<compile_context>
chip_gen: v5e
topology: v5e:2x2
jax: 0.10.0
libtpu: 0.0.40
codegen_flags: <defaults>
</compile_context>

<pallas_src>
import functools

import jax
import jax.numpy as jnp
from jax.experimental import pallas as pl
from jax.experimental.pallas import tpu as pltpu


# --------------------------------------------------------------------------
# Generation-aware tiling / VMEM budget
# --------------------------------------------------------------------------

def _vmem_budget():
    # v5e/v6e: 128 MiB physical -> 96 MiB scoped budget; v7x: 64 MiB -> 48 MiB.
    try:
        cap = pltpu.get_tpu_info().vmem_capacity_bytes
        return int(min(cap * 3 // 4, 96 * 1024 * 1024))
    except Exception:
        return 32 * 1024 * 1024   # conservative fallback known-good on all generations


_VMEM_LIMIT = _vmem_budget()

TM_PREF = 512     # row tile (multiple of 8)
TN_PREF = 512     # output-column tile (multiple of 128)
TK_PREF = 4096    # contraction tile: covers full K at ViT-B/L sizes -> no k grid axis
TH_PREF = 1024    # MLP hidden tile (multiple of 128), bounded for v7x's 64 MiB VMEM


def _tile(dim, pref, align):
    """Largest tile <= pref that divides dim and is align-aligned, else the full dim."""
    t = (min(pref, dim) // align) * align
    while t >= align:
        if dim % t == 0:
            return t
        t -= align
    return dim   # full-dim block is always legal


def _row_tile(dim, pref=TM_PREF):
    """Row (sublane) tile. Keeps >=2 row blocks for large dims so both v7x TensorCores
    get work on the 'parallel' axis without dropping below ~256 rows per block."""
    t = _tile(dim, pref, 8)
    if t == dim and dim >= 512:
        half = _tile(dim, dim // 2, 8)
        if half >= 256:
            t = half
    return t


# --------------------------------------------------------------------------
# Pallas kernels
# --------------------------------------------------------------------------

def _matmul_kernel(x_ref, w_ref, o_ref, acc_ref):
    k = pl.program_id(2)

    @pl.when(k == 0)
    def _():
        acc_ref[...] = jnp.zeros_like(acc_ref)

    acc_ref[...] += jnp.dot(x_ref[...], w_ref[...],
                            preferred_element_type=jnp.float32)

    @pl.when(k == pl.num_programs(2) - 1)
    def _():
        o_ref[...] = acc_ref[...].astype(o_ref.dtype)


def matmul(x, w, out_dtype=jnp.bfloat16):
    """Tiled x @ w (no bias). bf16 MXU inputs, f32 accumulation."""
    M, K = x.shape
    N = w.shape[1]
    tm = _row_tile(M)
    tn = _tile(N, TN_PREF, 128)
    tk = _tile(K, TK_PREF, 128)
    return pl.pallas_call(
        _matmul_kernel,
        out_shape=jax.ShapeDtypeStruct((M, N), out_dtype),
        grid_spec=pltpu.PrefetchScalarGridSpec(
            num_scalar_prefetch=0,
            grid=(M // tm, N // tn, K // tk),
            in_specs=[pl.BlockSpec((tm, tk), lambda i, j, k: (i, k)),
                      pl.BlockSpec((tk, tn), lambda i, j, k: (k, j))],
            out_specs=pl.BlockSpec((tm, tn), lambda i, j, k: (i, j)),
            scratch_shapes=[pltpu.VMEM((tm, tn), jnp.float32)]),
        compiler_params=pltpu.CompilerParams(
            dimension_semantics=("parallel", "parallel", "arbitrary"),
            vmem_limit_bytes=_VMEM_LIMIT),
    )(x, w)


def _linear_res_kernel(x_ref, w_ref, bias_ref, res_ref, o_ref, acc_ref):
    k = pl.program_id(2)

    @pl.when(k == 0)
    def _():
        acc_ref[...] = jnp.zeros_like(acc_ref)

    acc_ref[...] += jnp.dot(x_ref[...], w_ref[...],
                            preferred_element_type=jnp.float32)

    @pl.when(k == pl.num_programs(2) - 1)
    def _():
        o_ref[...] = (acc_ref[...] + bias_ref[...]
                      + res_ref[...].astype(jnp.float32)).astype(o_ref.dtype)


def linear_residual(x, w, b, res, out_dtype=jnp.bfloat16):
    """Fused: x @ w + b + res (attention out-projection + residual add)."""
    M, K = x.shape
    N = w.shape[1]
    tm = _row_tile(M)
    tn = _tile(N, TN_PREF, 128)
    tk = _tile(K, TK_PREF, 128)
    return pl.pallas_call(
        _linear_res_kernel,
        out_shape=jax.ShapeDtypeStruct((M, N), out_dtype),
        grid_spec=pltpu.PrefetchScalarGridSpec(
            num_scalar_prefetch=0,
            grid=(M // tm, N // tn, K // tk),
            in_specs=[pl.BlockSpec((tm, tk), lambda i, j, k: (i, k)),
                      pl.BlockSpec((tk, tn), lambda i, j, k: (k, j)),
                      pl.BlockSpec((1, tn), lambda i, j, k: (0, j)),
                      pl.BlockSpec((tm, tn), lambda i, j, k: (i, j))],
            out_specs=pl.BlockSpec((tm, tn), lambda i, j, k: (i, j)),
            scratch_shapes=[pltpu.VMEM((tm, tn), jnp.float32)]),
        compiler_params=pltpu.CompilerParams(
            dimension_semantics=("parallel", "parallel", "arbitrary"),
            vmem_limit_bytes=_VMEM_LIMIT),
    )(x, w, b.reshape(1, N), res)


def _ln_pos_kernel(x_ref, pos_ref, g_ref, b_ref, o_ref):
    x = x_ref[...].astype(jnp.float32) + pos_ref[...]     # fused pos-embedding add
    mu = jnp.mean(x, axis=-1, keepdims=True)
    xc = x - mu
    var = jnp.mean(xc * xc, axis=-1, keepdims=True)
    o_ref[...] = ((xc * jax.lax.rsqrt(var + 1e-5)) * g_ref[...]
                  + b_ref[...]).astype(o_ref.dtype)


def ln_pre_pos(x, pos_pad, g, b, *, n_pad, out_dtype=jnp.bfloat16):
    """Fused (tokens + positional embedding) -> LayerNorm (ln_pre)."""
    M, D = x.shape
    tm = _tile(n_pad, TM_PREF, 8)          # divides n_pad -> pos block wraps per batch
    npb = n_pad // tm
    return pl.pallas_call(
        _ln_pos_kernel,
        out_shape=jax.ShapeDtypeStruct((M, D), out_dtype),
        grid_spec=pltpu.PrefetchScalarGridSpec(
            num_scalar_prefetch=0,
            grid=(M // tm,),
            in_specs=[pl.BlockSpec((tm, D), lambda i: (i, 0)),
                      pl.BlockSpec((tm, D), lambda i: (i % npb, 0)),
                      pl.BlockSpec((1, D), lambda i: (0, 0)),
                      pl.BlockSpec((1, D), lambda i: (0, 0))],
            out_specs=pl.BlockSpec((tm, D), lambda i: (i, 0))),
        compiler_params=pltpu.CompilerParams(
            dimension_semantics=("parallel",),
            vmem_limit_bytes=_VMEM_LIMIT),
    )(x, pos_pad, g.reshape(1, D), b.reshape(1, D))


def _ln_linear_kernel(x_ref, g_ref, b_ref, w_ref, bias_ref, o_ref, xn_sc):
    j = pl.program_id(1)

    @pl.when(j == 0)                        # LN computed once per row tile, cached
    def _():
        x = x_ref[...].astype(jnp.float32)
        mu = jnp.mean(x, axis=-1, keepdims=True)
        xc = x - mu
        var = jnp.mean(xc * xc, axis=-1, keepdims=True)
        xn_sc[...] = ((xc * jax.lax.rsqrt(var + 1e-5)) * g_ref[...]
                      + b_ref[...]).astype(jnp.bfloat16)

    o_ref[...] = (jnp.dot(xn_sc[...], w_ref[...],
                          preferred_element_type=jnp.float32)
                  + bias_ref[...]).astype(o_ref.dtype)


def ln_linear(x, g, b, w, bias, out_dtype=jnp.bfloat16):
    """Fused LayerNorm + linear projection (LN1+QKV proj, ln_post+visual proj)."""
    M, D = x.shape
    N = w.shape[1]
    tm = _row_tile(M)
    tn = _tile(N, TN_PREF, 128)
    return pl.pallas_call(
        _ln_linear_kernel,
        out_shape=jax.ShapeDtypeStruct((M, N), out_dtype),
        grid_spec=pltpu.PrefetchScalarGridSpec(
            num_scalar_prefetch=0,
            grid=(M // tm, N // tn),
            in_specs=[pl.BlockSpec((tm, D), lambda i, j: (i, 0)),
                      pl.BlockSpec((1, D), lambda i, j: (0, 0)),
                      pl.BlockSpec((1, D), lambda i, j: (0, 0)),
                      pl.BlockSpec((D, tn), lambda i, j: (0, j)),
                      pl.BlockSpec((1, tn), lambda i, j: (0, j))],
            out_specs=pl.BlockSpec((tm, tn), lambda i, j: (i, j)),
            scratch_shapes=[pltpu.VMEM((tm, D), jnp.bfloat16)]),
        compiler_params=pltpu.CompilerParams(
            dimension_semantics=("parallel", "arbitrary"),
            vmem_limit_bytes=_VMEM_LIMIT),
    )(x, g.reshape(1, D), b.reshape(1, D), w, bias.reshape(1, N))


def _ln_mlp_kernel(x_ref, g_ref, b_ref, w1_ref, b1_ref, w2_ref, b2_ref,
                   o_ref, xn_sc, acc_sc):
    h = pl.program_id(1)

    @pl.when(h == 0)
    def _():
        x = x_ref[...].astype(jnp.float32)
        mu = jnp.mean(x, axis=-1, keepdims=True)
        xc = x - mu
        var = jnp.mean(xc * xc, axis=-1, keepdims=True)
        xn_sc[...] = ((xc * jax.lax.rsqrt(var + 1e-5)) * g_ref[...]
                      + b_ref[...]).astype(jnp.bfloat16)
        acc_sc[...] = jnp.zeros_like(acc_sc)

    hh = jnp.dot(xn_sc[...], w1_ref[...],
                 preferred_element_type=jnp.float32) + b1_ref[...]
    hh = hh * jax.nn.sigmoid(1.702 * hh)          # QuickGELU (OpenAI CLIP), f32
    acc_sc[...] += jnp.dot(hh.astype(jnp.bfloat16), w2_ref[...],
                           preferred_element_type=jnp.float32)

    @pl.when(h == pl.num_programs(1) - 1)
    def _():
        o_ref[...] = (acc_sc[...] + b2_ref[...]
                      + x_ref[...].astype(jnp.float32)).astype(o_ref.dtype)


def ln_mlp(x, g, b, w1, b1, w2, b2, out_dtype=jnp.bfloat16):
    """Fused LN2 + MLP(QuickGELU) + residual. Hidden dim tiled (bounds VMEM on v7x)."""
    M, D = x.shape
    Hd = w1.shape[1]
    tm = _row_tile(M)
    th = _tile(Hd, TH_PREF, 128)
    return pl.pallas_call(
        _ln_mlp_kernel,
        out_shape=jax.ShapeDtypeStruct((M, D), out_dtype),
        grid_spec=pltpu.PrefetchScalarGridSpec(
            num_scalar_prefetch=0,
            grid=(M // tm, Hd // th),
            in_specs=[pl.BlockSpec((tm, D), lambda i, h: (i, 0)),
                      pl.BlockSpec((1, D), lambda i, h: (0, 0)),
                      pl.BlockSpec((1, D), lambda i, h: (0, 0)),
                      pl.BlockSpec((D, th), lambda i, h: (0, h)),
                      pl.BlockSpec((1, th), lambda i, h: (0, h)),
                      pl.BlockSpec((th, D), lambda i, h: (h, 0)),
                      pl.BlockSpec((1, D), lambda i, h: (0, 0))],
            out_specs=pl.BlockSpec((tm, D), lambda i, h: (i, 0)),
            scratch_shapes=[pltpu.VMEM((tm, D), jnp.bfloat16),
                            pltpu.VMEM((tm, D), jnp.float32)]),
        compiler_params=pltpu.CompilerParams(
            dimension_semantics=("parallel", "arbitrary"),
            vmem_limit_bytes=_VMEM_LIMIT),
    )(x, g.reshape(1, D), b.reshape(1, D), w1, b1.reshape(1, Hd), w2,
      b2.reshape(1, D))


def _flash_attn_kernel(q_ref, k_ref, v_ref, o_ref, m_sc, l_sc, acc_sc,
                       *, hg, dh, n_tok, tkv, masked):
    ki = pl.program_id(3)

    @pl.when(ki == 0)
    def _():
        m_sc[...] = jnp.full_like(m_sc, -1e30)
        l_sc[...] = jnp.zeros_like(l_sc)
        acc_sc[...] = jnp.zeros_like(acc_sc)

    q_all = q_ref[...]          # (tq, hg*dh) bf16; softmax scale pre-folded into w_qkv
    k_all = k_ref[...]
    v_all = v_ref[...]

    if masked:                  # key-padding bias generated in-kernel (no mask DMA)
        kv_pos = ki * tkv + jax.lax.broadcasted_iota(jnp.int32, (1, tkv), 1)
        bias = jnp.where(kv_pos < n_tok, 0.0, -1e30)

    for h in range(hg):         # static per-head loop; heads never mix in a contraction
        sl = slice(h * dh, (h + 1) * dh)
        s = jax.lax.dot_general(q_all[:, sl], k_all[:, sl],
                                (((1,), (1,)), ((), ())),
                                preferred_element_type=jnp.float32)
        if masked:
            s = s + bias
        m_prev = m_sc[h]
        m_new = jnp.maximum(m_prev, jnp.max(s, axis=-1, keepdims=True))
        alpha = jnp.exp(m_prev - m_new)
        p = jnp.exp(s - m_new)
        l_sc[h] = alpha * l_sc[h] + jnp.sum(p, axis=-1, keepdims=True)
        acc_sc[h] = alpha * acc_sc[h] + jnp.dot(p.astype(v_all.dtype), v_all[:, sl],
                                                preferred_element_type=jnp.float32)
        m_sc[h] = m_new

    @pl.when(ki == pl.num_programs(3) - 1)
    def _():
        parts = [acc_sc[h] * pl.reciprocal(l_sc[h], approx=True) for h in range(hg)]
        out = parts[0] if hg == 1 else jnp.concatenate(parts, axis=-1)
        o_ref[...] = out.astype(o_ref.dtype)


def flash_attention(qkv, *, batch, n_pad, heads, dh, n_tok, out_dtype=jnp.bfloat16):
    """Flash-style MHA. Reads q/k/v slices of the [M, 3D] QKV activation and writes a
    head-concatenated [M, D] slab (no XLA transposes). Heads are grouped so each
    q/k/v/output block is 128 lanes wide (lane-dense stores, fuller MXU)."""
    M = batch * n_pad
    D = heads * dh
    hg = max(1, min(heads, 128 // max(dh, 1)))
    while heads % hg:
        hg -= 1
    gdh = hg * dh
    if gdh % 128 != 0:
        # TODO(synk): per-head lane-masked fallback for head dims not 128-groupable;
        # every real CLIP ViT (head_dim = 64) satisfies this.
        raise ValueError(f"head_dim * head_group = {gdh} must be a multiple of 128")
    n_groups = heads // hg
    tq = _tile(n_pad, TM_PREF, 8)
    tkv = _tile(n_pad, TN_PREF, 8)
    nq = n_pad // tq
    nkv = n_pad // tkv

    # TODO(synk): add pipeline_mode=pl.Buffered(3) on the k/v specs if profiling shows
    # exposed DMA at short per-step compute (small head_dim).
    q_spec = pl.BlockSpec((tq, gdh), lambda b, g, qi, ki: (b * nq + qi, g))
    k_spec = pl.BlockSpec((tkv, gdh), lambda b, g, qi, ki: (b * nkv + ki, n_groups + g))
    v_spec = pl.BlockSpec((tkv, gdh),
                          lambda b, g, qi, ki: (b * nkv + ki, 2 * n_groups + g))
    o_spec = pl.BlockSpec((tq, gdh), lambda b, g, qi, ki: (b * nq + qi, g))

    return pl.pallas_call(
        functools.partial(_flash_attn_kernel, hg=hg, dh=dh, n_tok=n_tok, tkv=tkv,
                          masked=(n_pad > n_tok)),
        out_shape=jax.ShapeDtypeStruct((M, D), out_dtype),
        grid_spec=pltpu.PrefetchScalarGridSpec(
            num_scalar_prefetch=0,
            grid=(batch, n_groups, nq, nkv),
            in_specs=[q_spec, k_spec, v_spec],
            out_specs=o_spec,
            scratch_shapes=[pltpu.VMEM((hg, tq, 1), jnp.float32),
                            pltpu.VMEM((hg, tq, 1), jnp.float32),
                            pltpu.VMEM((hg, tq, dh), jnp.float32)]),
        compiler_params=pltpu.CompilerParams(
            dimension_semantics=("parallel", "parallel", "parallel", "arbitrary"),
            vmem_limit_bytes=_VMEM_LIMIT),
    )(qkv, qkv, qkv)


def _head_kernel(feat_ref, w_ref, o_ref, *, scale):
    x = feat_ref[...].astype(jnp.float32)
    ssq = jnp.sum(x * x, axis=-1, keepdims=True)
    xn = x * jax.lax.rsqrt(jnp.maximum(ssq, 1e-24))       # == F.normalize (eps 1e-12)
    o_ref[...] = scale * jnp.dot(xn.astype(jnp.bfloat16), w_ref[...],
                                 preferred_element_type=jnp.float32)


def normalize_and_logits(img_feat, class_w_t, logit_scale):
    """Fused cosine-classifier head: L2-normalize + logit_scale * feat @ W^T.
    class_w_t is pre-normalized and pre-transposed [D, C] bf16."""
    B, _ = img_feat.shape
    C = class_w_t.shape[1]
    return pl.pallas_call(
        functools.partial(_head_kernel, scale=float(logit_scale)),
        in_specs=[pl.BlockSpec(memory_space=pltpu.MemorySpace.VMEM),
                  pl.BlockSpec(memory_space=pltpu.MemorySpace.VMEM)],
        out_specs=pl.BlockSpec(memory_space=pltpu.MemorySpace.VMEM),
        out_shape=jax.ShapeDtypeStruct((B, C), jnp.float32),
        compiler_params=pltpu.CompilerParams(vmem_limit_bytes=_VMEM_LIMIT),
    )(img_feat, class_w_t)


# --------------------------------------------------------------------------
# CLIP ViT visual encoder (glue in plain JAX, compute in Pallas kernels)
# --------------------------------------------------------------------------

def transformer_block(p, x2, *, batch, n_pad, heads, head_dim, n_tok):
    # fused LN1 + QKV projection (LN cached across output-column tiles)
    qkv = ln_linear(x2, p["ln1_g"], p["ln1_b"], p["w_qkv"], p["b_qkv"])   # [M, 3D] bf16
    # flash attention straight from the QKV slab into a head-concatenated [M, D] slab
    a = flash_attention(qkv, batch=batch, n_pad=n_pad, heads=heads,
                        dh=head_dim, n_tok=n_tok)
    # fused out-projection + residual
    x2 = linear_residual(a, p["w_o"], p["b_o"], x2)
    # fused LN2 + MLP(QuickGELU) + residual
    x2 = ln_mlp(x2, p["ln2_g"], p["ln2_b"], p["w_fc"], p["b_fc"],
                p["w_proj"], p["b_proj"])
    return x2


def clip_visual_encode(params, image_nchw):
    """CLIP VisionTransformer forward. image_nchw: [B, C, H, W] float32 -> [B, embed]."""
    B, C, H, W = image_nchw.shape
    P = params["patch_size"]
    D = params["width"]
    n_tok, n_pad = params["n_tok"], params["n_pad"]
    gh, gw = H // P, W // P
    n_patches = gh * gw

    # conv1 (stride = kernel = P, no bias) == im2col + tiled matmul; cast to bf16 BEFORE
    # the im2col transpose so XLA moves half the bytes (weight pre-hoisted at init).
    x = image_nchw.astype(jnp.bfloat16)
    x = x.reshape(B, C, gh, P, gw, P).transpose(0, 2, 4, 1, 3, 5)
    x = x.reshape(B * n_patches, C * P * P)
    x = matmul(x, params["w_patch"]).reshape(B, n_patches, D)

    # class token + pad tokens to a multiple of 8 (bf16, cheap); the positional
    # embedding add happens inside the ln_pre kernel.
    cls = jnp.broadcast_to(params["class_emb"].reshape(1, 1, D), (B, 1, D))
    tok = jnp.concatenate([cls.astype(jnp.bfloat16), x], axis=1)
    tok = jnp.pad(tok, ((0, 0), (0, n_pad - n_tok), (0, 0)))

    x2 = ln_pre_pos(tok.reshape(B * n_pad, D), params["pos_pad"],
                    params["ln_pre_g"], params["ln_pre_b"], n_pad=n_pad)

    for blk in params["blocks"]:
        x2 = transformer_block(blk, x2, batch=B, n_pad=n_pad, heads=params["heads"],
                               head_dim=params["head_dim"], n_tok=n_tok)

    # ln_post + visual projection, fused (cls token only)
    cls_tok = x2.reshape(B, n_pad, D)[:, 0, :]
    return ln_linear(cls_tok, params["ln_post_g"], params["ln_post_b"],
                     params["proj"], params["proj_b0"], out_dtype=jnp.float32)


def peft_model_forward(params, image, use_tuner=True, return_feature=False):
    """PeftModelFromCLIP.forward: image_encoder(image, tuner, head)."""
    # TODO(synk): ViT_Tuner (PEFT prompts/adapters) is cfg-dependent and not part of the
    # spec's forward math; use_tuner is accepted for signature parity (identity).
    del use_tuner
    feats = clip_visual_encode(params, image)
    if return_feature:
        return feats
    return normalize_and_logits(feats, params["class_w_t"], params["logit_scale"])


# --------------------------------------------------------------------------
# Deterministic parameter construction (synthetic "clip_model")
# --------------------------------------------------------------------------

def init_params(key, *, image_size=16, patch_size=4, in_ch=3, width=128,
                heads=2, layers=2, embed_dim=64, num_classes=8):
    n_patches = (image_size // patch_size) ** 2
    n_tok = n_patches + 1
    n_pad = ((n_tok + 7) // 8) * 8            # row axis only needs 8-alignment
    dh = width // heads
    s = 0.02
    keys = jax.random.split(key, 8 + layers)

    def nrm(k, shape, dtype=jnp.float32):
        return (s * jax.random.normal(k, shape)).astype(dtype)

    q_scale = float(dh) ** -0.5               # softmax scale folded into Q projection

    blocks = []
    for li in range(layers):
        bk = jax.random.split(keys[8 + li], 4)
        w_qkv = nrm(bk[0], (width, 3 * width))
        b_qkv = jnp.zeros((3 * width,), jnp.float32)
        w_qkv = w_qkv.at[:, :width].multiply(q_scale)
        b_qkv = b_qkv.at[:width].multiply(q_scale)
        blocks.append(dict(
            ln1_g=jnp.ones((width,), jnp.float32),
            ln1_b=jnp.zeros((width,), jnp.float32),
            w_qkv=w_qkv.astype(jnp.bfloat16),
            b_qkv=b_qkv,
            w_o=nrm(bk[1], (width, width), jnp.bfloat16),
            b_o=jnp.zeros((width,), jnp.float32),
            ln2_g=jnp.ones((width,), jnp.float32),
            ln2_b=jnp.zeros((width,), jnp.float32),
            w_fc=nrm(bk[2], (width, 4 * width), jnp.bfloat16),
            b_fc=jnp.zeros((4 * width,), jnp.float32),
            w_proj=nrm(bk[3], (4 * width, width), jnp.bfloat16),
            b_proj=jnp.zeros((width,), jnp.float32),
        ))

    # patch-embed conv weight, reshaped / transposed ONCE here (hoisted out of forward)
    conv1_w = nrm(keys[0], (width, in_ch, patch_size, patch_size))
    w_patch = conv1_w.reshape(width, in_ch * patch_size * patch_size).T.astype(jnp.bfloat16)

    # positional embedding, zero-padded on the token axis (add fused into ln_pre kernel)
    pos_emb = nrm(keys[2], (n_tok, width))
    pos_pad = jnp.zeros((n_pad, width), jnp.float32).at[:n_tok].set(pos_emb)

    # cosine-classifier class weights: pre-normalized, pre-transposed [D, C], bf16
    tf = jax.random.normal(keys[6], (num_classes, embed_dim)).astype(jnp.float32)
    tf = tf / jnp.maximum(jnp.linalg.norm(tf, axis=-1, keepdims=True), 1e-12)
    class_w_t = tf.T.astype(jnp.bfloat16)

    return dict(
        patch_size=patch_size, width=width, heads=heads, head_dim=dh,
        n_tok=n_tok, n_pad=n_pad,
        w_patch=w_patch,
        class_emb=nrm(keys[1], (width,)),
        pos_pad=pos_pad,
        ln_pre_g=jnp.ones((width,), jnp.float32),
        ln_pre_b=jnp.zeros((width,), jnp.float32),
        blocks=blocks,
        ln_post_g=jnp.ones((width,), jnp.float32),
        ln_post_b=jnp.zeros((width,), jnp.float32),
        proj=nrm(keys[3], (width, embed_dim), jnp.bfloat16),
        proj_b0=jnp.zeros((embed_dim,), jnp.float32),
        class_w_t=class_w_t,
        logit_scale=float(1.0 / 0.07),        # clip_model.logit_scale.exp()
    )


# --------------------------------------------------------------------------

if __name__ == "__main__":
    key = jax.random.PRNGKey(0)
    pkey, ikey = jax.random.split(key)
    params = init_params(pkey)

    # NCHW image input, like the PyTorch module.
    image = jax.random.normal(ikey, (2, 3, 16, 16), dtype=jnp.float32)

    fwd = jax.jit(lambda img: peft_model_forward(params, img))
    logits = fwd(image)
    jax.block_until_ready(logits)

    assert logits.shape == (2, 8)
    assert bool(jnp.all(jnp.isfinite(logits)))
    print("KERNEL_OK")
</pallas_src>

<mosaic_0001>
module attributes {stable_mosaic.version = 11 : i64} {
  func.func @_matmul_kernel(%arg0: i32, %arg1: i32, %arg2: i32, %arg3: memref<32x48xbf16, #tpu.memory_space<vmem>>, %arg4: memref<48x128xbf16, #tpu.memory_space<vmem>>, %arg5: memref<32x128xbf16, #tpu.memory_space<vmem>>, %arg6: memref<32x128xf32, #tpu.memory_space<vmem>>) attributes {dimension_semantics = [#tpu.dimension_semantics<parallel>, #tpu.dimension_semantics<parallel>, #tpu.dimension_semantics<arbitrary>], iteration_bounds = array<i64: 1, 1, 1>, scalar_prefetch = 0 : i64, scratch_operands = 1 : i64, tpu.core_type = #tpu.core_type<tc>, window_params = [{transform_indices = @transform_0, window_bounds = array<i64: 32, 48>}, {transform_indices = @transform_1, window_bounds = array<i64: 48, 128>}, {transform_indices = @transform_2, window_bounds = array<i64: 32, 128>}]} {
    %c0_i32 = arith.constant 0 : i32
    %0 = arith.cmpi eq, %arg2, %c0_i32 : i32
    %1 = arith.extui %0 : i1 to i32
    %c0_i32_0 = arith.constant 0 : i32
    %2 = arith.cmpi ne, %1, %c0_i32_0 : i32
    scf.if %2 {
      %cst_10 = arith.constant 0.000000e+00 : f32
      %12 = vector.broadcast %cst_10 : f32 to vector<32x128xf32>
      %c0_11 = arith.constant 0 : index
      %c0_12 = arith.constant 0 : index
      %13 = vector.load %arg6[%c0_11, %c0_12] : memref<32x128xf32, #tpu.memory_space<vmem>>, vector<32x128xf32>
      tpu.vector_store %arg6[%c0_11, %c0_12], %12 {strides = array<i32>} : memref<32x128xf32, #tpu.memory_space<vmem>>, vector<32x128xf32>,
    } else {
    }
    %c0 = arith.constant 0 : index
    %c0_1 = arith.constant 0 : index
    %3 = vector.load %arg6[%c0, %c0_1] : memref<32x128xf32, #tpu.memory_space<vmem>>, vector<32x128xf32>
    %c0_2 = arith.constant 0 : index
    %c0_3 = arith.constant 0 : index
    %4 = vector.load %arg3[%c0_2, %c0_3] : memref<32x48xbf16, #tpu.memory_space<vmem>>, vector<32x48xbf16>
    %c0_4 = arith.constant 0 : index
    %c0_5 = arith.constant 0 : index
    %5 = vector.load %arg4[%c0_4, %c0_5] : memref<48x128xbf16, #tpu.memory_space<vmem>>, vector<48x128xbf16>
    %cst = arith.constant dense<0.000000e+00> : vector<32x128xf32>
    %6 = tpu.matmul %4, %5, %cst {dimension_numbers = #tpu.dot_dimension_numbers<[1], [0], [0], [1], [0, 0, 1, 1], [], []>} : vector<32x48xbf16>, vector<48x128xbf16>, vector<32x128xf32> -> vector<32x128xf32>
    %7 = arith.addf %3, %6 : vector<32x128xf32>
    %c0_6 = arith.constant 0 : index
    %c0_7 = arith.constant 0 : index
    %8 = vector.load %arg6[%c0_6, %c0_7] : memref<32x128xf32, #tpu.memory_space<vmem>>, vector<32x128xf32>
    tpu.vector_store %arg6[%c0_6, %c0_7], %7 {strides = array<i32>} : memref<32x128xf32, #tpu.memory_space<vmem>>, vector<32x128xf32>,
    %c0_i32_8 = arith.constant 0 : i32
    %9 = arith.cmpi eq, %arg2, %c0_i32_8 : i32
    %10 = arith.extui %9 : i1 to i32
    %c0_i32_9 = arith.constant 0 : i32
    %11 = arith.cmpi ne, %10, %c0_i32_9 : i32
    scf.if %11 {
      %c0_10 = arith.constant 0 : index
      %c0_11 = arith.constant 0 : index
      %12 = vector.load %arg6[%c0_10, %c0_11] : memref<32x128xf32, #tpu.memory_space<vmem>>, vector<32x128xf32>
      %13 = arith.truncf %12 : vector<32x128xf32> to vector<32x128xbf16>
      %c0_12 = arith.constant 0 : index
      %c0_13 = arith.constant 0 : index
      %14 = vector.load %arg5[%c0_12, %c0_13] : memref<32x128xbf16, #tpu.memory_space<vmem>>, vector<32x128xbf16>
      tpu.vector_store %arg5[%c0_12, %c0_13], %13 {strides = array<i32>} : memref<32x128xbf16, #tpu.memory_space<vmem>>, vector<32x128xbf16>,
    } else {
    }
    return
  }
  func.func @transform_0(%arg0: i32, %arg1: i32, %arg2: i32) -> (i32, i32) {
    %c0_i32 = arith.constant 0 : i32
    return %arg0, %arg2 : i32, i32
  }
  func.func @transform_1(%arg0: i32, %arg1: i32, %arg2: i32) -> (i32, i32) {
    %c0_i32 = arith.constant 0 : i32
    return %arg2, %arg1 : i32, i32
  }
  func.func @transform_2(%arg0: i32, %arg1: i32, %arg2: i32) -> (i32, i32) {
    %c0_i32 = arith.constant 0 : i32
    return %arg0, %arg1 : i32, i32
  }
}

module attributes {stable_mosaic.version = 11 : i64} {
  func.func @_ln_linear_kernel(%arg0: i32, %arg1: i32, %arg2: memref<48x128xbf16, #tpu.memory_space<vmem>>, %arg3: memref<1x128xf32, #tpu.memory_space<vmem>>, %arg4: memref<1x128xf32, #tpu.memory_space<vmem>>, %arg5: memref<128x384xbf16, #tpu.memory_space<vmem>>, %arg6: memref<1x384xf32, #tpu.memory_space<vmem>>, %arg7: memref<48x384xbf16, #tpu.memory_space<vmem>>, %arg8: memref<48x128xbf16, #tpu.memory_space<vmem>>) attributes {dimension_semantics = [#tpu.dimension_semantics<parallel>, #tpu.dimension_semantics<arbitrary>], iteration_bounds = array<i64: 1, 1>, scalar_prefetch = 0 : i64, scratch_operands = 1 : i64, tpu.core_type = #tpu.core_type<tc>, window_params = [{transform_indices = @transform_0, window_bounds = array<i64: 48, 128>}, {pipeline_mode = #tpu.pipeline_mode<synchronous>, transform_indices = @transform_1, window_bounds = array<i64: 1, 128>}, {pipeline_mode = #tpu.pipeline_mode<synchronous>, transform_indices = @transform_2, window_bounds = array<i64: 1, 128>}, {transform_indices = @transform_3, window_bounds = array<i64: 128, 384>}, {transform_indices = @transform_4, window_bounds = array<i64: 1, 384>}, {transform_indices = @transform_5, window_bounds = array<i64: 48, 384>}]} {
    %c0_i32 = arith.constant 0 : i32
    %0 = arith.cmpi eq, %arg1, %c0_i32 : i32
    %1 = arith.extui %0 : i1 to i32
    %c0_i32_0 = arith.constant 0 : i32
    %2 = arith.cmpi ne, %1, %c0_i32_0 : i32
    scf.if %2 {
      %c0_8 = arith.constant 0 : index
      %c0_9 = arith.constant 0 : index
      %11 = vector.load %arg2[%c0_8, %c0_9] : memref<48x128xbf16, #tpu.memory_space<vmem>>, vector<48x128xbf16>
      %12 = arith.extf %11 : vector<48x128xbf16> to vector<48x128xf32>
      %cst_10 = arith.constant dense<0.000000e+00> : vector<48xf32>
      %13 = vector.multi_reduction <add>, %12, %cst_10 [1] : vector<48x128xf32> to vector<48xf32>
      %14 = vector.shape_cast %13 : vector<48xf32> to vector<48x1xf32>
      %cst_11 = arith.constant 1.280000e+02 : f32
      %15 = vector.broadcast %cst_11 : f32 to vector<48x1xf32>
      %16 = arith.divf %14, %15 : vector<48x1xf32>
      %17 = vector.broadcast %16 : vector<48x1xf32> to vector<48x128xf32>
      %18 = arith.subf %12, %17 : vector<48x128xf32>
      %19 = arith.mulf %18, %18 : vector<48x128xf32>
      %cst_12 = arith.constant dense<0.000000e+00> : vector<48xf32>
      %20 = vector.multi_reduction <add>, %19, %cst_12 [1] : vector<48x128xf32> to vector<48xf32>
      %21 = vector.shape_cast %20 : vector<48xf32> to vector<48x1xf32>
      %cst_13 = arith.constant 1.280000e+02 : f32
      %22 = vector.broadcast %cst_13 : f32 to vector<48x1xf32>
      %23 = arith.divf %21, %22 : vector<48x1xf32>
      %cst_14 = arith.constant 9.99999974E-6 : f32
      %24 = vector.broadcast %cst_14 : f32 to vector<48x1xf32>
      %25 = arith.addf %23, %24 : vector<48x1xf32>
      %26 = math.rsqrt %25 : vector<48x1xf32>
      %27 = vector.broadcast %26 : vector<48x1xf32> to vector<48x128xf32>
      %28 = arith.mulf %18, %27 : vector<48x128xf32>
      %c0_15 = arith.constant 0 : index
      %c0_16 = arith.constant 0 : index
      %29 = vector.load %arg3[%c0_15, %c0_16] : memref<1x128xf32, #tpu.memory_space<vmem>>, vector<1x128xf32>
      %30 = vector.broadcast %29 : vector<1x128xf32> to vector<48x128xf32>
      %31 = arith.mulf %28, %30 : vector<48x128xf32>
      %c0_17 = arith.constant 0 : index
      %c0_18 = arith.constant 0 : index
      %32 = vector.load %arg4[%c0_17, %c0_18] : memref<1x128xf32, #tpu.memory_space<vmem>>, vector<1x128xf32>
      %33 = vector.broadcast %32 : vector<1x128xf32> to vector<48x128xf32>
      %34 = arith.addf %31, %33 : vector<48x128xf32>
      %35 = arith.truncf %34 : vector<48x128xf32> to vector<48x128xbf16>
      %c0_19 = arith.constant 0 : index
      %c0_20 = arith.constant 0 : index
      %36 = vector.load %arg8[%c0_19, %c0_20] : memref<48x128xbf16, #tpu.memory_space<vmem>>, vector<48x128xbf16>
      tpu.vector_store %arg8[%c0_19, %c0_20], %35 {strides = array<i32>} : memref<48x128xbf16, #tpu.memory_space<vmem>>, vector<48x128xbf16>,
    } else {
    }
    %c0 = arith.constant 0 : index
    %c0_1 = arith.constant 0 : index
    %3 = vector.load %arg8[%c0, %c0_1] : memref<48x128xbf16, #tpu.memory_space<vmem>>, vector<48x128xbf16>
    %c0_2 = arith.constant 0 : index
    %c0_3 = arith.constant 0 : index
    %4 = vector.load %arg5[%c0_2, %c0_3] : memref<128x384xbf16, #tpu.memory_space<vmem>>, vector<128x384xbf16>
    %cst = arith.constant dense<0.000000e+00> : vector<48x384xf32>
    %5 = tpu.matmul %3, %4, %cst {dimension_numbers = #tpu.dot_dimension_numbers<[1], [0], [0], [1], [0, 0, 1, 1], [], []>} : vector<48x128xbf16>, vector<128x384xbf16>, vector<48x384xf32> -> vector<48x384xf32>
    %c0_4 = arith.constant 0 : index
    %c0_5 = arith.constant 0 : index
    %6 = vector.load %arg6[%c0_4, %c0_5] : memref<1x384xf32, #tpu.memory_space<vmem>>, vector<1x384xf32>
    %7 = vector.broadcast %6 : vector<1x384xf32> to vector<48x384xf32>
    %8 = arith.addf %5, %7 : vector<48x384xf32>
    %9 = arith.truncf %8 : vector<48x384xf32> to vector<48x384xbf16>
    %c0_6 = arith.constant 0 : index
    %c0_7 = arith.constant 0 : index
    %10 = vector.load %arg7[%c0_6, %c0_7] : memref<48x384xbf16, #tpu.memory_space<vmem>>, vector<48x384xbf16>
    tpu.vector_store %arg7[%c0_6, %c0_7], %9 {strides = array<i32>} : memref<48x384xbf16, #tpu.memory_space<vmem>>, vector<48x384xbf16>,
    return
  }
  func.func @transform_0(%arg0: i32, %arg1: i32) -> (i32, i32) {
    %c0_i32 = arith.constant 0 : i32
    %c0_i32_0 = arith.constant 0 : i32
    return %arg0, %c0_i32 : i32, i32
  }
  func.func @transform_1(%arg0: i32, %arg1: i32) -> (i32, i32) {
    %c0_i32 = arith.constant 0 : i32
    %c0_i32_0 = arith.constant 0 : i32
    %c0_i32_1 = arith.constant 0 : i32
    return %c0_i32, %c0_i32_0 : i32, i32
  }
  func.func @transform_2(%arg0: i32, %arg1: i32) -> (i32, i32) {
    %c0_i32 = arith.constant 0 : i32
    %c0_i32_0 = arith.constant 0 : i32
    %c0_i32_1 = arith.constant 0 : i32
    return %c0_i32, %c0_i32_0 : i32, i32
  }
  func.func @transform_3(%arg0: i32, %arg1: i32) -> (i32, i32) {
    %c0_i32 = arith.constant 0 : i32
    %c0_i32_0 = arith.constant 0 : i32
    return %c0_i32, %arg1 : i32, i32
  }
  func.func @transform_4(%arg0: i32, %arg1: i32) -> (i32, i32) {
    %c0_i32 = arith.constant 0 : i32
    %c0_i32_0 = arith.constant 0 : i32
    return %c0_i32, %arg1 : i32, i32
  }
  func.func @transform_5(%arg0: i32, %arg1: i32) -> (i32, i32) {
    %c0_i32 = arith.constant 0 : i32
    return %arg0, %arg1 : i32, i32
  }
}

module attributes {stable_mosaic.version = 11 : i64} {
  func.func @_ln_pos_kernel(%arg0: i32, %arg1: memref<24x128xbf16, #tpu.memory_space<vmem>>, %arg2: memref<24x128xf32, #tpu.memory_space<vmem>>, %arg3: memref<1x128xf32, #tpu.memory_space<vmem>>, %arg4: memref<1x128xf32, #tpu.memory_space<vmem>>, %arg5: memref<24x128xbf16, #tpu.memory_space<vmem>>) attributes {dimension_semantics = [#tpu.dimension_semantics<parallel>], iteration_bounds = array<i64: 2>, scalar_prefetch = 0 : i64, scratch_operands = 0 : i64, tpu.core_type = #tpu.core_type<tc>, window_params = [{transform_indices = @transform_0, window_bounds = array<i64: 24, 128>}, {transform_indices = @transform_1, window_bounds = array<i64: 24, 128>}, {pipeline_mode = #tpu.pipeline_mode<synchronous>, transform_indices = @transform_2, window_bounds = array<i64: 1, 128>}, {pipeline_mode = #tpu.pipeline_mode<synchronous>, transform_indices = @transform_3, window_bounds = array<i64: 1, 128>}, {transform_indices = @transform_4, window_bounds = array<i64: 24, 128>}]} {
    %c0 = arith.constant 0 : index
    %c0_0 = arith.constant 0 : index
    %0 = vector.load %arg1[%c0, %c0_0] : memref<24x128xbf16, #tpu.memory_space<vmem>>, vector<24x128xbf16>
    %1 = arith.extf %0 : vector<24x128xbf16> to vector<24x128xf32>
    %c0_1 = arith.constant 0 : index
    %c0_2 = arith.constant 0 : index
    %2 = vector.load %arg2[%c0_1, %c0_2] : memref<24x128xf32, #tpu.memory_space<vmem>>, vector<24x128xf32>
    %3 = arith.addf %1, %2 : vector<24x128xf32>
    %cst = arith.constant dense<0.000000e+00> : vector<24xf32>
    %4 = vector.multi_reduction <add>, %3, %cst [1] : vector<24x128xf32> to vector<24xf32>
    %5 = vector.shape_cast %4 : vector<24xf32> to vector<24x1xf32>
    %cst_3 = arith.constant 1.280000e+02 : f32
    %6 = vector.broadcast %cst_3 : f32 to vector<24x1xf32>
    %7 = arith.divf %5, %6 : vector<24x1xf32>
    %8 = vector.broadcast %7 : vector<24x1xf32> to vector<24x128xf32>
    %9 = arith.subf %3, %8 : vector<24x128xf32>
    %10 = arith.mulf %9, %9 : vector<24x128xf32>
    %cst_4 = arith.constant dense<0.000000e+00> : vector<24xf32>
    %11 = vector.multi_reduction <add>, %10, %cst_4 [1] : vector<24x128xf32> to vector<24xf32>
    %12 = vector.shape_cast %11 : vector<24xf32> to vector<24x1xf32>
    %cst_5 = arith.constant 1.280000e+02 : f32
    %13 = vector.broadcast %cst_5 : f32 to vector<24x1xf32>
    %14 = arith.divf %12, %13 : vector<24x1xf32>
    %cst_6 = arith.constant 9.99999974E-6 : f32
    %15 = vector.broadcast %cst_6 : f32 to vector<24x1xf32>
    %16 = arith.addf %14, %15 : vector<24x1xf32>
    %17 = math.rsqrt %16 : vector<24x1xf32>
    %18 = vector.broadcast %17 : vector<24x1xf32> to vector<24x128xf32>
    %19 = arith.mulf %9, %18 : vector<24x128xf32>
    %c0_7 = arith.constant 0 : index
    %c0_8 = arith.constant 0 : index
    %20 = vector.load %arg3[%c0_7, %c0_8] : memref<1x128xf32, #tpu.memory_space<vmem>>, vector<1x128xf32>
    %21 = vector.broadcast %20 : vector<1x128xf32> to vector<24x128xf32>
    %22 = arith.mulf %19, %21 : vector<24x128xf32>
    %c0_9 = arith.constant 0 : index
    %c0_10 = arith.constant 0 : index
    %23 = vector.load %arg4[%c0_9, %c0_10] : memref<1x128xf32, #tpu.memory_space<vmem>>, vector<1x128xf32>
    %24 = vector.broadcast %23 : vector<1x128xf32> to vector<24x128xf32>
    %25 = arith.addf %22, %24 : vector<24x128xf32>
    %26 = arith.truncf %25 : vector<24x128xf32> to vector<24x128xbf16>
    %c0_11 = arith.constant 0 : index
    %c0_12 = arith.constant 0 : index
    %27 = vector.load %arg5[%c0_11, %c0_12] : memref<24x128xbf16, #tpu.memory_space<vmem>>, vector<24x128xbf16>
    tpu.vector_store %arg5[%c0_11, %c0_12], %26 {strides = array<i32>} : memref<24x128xbf16, #tpu.memory_space<vmem>>, vector<24x128xbf16>,
    return
  }
  func.func @transform_0(%arg0: i32) -> (i32, i32) {
    %c0_i32 = arith.constant 0 : i32
    %c0_i32_0 = arith.constant 0 : i32
    return %arg0, %c0_i32 : i32, i32
  }
  func.func @transform_1(%arg0: i32) -> (i32, i32) {
    %c1_i32 = arith.constant 1 : i32
    %c0_i32 = arith.constant 0 : i32
    %0 = arith.cmpi eq, %c1_i32, %c0_i32 : i32
    %c1_i32_0 = arith.constant 1 : i32
    %1 = arith.select %0, %c1_i32_0, %c1_i32 : i32
    %2 = arith.remsi %arg0, %1 : i32
    %c0_i32_1 = arith.constant 0 : i32
    %3 = arith.cmpi ne, %2, %c0_i32_1 : i32
    %c0_i32_2 = arith.constant 0 : i32
    %4 = arith.cmpi slt, %2, %c0_i32_2 : i32
    %c0_i32_3 = arith.constant 0 : i32
    %5 = arith.cmpi slt, %1, %c0_i32_3 : i32
    %6 = arith.xori %4, %5 : i1
    %7 = arith.andi %6, %3 : i1
    %8 = arith.addi %2, %1 : i32
    %9 = arith.select %7, %8, %2 : i32
    %c0_i32_4 = arith.constant 0 : i32
    %c0_i32_5 = arith.constant 0 : i32
    return %9, %c0_i32_4 : i32, i32
  }
  func.func @transform_2(%arg0: i32) -> (i32, i32) {
    %c0_i32 = arith.constant 0 : i32
    %c0_i32_0 = arith.constant 0 : i32
    %c0_i32_1 = arith.constant 0 : i32
    return %c0_i32, %c0_i32_0 : i32, i32
  }
  func.func @transform_3(%arg0: i32) -> (i32, i32) {
    %c0_i32 = arith.constant 0 : i32
    %c0_i32_0 = arith.constant 0 : i32
    %c0_i32_1 = arith.constant 0 : i32
    return %c0_i32, %c0_i32_0 : i32, i32
  }
  func.func @transform_4(%arg0: i32) -> (i32, i32) {
    %c0_i32 = arith.constant 0 : i32
    %c0_i32_0 = arith.constant 0 : i32
    return %arg0, %c0_i32 : i32, i32
  }
}

module attributes {stable_mosaic.version = 11 : i64} {
  func.func @_flash_attn_kernel(%arg0: i32, %arg1: i32, %arg2: i32, %arg3: i32, %arg4: memref<24x128xbf16, #tpu.memory_space<vmem>>, %arg5: memref<24x128xbf16, #tpu.memory_space<vmem>>, %arg6: memref<24x128xbf16, #tpu.memory_space<vmem>>, %arg7: memref<24x128xbf16, #tpu.memory_space<vmem>>, %arg8: memref<2x24x1xf32, #tpu.memory_space<vmem>>, %arg9: memref<2x24x1xf32, #tpu.memory_space<vmem>>, %arg10: memref<2x24x64xf32, #tpu.memory_space<vmem>>) attributes {dimension_semantics = [#tpu.dimension_semantics<parallel>, #tpu.dimension_semantics<parallel>, #tpu.dimension_semantics<parallel>, #tpu.dimension_semantics<arbitrary>], iteration_bounds = array<i64: 2, 1, 1, 1>, scalar_prefetch = 0 : i64, scratch_operands = 3 : i64, tpu.core_type = #tpu.core_type<tc>, window_params = [{transform_indices = @transform_0, window_bounds = array<i64: 24, 128>}, {transform_indices = @transform_1, window_bounds = array<i64: 24, 128>}, {transform_indices = @transform_2, window_bounds = array<i64: 24, 128>}, {transform_indices = @transform_3, window_bounds = array<i64: 24, 128>}]} {
    %c0_i32 = arith.constant 0 : i32
    %0 = arith.cmpi eq, %arg3, %c0_i32 : i32
    %1 = arith.extui %0 : i1 to i32
    %c0_i32_0 = arith.constant 0 : i32
    %2 = arith.cmpi ne, %1, %c0_i32_0 : i32
    scf.if %2 {
      %cst_52 = arith.constant -1.000000e+30 : f32
      %94 = vector.broadcast %cst_52 : f32 to vector<2x24x1xf32>
      %c0_53 = arith.constant 0 : index
      %c0_54 = arith.constant 0 : index
      %c0_55 = arith.constant 0 : index
      %95 = vector.load %arg8[%c0_53, %c0_54, %c0_55] : memref<2x24x1xf32, #tpu.memory_space<vmem>>, vector<2x24x1xf32>
      tpu.vector_store %arg8[%c0_53, %c0_54, %c0_55], %94 {strides = array<i32>} : memref<2x24x1xf32, #tpu.memory_space<vmem>>, vector<2x24x1xf32>,
      %cst_56 = arith.constant 0.000000e+00 : f32
      %96 = vector.broadcast %cst_56 : f32 to vector<2x24x1xf32>
      %c0_57 = arith.constant 0 : index
      %c0_58 = arith.constant 0 : index
      %c0_59 = arith.constant 0 : index
      %97 = vector.load %arg9[%c0_57, %c0_58, %c0_59] : memref<2x24x1xf32, #tpu.memory_space<vmem>>, vector<2x24x1xf32>
      tpu.vector_store %arg9[%c0_57, %c0_58, %c0_59], %96 {strides = array<i32>} : memref<2x24x1xf32, #tpu.memory_space<vmem>>, vector<2x24x1xf32>,
      %cst_60 = arith.constant 0.000000e+00 : f32
      %98 = vector.broadcast %cst_60 : f32 to vector<2x24x64xf32>
      %c0_61 = arith.constant 0 : index
      %c0_62 = arith.constant 0 : index
      %c0_63 = arith.constant 0 : index
      %99 = vector.load %arg10[%c0_61, %c0_62, %c0_63] : memref<2x24x64xf32, #tpu.memory_space<vmem>>, vector<2x24x64xf32>
      tpu.vector_store %arg10[%c0_61, %c0_62, %c0_63], %98 {strides = array<i32>} : memref<2x24x64xf32, #tpu.memory_space<vmem>>, vector<2x24x64xf32>,
    } else {
    }
    %c0 = arith.constant 0 : index
    %c0_1 = arith.constant 0 : index
    %3 = vector.load %arg4[%c0, %c0_1] : memref<24x128xbf16, #tpu.memory_space<vmem>>, vector<24x128xbf16>
    %c0_2 = arith.constant 0 : index
    %c0_3 = arith.constant 0 : index
    %4 = vector.load %arg5[%c0_2, %c0_3] : memref<24x128xbf16, #tpu.memory_space<vmem>>, vector<24x128xbf16>
    %c0_4 = arith.constant 0 : index
    %c0_5 = arith.constant 0 : index
    %5 = vector.load %arg6[%c0_4, %c0_5] : memref<24x128xbf16, #tpu.memory_space<vmem>>, vector<24x128xbf16>
    %c24_i32 = arith.constant 24 : i32
    %6 = arith.muli %arg3, %c24_i32 : i32
    %7 = tpu.iota {dimensions = array<i32: 1>} : vector<1x24xi32>
    %8 = vector.broadcast %6 : i32 to vector<1x24xi32>
    %9 = arith.addi %8, %7 : vector<1x24xi32>
    %c17_i32 = arith.constant 17 : i32
    %10 = vector.broadcast %c17_i32 : i32 to vector<1x24xi32>
    %11 = arith.cmpi slt, %9, %10 : vector<1x24xi32>
    %cst = arith.constant 0.000000e+00 : f32
    %cst_6 = arith.constant -1.000000e+30 : f32
    %12 = vector.broadcast %cst : f32 to vector<1x24xf32>
    %13 = vector.broadcast %cst_6 : f32 to vector<1x24xf32>
    %14 = arith.select %11, %12, %13 : vector<1x24xi1>, vector<1x24xf32>
    %15 = vector.extract_strided_slice %3 {offsets = [0, 0], sizes = [24, 64], strides = [1, 1]} : vector<24x128xbf16> to vector<24x64xbf16>
    %16 = vector.extract_strided_slice %4 {offsets = [0, 0], sizes = [24, 64], strides = [1, 1]} : vector<24x128xbf16> to vector<24x64xbf16>
    %cst_7 = arith.constant dense<0.000000e+00> : vector<24x24xf32>
    %17 = tpu.matmul %15, %16, %cst_7 {dimension_numbers = #tpu.dot_dimension_numbers<[1], [1], [0], [0], [0, 0, 1, 0], [], []>} : vector<24x64xbf16>, vector<24x64xbf16>, vector<24x24xf32> -> vector<24x24xf32>
    %18 = vector.broadcast %14 : vector<1x24xf32> to vector<24x24xf32>
    %19 = arith.addf %17, %18 : vector<24x24xf32>
    %c0_8 = arith.constant 0 : index
    %c0_9 = arith.constant 0 : index
    %c0_10 = arith.constant 0 : index
    %20 = vector.load %arg8[%c0_8, %c0_9, %c0_10] : memref<2x24x1xf32, #tpu.memory_space<vmem>>, vector<1x24x1xf32>
    %21 = vector.shape_cast %20 : vector<1x24x1xf32> to vector<24x1xf32>
    %cst_11 = arith.constant dense<0xFF800000> : vector<24xf32>
    %22 = vector.multi_reduction <maximumf>, %19, %cst_11 [1] : vector<24x24xf32> to vector<24xf32>
    %23 = vector.shape_cast %22 : vector<24xf32> to vector<24x1xf32>
    %24 = arith.maximumf %21, %23 : vector<24x1xf32>
    %25 = arith.subf %21, %24 : vector<24x1xf32>
    %26 = math.exp %25 : vector<24x1xf32>
    %27 = vector.broadcast %24 : vector<24x1xf32> to vector<24x24xf32>
    %28 = arith.subf %19, %27 : vector<24x24xf32>
    %29 = math.exp %28 : vector<24x24xf32>
    %c0_12 = arith.constant 0 : index
    %c0_13 = arith.constant 0 : index
    %c0_14 = arith.constant 0 : index
    %30 = vector.load %arg9[%c0_12, %c0_13, %c0_14] : memref<2x24x1xf32, #tpu.memory_space<vmem>>, vector<1x24x1xf32>
    %31 = vector.shape_cast %30 : vector<1x24x1xf32> to vector<24x1xf32>
    %32 = arith.mulf %26, %31 : vector<24x1xf32>
    %cst_15 = arith.constant dense<0.000000e+00> : vector<24xf32>
    %33 = vector.multi_reduction <add>, %29, %cst_15 [1] : vector<24x24xf32> to vector<24xf32>
    %34 = vector.shape_cast %33 : vector<24xf32> to vector<24x1xf32>
    %35 = arith.addf %32, %34 : vector<24x1xf32>
    %c0_16 = arith.constant 0 : index
    %c0_17 = arith.constant 0 : index
    %c0_18 = arith.constant 0 : index
    %36 = vector.load %arg9[%c0_16, %c0_17, %c0_18] : memref<2x24x1xf32, #tpu.memory_space<vmem>>, vector<1x24x1xf32>
    %37 = vector.shape_cast %36 : vector<1x24x1xf32> to vector<24x1xf32>
    %38 = vector.shape_cast %35 : vector<24x1xf32> to vector<1x24x1xf32>
    tpu.vector_store %arg9[%c0_16, %c0_17, %c0_18], %38 {strides = array<i32>} : memref<2x24x1xf32, #tpu.memory_space<vmem>>, vector<1x24x1xf32>,
    %c0_19 = arith.constant 0 : index
    %c0_20 = arith.constant 0 : index
    %c0_21 = arith.constant 0 : index
    %39 = vector.load %arg10[%c0_19, %c0_20, %c0_21] : memref<2x24x64xf32, #tpu.memory_space<vmem>>, vector<1x24x64xf32>
    %40 = vector.shape_cast %39 : vector<1x24x64xf32> to vector<24x64xf32>
    %41 = vector.broadcast %26 : vector<24x1xf32> to vector<24x64xf32>
    %42 = arith.mulf %41, %40 : vector<24x64xf32>
    %43 = arith.truncf %29 : vector<24x24xf32> to vector<24x24xbf16>
    %44 = vector.extract_strided_slice %5 {offsets = [0, 0], sizes = [24, 64], strides = [1, 1]} : vector<24x128xbf16> to vector<24x64xbf16>
    %cst_22 = arith.constant dense<0.000000e+00> : vector<24x64xf32>
    %45 = tpu.matmul %43, %44, %cst_22 {dimension_numbers = #tpu.dot_dimension_numbers<[1], [0], [0], [1], [0, 0, 1, 1], [], []>} : vector<24x24xbf16>, vector<24x64xbf16>, vector<24x64xf32> -> vector<24x64xf32>
    %46 = arith.addf %42, %45 : vector<24x64xf32>
    %c0_23 = arith.constant 0 : index
    %c0_24 = arith.constant 0 : index
    %c0_25 = arith.constant 0 : index
    %47 = vector.load %arg10[%c0_23, %c0_24, %c0_25] : memref<2x24x64xf32, #tpu.memory_space<vmem>>, vector<1x24x64xf32>
    %48 = vector.shape_cast %47 : vector<1x24x64xf32> to vector<24x64xf32>
    %49 = vector.shape_cast %46 : vector<24x64xf32> to vector<1x24x64xf32>
    tpu.vector_store %arg10[%c0_23, %c0_24, %c0_25], %49 {strides = array<i32>} : memref<2x24x64xf32, #tpu.memory_space<vmem>>, vector<1x24x64xf32>,
    %c0_26 = arith.constant 0 : index
    %c0_27 = arith.constant 0 : index
    %c0_28 = arith.constant 0 : index
    %50 = vector.load %arg8[%c0_26, %c0_27, %c0_28] : memref<2x24x1xf32, #tpu.memory_space<vmem>>, vector<1x24x1xf32>
    %51 = vector.shape_cast %50 : vector<1x24x1xf32> to vector<24x1xf32>
    %52 = vector.shape_cast %24 : vector<24x1xf32> to vector<1x24x1xf32>
    tpu.vector_store %arg8[%c0_26, %c0_27, %c0_28], %52 {strides = array<i32>} : memref<2x24x1xf32, #tpu.memory_space<vmem>>, vector<1x24x1xf32>,
    %53 = vector.extract_strided_slice %3 {offsets = [0, 64], sizes = [24, 64], strides = [1, 1]} : vector<24x128xbf16> to vector<24x64xbf16>
    %54 = vector.extract_strided_slice %4 {offsets = [0, 64], sizes = [24, 64], strides = [1, 1]} : vector<24x128xbf16> to vector<24x64xbf16>
    %cst_29 = arith.constant dense<0.000000e+00> : vector<24x24xf32>
    %55 = tpu.matmul %53, %54, %cst_29 {dimension_numbers = #tpu.dot_dimension_numbers<[1], [1], [0], [0], [0, 0, 1, 0], [], []>} : vector<24x64xbf16>, vector<24x64xbf16>, vector<24x24xf32> -> vector<24x24xf32>
    %56 = vector.broadcast %14 : vector<1x24xf32> to vector<24x24xf32>
    %57 = arith.addf %55, %56 : vector<24x24xf32>
    %c1 = arith.constant 1 : index
    %c0_30 = arith.constant 0 : index
    %c0_31 = arith.constant 0 : index
    %58 = vector.load %arg8[%c1, %c0_30, %c0_31] : memref<2x24x1xf32, #tpu.memory_space<vmem>>, vector<1x24x1xf32>
    %59 = vector.shape_cast %58 : vector<1x24x1xf32> to vector<24x1xf32>
    %cst_32 = arith.constant dense<0xFF800000> : vector<24xf32>
    %60 = vector.multi_reduction <maximumf>, %57, %cst_32 [1] : vector<24x24xf32> to vector<24xf32>
    %61 = vector.shape_cast %60 : vector<24xf32> to vector<24x1xf32>
    %62 = arith.maximumf %59, %61 : vector<24x1xf32>
    %63 = arith.subf %59, %62 : vector<24x1xf32>
    %64 = math.exp %63 : vector<24x1xf32>
    %65 = vector.broadcast %62 : vector<24x1xf32> to vector<24x24xf32>
    %66 = arith.subf %57, %65 : vector<24x24xf32>
    %67 = math.exp %66 : vector<24x24xf32>
    %c1_33 = arith.constant 1 : index
    %c0_34 = arith.constant 0 : index
    %c0_35 = arith.constant 0 : index
    %68 = vector.load %arg9[%c1_33, %c0_34, %c0_35] : memref<2x24x1xf32, #tpu.memory_space<vmem>>, vector<1x24x1xf32>
    %69 = vector.shape_cast %68 : vector<1x24x1xf32> to vector<24x1xf32>
    %70 = arith.mulf %64, %69 : vector<24x1xf32>
    %cst_36 = arith.constant dense<0.000000e+00> : vector<24xf32>
    %71 = vector.multi_reduction <add>, %67, %cst_36 [1] : vector<24x24xf32> to vector<24xf32>
    %72 = vector.shape_cast %71 : vector<24xf32> to vector<24x1xf32>
    %73 = arith.addf %70, %72 : vector<24x1xf32>
    %c1_37 = arith.constant 1 : index
    %c0_38 = arith.constant 0 : index
    %c0_39 = arith.constant 0 : index
    %74 = vector.load %arg9[%c1_37, %c0_38, %c0_39] : memref<2x24x1xf32, #tpu.memory_space<vmem>>, vector<1x24x1xf32>
    %75 = vector.shape_cast %74 : vector<1x24x1xf32> to vector<24x1xf32>
    %76 = vector.shape_cast %73 : vector<24x1xf32> to vector<1x24x1xf32>
    tpu.vector_store %arg9[%c1_37, %c0_38, %c0_39], %76 {strides = array<i32>} : memref<2x24x1xf32, #tpu.memory_space<vmem>>, vector<1x24x1xf32>,
    %c1_40 = arith.constant 1 : index
    %c0_41 = arith.constant 0 : index
    %c0_42 = arith.constant 0 : index
    %77 = vector.load %arg10[%c1_40, %c0_41, %c0_42] : memref<2x24x64xf32, #tpu.memory_space<vmem>>, vector<1x24x64xf32>
    %78 = vector.shape_cast %77 : vector<1x24x64xf32> to vector<24x64xf32>
    %79 = vector.broadcast %64 : vector<24x1xf32> to vector<24x64xf32>
    %80 = arith.mulf %79, %78 : vector<24x64xf32>
    %81 = arith.truncf %67 : vector<24x24xf32> to vector<24x24xbf16>
    %82 = vector.extract_strided_slice %5 {offsets = [0, 64], sizes = [24, 64], strides = [1, 1]} : vector<24x128xbf16> to vector<24x64xbf16>
    %cst_43 = arith.constant dense<0.000000e+00> : vector<24x64xf32>
    %83 = tpu.matmul %81, %82, %cst_43 {dimension_numbers = #tpu.dot_dimension_numbers<[1], [0], [0], [1], [0, 0, 1, 1], [], []>} : vector<24x24xbf16>, vector<24x64xbf16>, vector<24x64xf32> -> vector<24x64xf32>
    %84 = arith.addf %80, %83 : vector<24x64xf32>
    %c1_44 = arith.constant 1 : index
    %c0_45 = arith.constant 0 : index
    %c0_46 = arith.constant 0 : index
    %85 = vector.load %arg10[%c1_44, %c0_45, %c0_46] : memref<2x24x64xf32, #tpu.memory_space<vmem>>, vector<1x24x64xf32>
    %86 = vector.shape_cast %85 : vector<1x24x64xf32> to vector<24x64xf32>
    %87 = vector.shape_cast %84 : vector<24x64xf32> to vector<1x24x64xf32>
    tpu.vector_store %arg10[%c1_44, %c0_45, %c0_46], %87 {strides = array<i32>} : memref<2x24x64xf32, #tpu.memory_space<vmem>>, vector<1x24x64xf32>,
    %c1_47 = arith.constant 1 : index
    %c0_48 = arith.constant 0 : index
    %c0_49 = arith.constant 0 : index
    %88 = vector.load %arg8[%c1_47, %c0_48, %c0_49] : memref<2x24x1xf32, #tpu.memory_space<vmem>>, vector<1x24x1xf32>
    %89 = vector.shape_cast %88 : vector<1x24x1xf32> to vector<24x1xf32>
    %90 = vector.shape_cast %62 : vector<24x1xf32> to vector<1x24x1xf32>
    tpu.vector_store %arg8[%c1_47, %c0_48, %c0_49], %90 {strides = array<i32>} : memref<2x24x1xf32, #tpu.memory_space<vmem>>, vector<1x24x1xf32>,
    %c0_i32_50 = arith.constant 0 : i32
    %91 = arith.cmpi eq, %arg3, %c0_i32_50 : i32
    %92 = arith.extui %91 : i1 to i32
    %c0_i32_51 = arith.constant 0 : i32
    %93 = arith.cmpi ne, %92, %c0_i32_51 : i32
    scf.if %93 {
      %c0_52 = arith.constant 0 : index
      %c0_53 = arith.constant 0 : index
      %c0_54 = arith.constant 0 : index
      %94 = vector.load %arg10[%c0_52, %c0_53, %c0_54] : memref<2x24x64xf32, #tpu.memory_space<vmem>>, vector<1x24x64xf32>
      %95 = vector.shape_cast %94 : vector<1x24x64xf32> to vector<24x64xf32>
      %c0_55 = arith.constant 0 : index
      %c0_56 = arith.constant 0 : index
      %c0_57 = arith.constant 0 : index
      %96 = vector.load %arg9[%c0_55, %c0_56, %c0_57] : memref<2x24x1xf32, #tpu.memory_space<vmem>>, vector<1x24x1xf32>
      %97 = vector.shape_cast %96 : vector<1x24x1xf32> to vector<24x1xf32>
      %98 = tpu.reciprocal %97 {approx = true} : vector<24x1xf32> -> vector<24x1xf32>
      %99 = vector.broadcast %98 : vector<24x1xf32> to vector<24x64xf32>
      %100 = arith.mulf %95, %99 : vector<24x64xf32>
      %c1_58 = arith.constant 1 : index
      %c0_59 = arith.constant 0 : index
      %c0_60 = arith.constant 0 : index
      %101 = vector.load %arg10[%c1_58, %c0_59, %c0_60] : memref<2x24x64xf32, #tpu.memory_space<vmem>>, vector<1x24x64xf32>
      %102 = vector.shape_cast %101 : vector<1x24x64xf32> to vector<24x64xf32>
      %c1_61 = arith.constant 1 : index
      %c0_62 = arith.constant 0 : index
      %c0_63 = arith.constant 0 : index
      %103 = vector.load %arg9[%c1_61, %c0_62, %c0_63] : memref<2x24x1xf32, #tpu.memory_space<vmem>>, vector<1x24x1xf32>
      %104 = vector.shape_cast %103 : vector<1x24x1xf32> to vector<24x1xf32>
      %105 = tpu.reciprocal %104 {approx = true} : vector<24x1xf32> -> vector<24x1xf32>
      %106 = vector.broadcast %105 : vector<24x1xf32> to vector<24x64xf32>
      %107 = arith.mulf %102, %106 : vector<24x64xf32>
      %108 = tpu.concatenate %100, %107 in 1 : vector<24x64xf32>, vector<24x64xf32> -> vector<24x128xf32>
      %109 = arith.truncf %108 : vector<24x128xf32> to vector<24x128xbf16>
      %c0_64 = arith.constant 0 : index
      %c0_65 = arith.constant 0 : index
      %110 = vector.load %arg7[%c0_64, %c0_65] : memref<24x128xbf16, #tpu.memory_space<vmem>>, vector<24x128xbf16>
      tpu.vector_store %arg7[%c0_64, %c0_65], %109 {strides = array<i32>} : memref<24x128xbf16, #tpu.memory_space<vmem>>, vector<24x128xbf16>,
    } else {
    }
    return
  }
  func.func @transform_0(%arg0: i32, %arg1: i32, %arg2: i32, %arg3: i32) -> (i32, i32) {
    %c1_i32 = arith.constant 1 : i32
    %0 = arith.muli %arg0, %c1_i32 : i32
    %1 = arith.addi %0, %arg2 : i32
    %c0_i32 = arith.constant 0 : i32
    return %1, %arg1 : i32, i32
  }
  func.func @transform_1(%arg0: i32, %arg1: i32, %arg2: i32, %arg3: i32) -> (i32, i32) {
    %c1_i32 = arith.constant 1 : i32
    %0 = arith.muli %arg0, %c1_i32 : i32
    %1 = arith.addi %0, %arg3 : i32
    %c1_i32_0 = arith.constant 1 : i32
    %2 = arith.addi %c1_i32_0, %arg1 : i32
    %c0_i32 = arith.constant 0 : i32
    return %1, %2 : i32, i32
  }
  func.func @transform_2(%arg0: i32, %arg1: i32, %arg2: i32, %arg3: i32) -> (i32, i32) {
    %c1_i32 = arith.constant 1 : i32
    %0 = arith.muli %arg0, %c1_i32 : i32
    %1 = arith.addi %0, %arg3 : i32
    %c2_i32 = arith.constant 2 : i32
    %2 = arith.addi %c2_i32, %arg1 : i32
    %c0_i32 = arith.constant 0 : i32
    return %1, %2 : i32, i32
  }
  func.func @transform_3(%arg0: i32, %arg1: i32, %arg2: i32, %arg3: i32) -> (i32, i32) {
    %c1_i32 = arith.constant 1 : i32
    %0 = arith.muli %arg0, %c1_i32 : i32
    %1 = arith.addi %0, %arg2 : i32
    %c0_i32 = arith.constant 0 : i32
    return %1, %arg1 : i32, i32
  }
}

module attributes {stable_mosaic.version = 11 : i64} {
  func.func @_linear_res_kernel(%arg0: i32, %arg1: i32, %arg2: i32, %arg3: memref<48x128xbf16, #tpu.memory_space<vmem>>, %arg4: memref<128x128xbf16, #tpu.memory_space<vmem>>, %arg5: memref<1x128xf32, #tpu.memory_space<vmem>>, %arg6: memref<48x128xbf16, #tpu.memory_space<vmem>>, %arg7: memref<48x128xbf16, #tpu.memory_space<vmem>>, %arg8: memref<48x128xf32, #tpu.memory_space<vmem>>) attributes {dimension_semantics = [#tpu.dimension_semantics<parallel>, #tpu.dimension_semantics<parallel>, #tpu.dimension_semantics<arbitrary>], iteration_bounds = array<i64: 1, 1, 1>, scalar_prefetch = 0 : i64, scratch_operands = 1 : i64, tpu.core_type = #tpu.core_type<tc>, window_params = [{transform_indices = @transform_0, window_bounds = array<i64: 48, 128>}, {transform_indices = @transform_1, window_bounds = array<i64: 128, 128>}, {transform_indices = @transform_2, window_bounds = array<i64: 1, 128>}, {transform_indices = @transform_3, window_bounds = array<i64: 48, 128>}, {transform_indices = @transform_4, window_bounds = array<i64: 48, 128>}]} {
    %c0_i32 = arith.constant 0 : i32
    %0 = arith.cmpi eq, %arg2, %c0_i32 : i32
    %1 = arith.extui %0 : i1 to i32
    %c0_i32_0 = arith.constant 0 : i32
    %2 = arith.cmpi ne, %1, %c0_i32_0 : i32
    scf.if %2 {
      %cst_10 = arith.constant 0.000000e+00 : f32
      %12 = vector.broadcast %cst_10 : f32 to vector<48x128xf32>
      %c0_11 = arith.constant 0 : index
      %c0_12 = arith.constant 0 : index
      %13 = vector.load %arg8[%c0_11, %c0_12] : memref<48x128xf32, #tpu.memory_space<vmem>>, vector<48x128xf32>
      tpu.vector_store %arg8[%c0_11, %c0_12], %12 {strides = array<i32>} : memref<48x128xf32, #tpu.memory_space<vmem>>, vector<48x128xf32>,
    } else {
    }
    %c0 = arith.constant 0 : index
    %c0_1 = arith.constant 0 : index
    %3 = vector.load %arg8[%c0, %c0_1] : memref<48x128xf32, #tpu.memory_space<vmem>>, vector<48x128xf32>
    %c0_2 = arith.constant 0 : index
    %c0_3 = arith.constant 0 : index
    %4 = vector.load %arg3[%c0_2, %c0_3] : memref<48x128xbf16, #tpu.memory_space<vmem>>, vector<48x128xbf16>
    %c0_4 = arith.constant 0 : index
    %c0_5 = arith.constant 0 : index
    %5 = vector.load %arg4[%c0_4, %c0_5] : memref<128x128xbf16, #tpu.memory_space<vmem>>, vector<128x128xbf16>
    %cst = arith.constant dense<0.000000e+00> : vector<48x128xf32>
    %6 = tpu.matmul %4, %5, %cst {dimension_numbers = #tpu.dot_dimension_numbers<[1], [0], [0], [1], [0, 0, 1, 1], [], []>} : vector<48x128xbf16>, vector<128x128xbf16>, vector<48x128xf32> -> vector<48x128xf32>
    %7 = arith.addf %3, %6 : vector<48x128xf32>
    %c0_6 = arith.constant 0 : index
    %c0_7 = arith.constant 0 : index
    %8 = vector.load %arg8[%c0_6, %c0_7] : memref<48x128xf32, #tpu.memory_space<vmem>>, vector<48x128xf32>
    tpu.vector_store %arg8[%c0_6, %c0_7], %7 {strides = array<i32>} : memref<48x128xf32, #tpu.memory_space<vmem>>, vector<48x128xf32>,
    %c0_i32_8 = arith.constant 0 : i32
    %9 = arith.cmpi eq, %arg2, %c0_i32_8 : i32
    %10 = arith.extui %9 : i1 to i32
    %c0_i32_9 = arith.constant 0 : i32
    %11 = arith.cmpi ne, %10, %c0_i32_9 : i32
    scf.if %11 {
      %c0_10 = arith.constant 0 : index
      %c0_11 = arith.constant 0 : index
      %12 = vector.load %arg8[%c0_10, %c0_11] : memref<48x128xf32, #tpu.memory_space<vmem>>, vector<48x128xf32>
      %c0_12 = arith.constant 0 : index
      %c0_13 = arith.constant 0 : index
      %13 = vector.load %arg5[%c0_12, %c0_13] : memref<1x128xf32, #tpu.memory_space<vmem>>, vector<1x128xf32>
      %14 = vector.broadcast %13 : vector<1x128xf32> to vector<48x128xf32>
      %15 = arith.addf %12, %14 : vector<48x128xf32>
      %c0_14 = arith.constant 0 : index
      %c0_15 = arith.constant 0 : index
      %16 = vector.load %arg6[%c0_14, %c0_15] : memref<48x128xbf16, #tpu.memory_space<vmem>>, vector<48x128xbf16>
      %17 = arith.extf %16 : vector<48x128xbf16> to vector<48x128xf32>
      %18 = arith.addf %15, %17 : vector<48x128xf32>
      %19 = arith.truncf %18 : vector<48x128xf32> to vector<48x128xbf16>
      %c0_16 = arith.constant 0 : index
      %c0_17 = arith.constant 0 : index
      %20 = vector.load %arg7[%c0_16, %c0_17] : memref<48x128xbf16, #tpu.memory_space<vmem>>, vector<48x128xbf16>
      tpu.vector_store %arg7[%c0_16, %c0_17], %19 {strides = array<i32>} : memref<48x128xbf16, #tpu.memory_space<vmem>>, vector<48x128xbf16>,
    } else {
    }
    return
  }
  func.func @transform_0(%arg0: i32, %arg1: i32, %arg2: i32) -> (i32, i32) {
    %c0_i32 = arith.constant 0 : i32
    return %arg0, %arg2 : i32, i32
  }
  func.func @transform_1(%arg0: i32, %arg1: i32, %arg2: i32) -> (i32, i32) {
    %c0_i32 = arith.constant 0 : i32
    return %arg2, %arg1 : i32, i32
  }
  func.func @transform_2(%arg0: i32, %arg1: i32, %arg2: i32) -> (i32, i32) {
    %c0_i32 = arith.constant 0 : i32
    %c0_i32_0 = arith.constant 0 : i32
    return %c0_i32, %arg1 : i32, i32
  }
  func.func @transform_3(%arg0: i32, %arg1: i32, %arg2: i32) -> (i32, i32) {
    %c0_i32 = arith.constant 0 : i32
    return %arg0, %arg1 : i32, i32
  }
  func.func @transform_4(%arg0: i32, %arg1: i32, %arg2: i32) -> (i32, i32) {
    %c0_i32 = arith.constant 0 : i32
    return %arg0, %arg1 : i32, i32
  }
}

module attributes {stable_mosaic.version = 11 : i64} {
  func.func @_ln_mlp_kernel(%arg0: i32, %arg1: i32, %arg2: memref<48x128xbf16, #tpu.memory_space<vmem>>, %arg3: memref<1x128xf32, #tpu.memory_space<vmem>>, %arg4: memref<1x128xf32, #tpu.memory_space<vmem>>, %arg5: memref<128x512xbf16, #tpu.memory_space<vmem>>, %arg6: memref<1x512xf32, #tpu.memory_space<vmem>>, %arg7: memref<512x128xbf16, #tpu.memory_space<vmem>>, %arg8: memref<1x128xf32, #tpu.memory_space<vmem>>, %arg9: memref<48x128xbf16, #tpu.memory_space<vmem>>, %arg10: memref<48x128xbf16, #tpu.memory_space<vmem>>, %arg11: memref<48x128xf32, #tpu.memory_space<vmem>>) attributes {dimension_semantics = [#tpu.dimension_semantics<parallel>, #tpu.dimension_semantics<arbitrary>], iteration_bounds = array<i64: 1, 1>, scalar_prefetch = 0 : i64, scratch_operands = 2 : i64, tpu.core_type = #tpu.core_type<tc>, window_params = [{transform_indices = @transform_0, window_bounds = array<i64: 48, 128>}, {pipeline_mode = #tpu.pipeline_mode<synchronous>, transform_indices = @transform_1, window_bounds = array<i64: 1, 128>}, {pipeline_mode = #tpu.pipeline_mode<synchronous>, transform_indices = @transform_2, window_bounds = array<i64: 1, 128>}, {transform_indices = @transform_3, window_bounds = array<i64: 128, 512>}, {transform_indices = @transform_4, window_bounds = array<i64: 1, 512>}, {transform_indices = @transform_5, window_bounds = array<i64: 512, 128>}, {pipeline_mode = #tpu.pipeline_mode<synchronous>, transform_indices = @transform_6, window_bounds = array<i64: 1, 128>}, {transform_indices = @transform_7, window_bounds = array<i64: 48, 128>}]} {
    %c0_i32 = arith.constant 0 : i32
    %0 = arith.cmpi eq, %arg1, %c0_i32 : i32
    %1 = arith.extui %0 : i1 to i32
    %c0_i32_0 = arith.constant 0 : i32
    %2 = arith.cmpi ne, %1, %c0_i32_0 : i32
    scf.if %2 {
      %c0_17 = arith.constant 0 : index
      %c0_18 = arith.constant 0 : index
      %26 = vector.load %arg2[%c0_17, %c0_18] : memref<48x128xbf16, #tpu.memory_space<vmem>>, vector<48x128xbf16>
      %27 = arith.extf %26 : vector<48x128xbf16> to vector<48x128xf32>
      %cst_19 = arith.constant dense<0.000000e+00> : vector<48xf32>
      %28 = vector.multi_reduction <add>, %27, %cst_19 [1] : vector<48x128xf32> to vector<48xf32>
      %29 = vector.shape_cast %28 : vector<48xf32> to vector<48x1xf32>
      %cst_20 = arith.constant 1.280000e+02 : f32
      %30 = vector.broadcast %cst_20 : f32 to vector<48x1xf32>
      %31 = arith.divf %29, %30 : vector<48x1xf32>
      %32 = vector.broadcast %31 : vector<48x1xf32> to vector<48x128xf32>
      %33 = arith.subf %27, %32 : vector<48x128xf32>
      %34 = arith.mulf %33, %33 : vector<48x128xf32>
      %cst_21 = arith.constant dense<0.000000e+00> : vector<48xf32>
      %35 = vector.multi_reduction <add>, %34, %cst_21 [1] : vector<48x128xf32> to vector<48xf32>
      %36 = vector.shape_cast %35 : vector<48xf32> to vector<48x1xf32>
      %cst_22 = arith.constant 1.280000e+02 : f32
      %37 = vector.broadcast %cst_22 : f32 to vector<48x1xf32>
      %38 = arith.divf %36, %37 : vector<48x1xf32>
      %cst_23 = arith.constant 9.99999974E-6 : f32
      %39 = vector.broadcast %cst_23 : f32 to vector<48x1xf32>
      %40 = arith.addf %38, %39 : vector<48x1xf32>
      %41 = math.rsqrt %40 : vector<48x1xf32>
      %42 = vector.broadcast %41 : vector<48x1xf32> to vector<48x128xf32>
      %43 = arith.mulf %33, %42 : vector<48x128xf32>
      %c0_24 = arith.constant 0 : index
      %c0_25 = arith.constant 0 : index
      %44 = vector.load %arg3[%c0_24, %c0_25] : memref<1x128xf32, #tpu.memory_space<vmem>>, vector<1x128xf32>
      %45 = vector.broadcast %44 : vector<1x128xf32> to vector<48x128xf32>
      %46 = arith.mulf %43, %45 : vector<48x128xf32>
      %c0_26 = arith.constant 0 : index
      %c0_27 = arith.constant 0 : index
      %47 = vector.load %arg4[%c0_26, %c0_27] : memref<1x128xf32, #tpu.memory_space<vmem>>, vector<1x128xf32>
      %48 = vector.broadcast %47 : vector<1x128xf32> to vector<48x128xf32>
      %49 = arith.addf %46, %48 : vector<48x128xf32>
      %50 = arith.truncf %49 : vector<48x128xf32> to vector<48x128xbf16>
      %c0_28 = arith.constant 0 : index
      %c0_29 = arith.constant 0 : index
      %51 = vector.load %arg10[%c0_28, %c0_29] : memref<48x128xbf16, #tpu.memory_space<vmem>>, vector<48x128xbf16>
      tpu.vector_store %arg10[%c0_28, %c0_29], %50 {strides = array<i32>} : memref<48x128xbf16, #tpu.memory_space<vmem>>, vector<48x128xbf16>,
      %cst_30 = arith.constant 0.000000e+00 : f32
      %52 = vector.broadcast %cst_30 : f32 to vector<48x128xf32>
      %c0_31 = arith.constant 0 : index
      %c0_32 = arith.constant 0 : index
      %53 = vector.load %arg11[%c0_31, %c0_32] : memref<48x128xf32, #tpu.memory_space<vmem>>, vector<48x128xf32>
      tpu.vector_store %arg11[%c0_31, %c0_32], %52 {strides = array<i32>} : memref<48x128xf32, #tpu.memory_space<vmem>>, vector<48x128xf32>,
    } else {
    }
    %c0 = arith.constant 0 : index
    %c0_1 = arith.constant 0 : index
    %3 = vector.load %arg10[%c0, %c0_1] : memref<48x128xbf16, #tpu.memory_space<vmem>>, vector<48x128xbf16>
    %c0_2 = arith.constant 0 : index
    %c0_3 = arith.constant 0 : index
    %4 = vector.load %arg5[%c0_2, %c0_3] : memref<128x512xbf16, #tpu.memory_space<vmem>>, vector<128x512xbf16>
    %cst = arith.constant dense<0.000000e+00> : vector<48x512xf32>
    %5 = tpu.matmul %3, %4, %cst {dimension_numbers = #tpu.dot_dimension_numbers<[1], [0], [0], [1], [0, 0, 1, 1], [], []>} : vector<48x128xbf16>, vector<128x512xbf16>, vector<48x512xf32> -> vector<48x512xf32>
    %c0_4 = arith.constant 0 : index
    %c0_5 = arith.constant 0 : index
    %6 = vector.load %arg6[%c0_4, %c0_5] : memref<1x512xf32, #tpu.memory_space<vmem>>, vector<1x512xf32>
    %7 = vector.broadcast %6 : vector<1x512xf32> to vector<48x512xf32>
    %8 = arith.addf %5, %7 : vector<48x512xf32>
    %cst_6 = arith.constant 1.702000e+00 : f32
    %9 = vector.broadcast %cst_6 : f32 to vector<48x512xf32>
    %10 = arith.mulf %9, %8 : vector<48x512xf32>
    %11 = arith.negf %10 : vector<48x512xf32>
    %12 = math.exp %11 : vector<48x512xf32>
    %cst_7 = arith.constant 1.000000e+00 : f32
    %13 = vector.broadcast %cst_7 : f32 to vector<48x512xf32>
    %14 = arith.addf %13, %12 : vector<48x512xf32>
    %15 = arith.divf %13, %14 : vector<48x512xf32>
    %16 = arith.mulf %8, %15 : vector<48x512xf32>
    %c0_8 = arith.constant 0 : index
    %c0_9 = arith.constant 0 : index
    %17 = vector.load %arg11[%c0_8, %c0_9] : memref<48x128xf32, #tpu.memory_space<vmem>>, vector<48x128xf32>
    %18 = arith.truncf %16 : vector<48x512xf32> to vector<48x512xbf16>
    %c0_10 = arith.constant 0 : index
    %c0_11 = arith.constant 0 : index
    %19 = vector.load %arg7[%c0_10, %c0_11] : memref<512x128xbf16, #tpu.memory_space<vmem>>, vector<512x128xbf16>
    %cst_12 = arith.constant dense<0.000000e+00> : vector<48x128xf32>
    %20 = tpu.matmul %18, %19, %cst_12 {dimension_numbers = #tpu.dot_dimension_numbers<[1], [0], [0], [1], [0, 0, 1, 1], [], []>} : vector<48x512xbf16>, vector<512x128xbf16>, vector<48x128xf32> -> vector<48x128xf32>
    %21 = arith.addf %17, %20 : vector<48x128xf32>
    %c0_13 = arith.constant 0 : index
    %c0_14 = arith.constant 0 : index
    %22 = vector.load %arg11[%c0_13, %c0_14] : memref<48x128xf32, #tpu.memory_space<vmem>>, vector<48x128xf32>
    tpu.vector_store %arg11[%c0_13, %c0_14], %21 {strides = array<i32>} : memref<48x128xf32, #tpu.memory_space<vmem>>, vector<48x128xf32>,
    %c0_i32_15 = arith.constant 0 : i32
    %23 = arith.cmpi eq, %arg1, %c0_i32_15 : i32
    %24 = arith.extui %23 : i1 to i32
    %c0_i32_16 = arith.constant 0 : i32
    %25 = arith.cmpi ne, %24, %c0_i32_16 : i32
    scf.if %25 {
      %c0_17 = arith.constant 0 : index
      %c0_18 = arith.constant 0 : index
      %26 = vector.load %arg11[%c0_17, %c0_18] : memref<48x128xf32, #tpu.memory_space<vmem>>, vector<48x128xf32>
      %c0_19 = arith.constant 0 : index
      %c0_20 = arith.constant 0 : index
      %27 = vector.load %arg8[%c0_19, %c0_20] : memref<1x128xf32, #tpu.memory_space<vmem>>, vector<1x128xf32>
      %28 = vector.broadcast %27 : vector<1x128xf32> to vector<48x128xf32>
      %29 = arith.addf %26, %28 : vector<48x128xf32>
      %c0_21 = arith.constant 0 : index
      %c0_22 = arith.constant 0 : index
      %30 = vector.load %arg2[%c0_21, %c0_22] : memref<48x128xbf16, #tpu.memory_space<vmem>>, vector<48x128xbf16>
      %31 = arith.extf %30 : vector<48x128xbf16> to vector<48x128xf32>
      %32 = arith.addf %29, %31 : vector<48x128xf32>
      %33 = arith.truncf %32 : vector<48x128xf32> to vector<48x128xbf16>
      %c0_23 = arith.constant 0 : index
      %c0_24 = arith.constant 0 : index
      %34 = vector.load %arg9[%c0_23, %c0_24] : memref<48x128xbf16, #tpu.memory_space<vmem>>, vector<48x128xbf16>
      tpu.vector_store %arg9[%c0_23, %c0_24], %33 {strides = array<i32>} : memref<48x128xbf16, #tpu.memory_space<vmem>>, vector<48x128xbf16>,
    } else {
    }
    return
  }
  func.func @transform_0(%arg0: i32, %arg1: i32) -> (i32, i32) {
    %c0_i32 = arith.constant 0 : i32
    %c0_i32_0 = arith.constant 0 : i32
    return %arg0, %c0_i32 : i32, i32
  }
  func.func @transform_1(%arg0: i32, %arg1: i32) -> (i32, i32) {
    %c0_i32 = arith.constant 0 : i32
    %c0_i32_0 = arith.constant 0 : i32
    %c0_i32_1 = arith.constant 0 : i32
    return %c0_i32, %c0_i32_0 : i32, i32
  }
  func.func @transform_2(%arg0: i32, %arg1: i32) -> (i32, i32) {
    %c0_i32 = arith.constant 0 : i32
    %c0_i32_0 = arith.constant 0 : i32
    %c0_i32_1 = arith.constant 0 : i32
    return %c0_i32, %c0_i32_0 : i32, i32
  }
  func.func @transform_3(%arg0: i32, %arg1: i32) -> (i32, i32) {
    %c0_i32 = arith.constant 0 : i32
    %c0_i32_0 = arith.constant 0 : i32
    return %c0_i32, %arg1 : i32, i32
  }
  func.func @transform_4(%arg0: i32, %arg1: i32) -> (i32, i32) {
    %c0_i32 = arith.constant 0 : i32
    %c0_i32_0 = arith.constant 0 : i32
    return %c0_i32, %arg1 : i32, i32
  }
  func.func @transform_5(%arg0: i32, %arg1: i32) -> (i32, i32) {
    %c0_i32 = arith.constant 0 : i32
    %c0_i32_0 = arith.constant 0 : i32
    return %arg1, %c0_i32 : i32, i32
  }
  func.func @transform_6(%arg0: i32, %arg1: i32) -> (i32, i32) {
    %c0_i32 = arith.constant 0 : i32
    %c0_i32_0 = arith.constant 0 : i32
    %c0_i32_1 = arith.constant 0 : i32
    return %c0_i32, %c0_i32_0 : i32, i32
  }
  func.func @transform_7(%arg0: i32, %arg1: i32) -> (i32, i32) {
    %c0_i32 = arith.constant 0 : i32
    %c0_i32_0 = arith.constant 0 : i32
    return %arg0, %c0_i32 : i32, i32
  }
}

module attributes {stable_mosaic.version = 11 : i64} {
  func.func @_ln_linear_kernel(%arg0: i32, %arg1: i32, %arg2: memref<48x128xbf16, #tpu.memory_space<vmem>>, %arg3: memref<1x128xf32, #tpu.memory_space<vmem>>, %arg4: memref<1x128xf32, #tpu.memory_space<vmem>>, %arg5: memref<128x384xbf16, #tpu.memory_space<vmem>>, %arg6: memref<1x384xf32, #tpu.memory_space<vmem>>, %arg7: memref<48x384xbf16, #tpu.memory_space<vmem>>, %arg8: memref<48x128xbf16, #tpu.memory_space<vmem>>) attributes {dimension_semantics = [#tpu.dimension_semantics<parallel>, #tpu.dimension_semantics<arbitrary>], iteration_bounds = array<i64: 1, 1>, scalar_prefetch = 0 : i64, scratch_operands = 1 : i64, tpu.core_type = #tpu.core_type<tc>, window_params = [{transform_indices = @transform_0, window_bounds = array<i64: 48, 128>}, {pipeline_mode = #tpu.pipeline_mode<synchronous>, transform_indices = @transform_1, window_bounds = array<i64: 1, 128>}, {pipeline_mode = #tpu.pipeline_mode<synchronous>, transform_indices = @transform_2, window_bounds = array<i64: 1, 128>}, {transform_indices = @transform_3, window_bounds = array<i64: 128, 384>}, {transform_indices = @transform_4, window_bounds = array<i64: 1, 384>}, {transform_indices = @transform_5, window_bounds = array<i64: 48, 384>}]} {
    %c0_i32 = arith.constant 0 : i32
    %0 = arith.cmpi eq, %arg1, %c0_i32 : i32
    %1 = arith.extui %0 : i1 to i32
    %c0_i32_0 = arith.constant 0 : i32
    %2 = arith.cmpi ne, %1, %c0_i32_0 : i32
    scf.if %2 {
      %c0_8 = arith.constant 0 : index
      %c0_9 = arith.constant 0 : index
      %11 = vector.load %arg2[%c0_8, %c0_9] : memref<48x128xbf16, #tpu.memory_space<vmem>>, vector<48x128xbf16>
      %12 = arith.extf %11 : vector<48x128xbf16> to vector<48x128xf32>
      %cst_10 = arith.constant dense<0.000000e+00> : vector<48xf32>
      %13 = vector.multi_reduction <add>, %12, %cst_10 [1] : vector<48x128xf32> to vector<48xf32>
      %14 = vector.shape_cast %13 : vector<48xf32> to vector<48x1xf32>
      %cst_11 = arith.constant 1.280000e+02 : f32
      %15 = vector.broadcast %cst_11 : f32 to vector<48x1xf32>
      %16 = arith.divf %14, %15 : vector<48x1xf32>
      %17 = vector.broadcast %16 : vector<48x1xf32> to vector<48x128xf32>
      %18 = arith.subf %12, %17 : vector<48x128xf32>
      %19 = arith.mulf %18, %18 : vector<48x128xf32>
      %cst_12 = arith.constant dense<0.000000e+00> : vector<48xf32>
      %20 = vector.multi_reduction <add>, %19, %cst_12 [1] : vector<48x128xf32> to vector<48xf32>
      %21 = vector.shape_cast %20 : vector<48xf32> to vector<48x1xf32>
      %cst_13 = arith.constant 1.280000e+02 : f32
      %22 = vector.broadcast %cst_13 : f32 to vector<48x1xf32>
      %23 = arith.divf %21, %22 : vector<48x1xf32>
      %cst_14 = arith.constant 9.99999974E-6 : f32
      %24 = vector.broadcast %cst_14 : f32 to vector<48x1xf32>
      %25 = arith.addf %23, %24 : vector<48x1xf32>
      %26 = math.rsqrt %25 : vector<48x1xf32>
      %27 = vector.broadcast %26 : vector<48x1xf32> to vector<48x128xf32>
      %28 = arith.mulf %18, %27 : vector<48x128xf32>
      %c0_15 = arith.constant 0 : index
      %c0_16 = arith.constant 0 : index
      %29 = vector.load %arg3[%c0_15, %c0_16] : memref<1x128xf32, #tpu.memory_space<vmem>>, vector<1x128xf32>
      %30 = vector.broadcast %29 : vector<1x128xf32> to vector<48x128xf32>
      %31 = arith.mulf %28, %30 : vector<48x128xf32>
      %c0_17 = arith.constant 0 : index
      %c0_18 = arith.constant 0 : index
      %32 = vector.load %arg4[%c0_17, %c0_18] : memref<1x128xf32, #tpu.memory_space<vmem>>, vector<1x128xf32>
      %33 = vector.broadcast %32 : vector<1x128xf32> to vector<48x128xf32>
      %34 = arith.addf %31, %33 : vector<48x128xf32>
      %35 = arith.truncf %34 : vector<48x128xf32> to vector<48x128xbf16>
      %c0_19 = arith.constant 0 : index
      %c0_20 = arith.constant 0 : index
      %36 = vector.load %arg8[%c0_19, %c0_20] : memref<48x128xbf16, #tpu.memory_space<vmem>>, vector<48x128xbf16>
      tpu.vector_store %arg8[%c0_19, %c0_20], %35 {strides = array<i32>} : memref<48x128xbf16, #tpu.memory_space<vmem>>, vector<48x128xbf16>,
    } else {
    }
    %c0 = arith.constant 0 : index
    %c0_1 = arith.constant 0 : index
    %3 = vector.load %arg8[%c0, %c0_1] : memref<48x128xbf16, #tpu.memory_space<vmem>>, vector<48x128xbf16>
    %c0_2 = arith.constant 0 : index
    %c0_3 = arith.constant 0 : index
    %4 = vector.load %arg5[%c0_2, %c0_3] : memref<128x384xbf16, #tpu.memory_space<vmem>>, vector<128x384xbf16>
    %cst = arith.constant dense<0.000000e+00> : vector<48x384xf32>
    %5 = tpu.matmul %3, %4, %cst {dimension_numbers = #tpu.dot_dimension_numbers<[1], [0], [0], [1], [0, 0, 1, 1], [], []>} : vector<48x128xbf16>, vector<128x384xbf16>, vector<48x384xf32> -> vector<48x384xf32>
    %c0_4 = arith.constant 0 : index
    %c0_5 = arith.constant 0 : index
    %6 = vector.load %arg6[%c0_4, %c0_5] : memref<1x384xf32, #tpu.memory_space<vmem>>, vector<1x384xf32>
    %7 = vector.broadcast %6 : vector<1x384xf32> to vector<48x384xf32>
    %8 = arith.addf %5, %7 : vector<48x384xf32>
    %9 = arith.truncf %8 : vector<48x384xf32> to vector<48x384xbf16>
    %c0_6 = arith.constant 0 : index
    %c0_7 = arith.constant 0 : index
    %10 = vector.load %arg7[%c0_6, %c0_7] : memref<48x384xbf16, #tpu.memory_space<vmem>>, vector<48x384xbf16>
    tpu.vector_store %arg7[%c0_6, %c0_7], %9 {strides = array<i32>} : memref<48x384xbf16, #tpu.memory_space<vmem>>, vector<48x384xbf16>,
    return
  }
  func.func @transform_0(%arg0: i32, %arg1: i32) -> (i32, i32) {
    %c0_i32 = arith.constant 0 : i32
    %c0_i32_0 = arith.constant 0 : i32
    return %arg0, %c0_i32 : i32, i32
  }
  func.func @transform_1(%arg0: i32, %arg1: i32) -> (i32, i32) {
    %c0_i32 = arith.constant 0 : i32
    %c0_i32_0 = arith.constant 0 : i32
    %c0_i32_1 = arith.constant 0 : i32
    return %c0_i32, %c0_i32_0 : i32, i32
  }
  func.func @transform_2(%arg0: i32, %arg1: i32) -> (i32, i32) {
    %c0_i32 = arith.constant 0 : i32
    %c0_i32_0 = arith.constant 0 : i32
    %c0_i32_1 = arith.constant 0 : i32
    return %c0_i32, %c0_i32_0 : i32, i32
  }
  func.func @transform_3(%arg0: i32, %arg1: i32) -> (i32, i32) {
    %c0_i32 = arith.constant 0 : i32
    %c0_i32_0 = arith.constant 0 : i32
    return %c0_i32, %arg1 : i32, i32
  }
  func.func @transform_4(%arg0: i32, %arg1: i32) -> (i32, i32) {
    %c0_i32 = arith.constant 0 : i32
    %c0_i32_0 = arith.constant 0 : i32
    return %c0_i32, %arg1 : i32, i32
  }
  func.func @transform_5(%arg0: i32, %arg1: i32) -> (i32, i32) {
    %c0_i32 = arith.constant 0 : i32
    return %arg0, %arg1 : i32, i32
  }
}

module attributes {stable_mosaic.version = 11 : i64} {
  func.func @_ln_mlp_kernel(%arg0: i32, %arg1: i32, %arg2: memref<48x128xbf16, #tpu.memory_space<vmem>>, %arg3: memref<1x128xf32, #tpu.memory_space<vmem>>, %arg4: memref<1x128xf32, #tpu.memory_space<vmem>>, %arg5: memref<128x512xbf16, #tpu.memory_space<vmem>>, %arg6: memref<1x512xf32, #tpu.memory_space<vmem>>, %arg7: memref<512x128xbf16, #tpu.memory_space<vmem>>, %arg8: memref<1x128xf32, #tpu.memory_space<vmem>>, %arg9: memref<48x128xbf16, #tpu.memory_space<vmem>>, %arg10: memref<48x128xbf16, #tpu.memory_space<vmem>>, %arg11: memref<48x128xf32, #tpu.memory_space<vmem>>) attributes {dimension_semantics = [#tpu.dimension_semantics<parallel>, #tpu.dimension_semantics<arbitrary>], iteration_bounds = array<i64: 1, 1>, scalar_prefetch = 0 : i64, scratch_operands = 2 : i64, tpu.core_type = #tpu.core_type<tc>, window_params = [{transform_indices = @transform_0, window_bounds = array<i64: 48, 128>}, {pipeline_mode = #tpu.pipeline_mode<synchronous>, transform_indices = @transform_1, window_bounds = array<i64: 1, 128>}, {pipeline_mode = #tpu.pipeline_mode<synchronous>, transform_indices = @transform_2, window_bounds = array<i64: 1, 128>}, {transform_indices = @transform_3, window_bounds = array<i64: 128, 512>}, {transform_indices = @transform_4, window_bounds = array<i64: 1, 512>}, {transform_indices = @transform_5, window_bounds = array<i64: 512, 128>}, {pipeline_mode = #tpu.pipeline_mode<synchronous>, transform_indices = @transform_6, window_bounds = array<i64: 1, 128>}, {transform_indices = @transform_7, window_bounds = array<i64: 48, 128>}]} {
    %c0_i32 = arith.constant 0 : i32
    %0 = arith.cmpi eq, %arg1, %c0_i32 : i32
    %1 = arith.extui %0 : i1 to i32
    %c0_i32_0 = arith.constant 0 : i32
    %2 = arith.cmpi ne, %1, %c0_i32_0 : i32
    scf.if %2 {
      %c0_17 = arith.constant 0 : index
      %c0_18 = arith.constant 0 : index
      %26 = vector.load %arg2[%c0_17, %c0_18] : memref<48x128xbf16, #tpu.memory_space<vmem>>, vector<48x128xbf16>
      %27 = arith.extf %26 : vector<48x128xbf16> to vector<48x128xf32>
      %cst_19 = arith.constant dense<0.000000e+00> : vector<48xf32>
      %28 = vector.multi_reduction <add>, %27, %cst_19 [1] : vector<48x128xf32> to vector<48xf32>
      %29 = vector.shape_cast %28 : vector<48xf32> to vector<48x1xf32>
      %cst_20 = arith.constant 1.280000e+02 : f32
      %30 = vector.broadcast %cst_20 : f32 to vector<48x1xf32>
      %31 = arith.divf %29, %30 : vector<48x1xf32>
      %32 = vector.broadcast %31 : vector<48x1xf32> to vector<48x128xf32>
      %33 = arith.subf %27, %32 : vector<48x128xf32>
      %34 = arith.mulf %33, %33 : vector<48x128xf32>
      %cst_21 = arith.constant dense<0.000000e+00> : vector<48xf32>
      %35 = vector.multi_reduction <add>, %34, %cst_21 [1] : vector<48x128xf32> to vector<48xf32>
      %36 = vector.shape_cast %35 : vector<48xf32> to vector<48x1xf32>
      %cst_22 = arith.constant 1.280000e+02 : f32
      %37 = vector.broadcast %cst_22 : f32 to vector<48x1xf32>
      %38 = arith.divf %36, %37 : vector<48x1xf32>
      %cst_23 = arith.constant 9.99999974E-6 : f32
      %39 = vector.broadcast %cst_23 : f32 to vector<48x1xf32>
      %40 = arith.addf %38, %39 : vector<48x1xf32>
      %41 = math.rsqrt %40 : vector<48x1xf32>
      %42 = vector.broadcast %41 : vector<48x1xf32> to vector<48x128xf32>
      %43 = arith.mulf %33, %42 : vector<48x128xf32>
      %c0_24 = arith.constant 0 : index
      %c0_25 = arith.constant 0 : index
      %44 = vector.load %arg3[%c0_24, %c0_25] : memref<1x128xf32, #tpu.memory_space<vmem>>, vector<1x128xf32>
      %45 = vector.broadcast %44 : vector<1x128xf32> to vector<48x128xf32>
      %46 = arith.mulf %43, %45 : vector<48x128xf32>
      %c0_26 = arith.constant 0 : index
      %c0_27 = arith.constant 0 : index
      %47 = vector.load %arg4[%c0_26, %c0_27] : memref<1x128xf32, #tpu.memory_space<vmem>>, vector<1x128xf32>
      %48 = vector.broadcast %47 : vector<1x128xf32> to vector<48x128xf32>
      %49 = arith.addf %46, %48 : vector<48x128xf32>
      %50 = arith.truncf %49 : vector<48x128xf32> to vector<48x128xbf16>
      %c0_28 = arith.constant 0 : index
      %c0_29 = arith.constant 0 : index
      %51 = vector.load %arg10[%c0_28, %c0_29] : memref<48x128xbf16, #tpu.memory_space<vmem>>, vector<48x128xbf16>
      tpu.vector_store %arg10[%c0_28, %c0_29], %50 {strides = array<i32>} : memref<48x128xbf16, #tpu.memory_space<vmem>>, vector<48x128xbf16>,
      %cst_30 = arith.constant 0.000000e+00 : f32
      %52 = vector.broadcast %cst_30 : f32 to vector<48x128xf32>
      %c0_31 = arith.constant 0 : index
      %c0_32 = arith.constant 0 : index
      %53 = vector.load %arg11[%c0_31, %c0_32] : memref<48x128xf32, #tpu.memory_space<vmem>>, vector<48x128xf32>
      tpu.vector_store %arg11[%c0_31, %c0_32], %52 {strides = array<i32>} : memref<48x128xf32, #tpu.memory_space<vmem>>, vector<48x128xf32>,
    } else {
    }
    %c0 = arith.constant 0 : index
    %c0_1 = arith.constant 0 : index
    %3 = vector.load %arg10[%c0, %c0_1] : memref<48x128xbf16, #tpu.memory_space<vmem>>, vector<48x128xbf16>
    %c0_2 = arith.constant 0 : index
    %c0_3 = arith.constant 0 : index
    %4 = vector.load %arg5[%c0_2, %c0_3] : memref<128x512xbf16, #tpu.memory_space<vmem>>, vector<128x512xbf16>
    %cst = arith.constant dense<0.000000e+00> : vector<48x512xf32>
    %5 = tpu.matmul %3, %4, %cst {dimension_numbers = #tpu.dot_dimension_numbers<[1], [0], [0], [1], [0, 0, 1, 1], [], []>} : vector<48x128xbf16>, vector<128x512xbf16>, vector<48x512xf32> -> vector<48x512xf32>
    %c0_4 = arith.constant 0 : index
    %c0_5 = arith.constant 0 : index
    %6 = vector.load %arg6[%c0_4, %c0_5] : memref<1x512xf32, #tpu.memory_space<vmem>>, vector<1x512xf32>
    %7 = vector.broadcast %6 : vector<1x512xf32> to vector<48x512xf32>
    %8 = arith.addf %5, %7 : vector<48x512xf32>
    %cst_6 = arith.constant 1.702000e+00 : f32
    %9 = vector.broadcast %cst_6 : f32 to vector<48x512xf32>
    %10 = arith.mulf %9, %8 : vector<48x512xf32>
    %11 = arith.negf %10 : vector<48x512xf32>
    %12 = math.exp %11 : vector<48x512xf32>
    %cst_7 = arith.constant 1.000000e+00 : f32
    %13 = vector.broadcast %cst_7 : f32 to vector<48x512xf32>
    %14 = arith.addf %13, %12 : vector<48x512xf32>
    %15 = arith.divf %13, %14 : vector<48x512xf32>
    %16 = arith.mulf %8, %15 : vector<48x512xf32>
    %c0_8 = arith.constant 0 : index
    %c0_9 = arith.constant 0 : index
    %17 = vector.load %arg11[%c0_8, %c0_9] : memref<48x128xf32, #tpu.memory_space<vmem>>, vector<48x128xf32>
    %18 = arith.truncf %16 : vector<48x512xf32> to vector<48x512xbf16>
    %c0_10 = arith.constant 0 : index
    %c0_11 = arith.constant 0 : index
    %19 = vector.load %arg7[%c0_10, %c0_11] : memref<512x128xbf16, #tpu.memory_space<vmem>>, vector<512x128xbf16>
    %cst_12 = arith.constant dense<0.000000e+00> : vector<48x128xf32>
    %20 = tpu.matmul %18, %19, %cst_12 {dimension_numbers = #tpu.dot_dimension_numbers<[1], [0], [0], [1], [0, 0, 1, 1], [], []>} : vector<48x512xbf16>, vector<512x128xbf16>, vector<48x128xf32> -> vector<48x128xf32>
    %21 = arith.addf %17, %20 : vector<48x128xf32>
    %c0_13 = arith.constant 0 : index
    %c0_14 = arith.constant 0 : index
    %22 = vector.load %arg11[%c0_13, %c0_14] : memref<48x128xf32, #tpu.memory_space<vmem>>, vector<48x128xf32>
    tpu.vector_store %arg11[%c0_13, %c0_14], %21 {strides = array<i32>} : memref<48x128xf32, #tpu.memory_space<vmem>>, vector<48x128xf32>,
    %c0_i32_15 = arith.constant 0 : i32
    %23 = arith.cmpi eq, %arg1, %c0_i32_15 : i32
    %24 = arith.extui %23 : i1 to i32
    %c0_i32_16 = arith.constant 0 : i32
    %25 = arith.cmpi ne, %24, %c0_i32_16 : i32
    scf.if %25 {
      %c0_17 = arith.constant 0 : index
      %c0_18 = arith.constant 0 : index
      %26 = vector.load %arg11[%c0_17, %c0_18] : memref<48x128xf32, #tpu.memory_space<vmem>>, vector<48x128xf32>
      %c0_19 = arith.constant 0 : index
      %c0_20 = arith.constant 0 : index
      %27 = vector.load %arg8[%c0_19, %c0_20] : memref<1x128xf32, #tpu.memory_space<vmem>>, vector<1x128xf32>
      %28 = vector.broadcast %27 : vector<1x128xf32> to vector<48x128xf32>
      %29 = arith.addf %26, %28 : vector<48x128xf32>
      %c0_21 = arith.constant 0 : index
      %c0_22 = arith.constant 0 : index
      %30 = vector.load %arg2[%c0_21, %c0_22] : memref<48x128xbf16, #tpu.memory_space<vmem>>, vector<48x128xbf16>
      %31 = arith.extf %30 : vector<48x128xbf16> to vector<48x128xf32>
      %32 = arith.addf %29, %31 : vector<48x128xf32>
      %33 = arith.truncf %32 : vector<48x128xf32> to vector<48x128xbf16>
      %c0_23 = arith.constant 0 : index
      %c0_24 = arith.constant 0 : index
      %34 = vector.load %arg9[%c0_23, %c0_24] : memref<48x128xbf16, #tpu.memory_space<vmem>>, vector<48x128xbf16>
      tpu.vector_store %arg9[%c0_23, %c0_24], %33 {strides = array<i32>} : memref<48x128xbf16, #tpu.memory_space<vmem>>, vector<48x128xbf16>,
    } else {
    }
    return
  }
  func.func @transform_0(%arg0: i32, %arg1: i32) -> (i32, i32) {
    %c0_i32 = arith.constant 0 : i32
    %c0_i32_0 = arith.constant 0 : i32
    return %arg0, %c0_i32 : i32, i32
  }
  func.func @transform_1(%arg0: i32, %arg1: i32) -> (i32, i32) {
    %c0_i32 = arith.constant 0 : i32
    %c0_i32_0 = arith.constant 0 : i32
    %c0_i32_1 = arith.constant 0 : i32
    return %c0_i32, %c0_i32_0 : i32, i32
  }
  func.func @transform_2(%arg0: i32, %arg1: i32) -> (i32, i32) {
    %c0_i32 = arith.constant 0 : i32
    %c0_i32_0 = arith.constant 0 : i32
    %c0_i32_1 = arith.constant 0 : i32
    return %c0_i32, %c0_i32_0 : i32, i32
  }
  func.func @transform_3(%arg0: i32, %arg1: i32) -> (i32, i32) {
    %c0_i32 = arith.constant 0 : i32
    %c0_i32_0 = arith.constant 0 : i32
    return %c0_i32, %arg1 : i32, i32
  }
  func.func @transform_4(%arg0: i32, %arg1: i32) -> (i32, i32) {
    %c0_i32 = arith.constant 0 : i32
    %c0_i32_0 = arith.constant 0 : i32
    return %c0_i32, %arg1 : i32, i32
  }
  func.func @transform_5(%arg0: i32, %arg1: i32) -> (i32, i32) {
    %c0_i32 = arith.constant 0 : i32
    %c0_i32_0 = arith.constant 0 : i32
    return %arg1, %c0_i32 : i32, i32
  }
  func.func @transform_6(%arg0: i32, %arg1: i32) -> (i32, i32) {
    %c0_i32 = arith.constant 0 : i32
    %c0_i32_0 = arith.constant 0 : i32
    %c0_i32_1 = arith.constant 0 : i32
    return %c0_i32, %c0_i32_0 : i32, i32
  }
  func.func @transform_7(%arg0: i32, %arg1: i32) -> (i32, i32) {
    %c0_i32 = arith.constant 0 : i32
    %c0_i32_0 = arith.constant 0 : i32
    return %arg0, %c0_i32 : i32, i32
  }
}

module attributes {stable_mosaic.version = 11 : i64} {
  func.func @_ln_linear_kernel(%arg0: i32, %arg1: i32, %arg2: memref<2x128xbf16, #tpu.memory_space<vmem>>, %arg3: memref<1x128xf32, #tpu.memory_space<vmem>>, %arg4: memref<1x128xf32, #tpu.memory_space<vmem>>, %arg5: memref<128x64xbf16, #tpu.memory_space<vmem>>, %arg6: memref<1x64xf32, #tpu.memory_space<vmem>>, %arg7: memref<2x64xf32, #tpu.memory_space<vmem>>, %arg8: memref<2x128xbf16, #tpu.memory_space<vmem>>) attributes {dimension_semantics = [#tpu.dimension_semantics<parallel>, #tpu.dimension_semantics<arbitrary>], iteration_bounds = array<i64: 1, 1>, scalar_prefetch = 0 : i64, scratch_operands = 1 : i64, tpu.core_type = #tpu.core_type<tc>, window_params = [{transform_indices = @transform_0, window_bounds = array<i64: 2, 128>}, {pipeline_mode = #tpu.pipeline_mode<synchronous>, transform_indices = @transform_1, window_bounds = array<i64: 1, 128>}, {pipeline_mode = #tpu.pipeline_mode<synchronous>, transform_indices = @transform_2, window_bounds = array<i64: 1, 128>}, {transform_indices = @transform_3, window_bounds = array<i64: 128, 64>}, {transform_indices = @transform_4, window_bounds = array<i64: 1, 64>}, {transform_indices = @transform_5, window_bounds = array<i64: 2, 64>}]} {
    %c0_i32 = arith.constant 0 : i32
    %0 = arith.cmpi eq, %arg1, %c0_i32 : i32
    %1 = arith.extui %0 : i1 to i32
    %c0_i32_0 = arith.constant 0 : i32
    %2 = arith.cmpi ne, %1, %c0_i32_0 : i32
    scf.if %2 {
      %c0_8 = arith.constant 0 : index
      %c0_9 = arith.constant 0 : index
      %10 = vector.load %arg2[%c0_8, %c0_9] : memref<2x128xbf16, #tpu.memory_space<vmem>>, vector<2x128xbf16>
      %11 = arith.extf %10 : vector<2x128xbf16> to vector<2x128xf32>
      %cst_10 = arith.constant dense<0.000000e+00> : vector<2xf32>
      %12 = vector.multi_reduction <add>, %11, %cst_10 [1] : vector<2x128xf32> to vector<2xf32>
      %13 = vector.shape_cast %12 : vector<2xf32> to vector<2x1xf32>
      %cst_11 = arith.constant 1.280000e+02 : f32
      %14 = vector.broadcast %cst_11 : f32 to vector<2x1xf32>
      %15 = arith.divf %13, %14 : vector<2x1xf32>
      %16 = vector.broadcast %15 : vector<2x1xf32> to vector<2x128xf32>
      %17 = arith.subf %11, %16 : vector<2x128xf32>
      %18 = arith.mulf %17, %17 : vector<2x128xf32>
      %cst_12 = arith.constant dense<0.000000e+00> : vector<2xf32>
      %19 = vector.multi_reduction <add>, %18, %cst_12 [1] : vector<2x128xf32> to vector<2xf32>
      %20 = vector.shape_cast %19 : vector<2xf32> to vector<2x1xf32>
      %cst_13 = arith.constant 1.280000e+02 : f32
      %21 = vector.broadcast %cst_13 : f32 to vector<2x1xf32>
      %22 = arith.divf %20, %21 : vector<2x1xf32>
      %cst_14 = arith.constant 9.99999974E-6 : f32
      %23 = vector.broadcast %cst_14 : f32 to vector<2x1xf32>
      %24 = arith.addf %22, %23 : vector<2x1xf32>
      %25 = math.rsqrt %24 : vector<2x1xf32>
      %26 = vector.broadcast %25 : vector<2x1xf32> to vector<2x128xf32>
      %27 = arith.mulf %17, %26 : vector<2x128xf32>
      %c0_15 = arith.constant 0 : index
      %c0_16 = arith.constant 0 : index
      %28 = vector.load %arg3[%c0_15, %c0_16] : memref<1x128xf32, #tpu.memory_space<vmem>>, vector<1x128xf32>
      %29 = vector.broadcast %28 : vector<1x128xf32> to vector<2x128xf32>
      %30 = arith.mulf %27, %29 : vector<2x128xf32>
      %c0_17 = arith.constant 0 : index
      %c0_18 = arith.constant 0 : index
      %31 = vector.load %arg4[%c0_17, %c0_18] : memref<1x128xf32, #tpu.memory_space<vmem>>, vector<1x128xf32>
      %32 = vector.broadcast %31 : vector<1x128xf32> to vector<2x128xf32>
      %33 = arith.addf %30, %32 : vector<2x128xf32>
      %34 = arith.truncf %33 : vector<2x128xf32> to vector<2x128xbf16>
      %c0_19 = arith.constant 0 : index
      %c0_20 = arith.constant 0 : index
      %35 = vector.load %arg8[%c0_19, %c0_20] : memref<2x128xbf16, #tpu.memory_space<vmem>>, vector<2x128xbf16>
      tpu.vector_store %arg8[%c0_19, %c0_20], %34 {strides = array<i32>} : memref<2x128xbf16, #tpu.memory_space<vmem>>, vector<2x128xbf16>,
    } else {
    }
    %c0 = arith.constant 0 : index
    %c0_1 = arith.constant 0 : index
    %3 = vector.load %arg8[%c0, %c0_1] : memref<2x128xbf16, #tpu.memory_space<vmem>>, vector<2x128xbf16>
    %c0_2 = arith.constant 0 : index
    %c0_3 = arith.constant 0 : index
    %4 = vector.load %arg5[%c0_2, %c0_3] : memref<128x64xbf16, #tpu.memory_space<vmem>>, vector<128x64xbf16>
    %cst = arith.constant dense<0.000000e+00> : vector<2x64xf32>
    %5 = tpu.matmul %3, %4, %cst {dimension_numbers = #tpu.dot_dimension_numbers<[1], [0], [0], [1], [0, 0, 1, 1], [], []>} : vector<2x128xbf16>, vector<128x64xbf16>, vector<2x64xf32> -> vector<2x64xf32>
    %c0_4 = arith.constant 0 : index
    %c0_5 = arith.constant 0 : index
    %6 = vector.load %arg6[%c0_4, %c0_5] : memref<1x64xf32, #tpu.memory_space<vmem>>, vector<1x64xf32>
    %7 = vector.broadcast %6 : vector<1x64xf32> to vector<2x64xf32>
    %8 = arith.addf %5, %7 : vector<2x64xf32>
    %c0_6 = arith.constant 0 : index
    %c0_7 = arith.constant 0 : index
    %9 = vector.load %arg7[%c0_6, %c0_7] : memref<2x64xf32, #tpu.memory_space<vmem>>, vector<2x64xf32>
    tpu.vector_store %arg7[%c0_6, %c0_7], %8 {strides = array<i32>} : memref<2x64xf32, #tpu.memory_space<vmem>>, vector<2x64xf32>,
    return
  }
  func.func @transform_0(%arg0: i32, %arg1: i32) -> (i32, i32) {
    %c0_i32 = arith.constant 0 : i32
    %c0_i32_0 = arith.constant 0 : i32
    return %arg0, %c0_i32 : i32, i32
  }
  func.func @transform_1(%arg0: i32, %arg1: i32) -> (i32, i32) {
    %c0_i32 = arith.constant 0 : i32
    %c0_i32_0 = arith.constant 0 : i32
    %c0_i32_1 = arith.constant 0 : i32
    return %c0_i32, %c0_i32_0 : i32, i32
  }
  func.func @transform_2(%arg0: i32, %arg1: i32) -> (i32, i32) {
    %c0_i32 = arith.constant 0 : i32
    %c0_i32_0 = arith.constant 0 : i32
    %c0_i32_1 = arith.constant 0 : i32
    return %c0_i32, %c0_i32_0 : i32, i32
  }
  func.func @transform_3(%arg0: i32, %arg1: i32) -> (i32, i32) {
    %c0_i32 = arith.constant 0 : i32
    %c0_i32_0 = arith.constant 0 : i32
    return %c0_i32, %arg1 : i32, i32
  }
  func.func @transform_4(%arg0: i32, %arg1: i32) -> (i32, i32) {
    %c0_i32 = arith.constant 0 : i32
    %c0_i32_0 = arith.constant 0 : i32
    return %c0_i32, %arg1 : i32, i32
  }
  func.func @transform_5(%arg0: i32, %arg1: i32) -> (i32, i32) {
    %c0_i32 = arith.constant 0 : i32
    return %arg0, %arg1 : i32, i32
  }
}

module attributes {stable_mosaic.version = 11 : i64} {
  func.func @_head_kernel(%arg0: memref<2x64xf32, #tpu.memory_space<vmem>>, %arg1: memref<64x8xbf16, #tpu.memory_space<vmem>>, %arg2: memref<2x8xf32, #tpu.memory_space<vmem>>) attributes {dimension_semantics = [], scalar_prefetch = 0 : i64, scratch_operands = 0 : i64, tpu.core_type = #tpu.core_type<tc>} {
    %c0 = arith.constant 0 : index
    %c0_0 = arith.constant 0 : index
    %0 = vector.load %arg0[%c0, %c0_0] : memref<2x64xf32, #tpu.memory_space<vmem>>, vector<2x64xf32>
    %1 = arith.mulf %0, %0 : vector<2x64xf32>
    %cst = arith.constant dense<0.000000e+00> : vector<2xf32>
    %2 = vector.multi_reduction <add>, %1, %cst [1] : vector<2x64xf32> to vector<2xf32>
    %3 = vector.shape_cast %2 : vector<2xf32> to vector<2x1xf32>
    %cst_1 = arith.constant 1.000000e-24 : f32
    %4 = vector.broadcast %cst_1 : f32 to vector<2x1xf32>
    %5 = arith.maximumf %3, %4 : vector<2x1xf32>
    %6 = math.rsqrt %5 : vector<2x1xf32>
    %7 = vector.broadcast %6 : vector<2x1xf32> to vector<2x64xf32>
    %8 = arith.mulf %0, %7 : vector<2x64xf32>
    %9 = arith.truncf %8 : vector<2x64xf32> to vector<2x64xbf16>
    %c0_2 = arith.constant 0 : index
    %c0_3 = arith.constant 0 : index
    %10 = vector.load %arg1[%c0_2, %c0_3] : memref<64x8xbf16, #tpu.memory_space<vmem>>, vector<64x8xbf16>
    %cst_4 = arith.constant dense<0.000000e+00> : vector<2x8xf32>
    %11 = tpu.matmul %9, %10, %cst_4 {dimension_numbers = #tpu.dot_dimension_numbers<[1], [0], [0], [1], [0, 0, 1, 1], [], []>} : vector<2x64xbf16>, vector<64x8xbf16>, vector<2x8xf32> -> vector<2x8xf32>
    %cst_5 = arith.constant 14.2857141 : f32
    %12 = vector.broadcast %cst_5 : f32 to vector<2x8xf32>
    %13 = arith.mulf %12, %11 : vector<2x8xf32>
    %c0_6 = arith.constant 0 : index
    %c0_7 = arith.constant 0 : index
    %14 = vector.load %arg2[%c0_6, %c0_7] : memref<2x8xf32, #tpu.memory_space<vmem>>, vector<2x8xf32>
    tpu.vector_store %arg2[%c0_6, %c0_7], %13 {strides = array<i32>} : memref<2x8xf32, #tpu.memory_space<vmem>>, vector<2x8xf32>,
    return
  }
}

</mosaic_0001>

<llo_original>
// kernel: _lambda_.12
$region0: #{_lambda_.12}
  #allocation0 [shape = 'u32[]', space=smem, size = 0x4, offset = 0x4, fixed_abs, tag = 'smem constant byte address 0x4 - core index']
  #allocation1 [shape = 'u32[72,128]{1,0:T(1,128)}', space=vmem, size = 0x9000, scoped, tag = 'internal scratch']
  #allocation2 [shape = 'f32[32,128]{1,0:T(8,128)}', space=vmem, size = 0x4000, scoped, tag = 'scratch operand']
  %s0 = inlined_call_operand.vmem [shape: bf16[32,48], index: 0, kind: input, shape index: {}]
  %s1 = inlined_call_operand.hbm [shape: bf16[48,128], index: 1, kind: input, shape index: {}]
  %s2 = inlined_call_operand.vmem [shape: bf16[32,128], index: 2, kind: output, shape index: {}]
  %s3 = sld [smem:[#allocation0]]
  $region30: #{_lambda_.12} parent=0
    _
  %s5 = ssub.s32 1, %s3
  %s6 = scalar_select 0, %s5, %s3
  $region1: #{_lambda_.12} parent=0
    #allocation3 [shape = 'u8[12288]{0}', space=vmem, size = 0x3000, scoped, tag = 'input window, operand 1, single buffered']
    #allocation4 [shape = 's32[1]{0}', space=sflag, size = 0x4, scoped, tag = 'scoped memory for _lambda_.12']
    %7 = vsyncpa [#allocation4], 0
    // Predicated region
    $region2: #{_lambda_.12} parent=1 // pred_check
      _
    $region3: #{_lambda_.12} parent=1 // pred_check_branch
      %9 = sbr.rel (0) target = $region5
    $region4: #{_lambda_.12} parent=1 // pred_region
      _
    $region5: #{_lambda_.12} parent=1 // pred_fallthru
      _
    // Predicated region
    $region6: #{_lambda_.12} parent=1 // pred_check
      _
    $region7: #{_lambda_.12} parent=1 // pred_check_branch
      %11 = sbr.rel (0) target = $region9
    $region8: #{_lambda_.12} parent=1 // pred_region
      %13 = vsyncadd [#allocation4], 0
      %s14 = sshll.u32 %s1, 4
      %s15 = int_to_ptr.hbm [resolvable:$true] %s14
      %s16 = sshll.u32 [#allocation3], 4
      %s17 = int_to_ptr.vmem [resolvable:$true] %s16
      %22 = dma.hbm_to_vmem [thread:$0]  %s15, 384, %s17, [#allocation4], 64, 64, 4
    $region9: #{_lambda_.12} parent=1 // pred_fallthru
      _
    // Predicated region
    $region10: #{_lambda_.12} parent=1 // pred_check
      _
    $region11: #{_lambda_.12} parent=1 // pred_check_branch
      %24 = sbr.rel (0) target = $region13
    $region12: #{_lambda_.12} parent=1 // pred_region
      %26 = dma.done [#allocation4], 384
    $region13: #{_lambda_.12} parent=1 // pred_fallthru
      _
    %p28 = scmp.eq.s32.totalorder 0, 0
    // Predicated region
    $region14: #{_lambda_.12} parent=1 // pred_check
      %p29 = pneg %p28
    $region15: #{_lambda_.12} parent=1 // pred_check_branch
      %31 = sbr.rel (%p29) target = $region17
    $region16: #{_lambda_.12} parent=1 // pred_region
      %32 = vst [vmem:[#allocation2] sm:$0xff] 0.0
      %33 = vst [vmem:[#allocation2 + $0x8] sm:$0xff] 0.0
      %34 = vst [vmem:[#allocation2 + $0x10] sm:$0xff] 0.0
      %35 = vst [vmem:[#allocation2 + $0x18] sm:$0xff] 0.0
    $region17: #{_lambda_.12} parent=1 // pred_fallthru
      _
    %v36 = vld [vmem:[#allocation2] sm:$0xff]
    %v37 = vld [vmem:[#allocation2 + $0x8] sm:$0xff]
    %v38 = vld [vmem:[#allocation2 + $0x10] sm:$0xff]
    %v39 = vld [vmem:[#allocation2 + $0x18] sm:$0xff]
    %v40 = vld [vmem:[%s0] sm:$0xf]
    %v41 = vld [vmem:[%s0 + $0x4] sm:$0xf]
    %v42 = vld [vmem:[%s0 + $0x8] sm:$0xf]
    %v43 = vld [vmem:[%s0 + $0xc] sm:$0xf]
    %v44 = vld [vmem:[#allocation3] sm:$0xf]
    %v45 = vld [vmem:[#allocation3 + $0x4] sm:$0xf]
    %v46 = vld [vmem:[#allocation3 + $0x8] sm:$0xf]
    %v47 = vld [vmem:[#allocation3 + $0xc] sm:$0xf]
    %v48 = vld [vmem:[#allocation3 + $0x10] sm:$0xf]
    %v49 = vld [vmem:[#allocation3 + $0x14] sm:$0xf]
    %v54 = vunpack.c.l.b16 %v40
    %v55 = vunpack.c.l.b16 %v41
    %v56 = vunpack.c.l.b16 %v42
    %v57 = vunpack.c.l.b16 %v43
    %v58 = vpack.c.b16 %v55, %v54
    %v59 = vpack.c.b16 %v57, %v56
    %v66 = vunpack.c.l.b16 %v44
    %v67 = vunpack.c.l.b16 %v45
    %v68 = vunpack.c.l.b16 %v46
    %v69 = vunpack.c.l.b16 %v47
    %v70 = vunpack.c.l.b16 %v48
    %v71 = vunpack.c.l.b16 %v49
    %v72 = vpack.c.b16 %v67, %v66
    %v73 = vpack.c.b16 %v69, %v68
    %v74 = vpack.c.b16 %v71, %v70
    %vm78 = vcmask 392192
    %v80 = vsel %vm78, %v58, 0
    %v83 = vsel %vm78, %v59, 0
    %85 = vmatpush.bf16.msra.mxu0 0
    %86 = vmatpush.bf16.msra.mxu0 0
    %87 = vmatpush.bf16.msra.mxu0 0
    %88 = vmatpush.bf16.msra.mxu0 0
    %89 = vmatpush.bf16.msra.mxu0 0
    %90 = vmatpush.bf16.msra.mxu0 %v74
    %91 = vmatpush.bf16.msra.mxu0 %v73
    %92 = vmatpush.bf16.msra.mxu0 %v72
    %93 = vmatmul.bf16.gmra.mxu0 %v80
    %v94 = vpop.f32.mrf.mxu0
    %v95 = vadd.f32 0.0, %v94
    %v96 = vpop.f32.mrf.mxu0
    %v97 = vadd.f32 0.0, %v96
    %98 = vmatmul.bf16.gmra.mxu0 %v83
    %v99 = vpop.f32.mrf.mxu0
    %v100 = vadd.f32 0.0, %v99
    %v101 = vpop.f32.mrf.mxu0
    %v102 = vadd.f32 0.0, %v101
    %103 = vdwg.mxu0
    %v104 = vadd.f32 %v36, %v95
    %v105 = vadd.f32 %v37, %v97
    %v106 = vadd.f32 %v38, %v100
    %v107 = vadd.f32 %v39, %v102
    %108 = vst [vmem:[#allocation2] sm:$0xff] %v104
    %109 = vst [vmem:[#allocation2 + $0x8] sm:$0xff] %v105
    %110 = vst [vmem:[#allocation2 + $0x10] sm:$0xff] %v106
    %111 = vst [vmem:[#allocation2 + $0x18] sm:$0xff] %v107
    // Predicated region
    $region18: #{_lambda_.12} parent=1 // pred_check
      %p112 = pneg %p28
    $region19: #{_lambda_.12} parent=1 // pred_check_branch
      %114 = sbr.rel (%p112) target = $region21
    $region20: #{_lambda_.12} parent=1 // pred_region
      %v115 = vld [vmem:[#allocation2] sm:$0xff]
      %v116 = vld [vmem:[#allocation2 + $0x8] sm:$0xff]
      %v117 = vld [vmem:[#allocation2 + $0x10] sm:$0xff]
      %v118 = vld [vmem:[#allocation2 + $0x18] sm:$0xff]
      %v119 = vpack.c.bf16 %v115, %v115
      %v120 = vpack.c.bf16 %v116, %v116
      %v121 = vpack.c.bf16 %v117, %v117
      %v122 = vpack.c.bf16 %v118, %v118
      %123 = vst [vmem:[%s2] sm:$0xf] %v119
      %124 = vst [vmem:[%s2 + $0x4] sm:$0xf] %v120
      %125 = vst [vmem:[%s2 + $0x8] sm:$0xf] %v121
      %126 = vst [vmem:[%s2 + $0xc] sm:$0xf] %v122
    $region21: #{_lambda_.12} parent=1 // pred_fallthru
      _
    // Predicated region
    $region22: #{_lambda_.12} parent=1 // pred_check
      _
    $region23: #{_lambda_.12} parent=1 // pred_check_branch
      %128 = sbr.rel (0) target = $region25
    $region24: #{_lambda_.12} parent=1 // pred_region
      _
    $region25: #{_lambda_.12} parent=1 // pred_fallthru
      _
    // Predicated region
    $region26: #{_lambda_.12} parent=1 // pred_check
      _
    $region27: #{_lambda_.12} parent=1 // pred_check_branch
      %130 = sbr.rel (0) target = $region29
    $region28: #{_lambda_.12} parent=1 // pred_region
      _
    $region29: #{_lambda_.12} parent=1 // pred_fallthru
      _
    %131 = vsyncpa [#allocation4], 1

// kernel: _lambda_.13
$region0: #{_lambda_.13}
  #allocation0 [shape = 'u32[]', space=smem, size = 0x4, offset = 0x4, fixed_abs, tag = 'smem constant byte address 0x4 - core index']
  #allocation1 [shape = 'u32[72,128]{1,0:T(1,128)}', space=vmem, size = 0x9000, scoped, tag = 'internal scratch']
  %s0 = inlined_call_operand.vmem [shape: bf16[48,128], index: 0, kind: input, shape index: {}]
  %s1 = inlined_call_operand.vmem [shape: f32[24,128], index: 1, kind: input, shape index: {}]
  %s2 = inlined_call_operand.vmem [shape: f32[1,128], index: 2, kind: input, shape index: {}]
  %s3 = inlined_call_operand.vmem [shape: f32[1,128], index: 3, kind: input, shape index: {}]
  %s4 = inlined_call_operand.vmem [shape: bf16[48,128], index: 4, kind: output, shape index: {}]
  %s5 = sld [smem:[#allocation0]]
  $region49: #{_lambda_.13} parent=0
    _
  %s7 = ssub.s32 1, %s5
  %s8 = scalar_select 0, %s7, %s5
  loop: start=0, step=1, limit=4
  $region2: #{_lambda_.13} parent=0 // loop_pre_header
    _
  $region3: #{_lambda_.13} parent=0 // loop_header
    %s10 = sphi 0, %s14
    %p11 = scmp.ge.s32.totalorder %s10, 4
    %s20 = sphi 0, %s22
    %s23 = sphi 0, %s20
    %s24 = sphi 0, %s23
    %s40 = sphi 0, %s24
    %s44 = sphi 0, %s44
    %s46 = sphi 0, %s44
    %s47 = sphi 0, %s46
    %s61 = sphi 0, %s47
    %s65 = sphi 0, %s65
    %s67 = sphi 0, %s65
    %s68 = sphi 0, %s67
    %s82 = sphi 0, %s68
    %s86 = sphi 0, %s86
    %s88 = sphi 0, %s86
    %s89 = sphi 0, %s88
    %s103 = sphi 0, %s89
    %s109 = sphi 0, %s111
    %s112 = sphi 0, %s109
    %s113 = sphi 0, %s112
    %s129 = sphi 0, %s113
  $region4: #{_lambda_.13} parent=0 // loop_header_branch
    %13 = sbr.rel (%p11) target = $region8
  $region5: #{_lambda_.13} parent=0 // loop_body
    %s15 = ssub.s32 %s10, 1
    %s16 = ssub.s32 %s10, 2
    %s17 = sadd.s32 %s10, 1
    %s18 = ssub.s32 %s10, %s17
    %p19 = scmp.eq.s32.totalorder %s18, 0
    %s21 = sadd.s32 %s20, 1
    %s22 = scalar_select %p19, %s20, %s21
    %p25 = pneg %p19
    %p26 = scmp.eq.s32.totalorder %s10, 1
    %p27 = por %p25, %p26
    %p28 = scmp.ne.s32.totalorder %s20, %s23
    %p29 = scmp.eq.s32.totalorder %s10, 0
    %p30 = por %p28, %p29
    %p31 = scmp.ne.s32.totalorder %s20, %s23
    %p32 = scmp.eq.s32.totalorder %s15, 1
    %p33 = por %p31, %p32
    %p34 = scmp.ne.s32.totalorder %s23, %s24
    %p35 = scmp.eq.s32.totalorder %s15, 0
    %p36 = por %p34, %p35
    %p37 = scmp.ne.s32.totalorder %s23, %s24
    %p38 = scmp.eq.s32.totalorder %s16, 1
    %p39 = por %p37, %p38
    %p41 = scmp.ne.s32.totalorder %s24, %s40
    %p42 = scmp.eq.s32.totalorder %s16, 0
    %p43 = por %p41, %p42
    %s45 = sadd.s32 %s44, 1
    %p48 = scmp.eq.s32.totalorder %s10, 1
    %p49 = scmp.ne.s32.totalorder %s44, %s46
    %p50 = scmp.eq.s32.totalorder %s10, 0
    %p51 = por %p49, %p50
    %p52 = scmp.ne.s32.totalorder %s44, %s46
    %p53 = scmp.eq.s32.totalorder %s15, 1
    %p54 = por %p52, %p53
    %p55 = scmp.ne.s32.totalorder %s46, %s47
    %p56 = scmp.eq.s32.totalorder %s15, 0
    %p57 = por %p55, %p56
    %p58 = scmp.ne.s32.totalorder %s46, %s47
    %p59 = scmp.eq.s32.totalorder %s16, 1
    %p60 = por %p58, %p59
    %p62 = scmp.ne.s32.totalorder %s47, %s61
    %p63 = scmp.eq.s32.totalorder %s16, 0
    %p64 = por %p62, %p63
    %s66 = sadd.s32 %s65, 1
    %p69 = scmp.eq.s32.totalorder %s10, 1
    %p70 = scmp.ne.s32.totalorder %s65, %s67
    %p71 = scmp.eq.s32.totalorder %s10, 0
    %p72 = por %p70, %p71
    %p73 = scmp.ne.s32.totalorder %s65, %s67
    %p74 = scmp.eq.s32.totalorder %s15, 1
    %p75 = por %p73, %p74
    %p76 = scmp.ne.s32.totalorder %s67, %s68
    %p77 = scmp.eq.s32.totalorder %s15, 0
    %p78 = por %p76, %p77
    %p79 = scmp.ne.s32.totalorder %s67, %s68
    %p80 = scmp.eq.s32.totalorder %s16, 1
    %p81 = por %p79, %p80
    %p83 = scmp.ne.s32.totalorder %s68, %s82
    %p84 = scmp.eq.s32.totalorder %s16, 0
    %p85 = por %p83, %p84
    %s87 = sadd.s32 %s86, 1
    %p90 = scmp.eq.s32.totalorder %s10, 1
    %p91 = scmp.ne.s32.totalorder %s86, %s88
    %p92 = scmp.eq.s32.totalorder %s10, 0
    %p93 = por %p91, %p92
    %p94 = scmp.ne.s32.totalorder %s86, %s88
    %p95 = scmp.eq.s32.totalorder %s15, 1
    %p96 = por %p94, %p95
    %p97 = scmp.ne.s32.totalorder %s88, %s89
    %p98 = scmp.eq.s32.totalorder %s15, 0
    %p99 = por %p97, %p98
    %p100 = scmp.ne.s32.totalorder %s88, %s89
    %p101 = scmp.eq.s32.totalorder %s16, 1
    %p102 = por %p100, %p101
    %p104 = scmp.ne.s32.totalorder %s89, %s103
    %p105 = scmp.eq.s32.totalorder %s16, 0
    %p106 = por %p104, %p105
    %s107 = ssub.s32 %s10, %s17
    %p108 = scmp.eq.s32.totalorder %s107, 0
    %s110 = sadd.s32 %s109, 1
    %s111 = scalar_select %p108, %s109, %s110
    %p114 = pneg %p108
    %p115 = scmp.eq.s32.totalorder %s10, 1
    %p116 = por %p114, %p115
    %p117 = scmp.ne.s32.totalorder %s109, %s112
    %p118 = scmp.eq.s32.totalorder %s10, 0
    %p119 = por %p117, %p118
    %p120 = scmp.ne.s32.totalorder %s109, %s112
    %p121 = scmp.eq.s32.totalorder %s15, 1
    %p122 = por %p120, %p121
    %p123 = scmp.ne.s32.totalorder %s112, %s113
    %p124 = scmp.eq.s32.totalorder %s15, 0
    %p125 = por %p123, %p124
    %p126 = scmp.ne.s32.totalorder %s112, %s113
    %p127 = scmp.eq.s32.totalorder %s16, 1
    %p128 = por %p126, %p127
    %p130 = scmp.ne.s32.totalorder %s113, %s129
    %p131 = scmp.eq.s32.totalorder %s16, 0
    %p132 = por %p130, %p131
    %p133 = scmp.le.s32.totalorder 1, %s10
    %p134 = scmp.lt.s32.totalorder %s10, 3
    %p135 = pnand %p133, %p134
    %p136 = pneg %p135
    // Predicated region
    $region9: #{_lambda_.13} parent=5 // pred_check
      _
    $region10: #{_lambda_.13} parent=5 // pred_check_branch
      %138 = sbr.rel (%p135) target = $region12
    $region11: #{_lambda_.13} parent=5 // pred_region
      %s139 = ssub.s32 %s10, 1
      // Predicated region
      $region13: #{_lambda_.13} parent=11 // pred_check
        %p140 = pneg %p57
      $region14: #{_lambda_.13} parent=11 // pred_check_branch
        %142 = sbr.rel (%p140) target = $region16
      $region15: #{_lambda_.13} parent=11 // pred_region
        _
      $region16: #{_lambda_.13} parent=11 // pred_fallthru
        _
      // Predicated region
      $region17: #{_lambda_.13} parent=11 // pred_check
        %p143 = pneg %p78
      $region18: #{_lambda_.13} parent=11 // pred_check_branch
        %145 = sbr.rel (%p143) target = $region20
      $region19: #{_lambda_.13} parent=11 // pred_region
        _
      $region20: #{_lambda_.13} parent=11 // pred_fallthru
        _
      // Predicated region
      $region21: #{_lambda_.13} parent=11 // pred_check
        %p146 = pneg %p99
      $region22: #{_lambda_.13} parent=11 // pred_check_branch
        %148 = sbr.rel (%p146) target = $region24
      $region23: #{_lambda_.13} parent=11 // pred_region
        _
      $region24: #{_lambda_.13} parent=11 // pred_fallthru
        _
    $region12: #{_lambda_.13} parent=5 // pred_fallthru
      _
    %p149 = scmp.lt.s32.totalorder %s10, 2
    // Predicated region
    $region25: #{_lambda_.13} parent=5 // pred_check
      %p150 = pneg %p149
    $region26: #{_lambda_.13} parent=5 // pred_check_branch
      %152 = sbr.rel (%p150) target = $region28
    $region27: #{_lambda_.13} parent=5 // pred_region
      // Predicated region
      $region29: #{_lambda_.13} parent=27 // pred_check
        %p153 = pneg %p30
      $region30: #{_lambda_.13} parent=27 // pred_check_branch
        %155 = sbr.rel (%p153) target = $region32
      $region31: #{_lambda_.13} parent=27 // pred_region
        %s156 = smul.u32 3, %s10
        %p157 = scmp.lt.s32.totalorder %s156, 5
        %s158 = scalar_select %p157, %s156, 5
        %s159 = smul.addr %s158, 4
        %s160 = scalar_lea.vmem %s0, %s159
        %s161 = smul.u32 3, %s10
      $region32: #{_lambda_.13} parent=27 // pred_fallthru
        _
    $region28: #{_lambda_.13} parent=5 // pred_fallthru
      _
    %p162 = scmp.le.s32.totalorder 1, %s10
    %p163 = scmp.lt.s32.totalorder %s10, 3
    %p164 = pnand %p162, %p163
    %p165 = pneg %p164
    // Predicated region
    $region33: #{_lambda_.13} parent=5 // pred_check
      _
    $region34: #{_lambda_.13} parent=5 // pred_check_branch
      %167 = sbr.rel (%p164) target = $region36
    $region35: #{_lambda_.13} parent=5 // pred_region
      %s168 = ssub.s32 %s10, 1
      %s169 = smul.u32 3, %s15
      %p170 = scmp.lt.s32.totalorder %s169, 5
      %s171 = scalar_select %p170, %s169, 5
      %s172 = smul.addr %s171, 4
      %s173 = scalar_lea.vmem %s0, %s172
      %p174 = pneg %p36
      %p175 = pneg %p33
      %p176 = pneg %p57
      %p177 = pneg %p54
      %p178 = pneg %p78
      %p179 = pneg %p75
      %p180 = pneg %p99
      %p181 = pneg %p96
      %p182 = pneg %p125
      %p183 = pneg %p122
      %s184 = smul.u32 3, %s15
      %p185 = scmp.lt.s32.totalorder %s184, 5
      %s186 = scalar_select %p185, %s184, 5
      %s187 = smul.addr %s186, 4
      %s188 = scalar_lea.vmem %s4, %s187
      %s189 = smul.u32 3, %s15
      %p190 = scmp.lt.s32.totalorder %s189, 5
      %s191 = scalar_select %p190, %s189, 5
      %s192 = smul.addr %s191, 4
      %s193 = scalar_lea.vmem %s0, %s192
      %s194 = smul.u32 3, %s15
      %s195 = smul.u32 3, %s15
      %p196 = scmp.lt.s32.totalorder %s195, 5
      %s197 = scalar_select %p196, %s195, 5
      %s198 = smul.addr %s197, 4
      %s199 = scalar_lea.vmem %s4, %s198
      %s200 = smul.u32 3, %s15
      %v201 = vld [vmem:[%s193] sm:$0xf]
      %v202 = vld [vmem:[%s193 + $0x4] sm:$0xf]
      %v203 = vld [vmem:[%s193 + $0x8] sm:$0xf]
      %v204 = vunpack.c.l.bf16 %v201
      %v205 = vunpack.c.l.bf16 %v202
      %v206 = vunpack.c.l.bf16 %v203
      %v207 = vld [vmem:[%s1] sm:$0xff]
      %v208 = vld [vmem:[%s1 + $0x8] sm:$0xff]
      %v209 = vld [vmem:[%s1 + $0x10] sm:$0xff]
      %v210 = vadd.f32 %v204, %v207
      %v211 = vadd.f32 %v205, %v208
      %v212 = vadd.f32 %v206, %v209
      %213 = vadd.xlane.f32.xlu0 %v210
      %v214 = vpop.xlane.xlu0 %213
      %215 = vadd.xlane.f32.xlu0 %v211
      %v216 = vpop.xlane.xlu0 %215
      %217 = vadd.xlane.f32.xlu0 %v212
      %v218 = vpop.xlane.xlu0 %217
      %v219 = vrcp.pop 128.0
      %v220 = vmul.f32 128.0, %v219
      %v221 = vsub.f32 1.0, %v220
      %v222 = vmul.f32 %v219, %v221
      %v223 = vadd.f32 %v219, %v222
      %vm224 = vweird.f32 %v219
      %v225 = vsel %vm224, %v219, %v223
      %v226 = vmul.f32 %v214, %v225
      %v227 = vmul.f32 %v216, %v225
      %v228 = vmul.f32 %v218, %v225
      %v229 = vsub.f32 %v210, %v226
      %v230 = vsub.f32 %v211, %v227
      %v231 = vsub.f32 %v212, %v228
      %v232 = vmul.f32 %v229, %v229
      %v233 = vmul.f32 %v230, %v230
      %v234 = vmul.f32 %v231, %v231
      %235 = vadd.xlane.f32.xlu0 %v232
      %v236 = vpop.xlane.xlu0 %235
      %237 = vadd.xlane.f32.xlu0 %v233
      %v238 = vpop.xlane.xlu0 %237
      %239 = vadd.xlane.f32.xlu0 %v234
      %v240 = vpop.xlane.xlu0 %239
      %v241 = vmul.f32 %v236, %v225
      %v242 = vmul.f32 %v238, %v225
      %v243 = vmul.f32 %v240, %v225
      %v244 = vadd.f32 %v241, 1e-05
      %v245 = vadd.f32 %v242, 1e-05
      %v246 = vadd.f32 %v243, 1e-05
      %v247 = vrsqrt.pop %v244
      %v248 = vmul.f32 %v247, %v244
      %v249 = vmul.f32 %v248, %v247
      %v250 = vmul.f32 0.5, %v249
      %v251 = vsub.f32 1.5, %v250
      %v252 = vmul.f32 %v247, %v251
      %vm253 = vweird.f32 %v244
      %vm254 = vweird.f32 %v247
      %vm255 = vmor %vm253, %vm254
      %v256 = vsel %vm255, %v247, %v252
      %v257 = vrsqrt.pop %v245
      %v258 = vmul.f32 %v257, %v245
      %v259 = vmul.f32 %v258, %v257
      %v260 = vmul.f32 0.5, %v259
      %v261 = vsub.f32 1.5, %v260
      %v262 = vmul.f32 %v257, %v261
      %vm263 = vweird.f32 %v245
      %vm264 = vweird.f32 %v257
      %vm265 = vmor %vm263, %vm264
      %v266 = vsel %vm265, %v257, %v262
      %v267 = vrsqrt.pop %v246
      %v268 = vmul.f32 %v267, %v246
      %v269 = vmul.f32 %v268, %v267
      %v270 = vmul.f32 0.5, %v269
      %v271 = vsub.f32 1.5, %v270
      %v272 = vmul.f32 %v267, %v271
      %vm273 = vweird.f32 %v246
      %vm274 = vweird.f32 %v267
      %vm275 = vmor %vm273, %vm274
      %v276 = vsel %vm275, %v267, %v272
      %v277 = vmul.f32 %v229, %v256
      %v278 = vmul.f32 %v230, %v266
      %v279 = vmul.f32 %v231, %v276
      %v280 = vld [vmem:[%s2] sm:$0x1]
      %v282 = vperm.slane %v280, 0
      %v284 = vmul.f32 %v277, %v282
      %v285 = vmul.f32 %v278, %v282
      %v286 = vmul.f32 %v279, %v282
      %v287 = vld [vmem:[%s3] sm:$0x1]
      %v289 = vperm.slane %v287, 0
      %v291 = vadd.f32 %v284, %v289
      %v292 = vadd.f32 %v285, %v289
      %v293 = vadd.f32 %v286, %v289
      %v294 = vpack.c.bf16 %v291, %v291
      %v295 = vpack.c.bf16 %v292, %v292
      %v296 = vpack.c.bf16 %v293, %v293
      %297 = vst [vmem:[%s199] sm:$0xf] %v294
      %298 = vst [vmem:[%s199 + $0x4] sm:$0xf] %v295
      %299 = vst [vmem:[%s199 + $0x8] sm:$0xf] %v296
      %s300 = smul.u32 3, %s15
      %p301 = scmp.lt.s32.totalorder %s300, 5
      %s302 = scalar_select %p301, %s300, 5
      %s303 = smul.addr %s302, 4
      %s304 = scalar_lea.vmem %s4, %s303
      // Predicated region
      $region37: #{_lambda_.13} parent=35 // pred_check
        %p305 = pneg %p122
      $region38: #{_lambda_.13} parent=35 // pred_check_branch
        %307 = sbr.rel (%p305) target = $region40
      $region39: #{_lambda_.13} parent=35 // pred_region
        %s308 = smul.u32 3, %s15
      $region40: #{_lambda_.13} parent=35 // pred_fallthru
        _
    $region36: #{_lambda_.13} parent=5 // pred_fallthru
      _
    %p309 = scmp.le.s32.totalorder 2, %s10
    // Predicated region
    $region41: #{_lambda_.13} parent=5 // pred_check
      %p310 = pneg %p309
    $region42: #{_lambda_.13} parent=5 // pred_check_branch
      %312 = sbr.rel (%p310) target = $region44
    $region43: #{_lambda_.13} parent=5 // pred_region
      %s313 = ssub.s32 %s10, 2
      // Predicated region
      $region45: #{_lambda_.13} parent=43 // pred_check
        %p314 = pneg %p128
      $region46: #{_lambda_.13} parent=43 // pred_check_branch
        %316 = sbr.rel (%p314) target = $region48
      $region47: #{_lambda_.13} parent=43 // pred_region
        %s317 = smul.u32 3, %s16
        %p318 = scmp.lt.s32.totalorder %s317, 5
        %s319 = scalar_select %p318, %s317, 5
        %s320 = smul.addr %s319, 4
        %s321 = scalar_lea.vmem %s4, %s320
      $region48: #{_lambda_.13} parent=43 // pred_fallthru
        _
    $region44: #{_lambda_.13} parent=5 // pred_fallthru
      _
  $region6: #{_lambda_.13} parent=0 // loop_footer
    %s14 = sadd.s32 1, %s10
  $region7: #{_lambda_.13} parent=0 // loop_footer_branch
    %9 = sbr.rel target = $region3
  $region8: #{_lambda_.13} parent=0 // loop_exit
    _

// kernel: _lambda_.14
$region0: #{_lambda_.14}
  #allocation0 [shape = 'u32[]', space=smem, size = 0x4, offset = 0x4, fixed_abs, tag = 'smem constant byte address 0x4 - core index']
  #allocation1 [shape = 'u32[72,128]{1,0:T(1,128)}', space=vmem, size = 0x9000, scoped, tag = 'internal scratch']
  #allocation2 [shape = 'bf16[48,128]{1,0:T(8,128)(2,1)}', space=vmem, size = 0x3000, scoped, tag = 'scratch operand']
  %s0 = inlined_call_operand.vmem [shape: bf16[48,128], index: 0, kind: input, shape index: {}]
  %s1 = inlined_call_operand.vmem [shape: f32[1,128], index: 1, kind: input, shape index: {}]
  %s2 = inlined_call_operand.vmem [shape: f32[1,128], index: 2, kind: input, shape index: {}]
  %s3 = inlined_call_operand.hbm [shape: bf16[128,384], index: 3, kind: input, shape index: {}]
  %s4 = inlined_call_operand.vmem [shape: f32[1,384], index: 4, kind: input, shape index: {}]
  %s5 = inlined_call_operand.vmem [shape: bf16[48,384], index: 5, kind: output, shape index: {}]
  %s6 = sld [smem:[#allocation0]]
  $region38: #{_lambda_.14} parent=0
    _
  %s8 = ssub.s32 1, %s6
  %s9 = scalar_select 0, %s8, %s6
  $region1: #{_lambda_.14} parent=0
    #allocation3 [shape = 'u8[98304]{0}', space=vmem, size = 0x18000, scoped, tag = 'input window, operand 3, single buffered']
    #allocation4 [shape = 's32[1]{0}', space=sflag, size = 0x4, scoped, tag = 'scoped memory for _lambda_.14']
    %10 = vsyncpa [#allocation4], 0
    // Predicated region
    $region2: #{_lambda_.14} parent=1 // pred_check
      _
    $region3: #{_lambda_.14} parent=1 // pred_check_branch
      %12 = sbr.rel (0) target = $region5
    $region4: #{_lambda_.14} parent=1 // pred_region
      _
    $region5: #{_lambda_.14} parent=1 // pred_fallthru
      _
    // Predicated region
    $region6: #{_lambda_.14} parent=1 // pred_check
      _
    $region7: #{_lambda_.14} parent=1 // pred_check_branch
      %14 = sbr.rel (0) target = $region9
    $region8: #{_lambda_.14} parent=1 // pred_region
      _
    $region9: #{_lambda_.14} parent=1 // pred_fallthru
      _
    // Predicated region
    $region10: #{_lambda_.14} parent=1 // pred_check
      _
    $region11: #{_lambda_.14} parent=1 // pred_check_branch
      %16 = sbr.rel (0) target = $region13
    $region12: #{_lambda_.14} parent=1 // pred_region
      _
    $region13: #{_lambda_.14} parent=1 // pred_fallthru
      _
    // Predicated region
    $region14: #{_lambda_.14} parent=1 // pred_check
      _
    $region15: #{_lambda_.14} parent=1 // pred_check_branch
      %18 = sbr.rel (0) target = $region17
    $region16: #{_lambda_.14} parent=1 // pred_region
      %20 = vsyncadd [#allocation4], 0
      %s21 = sshll.u32 %s3, 4
      %s22 = int_to_ptr.hbm [resolvable:$true] %s21
      %s23 = sshll.u32 [#allocation3], 4
      %s24 = int_to_ptr.vmem [resolvable:$true] %s23
      %29 = dma.hbm_to_vmem [thread:$0]  %s22, 3072, %s24, [#allocation4], 192, 192, 12
    $region17: #{_lambda_.14} parent=1 // pred_fallthru
      _
    // Predicated region
    $region18: #{_lambda_.14} parent=1 // pred_check
      _
    $region19: #{_lambda_.14} parent=1 // pred_check_branch
      %31 = sbr.rel (0) target = $region21
    $region20: #{_lambda_.14} parent=1 // pred_region
      _
    $region21: #{_lambda_.14} parent=1 // pred_fallthru
      _
    // Predicated region
    $region22: #{_lambda_.14} parent=1 // pred_check
      _
    $region23: #{_lambda_.14} parent=1 // pred_check_branch
      %33 = sbr.rel (0) target = $region25
    $region24: #{_lambda_.14} parent=1 // pred_region
      %35 = dma.done [#allocation4], 3072
    $region25: #{_lambda_.14} parent=1 // pred_fallthru
      _
    %p36 = scmp.eq.s32.totalorder 0, 0
    // Predicated region
    $region26: #{_lambda_.14} parent=1 // pred_check
      %p37 = pneg %p36
    $region27: #{_lambda_.14} parent=1 // pred_check_branch
      %39 = sbr.rel (%p37) target = $region29
    $region28: #{_lambda_.14} parent=1 // pred_region
      %v40 = vld [vmem:[%s0] sm:$0xf]
      %v41 = vld [vmem:[%s0 + $0x4] sm:$0xf]
      %v42 = vld [vmem:[%s0 + $0x8] sm:$0xf]
      %v43 = vld [vmem:[%s0 + $0xc] sm:$0xf]
      %v44 = vld [vmem:[%s0 + $0x10] sm:$0xf]
      %v45 = vld [vmem:[%s0 + $0x14] sm:$0xf]
      %v46 = vunpack.c.l.bf16 %v40
      %v47 = vunpack.c.l.bf16 %v41
      %v48 = vunpack.c.l.bf16 %v42
      %v49 = vunpack.c.l.bf16 %v43
      %v50 = vunpack.c.l.bf16 %v44
      %v51 = vunpack.c.l.bf16 %v45
      %52 = vadd.xlane.f32.xlu0 %v46
      %v53 = vpop.xlane.xlu0 %52
      %54 = vadd.xlane.f32.xlu0 %v47
      %v55 = vpop.xlane.xlu0 %54
      %56 = vadd.xlane.f32.xlu0 %v48
      %v57 = vpop.xlane.xlu0 %56
      %58 = vadd.xlane.f32.xlu0 %v49
      %v59 = vpop.xlane.xlu0 %58
      %60 = vadd.xlane.f32.xlu0 %v50
      %v61 = vpop.xlane.xlu0 %60
      %62 = vadd.xlane.f32.xlu0 %v51
      %v63 = vpop.xlane.xlu0 %62
      %v64 = vrcp.pop 128.0
      %v65 = vmul.f32 128.0, %v64
      %v66 = vsub.f32 1.0, %v65
      %v67 = vmul.f32 %v64, %v66
      %v68 = vadd.f32 %v64, %v67
      %vm69 = vweird.f32 %v64
      %v70 = vsel %vm69, %v64, %v68
      %v71 = vmul.f32 %v53, %v70
      %v72 = vmul.f32 %v55, %v70
      %v73 = vmul.f32 %v57, %v70
      %v74 = vmul.f32 %v59, %v70
      %v75 = vmul.f32 %v61, %v70
      %v76 = vmul.f32 %v63, %v70
      %v77 = vsub.f32 %v46, %v71
      %v78 = vsub.f32 %v47, %v72
      %v79 = vsub.f32 %v48, %v73
      %v80 = vsub.f32 %v49, %v74
      %v81 = vsub.f32 %v50, %v75
      %v82 = vsub.f32 %v51, %v76
      %v83 = vmul.f32 %v77, %v77
      %v84 = vmul.f32 %v78, %v78
      %v85 = vmul.f32 %v79, %v79
      %v86 = vmul.f32 %v80, %v80
      %v87 = vmul.f32 %v81, %v81
      %v88 = vmul.f32 %v82, %v82
      %89 = vadd.xlane.f32.xlu0 %v83
      %v90 = vpop.xlane.xlu0 %89
      %91 = vadd.xlane.f32.xlu0 %v84
      %v92 = vpop.xlane.xlu0 %91
      %93 = vadd.xlane.f32.xlu0 %v85
      %v94 = vpop.xlane.xlu0 %93
      %95 = vadd.xlane.f32.xlu0 %v86
      %v96 = vpop.xlane.xlu0 %95
      %97 = vadd.xlane.f32.xlu0 %v87
      %v98 = vpop.xlane.xlu0 %97
      %99 = vadd.xlane.f32.xlu0 %v88
      %v100 = vpop.xlane.xlu0 %99
      %v101 = vmul.f32 %v90, %v70
      %v102 = vmul.f32 %v92, %v70
      %v103 = vmul.f32 %v94, %v70
      %v104 = vmul.f32 %v96, %v70
      %v105 = vmul.f32 %v98, %v70
      %v106 = vmul.f32 %v100, %v70
      %v107 = vadd.f32 %v101, 1e-05
      %v108 = vadd.f32 %v102, 1e-05
      %v109 = vadd.f32 %v103, 1e-05
      %v110 = vadd.f32 %v104, 1e-05
      %v111 = vadd.f32 %v105, 1e-05
      %v112 = vadd.f32 %v106, 1e-05
      %v113 = vrsqrt.pop %v107
      %v114 = vmul.f32 %v113, %v107
      %v115 = vmul.f32 %v114, %v113
      %v116 = vmul.f32 0.5, %v115
      %v117 = vsub.f32 1.5, %v116
      %v118 = vmul.f32 %v113, %v117
      %vm119 = vweird.f32 %v107
      %vm120 = vweird.f32 %v113
      %vm121 = vmor %vm119, %vm120
      %v122 = vsel %vm121, %v113, %v118
      %v123 = vrsqrt.pop %v108
      %v124 = vmul.f32 %v123, %v108
      %v125 = vmul.f32 %v124, %v123
      %v126 = vmul.f32 0.5, %v125
      %v127 = vsub.f32 1.5, %v126
      %v128 = vmul.f32 %v123, %v127
      %vm129 = vweird.f32 %v108
      %vm130 = vweird.f32 %v123
      %vm131 = vmor %vm129, %vm130
      %v132 = vsel %vm131, %v123, %v128
      %v133 = vrsqrt.pop %v109
      %v134 = vmul.f32 %v133, %v109
      %v135 = vmul.f32 %v134, %v133
      %v136 = vmul.f32 0.5, %v135
      %v137 = vsub.f32 1.5, %v136
      %v138 = vmul.f32 %v133, %v137
      %vm139 = vweird.f32 %v109
      %vm140 = vweird.f32 %v133
      %vm141 = vmor %vm139, %vm140
      %v142 = vsel %vm141, %v133, %v138
      %v143 = vrsqrt.pop %v110
      %v144 = vmul.f32 %v143, %v110
      %v145 = vmul.f32 %v144, %v143
      %v146 = vmul.f32 0.5, %v145
      %v147 = vsub.f32 1.5, %v146
      %v148 = vmul.f32 %v143, %v147
      %vm149 = vweird.f32 %v110
      %vm150 = vweird.f32 %v143
      %vm151 = vmor %vm149, %vm150
      %v152 = vsel %vm151, %v143, %v148
      %v153 = vrsqrt.pop %v111
      %v154 = vmul.f32 %v153, %v111
      %v155 = vmul.f32 %v154, %v153
      %v156 = vmul.f32 0.5, %v155
      %v157 = vsub.f32 1.5, %v156
      %v158 = vmul.f32 %v153, %v157
      %vm159 = vweird.f32 %v111
      %vm160 = vweird.f32 %v153
      %vm161 = vmor %vm159, %vm160
      %v162 = vsel %vm161, %v153, %v158
      %v163 = vrsqrt.pop %v112
      %v164 = vmul.f32 %v163, %v112
      %v165 = vmul.f32 %v164, %v163
      %v166 = vmul.f32 0.5, %v165
      %v167 = vsub.f32 1.5, %v166
      %v168 = vmul.f32 %v163, %v167
      %vm169 = vweird.f32 %v112
      %vm170 = vweird.f32 %v163
      %vm171 = vmor %vm169, %vm170
      %v172 = vsel %vm171, %v163, %v168
      %v173 = vmul.f32 %v77, %v122
      %v174 = vmul.f32 %v78, %v132
      %v175 = vmul.f32 %v79, %v142
      %v176 = vmul.f32 %v80, %v152
      %v177 = vmul.f32 %v81, %v162
      %v178 = vmul.f32 %v82, %v172
      %v179 = vld [vmem:[%s1] sm:$0x1]
      %v181 = vperm.slane %v179, 0
      %v183 = vmul.f32 %v173, %v181
      %v184 = vmul.f32 %v174, %v181
      %v185 = vmul.f32 %v175, %v181
      %v186 = vmul.f32 %v176, %v181
      %v187 = vmul.f32 %v177, %v181
      %v188 = vmul.f32 %v178, %v181
      %v189 = vld [vmem:[%s2] sm:$0x1]
      %v191 = vperm.slane %v189, 0
      %v193 = vadd.f32 %v183, %v191
      %v194 = vadd.f32 %v184, %v191
      %v195 = vadd.f32 %v185, %v191
      %v196 = vadd.f32 %v186, %v191
      %v197 = vadd.f32 %v187, %v191
      %v198 = vadd.f32 %v188, %v191
      %v199 = vpack.c.bf16 %v193, %v193
      %v200 = vpack.c.bf16 %v194, %v194
      %v201 = vpack.c.bf16 %v195, %v195
      %v202 = vpack.c.bf16 %v196, %v196
      %v203 = vpack.c.bf16 %v197, %v197
      %v204 = vpack.c.bf16 %v198, %v198
      %205 = vst [vmem:[#allocation2] sm:$0xf] %v199
      %206 = vst [vmem:[#allocation2 + $0x4] sm:$0xf] %v200
      %207 = vst [vmem:[#allocation2 + $0x8] sm:$0xf] %v201
      %208 = vst [vmem:[#allocation2 + $0xc] sm:$0xf] %v202
      %209 = vst [vmem:[#allocation2 + $0x10] sm:$0xf] %v203
      %210 = vst [vmem:[#allocation2 + $0x14] sm:$0xf] %v204
    $region29: #{_lambda_.14} parent=1 // pred_fallthru
      _
    %v211 = vld [vmem:[#allocation2] sm:$0xf]
    %v212 = vld [vmem:[#allocation2 + $0x4] sm:$0xf]
    %v213 = vld [vmem:[#allocation2 + $0x8] sm:$0xf]
    %v214 = vld [vmem:[#allocation2 + $0xc] sm:$0xf]
    %v215 = vld [vmem:[#allocation2 + $0x10] sm:$0xf]
    %v216 = vld [vmem:[#allocation2 + $0x14] sm:$0xf]
    %v217 = vld [vmem:[#allocation3] sm:$0xff]
    %v218 = vld [vmem:[#allocation3 + $0x8] sm:$0xf]
    %v219 = vld [vmem:[#allocation3 + $0xc] sm:$0xff]
    %v220 = vld [vmem:[#allocation3 + $0x14] sm:$0xf]
    %v221 = vld [vmem:[#allocation3 + $0x18] sm:$0xff]
    %v222 = vld [vmem:[#allocation3 + $0x20] sm:$0xf]
    %v223 = vld [vmem:[#allocation3 + $0x24] sm:$0xff]
    %v224 = vld [vmem:[#allocation3 + $0x2c] sm:$0xf]
    %v225 = vld [vmem:[#allocation3 + $0x30] sm:$0xff]
    %v226 = vld [vmem:[#allocation3 + $0x38] sm:$0xf]
    %v227 = vld [vmem:[#allocation3 + $0x3c] sm:$0xff]
    %v228 = vld [vmem:[#allocation3 + $0x44] sm:$0xf]
    %v229 = vld [vmem:[#allocation3 + $0x48] sm:$0xff]
    %v230 = vld [vmem:[#allocation3 + $0x50] sm:$0xf]
    %v231 = vld [vmem:[#allocation3 + $0x54] sm:$0xff]
    %v232 = vld [vmem:[#allocation3 + $0x5c] sm:$0xf]
    %v233 = vld [vmem:[#allocation3 + $0x60] sm:$0xff]
    %v234 = vld [vmem:[#allocation3 + $0x68] sm:$0xf]
    %v235 = vld [vmem:[#allocation3 + $0x6c] sm:$0xff]
    %v236 = vld [vmem:[#allocation3 + $0x74] sm:$0xf]
    %v237 = vld [vmem:[#allocation3 + $0x78] sm:$0xff]
    %v238 = vld [vmem:[#allocation3 + $0x80] sm:$0xf]
    %v239 = vld [vmem:[#allocation3 + $0x84] sm:$0xff]
    %v240 = vld [vmem:[#allocation3 + $0x8c] sm:$0xf]
    %v241 = vld [vmem:[#allocation3 + $0x90] sm:$0xff]
    %v242 = vld [vmem:[#allocation3 + $0x98] sm:$0xf]
    %v243 = vld [vmem:[#allocation3 + $0x9c] sm:$0xff]
    %v244 = vld [vmem:[#allocation3 + $0xa4] sm:$0xf]
    %v245 = vld [vmem:[#allocation3 + $0xa8] sm:$0xff]
    %v246 = vld [vmem:[#allocation3 + $0xb0] sm:$0xf]
    %v247 = vld [vmem:[#allocation3 + $0xb4] sm:$0xff]
    %v248 = vld [vmem:[#allocation3 + $0xbc] sm:$0xf]
    %v249 = vld [vmem:[%s4] sm:$0x7]
    %v251 = vperm.slane %v249, 0
    %v252 = vperm.slane %v249, 1
    %v253 = vperm.slane %v249, 2
    %v263 = vunpack.c.l.b16 %v211
    %v264 = vunpack.c.l.b16 %v212
    %v265 = vunpack.c.l.b16 %v213
    %v266 = vunpack.c.l.b16 %v214
    %v267 = vunpack.c.l.b16 %v215
    %v268 = vunpack.c.l.b16 %v216
    %v269 = vpack.c.b16 %v264, %v263
    %v270 = vpack.c.b16 %v266, %v265
    %v271 = vpack.c.b16 %v268, %v267
    %v307 = vunpack.c.l.b16 %v217
    %v308 = vunpack.c.h.b16 %v217
    %v309 = vunpack.c.l.b16 %v218
    %v310 = vunpack.c.l.b16 %v219
    %v311 = vunpack.c.h.b16 %v219
    %v312 = vunpack.c.l.b16 %v220
    %v313 = vunpack.c.l.b16 %v221
    %v314 = vunpack.c.h.b16 %v221
    %v315 = vunpack.c.l.b16 %v222
    %v316 = vunpack.c.l.b16 %v223
    %v317 = vunpack.c.h.b16 %v223
    %v318 = vunpack.c.l.b16 %v224
    %v319 = vunpack.c.l.b16 %v225
    %v320 = vunpack.c.h.b16 %v225
    %v321 = vunpack.c.l.b16 %v226
    %v322 = vunpack.c.l.b16 %v227
    %v323 = vunpack.c.h.b16 %v227
    %v324 = vunpack.c.l.b16 %v228
    %v325 = vunpack.c.l.b16 %v229
    %v326 = vunpack.c.h.b16 %v229
    %v327 = vunpack.c.l.b16 %v230
    %v328 = vunpack.c.l.b16 %v231
    %v329 = vunpack.c.h.b16 %v231
    %v330 = vunpack.c.l.b16 %v232
    %v331 = vunpack.c.l.b16 %v233
    %v332 = vunpack.c.h.b16 %v233
    %v333 = vunpack.c.l.b16 %v234
    %v334 = vunpack.c.l.b16 %v235
    %v335 = vunpack.c.h.b16 %v235
    %v336 = vunpack.c.l.b16 %v236
    %v337 = vunpack.c.l.b16 %v237
    %v338 = vunpack.c.h.b16 %v237
    %v339 = vunpack.c.l.b16 %v238
    %v340 = vunpack.c.l.b16 %v239
    %v341 = vunpack.c.h.b16 %v239
    %v342 = vunpack.c.l.b16 %v240
    %v343 = vunpack.c.l.b16 %v241
    %v344 = vunpack.c.h.b16 %v241
    %v345 = vunpack.c.l.b16 %v242
    %v346 = vunpack.c.l.b16 %v243
    %v347 = vunpack.c.h.b16 %v243
    %v348 = vunpack.c.l.b16 %v244
    %v349 = vunpack.c.l.b16 %v245
    %v350 = vunpack.c.h.b16 %v245
    %v351 = vunpack.c.l.b16 %v246
    %v352 = vunpack.c.l.b16 %v247
    %v353 = vunpack.c.h.b16 %v247
    %v354 = vunpack.c.l.b16 %v248
    %v355 = vpack.c.b16 %v310, %v307
    %v356 = vpack.c.b16 %v311, %v308
    %v357 = vpack.c.b16 %v312, %v309
    %v358 = vpack.c.b16 %v316, %v313
    %v359 = vpack.c.b16 %v317, %v314
    %v360 = vpack.c.b16 %v318, %v315
    %v361 = vpack.c.b16 %v322, %v319
    %v362 = vpack.c.b16 %v323, %v320
    %v363 = vpack.c.b16 %v324, %v321
    %v364 = vpack.c.b16 %v328, %v325
    %v365 = vpack.c.b16 %v329, %v326
    %v366 = vpack.c.b16 %v330, %v327
    %v367 = vpack.c.b16 %v334, %v331
    %v368 = vpack.c.b16 %v335, %v332
    %v369 = vpack.c.b16 %v336, %v333
    %v370 = vpack.c.b16 %v340, %v337
    %v371 = vpack.c.b16 %v341, %v338
    %v372 = vpack.c.b16 %v342, %v339
    %v373 = vpack.c.b16 %v346, %v343
    %v374 = vpack.c.b16 %v347, %v344
    %v375 = vpack.c.b16 %v348, %v345
    %v376 = vpack.c.b16 %v352, %v349
    %v377 = vpack.c.b16 %v353, %v350
    %v378 = vpack.c.b16 %v354, %v351
    %403 = vmatpush.bf16.msra.mxu0 %v376
    %404 = vmatpush.bf16.msra.mxu0 %v373
    %405 = vmatpush.bf16.msra.mxu0 %v370
    %406 = vmatpush.bf16.msra.mxu0 %v367
    %407 = vmatpush.bf16.msra.mxu0 %v364
    %408 = vmatpush.bf16.msra.mxu0 %v361
    %409 = vmatpush.bf16.msra.mxu0 %v358
    %410 = vmatpush.bf16.msra.mxu0 %v355
    %411 = vmatmul.bf16.gmra.mxu0 %v269
    %v412 = vpop.f32.mrf.mxu0
    %v413 = vadd.f32 %v251, %v412
    %v414 = vpop.f32.mrf.mxu0
    %v415 = vadd.f32 %v251, %v414
    %416 = vmatmul.bf16.gmra.mxu0 %v270
    %v417 = vpop.f32.mrf.mxu0
    %v418 = vadd.f32 %v251, %v417
    %v419 = vpop.f32.mrf.mxu0
    %v420 = vadd.f32 %v251, %v419
    %421 = vmatmul.bf16.gmra.mxu0 %v271
    %v422 = vpop.f32.mrf.mxu0
    %v423 = vadd.f32 %v251, %v422
    %v424 = vpop.f32.mrf.mxu0
    %v425 = vadd.f32 %v251, %v424
    %426 = vdwg.mxu0
    %427 = vmatpush.bf16.msra.mxu0 %v377
    %428 = vmatpush.bf16.msra.mxu0 %v374
    %429 = vmatpush.bf16.msra.mxu0 %v371
    %430 = vmatpush.bf16.msra.mxu0 %v368
    %431 = vmatpush.bf16.msra.mxu0 %v365
    %432 = vmatpush.bf16.msra.mxu0 %v362
    %433 = vmatpush.bf16.msra.mxu0 %v359
    %434 = vmatpush.bf16.msra.mxu0 %v356
    %435 = vmatmul.bf16.gmra.mxu0 %v269
    %v436 = vpop.f32.mrf.mxu0
    %v437 = vadd.f32 %v252, %v436
    %v438 = vpop.f32.mrf.mxu0
    %v439 = vadd.f32 %v252, %v438
    %440 = vmatmul.bf16.gmra.mxu0 %v270
    %v441 = vpop.f32.mrf.mxu0
    %v442 = vadd.f32 %v252, %v441
    %v443 = vpop.f32.mrf.mxu0
    %v444 = vadd.f32 %v252, %v443
    %445 = vmatmul.bf16.gmra.mxu0 %v271
    %v446 = vpop.f32.mrf.mxu0
    %v447 = vadd.f32 %v252, %v446
    %v448 = vpop.f32.mrf.mxu0
    %v449 = vadd.f32 %v252, %v448
    %450 = vdwg.mxu0
    %451 = vmatpush.bf16.msra.mxu0 %v378
    %452 = vmatpush.bf16.msra.mxu0 %v375
    %453 = vmatpush.bf16.msra.mxu0 %v372
    %454 = vmatpush.bf16.msra.mxu0 %v369
    %455 = vmatpush.bf16.msra.mxu0 %v366
    %456 = vmatpush.bf16.msra.mxu0 %v363
    %457 = vmatpush.bf16.msra.mxu0 %v360
    %458 = vmatpush.bf16.msra.mxu0 %v357
    %459 = vmatmul.bf16.gmra.mxu0 %v269
    %v460 = vpop.f32.mrf.mxu0
    %v461 = vadd.f32 %v253, %v460
    %v462 = vpop.f32.mrf.mxu0
    %v463 = vadd.f32 %v253, %v462
    %464 = vmatmul.bf16.gmra.mxu0 %v270
    %v465 = vpop.f32.mrf.mxu0
    %v466 = vadd.f32 %v253, %v465
    %v467 = vpop.f32.mrf.mxu0
    %v468 = vadd.f32 %v253, %v467
    %469 = vmatmul.bf16.gmra.mxu0 %v271
    %v470 = vpop.f32.mrf.mxu0
    %v471 = vadd.f32 %v253, %v470
    %v472 = vpop.f32.mrf.mxu0
    %v473 = vadd.f32 %v253, %v472
    %474 = vdwg.mxu0
    %v475 = vpack.c.bf16 %v437, %v413
    %v476 = vpack.c.bf16 %v461, %v461
    %v477 = vpack.c.bf16 %v439, %v415
    %v478 = vpack.c.bf16 %v463, %v463
    %v479 = vpack.c.bf16 %v442, %v418
    %v480 = vpack.c.bf16 %v466, %v466
    %v481 = vpack.c.bf16 %v444, %v420
    %v482 = vpack.c.bf16 %v468, %v468
    %v483 = vpack.c.bf16 %v447, %v423
    %v484 = vpack.c.bf16 %v471, %v471
    %v485 = vpack.c.bf16 %v449, %v425
    %v486 = vpack.c.bf16 %v473, %v473
    %487 = vst [vmem:[%s5] sm:$0xff] %v475
    %488 = vst [vmem:[%s5 + $0x8] sm:$0xf] %v476
    %489 = vst [vmem:[%s5 + $0xc] sm:$0xff] %v477
    %490 = vst [vmem:[%s5 + $0x14] sm:$0xf] %v478
    %491 = vst [vmem:[%s5 + $0x18] sm:$0xff] %v479
    %492 = vst [vmem:[%s5 + $0x20] sm:$0xf] %v480
    %493 = vst [vmem:[%s5 + $0x24] sm:$0xff] %v481
    %494 = vst [vmem:[%s5 + $0x2c] sm:$0xf] %v482
    %495 = vst [vmem:[%s5 + $0x30] sm:$0xff] %v483
    %496 = vst [vmem:[%s5 + $0x38] sm:$0xf] %v484
    %497 = vst [vmem:[%s5 + $0x3c] sm:$0xff] %v485
    %498 = vst [vmem:[%s5 + $0x44] sm:$0xf] %v486
    // Predicated region
    $region30: #{_lambda_.14} parent=1 // pred_check
      _
    $region31: #{_lambda_.14} parent=1 // pred_check_branch
      %500 = sbr.rel (0) target = $region33
    $region32: #{_lambda_.14} parent=1 // pred_region
      _
    $region33: #{_lambda_.14} parent=1 // pred_fallthru
      _
    // Predicated region
    $region34: #{_lambda_.14} parent=1 // pred_check
      _
    $region35: #{_lambda_.14} parent=1 // pred_check_branch
      %502 = sbr.rel (0) target = $region37
    $region36: #{_lambda_.14} parent=1 // pred_region
      _
    $region37: #{_lambda_.14} parent=1 // pred_fallthru
      _
    %503 = vsyncpa [#allocation4], 1

// kernel: _lambda_.15
$region0: #{_lambda_.15}
  #allocation0 [shape = 'u32[]', space=smem, size = 0x4, offset = 0x4, fixed_abs, tag = 'smem constant byte address 0x4 - core index']
  #allocation1 [shape = 'u32[72,128]{1,0:T(1,128)}', space=vmem, size = 0x9000, scoped, tag = 'internal scratch']
  #allocation2 [shape = 'f32[2,24,1]{2,1,0:T(8,128)}', space=vmem, size = 0x6000, scoped, tag = 'scratch operand']
  #allocation3 [shape = 'f32[2,24,1]{2,1,0:T(8,128)}', space=vmem, size = 0x6000, scoped, tag = 'scratch operand']
  #allocation4 [shape = 'f32[2,24,64]{2,1,0:T(8,128)}', space=vmem, size = 0x6000, scoped, tag = 'scratch operand']
  %s0 = inlined_call_operand.vmem [shape: bf16[48,384], index: 0, kind: input, shape index: {}, may-alias: {0,1,2}]
  %s1 = inlined_call_operand.vmem [shape: bf16[48,384], index: 1, kind: input, shape index: {}, may-alias: {0,1,2}]
  %s2 = inlined_call_operand.vmem [shape: bf16[48,384], index: 2, kind: input, shape index: {}, may-alias: {0,1,2}]
  %s3 = inlined_call_operand.vmem [shape: bf16[48,128], index: 3, kind: output, shape index: {}]
  %s4 = sld [smem:[#allocation0]]
  $region176: #{_lambda_.15} parent=0
    _
  %s6 = ssub.s32 1, %s4
  %s7 = scalar_select 0, %s6, %s4
  $region1: #{_lambda_.15} parent=0
    #allocation5 [shape = 'u8[12288]{0}', space=vmem, size = 0x3000, scoped, tag = 'input window, operand 0']
    #allocation6 [shape = 'u8[12288]{0}', space=vmem, size = 0x3000, scoped, tag = 'input window, operand 1']
    #allocation7 [shape = 'u8[12288]{0}', space=vmem, size = 0x3000, scoped, tag = 'input window, operand 2']
    loop: start=0, step=1, limit=4
    $region2: #{_lambda_.15} parent=1 // loop_pre_header
      _
    $region3: #{_lambda_.15} parent=1 // loop_header
      %s9 = sphi 0, %s13
      %p10 = scmp.ge.s32.totalorder %s9, 4
      %s16 = sphi 0, %s42
      %s17 = sphi 0, %s38
      %s18 = sphi 0, %s34
      %s19 = sphi 0, %s30
      %s20 = sphi 0, %s16
      %s21 = sphi 0, %s17
      %s22 = sphi 0, %s18
      %s23 = sphi 0, %s19
      %s24 = sphi 0, %s20
      %s25 = sphi 0, %s21
      %s26 = sphi 0, %s22
      %s27 = sphi 0, %s23
      %s49 = sphi 0, %s51
      %s52 = sphi 0, %s49
      %s53 = sphi 0, %s52
      %s69 = sphi 0, %s53
      %s81 = sphi 0, %s83
      %s84 = sphi 0, %s81
      %s85 = sphi 0, %s84
      %s101 = sphi 0, %s85
      %s113 = sphi 0, %s115
      %s116 = sphi 0, %s113
      %s117 = sphi 0, %s116
      %s133 = sphi 0, %s117
      %s143 = sphi 0, %s145
      %s146 = sphi 0, %s143
      %s147 = sphi 0, %s146
      %s163 = sphi 0, %s147
    $region4: #{_lambda_.15} parent=1 // loop_header_branch
      %12 = sbr.rel (%p10) target = $region8
    $region5: #{_lambda_.15} parent=1 // loop_body
      %s14 = ssub.s32 %s9, 1
      %s15 = ssub.s32 %s9, 2
      %s28 = sadd.s32 1, %s19
      %p29 = scmp.ge.s32.totalorder %s28, 1
      %s30 = scalar_select %p29, 0, %s28
      %s31 = sadd.s32 1, %s18
      %s32 = scalar_select %p29, %s31, %s18
      %p33 = scmp.ge.s32.totalorder %s32, 1
      %s34 = scalar_select %p33, 0, %s32
      %s35 = sadd.s32 1, %s17
      %s36 = scalar_select %p33, %s35, %s17
      %p37 = scmp.ge.s32.totalorder %s36, 1
      %s38 = scalar_select %p37, 0, %s36
      %s39 = sadd.s32 1, %s16
      %s40 = scalar_select %p37, %s39, %s16
      %p41 = scmp.ge.s32.totalorder %s40, 2
      %s42 = scalar_select %p41, 0, %s40
      %s43 = sadd.s32 %s16, %s18
      %s44 = sadd.s32 %s42, %s34
      %s45 = ssub.s32 %s43, %s44
      %s46 = ssub.s32 %s17, %s38
      %s47 = sor.u32 %s45, %s46
      %p48 = scmp.eq.s32.totalorder %s47, 0
      %s50 = sadd.s32 %s49, 1
      %s51 = scalar_select %p48, %s49, %s50
      %p54 = pneg %p48
      %p55 = scmp.eq.s32.totalorder %s9, 1
      %p56 = por %p54, %p55
      %p57 = scmp.ne.s32.totalorder %s49, %s52
      %p58 = scmp.eq.s32.totalorder %s9, 0
      %p59 = por %p57, %p58
      %p60 = scmp.ne.s32.totalorder %s49, %s52
      %p61 = scmp.eq.s32.totalorder %s14, 1
      %p62 = por %p60, %p61
      %p63 = scmp.ne.s32.totalorder %s52, %s53
      %p64 = scmp.eq.s32.totalorder %s14, 0
      %p65 = por %p63, %p64
      %p66 = scmp.ne.s32.totalorder %s52, %s53
      %p67 = scmp.eq.s32.totalorder %s15, 1
      %p68 = por %p66, %p67
      %p70 = scmp.ne.s32.totalorder %s53, %s69
      %p71 = scmp.eq.s32.totalorder %s15, 0
      %p72 = por %p70, %p71
      %s73 = sadd.s32 %s16, %s19
      %s74 = sadd.s32 %s17, 1
      %s75 = sadd.s32 %s42, %s30
      %s76 = sadd.s32 %s38, 1
      %s77 = ssub.s32 %s73, %s75
      %s78 = ssub.s32 %s74, %s76
      %s79 = sor.u32 %s77, %s78
      %p80 = scmp.eq.s32.totalorder %s79, 0
      %s82 = sadd.s32 %s81, 1
      %s83 = scalar_select %p80, %s81, %s82
      %p86 = pneg %p80
      %p87 = scmp.eq.s32.totalorder %s9, 1
      %p88 = por %p86, %p87
      %p89 = scmp.ne.s32.totalorder %s81, %s84
      %p90 = scmp.eq.s32.totalorder %s9, 0
      %p91 = por %p89, %p90
      %p92 = scmp.ne.s32.totalorder %s81, %s84
      %p93 = scmp.eq.s32.totalorder %s14, 1
      %p94 = por %p92, %p93
      %p95 = scmp.ne.s32.totalorder %s84, %s85
      %p96 = scmp.eq.s32.totalorder %s14, 0
      %p97 = por %p95, %p96
      %p98 = scmp.ne.s32.totalorder %s84, %s85
      %p99 = scmp.eq.s32.totalorder %s15, 1
      %p100 = por %p98, %p99
      %p102 = scmp.ne.s32.totalorder %s85, %s101
      %p103 = scmp.eq.s32.totalorder %s15, 0
      %p104 = por %p102, %p103
      %s105 = sadd.s32 %s16, %s19
      %s106 = sadd.s32 %s17, 2
      %s107 = sadd.s32 %s42, %s30
      %s108 = sadd.s32 %s38, 2
      %s109 = ssub.s32 %s105, %s107
      %s110 = ssub.s32 %s106, %s108
      %s111 = sor.u32 %s109, %s110
      %p112 = scmp.eq.s32.totalorder %s111, 0
      %s114 = sadd.s32 %s113, 1
      %s115 = scalar_select %p112, %s113, %s114
      %p118 = pneg %p112
      %p119 = scmp.eq.s32.totalorder %s9, 1
      %p120 = por %p118, %p119
      %p121 = scmp.ne.s32.totalorder %s113, %s116
      %p122 = scmp.eq.s32.totalorder %s9, 0
      %p123 = por %p121, %p122
      %p124 = scmp.ne.s32.totalorder %s113, %s116
      %p125 = scmp.eq.s32.totalorder %s14, 1
      %p126 = por %p124, %p125
      %p127 = scmp.ne.s32.totalorder %s116, %s117
      %p128 = scmp.eq.s32.totalorder %s14, 0
      %p129 = por %p127, %p128
      %p130 = scmp.ne.s32.totalorder %s116, %s117
      %p131 = scmp.eq.s32.totalorder %s15, 1
      %p132 = por %p130, %p131
      %p134 = scmp.ne.s32.totalorder %s117, %s133
      %p135 = scmp.eq.s32.totalorder %s15, 0
      %p136 = por %p134, %p135
      %s137 = sadd.s32 %s16, %s18
      %s138 = sadd.s32 %s42, %s34
      %s139 = ssub.s32 %s137, %s138
      %s140 = ssub.s32 %s17, %s38
      %s141 = sor.u32 %s139, %s140
      %p142 = scmp.eq.s32.totalorder %s141, 0
      %s144 = sadd.s32 %s143, 1
      %s145 = scalar_select %p142, %s143, %s144
      %p148 = pneg %p142
      %p149 = scmp.eq.s32.totalorder %s9, 1
      %p150 = por %p148, %p149
      %p151 = scmp.ne.s32.totalorder %s143, %s146
      %p152 = scmp.eq.s32.totalorder %s9, 0
      %p153 = por %p151, %p152
      %p154 = scmp.ne.s32.totalorder %s143, %s146
      %p155 = scmp.eq.s32.totalorder %s14, 1
      %p156 = por %p154, %p155
      %p157 = scmp.ne.s32.totalorder %s146, %s147
      %p158 = scmp.eq.s32.totalorder %s14, 0
      %p159 = por %p157, %p158
      %p160 = scmp.ne.s32.totalorder %s146, %s147
      %p161 = scmp.eq.s32.totalorder %s15, 1
      %p162 = por %p160, %p161
      %p164 = scmp.ne.s32.totalorder %s147, %s163
      %p165 = scmp.eq.s32.totalorder %s15, 0
      %p166 = por %p164, %p165
      %p167 = scmp.le.s32.totalorder 1, %s9
      %p168 = scmp.lt.s32.totalorder %s9, 3
      %p169 = pnand %p167, %p168
      %p170 = pneg %p169
      // Predicated region
      $region9: #{_lambda_.15} parent=5 // pred_check
        _
      $region10: #{_lambda_.15} parent=5 // pred_check_branch
        %172 = sbr.rel (%p169) target = $region12
      $region11: #{_lambda_.15} parent=5 // pred_region
        %s173 = ssub.s32 %s9, 1
      $region12: #{_lambda_.15} parent=5 // pred_fallthru
        _
      %p174 = scmp.lt.s32.totalorder %s9, 2
      // Predicated region
      $region13: #{_lambda_.15} parent=5 // pred_check
        %p175 = pneg %p174
      $region14: #{_lambda_.15} parent=5 // pred_check_branch
        %177 = sbr.rel (%p175) target = $region16
      $region15: #{_lambda_.15} parent=5 // pred_region
        // Predicated region
        $region17: #{_lambda_.15} parent=15 // pred_check
          %p178 = pneg %p59
        $region18: #{_lambda_.15} parent=15 // pred_check_branch
          %180 = sbr.rel (%p178) target = $region20
        $region19: #{_lambda_.15} parent=15 // pred_region
          %s181 = sand.u32 %s49, 1
          %s182 = sand.u32 %s49, 1
          %s183 = smul.addr %s182, 12
          %s184 = scalar_lea.vmem [#allocation5], %s183
          %s185 = sadd.s32 %s16, %s18
          %s186 = smul.u32 3, %s185
          %s187 = smul.addr %s186, 3
          %s188 = sadd.s32 %s17, %s187
          %s189 = smul.addr %s188, 4
          %s190 = scalar_lea.vmem %s0, %s189
          // Predicated region
          $region21: #{_lambda_.15} parent=19 // pred_check
            _
          $region22: #{_lambda_.15} parent=19 // pred_check_branch
            %192 = sbr.rel (0) target = $region24
          $region23: #{_lambda_.15} parent=19 // pred_region
            // Predicated region
            $region25: #{_lambda_.15} parent=23 // pred_check
              _
            $region26: #{_lambda_.15} parent=23 // pred_check_branch
              %194 = sbr.rel target = $region28
            $region27: #{_lambda_.15} parent=23 // pred_region
              // Predicated region
              $region40: #{_lambda_.15} parent=27 // pred_check
                _
              $region41: #{_lambda_.15} parent=27 // pred_check_branch
                %214 = sbr.rel (0) target = $region43
              $region42: #{_lambda_.15} parent=27 // pred_region
                loop: start=0, step=1, limit=1
                $region44: #{_lambda_.15} parent=42 // loop_pre_header
                  _
                $region45: #{_lambda_.15} parent=42 // loop_header
                  %s216 = sphi 0, %s220
                  %p217 = scmp.ge.s32.totalorder %s216, 1
                  %s221 = sphi %s190, %s190
                  %s222 = sphi %s184, %s184
                $region46: #{_lambda_.15} parent=42 // loop_header_branch
                  %219 = sbr.rel (%p217) target = $region50
                $region47: #{_lambda_.15} parent=42 // loop_body
                  _
                $region48: #{_lambda_.15} parent=42 // loop_footer
                  %s220 = sadd.s32 1, %s216
                $region49: #{_lambda_.15} parent=42 // loop_footer_branch
                  %215 = sbr.rel target = $region45
                $region50: #{_lambda_.15} parent=42 // loop_exit
                  _
                %s224 = ssub.s32 16, 1
                loop: start=0, step=1, limit=1
                $region51: #{_lambda_.15} parent=42 // loop_pre_header
                  _
                $region52: #{_lambda_.15} parent=42 // loop_header
                  %s226 = sphi 0, %s230
                  %p227 = scmp.ge.s32.totalorder %s226, 1
                  %s231 = sphi %s190, %s190
                  %s232 = sphi %s184, %s184
                $region53: #{_lambda_.15} parent=42 // loop_header_branch
                  %229 = sbr.rel (%p227) target = $region57
                $region54: #{_lambda_.15} parent=42 // loop_body
                  %v233 = vld [vmem:[%s231] sm:%s224]
                  %234 = vst [vmem:[%s232] sm:%s224] %v233
                  %v235 = vld [vmem:[%s231 + $0xc] sm:%s224]
                  %236 = vst [vmem:[%s232 + $0x4] sm:%s224] %v235
                  %v237 = vld [vmem:[%s231 + $0x18] sm:%s224]
                  %238 = vst [vmem:[%s232 + $0x8] sm:%s224] %v237
                $region55: #{_lambda_.15} parent=42 // loop_footer
                  %s230 = sadd.s32 1, %s226
                $region56: #{_lambda_.15} parent=42 // loop_footer_branch
                  %225 = sbr.rel target = $region52
                $region57: #{_lambda_.15} parent=42 // loop_exit
                  _
              $region43: #{_lambda_.15} parent=27 // pred_fallthru
                _
            $region28: #{_lambda_.15} parent=23 // pred_fallthru
              _
            // Predicated region
            $region29: #{_lambda_.15} parent=23 // pred_check
              _
            $region30: #{_lambda_.15} parent=23 // pred_check_branch
              %196 = sbr.rel (0) target = $region32
            $region31: #{_lambda_.15} parent=23 // pred_region
              %s198 = ssub.s32 16, 1
              loop: start=0, step=1, limit=1
              $region33: #{_lambda_.15} parent=31 // loop_pre_header
                _
              $region34: #{_lambda_.15} parent=31 // loop_header
                %s200 = sphi 0, %s204
                %p201 = scmp.ge.s32.totalorder %s200, 1
                %s205 = sphi %s190, %s190
                %s206 = sphi %s184, %s184
              $region35: #{_lambda_.15} parent=31 // loop_header_branch
                %203 = sbr.rel (%p201) target = $region39
              $region36: #{_lambda_.15} parent=31 // loop_body
                %v207 = vld [vmem:[%s205] sm:%s198]
                %208 = vst [vmem:[%s206] sm:%s198] %v207
                %v209 = vld [vmem:[%s205 + $0xc] sm:%s198]
                %210 = vst [vmem:[%s206 + $0x4] sm:%s198] %v209
                %v211 = vld [vmem:[%s205 + $0x18] sm:%s198]
                %212 = vst [vmem:[%s206 + $0x8] sm:%s198] %v211
              $region37: #{_lambda_.15} parent=31 // loop_footer
                %s204 = sadd.s32 1, %s200
              $region38: #{_lambda_.15} parent=31 // loop_footer_branch
                %199 = sbr.rel target = $region34
              $region39: #{_lambda_.15} parent=31 // loop_exit
                _
            $region32: #{_lambda_.15} parent=23 // pred_fallthru
              _
          $region24: #{_lambda_.15} parent=19 // pred_fallthru
            _
          %239 = vnop
        $region20: #{_lambda_.15} parent=15 // pred_fallthru
          _
        // Predicated region
        $region58: #{_lambda_.15} parent=15 // pred_check
          %p240 = pneg %p91
        $region59: #{_lambda_.15} parent=15 // pred_check_branch
          %242 = sbr.rel (%p240) target = $region61
        $region60: #{_lambda_.15} parent=15 // pred_region
          %s243 = sand.u32 %s81, 1
          %s244 = sand.u32 %s81, 1
          %s245 = smul.addr %s244, 12
          %s246 = scalar_lea.vmem [#allocation6], %s245
          %s247 = sadd.s32 %s16, %s19
          %s248 = sadd.s32 %s17, 1
          %s249 = smul.u32 3, %s247
          %s250 = smul.addr %s249, 3
          %s251 = sadd.s32 %s248, %s250
          %s252 = smul.addr %s251, 4
          %s253 = scalar_lea.vmem %s1, %s252
          // Predicated region
          $region62: #{_lambda_.15} parent=60 // pred_check
            _
          $region63: #{_lambda_.15} parent=60 // pred_check_branch
            %255 = sbr.rel (0) target = $region65
          $region64: #{_lambda_.15} parent=60 // pred_region
            // Predicated region
            $region66: #{_lambda_.15} parent=64 // pred_check
              _
            $region67: #{_lambda_.15} parent=64 // pred_check_branch
              %257 = sbr.rel target = $region69
            $region68: #{_lambda_.15} parent=64 // pred_region
              // Predicated region
              $region81: #{_lambda_.15} parent=68 // pred_check
                _
              $region82: #{_lambda_.15} parent=68 // pred_check_branch
                %277 = sbr.rel (0) target = $region84
              $region83: #{_lambda_.15} parent=68 // pred_region
                loop: start=0, step=1, limit=1
                $region85: #{_lambda_.15} parent=83 // loop_pre_header
                  _
                $region86: #{_lambda_.15} parent=83 // loop_header
                  %s279 = sphi 0, %s283
                  %p280 = scmp.ge.s32.totalorder %s279, 1
                  %s284 = sphi %s253, %s253
                  %s285 = sphi %s246, %s246
                $region87: #{_lambda_.15} parent=83 // loop_header_branch
                  %282 = sbr.rel (%p280) target = $region91
                $region88: #{_lambda_.15} parent=83 // loop_body
                  _
                $region89: #{_lambda_.15} parent=83 // loop_footer
                  %s283 = sadd.s32 1, %s279
                $region90: #{_lambda_.15} parent=83 // loop_footer_branch
                  %278 = sbr.rel target = $region86
                $region91: #{_lambda_.15} parent=83 // loop_exit
                  _
                %s287 = ssub.s32 16, 1
                loop: start=0, step=1, limit=1
                $region92: #{_lambda_.15} parent=83 // loop_pre_header
                  _
                $region93: #{_lambda_.15} parent=83 // loop_header
                  %s289 = sphi 0, %s293
                  %p290 = scmp.ge.s32.totalorder %s289, 1
                  %s294 = sphi %s253, %s253
                  %s295 = sphi %s246, %s246
                $region94: #{_lambda_.15} parent=83 // loop_header_branch
                  %292 = sbr.rel (%p290) target = $region98
                $region95: #{_lambda_.15} parent=83 // loop_body
                  %v296 = vld [vmem:[%s294] sm:%s287]
                  %297 = vst [vmem:[%s295] sm:%s287] %v296
                  %v298 = vld [vmem:[%s294 + $0xc] sm:%s287]
                  %299 = vst [vmem:[%s295 + $0x4] sm:%s287] %v298
                  %v300 = vld [vmem:[%s294 + $0x18] sm:%s287]
                  %301 = vst [vmem:[%s295 + $0x8] sm:%s287] %v300
                $region96: #{_lambda_.15} parent=83 // loop_footer
                  %s293 = sadd.s32 1, %s289
                $region97: #{_lambda_.15} parent=83 // loop_footer_branch
                  %288 = sbr.rel target = $region93
                $region98: #{_lambda_.15} parent=83 // loop_exit
                  _
              $region84: #{_lambda_.15} parent=68 // pred_fallthru
                _
            $region69: #{_lambda_.15} parent=64 // pred_fallthru
              _
            // Predicated region
            $region70: #{_lambda_.15} parent=64 // pred_check
              _
            $region71: #{_lambda_.15} parent=64 // pred_check_branch
              %259 = sbr.rel (0) target = $region73
            $region72: #{_lambda_.15} parent=64 // pred_region
              %s261 = ssub.s32 16, 1
              loop: start=0, step=1, limit=1
              $region74: #{_lambda_.15} parent=72 // loop_pre_header
                _
              $region75: #{_lambda_.15} parent=72 // loop_header
                %s263 = sphi 0, %s267
                %p264 = scmp.ge.s32.totalorder %s263, 1
                %s268 = sphi %s253, %s253
                %s269 = sphi %s246, %s246
              $region76: #{_lambda_.15} parent=72 // loop_header_branch
                %266 = sbr.rel (%p264) target = $region80
              $region77: #{_lambda_.15} parent=72 // loop_body
                %v270 = vld [vmem:[%s268] sm:%s261]
                %271 = vst [vmem:[%s269] sm:%s261] %v270
                %v272 = vld [vmem:[%s268 + $0xc] sm:%s261]
                %273 = vst [vmem:[%s269 + $0x4] sm:%s261] %v272
                %v274 = vld [vmem:[%s268 + $0x18] sm:%s261]
                %275 = vst [vmem:[%s269 + $0x8] sm:%s261] %v274
              $region78: #{_lambda_.15} parent=72 // loop_footer
                %s267 = sadd.s32 1, %s263
              $region79: #{_lambda_.15} parent=72 // loop_footer_branch
                %262 = sbr.rel target = $region75
              $region80: #{_lambda_.15} parent=72 // loop_exit
                _
            $region73: #{_lambda_.15} parent=64 // pred_fallthru
              _
          $region65: #{_lambda_.15} parent=60 // pred_fallthru
            _
          %302 = vnop
        $region61: #{_lambda_.15} parent=15 // pred_fallthru
          _
        // Predicated region
        $region99: #{_lambda_.15} parent=15 // pred_check
          %p303 = pneg %p123
        $region100: #{_lambda_.15} parent=15 // pred_check_branch
          %305 = sbr.rel (%p303) target = $region102
        $region101: #{_lambda_.15} parent=15 // pred_region
          %s306 = sand.u32 %s113, 1
          %s307 = sand.u32 %s113, 1
          %s308 = smul.addr %s307, 12
          %s309 = scalar_lea.vmem [#allocation7], %s308
          %s310 = sadd.s32 %s16, %s19
          %s311 = sadd.s32 %s17, 2
          %s312 = smul.u32 3, %s310
          %s313 = smul.addr %s312, 3
          %s314 = sadd.s32 %s311, %s313
          %s315 = smul.addr %s314, 4
          %s316 = scalar_lea.vmem %s2, %s315
          // Predicated region
          $region103: #{_lambda_.15} parent=101 // pred_check
            _
          $region104: #{_lambda_.15} parent=101 // pred_check_branch
            %318 = sbr.rel (0) target = $region106
          $region105: #{_lambda_.15} parent=101 // pred_region
            // Predicated region
            $region107: #{_lambda_.15} parent=105 // pred_check
              _
            $region108: #{_lambda_.15} parent=105 // pred_check_branch
              %320 = sbr.rel target = $region110
            $region109: #{_lambda_.15} parent=105 // pred_region
              // Predicated region
              $region122: #{_lambda_.15} parent=109 // pred_check
                _
              $region123: #{_lambda_.15} parent=109 // pred_check_branch
                %340 = sbr.rel (0) target = $region125
              $region124: #{_lambda_.15} parent=109 // pred_region
                loop: start=0, step=1, limit=1
                $region126: #{_lambda_.15} parent=124 // loop_pre_header
                  _
                $region127: #{_lambda_.15} parent=124 // loop_header
                  %s342 = sphi 0, %s346
                  %p343 = scmp.ge.s32.totalorder %s342, 1
                  %s347 = sphi %s316, %s316
                  %s348 = sphi %s309, %s309
                $region128: #{_lambda_.15} parent=124 // loop_header_branch
                  %345 = sbr.rel (%p343) target = $region132
                $region129: #{_lambda_.15} parent=124 // loop_body
                  _
                $region130: #{_lambda_.15} parent=124 // loop_footer
                  %s346 = sadd.s32 1, %s342
                $region131: #{_lambda_.15} parent=124 // loop_footer_branch
                  %341 = sbr.rel target = $region127
                $region132: #{_lambda_.15} parent=124 // loop_exit
                  _
                %s350 = ssub.s32 16, 1
                loop: start=0, step=1, limit=1
                $region133: #{_lambda_.15} parent=124 // loop_pre_header
                  _
                $region134: #{_lambda_.15} parent=124 // loop_header
                  %s352 = sphi 0, %s356
                  %p353 = scmp.ge.s32.totalorder %s352, 1
                  %s357 = sphi %s316, %s316
                  %s358 = sphi %s309, %s309
                $region135: #{_lambda_.15} parent=124 // loop_header_branch
                  %355 = sbr.rel (%p353) target = $region139
                $region136: #{_lambda_.15} parent=124 // loop_body
                  %v359 = vld [vmem:[%s357] sm:%s350]
                  %360 = vst [vmem:[%s358] sm:%s350] %v359
                  %v361 = vld [vmem:[%s357 + $0xc] sm:%s350]
                  %362 = vst [vmem:[%s358 + $0x4] sm:%s350] %v361
                  %v363 = vld [vmem:[%s357 + $0x18] sm:%s350]
                  %364 = vst [vmem:[%s358 + $0x8] sm:%s350] %v363
                $region137: #{_lambda_.15} parent=124 // loop_footer
                  %s356 = sadd.s32 1, %s352
                $region138: #{_lambda_.15} parent=124 // loop_footer_branch
                  %351 = sbr.rel target = $region134
                $region139: #{_lambda_.15} parent=124 // loop_exit
                  _
              $region125: #{_lambda_.15} parent=109 // pred_fallthru
                _
            $region110: #{_lambda_.15} parent=105 // pred_fallthru
              _
            // Predicated region
            $region111: #{_lambda_.15} parent=105 // pred_check
              _
            $region112: #{_lambda_.15} parent=105 // pred_check_branch
              %322 = sbr.rel (0) target = $region114
            $region113: #{_lambda_.15} parent=105 // pred_region
              %s324 = ssub.s32 16, 1
              loop: start=0, step=1, limit=1
              $region115: #{_lambda_.15} parent=113 // loop_pre_header
                _
              $region116: #{_lambda_.15} parent=113 // loop_header
                %s326 = sphi 0, %s330
                %p327 = scmp.ge.s32.totalorder %s326, 1
                %s331 = sphi %s316, %s316
                %s332 = sphi %s309, %s309
              $region117: #{_lambda_.15} parent=113 // loop_header_branch
                %329 = sbr.rel (%p327) target = $region121
              $region118: #{_lambda_.15} parent=113 // loop_body
                %v333 = vld [vmem:[%s331] sm:%s324]
                %334 = vst [vmem:[%s332] sm:%s324] %v333
                %v335 = vld [vmem:[%s331 + $0xc] sm:%s324]
                %336 = vst [vmem:[%s332 + $0x4] sm:%s324] %v335
                %v337 = vld [vmem:[%s331 + $0x18] sm:%s324]
                %338 = vst [vmem:[%s332 + $0x8] sm:%s324] %v337
              $region119: #{_lambda_.15} parent=113 // loop_footer
                %s330 = sadd.s32 1, %s326
              $region120: #{_lambda_.15} parent=113 // loop_footer_branch
                %325 = sbr.rel target = $region116
              $region121: #{_lambda_.15} parent=113 // loop_exit
                _
            $region114: #{_lambda_.15} parent=105 // pred_fallthru
              _
          $region106: #{_lambda_.15} parent=101 // pred_fallthru
            _
          %365 = vnop
        $region102: #{_lambda_.15} parent=15 // pred_fallthru
          _
      $region16: #{_lambda_.15} parent=5 // pred_fallthru
        _
      %p366 = scmp.le.s32.totalorder 1, %s9
      %p367 = scmp.lt.s32.totalorder %s9, 3
      %p368 = pnand %p366, %p367
      %p369 = pneg %p368
      // Predicated region
      $region140: #{_lambda_.15} parent=5 // pred_check
        _
      $region141: #{_lambda_.15} parent=5 // pred_check_branch
        %371 = sbr.rel (%p368) target = $region143
      $region142: #{_lambda_.15} parent=5 // pred_region
        %s372 = ssub.s32 %s9, 1
        %s373 = sand.u32 %s52, 1
        %s374 = sand.u32 %s52, 1
        %s375 = smul.addr %s374, 12
        %s376 = scalar_lea.vmem [#allocation5], %s375
        // Predicated region
        $region144: #{_lambda_.15} parent=142 // pred_check
          %p377 = pneg %p65
        $region145: #{_lambda_.15} parent=142 // pred_check_branch
          %379 = sbr.rel (%p377) target = $region147
        $region146: #{_lambda_.15} parent=142 // pred_region
          _
        $region147: #{_lambda_.15} parent=142 // pred_fallthru
          _
        %s380 = sand.u32 %s84, 1
        %s381 = sand.u32 %s84, 1
        %s382 = smul.addr %s381, 12
        %s383 = scalar_lea.vmem [#allocation6], %s382
        // Predicated region
        $region148: #{_lambda_.15} parent=142 // pred_check
          %p384 = pneg %p97
        $region149: #{_lambda_.15} parent=142 // pred_check_branch
          %386 = sbr.rel (%p384) target = $region151
        $region150: #{_lambda_.15} parent=142 // pred_region
          _
        $region151: #{_lambda_.15} parent=142 // pred_fallthru
          _
        %s387 = sand.u32 %s116, 1
        %s388 = sand.u32 %s116, 1
        %s389 = smul.addr %s388, 12
        %s390 = scalar_lea.vmem [#allocation7], %s389
        // Predicated region
        $region152: #{_lambda_.15} parent=142 // pred_check
          %p391 = pneg %p129
        $region153: #{_lambda_.15} parent=142 // pred_check_branch
          %393 = sbr.rel (%p391) target = $region155
        $region154: #{_lambda_.15} parent=142 // pred_region
          _
        $region155: #{_lambda_.15} parent=142 // pred_fallthru
          _
        %s394 = sand.u32 %s52, 1
        %s395 = sand.u32 %s52, 1
        %s396 = smul.addr %s395, 12
        %s397 = scalar_lea.vmem [#allocation5], %s396
        %p398 = pneg %p65
        %p399 = pneg %p62
        %s400 = sand.u32 %s84, 1
        %s401 = sand.u32 %s84, 1
        %s402 = smul.addr %s401, 12
        %s403 = scalar_lea.vmem [#allocation6], %s402
        %p404 = pneg %p97
        %p405 = pneg %p94
        %s406 = sand.u32 %s116, 1
        %s407 = sand.u32 %s116, 1
        %s408 = smul.addr %s407, 12
        %s409 = scalar_lea.vmem [#allocation7], %s408
        %p410 = pneg %p129
        %p411 = pneg %p126
        %p412 = pneg %p159
        %p413 = pneg %p156
        %s414 = sadd.s32 %s20, %s22
        %s415 = smul.u32 3, %s414
        %p416 = scmp.lt.s32.totalorder %s415, 5
        %s417 = scalar_select %p416, %s415, 5
        %p418 = scmp.lt.s32.totalorder %s21, 0
        %s419 = scalar_select %p418, %s21, 0
        %s420 = sadd.s32 %s419, %s417
        %s421 = smul.addr %s420, 4
        %s422 = scalar_lea.vmem %s3, %s421
        %s423 = sadd.s32 %s20, %s22
        %s424 = smul.u32 3, %s423
        %s425 = sadd.s32 %s20, %s23
        %s426 = sadd.s32 %s21, 1
        %s427 = smul.u32 3, %s425
        %s428 = sadd.s32 %s20, %s23
        %s429 = sadd.s32 %s21, 2
        %s430 = smul.u32 3, %s428
        %s431 = sadd.s32 %s20, %s22
        %s432 = smul.u32 3, %s431
        %p433 = scmp.lt.s32.totalorder %s432, 5
        %s434 = scalar_select %p433, %s432, 5
        %p435 = scmp.lt.s32.totalorder %s21, 0
        %s436 = scalar_select %p435, %s21, 0
        %s437 = sadd.s32 %s436, %s434
        %s438 = smul.addr %s437, 4
        %s439 = scalar_lea.vmem %s3, %s438
        %s440 = sadd.s32 %s20, %s22
        %s441 = smul.u32 3, %s440
        %p443 = scmp.eq.s32.totalorder %s23, 0
        // Predicated region
        $region156: #{_lambda_.15} parent=142 // pred_check
          %p444 = pneg %p443
        $region157: #{_lambda_.15} parent=142 // pred_check_branch
          %446 = sbr.rel (%p444) target = $region159
        $region158: #{_lambda_.15} parent=142 // pred_region
          %vm447 = vcmask 7168
          %448 = vst.msk [vmem:[#allocation2] sm:$0xff] %vm447, -1e+30
          %449 = vst.msk [vmem:[#allocation2 + $0x8] sm:$0xff] %vm447, -1e+30
          %450 = vst.msk [vmem:[#allocation2 + $0x10] sm:$0xff] %vm447, -1e+30
          %451 = vst.msk [vmem:[#allocation2 + $0x18] sm:$0xff] %vm447, -1e+30
          %452 = vst.msk [vmem:[#allocation2 + $0x20] sm:$0xff] %vm447, -1e+30
          %453 = vst.msk [vmem:[#allocation2 + $0x28] sm:$0xff] %vm447, -1e+30
          %454 = vst.msk [vmem:[#allocation3] sm:$0xff] %vm447, 0.0
          %455 = vst.msk [vmem:[#allocation3 + $0x8] sm:$0xff] %vm447, 0.0
          %456 = vst.msk [vmem:[#allocation3 + $0x10] sm:$0xff] %vm447, 0.0
          %457 = vst.msk [vmem:[#allocation3 + $0x18] sm:$0xff] %vm447, 0.0
          %458 = vst.msk [vmem:[#allocation3 + $0x20] sm:$0xff] %vm447, 0.0
          %459 = vst.msk [vmem:[#allocation3 + $0x28] sm:$0xff] %vm447, 0.0
          %vm460 = vcmask 523264
          %461 = vst.msk [vmem:[#allocation4] sm:$0xff] %vm460, 0.0
          %462 = vst.msk [vmem:[#allocation4 + $0x8] sm:$0xff] %vm460, 0.0
          %463 = vst.msk [vmem:[#allocation4 + $0x10] sm:$0xff] %vm460, 0.0
          %464 = vst.msk [vmem:[#allocation4 + $0x18] sm:$0xff] %vm460, 0.0
          %465 = vst.msk [vmem:[#allocation4 + $0x20] sm:$0xff] %vm460, 0.0
          %466 = vst.msk [vmem:[#allocation4 + $0x28] sm:$0xff] %vm460, 0.0
        $region159: #{_lambda_.15} parent=142 // pred_fallthru
          _
        %v467 = vld [vmem:[%s376] sm:$0xf]
        %v468 = vld [vmem:[%s376 + $0x4] sm:$0xf]
        %v469 = vld [vmem:[%s376 + $0x8] sm:$0xf]
        %v470 = vld [vmem:[%s383] sm:$0xf]
        %v471 = vld [vmem:[%s383 + $0x4] sm:$0xf]
        %v472 = vld [vmem:[%s383 + $0x8] sm:$0xf]
        %v473 = vld [vmem:[%s390] sm:$0xf]
        %v474 = vld [vmem:[%s390 + $0x4] sm:$0xf]
        %v475 = vld [vmem:[%s390 + $0x8] sm:$0xf]
        %s476 = smul.u32 %s23, 24
        %v477 = vlaneseq
        %v478 = vand.u32 %v477, 127
        %v479 = vstv %s476
        %v480 = vadd.s32 %v479, %v478
        %vm481 = vcmp.lt.s32.totalorder %v480, 17
        %v482 = vsel %vm481, 0.0, -1e+30
        %v486 = vunpack.c.l.b16 %v467
        %v487 = vunpack.c.l.b16 %v468
        %v488 = vunpack.c.l.b16 %v469
        %v489 = vpack.c.b16 %v487, %v486
        %v490 = vpack.c.b16 %v488, %v488
        %v494 = vunpack.c.l.b16 %v470
        %v495 = vunpack.c.l.b16 %v471
        %v496 = vunpack.c.l.b16 %v472
        %v497 = vpack.c.b16 %v495, %v494
        %v498 = vpack.c.b16 %v496, %v496
        %vm499 = vcmask 523264
        %v501 = vsel %vm499, %v489, 0
        %v504 = vsel %vm499, %v490, 0
        %v507 = vsel %vm499, %v497, 0
        %v510 = vsel %vm499, %v498, 0
        %512 = vmatpush.bf16.xpose.msra.mxu0 0
        %513 = vmatpush.bf16.xpose.msra.mxu0 0
        %514 = vmatpush.bf16.xpose.msra.mxu0 0
        %515 = vmatpush.bf16.xpose.msra.mxu0 0
        %516 = vmatpush.bf16.xpose.msra.mxu0 0
        %517 = vmatpush.bf16.xpose.msra.mxu0 0
        %518 = vmatpush.bf16.xpose.msra.mxu0 %v510
        %519 = vmatpush.bf16.xpose.msra.mxu0 %v507
        %520 = vmatmul.bf16.gmra.mxu0 %v501
        %v521 = vpop.f32.mrf.mxu0
        %v522 = vadd.f32 %v482, %v521
        %v523 = vpop.f32.mrf.mxu0
        %v524 = vadd.f32 %v482, %v523
        %525 = vmatmul.bf16.gmra.mxu0 %v504
        %v526 = vpop.f32.mrf.mxu0
        %v527 = vadd.f32 %v482, %v526
        %v528 = vpop.f32.mrf.mxu0
        %529 = vdwg.mxu0
        %v530 = vld [vmem:[#allocation2] sm:$0xff]
        %v531 = vld [vmem:[#allocation2 + $0x8] sm:$0xff]
        %v532 = vld [vmem:[#allocation2 + $0x10] sm:$0xff]
        %vm533 = vcmask 195584
        %v534 = vsel %vm533, %v522, -inf
        %535 = vmax.xlane.f32.xlu0 %v534
        %v536 = vpop.xlane.xlu0 %535
        %v537 = vsel %vm533, %v524, -inf
        %538 = vmax.xlane.f32.xlu0 %v537
        %v539 = vpop.xlane.xlu0 %538
        %v540 = vsel %vm533, %v527, -inf
        %541 = vmax.xlane.f32.xlu0 %v540
        %v542 = vpop.xlane.xlu0 %541
        %v543 = vmax.f32 %v530, %v536
        %v544 = vmax.f32 %v531, %v539
        %v545 = vmax.f32 %v532, %v542
        %v546 = vsub.f32 %v530, %v543
        %v547 = vsub.f32 %v531, %v544
        %v548 = vsub.f32 %v532, %v545
        %v549 = vmul.f32 %v546, 1.442695
        %v550 = vpow.pop %v549
        %v551 = vmul.f32 %v547, 1.442695
        %v552 = vpow.pop %v551
        %v553 = vmul.f32 %v548, 1.442695
        %v554 = vpow.pop %v553
        %556 = vset.pattern.permute.xlu0 0
        %557 = vperm.xlu0 %556, %v543
        %v558 = vpop.permute.xlu0 %557
        %561 = vset.pattern.permute.xlu0 0
        %562 = vperm.xlu0 %561, %v544
        %v563 = vpop.permute.xlu0 %562
        %566 = vset.pattern.permute.xlu0 0
        %567 = vperm.xlu0 %566, %v545
        %v568 = vpop.permute.xlu0 %567
        %v570 = vsub.f32 %v522, %v558
        %v571 = vsub.f32 %v524, %v563
        %v572 = vsub.f32 %v527, %v568
        %v573 = vmul.f32 %v570, 1.442695
        %v574 = vpow.pop %v573
        %v575 = vmul.f32 %v571, 1.442695
        %v576 = vpow.pop %v575
        %v577 = vmul.f32 %v572, 1.442695
        %v578 = vpow.pop %v577
        %v579 = vld [vmem:[#allocation3] sm:$0xff]
        %v580 = vld [vmem:[#allocation3 + $0x8] sm:$0xff]
        %v581 = vld [vmem:[#allocation3 + $0x10] sm:$0xff]
        %v582 = vmul.f32 %v550, %v579
        %v583 = vmul.f32 %v552, %v580
        %v584 = vmul.f32 %v554, %v581
        %v585 = vsel %vm533, %v574, 0.0
        %586 = vadd.xlane.f32.xlu0 %v585
        %v587 = vpop.xlane.xlu0 %586
        %v588 = vsel %vm533, %v576, 0.0
        %589 = vadd.xlane.f32.xlu0 %v588
        %v590 = vpop.xlane.xlu0 %589
        %v591 = vsel %vm533, %v578, 0.0
        %592 = vadd.xlane.f32.xlu0 %v591
        %v593 = vpop.xlane.xlu0 %592
        %v594 = vadd.f32 %v582, %v587
        %v595 = vadd.f32 %v583, %v590
        %v596 = vadd.f32 %v584, %v593
        %vm597 = vcmask 7168
        %598 = vst.msk [vmem:[#allocation3] sm:$0xff] %vm597, %v594
        %599 = vst.msk [vmem:[#allocation3 + $0x8] sm:$0xff] %vm597, %v595
        %600 = vst.msk [vmem:[#allocation3 + $0x10] sm:$0xff] %vm597, %v596
        %v601 = vld [vmem:[#allocation4] sm:$0xff]
        %v602 = vld [vmem:[#allocation4 + $0x8] sm:$0xff]
        %v603 = vld [vmem:[#allocation4 + $0x10] sm:$0xff]
        %605 = vset.pattern.permute.xlu0 0
        %606 = vperm.xlu0 %605, %v550
        %v607 = vpop.permute.xlu0 %606
        %610 = vset.pattern.permute.xlu0 0
        %611 = vperm.xlu0 %610, %v552
        %v612 = vpop.permute.xlu0 %611
        %615 = vset.pattern.permute.xlu0 0
        %616 = vperm.xlu0 %615, %v554
        %v617 = vpop.permute.xlu0 %616
        %v619 = vmul.f32 %v607, %v601
        %v620 = vmul.f32 %v612, %v602
        %v621 = vmul.f32 %v617, %v603
        %v622 = vpack.c.bf16 %v576, %v574
        %v623 = vpack.c.bf16 %v578, %v578
        %v627 = vunpack.c.l.b16 %v473
        %v628 = vunpack.c.l.b16 %v474
        %v629 = vunpack.c.l.b16 %v475
        %v630 = vpack.c.b16 %v628, %v627
        %v631 = vpack.c.b16 %v629, %v629
        %v634 = vsel %vm533, %v622, 0
        %v637 = vsel %vm533, %v623, 0
        %vm639 = vcmask 1043456
        %v641 = vsel %vm639, %v631, 0
        %643 = vmatpush.bf16.msra.mxu0 0
        %644 = vmatpush.bf16.msra.mxu0 0
        %645 = vmatpush.bf16.msra.mxu0 0
        %646 = vmatpush.bf16.msra.mxu0 0
        %647 = vmatpush.bf16.msra.mxu0 0
        %648 = vmatpush.bf16.msra.mxu0 0
        %649 = vmatpush.bf16.msra.mxu0 %v641
        %650 = vmatpush.bf16.msra.mxu0 %v630
        %651 = vmatmul.bf16.gmra.mxu0 %v634
        %v652 = vpop.f32.mrf.mxu0
        %v653 = vadd.f32 0.0, %v652
        %v654 = vpop.f32.mrf.mxu0
        %v655 = vadd.f32 0.0, %v654
        %656 = vmatmul.bf16.gmra.mxu0 %v637
        %v657 = vpop.f32.mrf.mxu0
        %v658 = vadd.f32 0.0, %v657
        %v659 = vpop.f32.mrf.mxu0
        %660 = vdwg.mxu0
        %v661 = vadd.f32 %v619, %v653
        %v662 = vadd.f32 %v620, %v655
        %v663 = vadd.f32 %v621, %v658
        %664 = vst.msk [vmem:[#allocation4] sm:$0xff] %vm499, %v661
        %665 = vst.msk [vmem:[#allocation4 + $0x8] sm:$0xff] %vm499, %v662
        %666 = vst.msk [vmem:[#allocation4 + $0x10] sm:$0xff] %vm499, %v663
        %667 = vst.msk [vmem:[#allocation2] sm:$0xff] %vm597, %v543
        %668 = vst.msk [vmem:[#allocation2 + $0x8] sm:$0xff] %vm597, %v544
        %669 = vst.msk [vmem:[#allocation2 + $0x10] sm:$0xff] %vm597, %v545
        %670 = vrot.lane.b32.xlu0 %v489, 64
        %v671 = vpop.permute.xlu0 %670
        %672 = vrot.lane.b32.xlu0 %v490, 64
        %v673 = vpop.permute.xlu0 %672
        %674 = vrot.lane.b32.xlu0 %v497, 64
        %v675 = vpop.permute.xlu0 %674
        %676 = vrot.lane.b32.xlu0 %v498, 64
        %v677 = vpop.permute.xlu0 %676
        %v679 = vsel %vm499, %v671, 0
        %v682 = vsel %vm499, %v673, 0
        %v685 = vsel %vm499, %v675, 0
        %v688 = vsel %vm499, %v677, 0
        %690 = vmatpush.bf16.xpose.msra.mxu0 0
        %691 = vmatpush.bf16.xpose.msra.mxu0 0
        %692 = vmatpush.bf16.xpose.msra.mxu0 0
        %693 = vmatpush.bf16.xpose.msra.mxu0 0
        %694 = vmatpush.bf16.xpose.msra.mxu0 0
        %695 = vmatpush.bf16.xpose.msra.mxu0 0
        %696 = vmatpush.bf16.xpose.msra.mxu0 %v688
        %697 = vmatpush.bf16.xpose.msra.mxu0 %v685
        %698 = vmatmul.bf16.gmra.mxu0 %v679
        %v699 = vpop.f32.mrf.mxu0
        %v700 = vadd.f32 %v482, %v699
        %v701 = vpop.f32.mrf.mxu0
        %v702 = vadd.f32 %v482, %v701
        %703 = vmatmul.bf16.gmra.mxu0 %v682
        %v704 = vpop.f32.mrf.mxu0
        %v705 = vadd.f32 %v482, %v704
        %v706 = vpop.f32.mrf.mxu0
        %707 = vdwg.mxu0
        %s708 = scalar_lea.vmem [#allocation2], 24
        %v709 = vld [vmem:[%s708] sm:$0xff]
        %v710 = vld [vmem:[%s708 + $0x8] sm:$0xff]
        %v711 = vld [vmem:[%s708 + $0x10] sm:$0xff]
        %v712 = vsel %vm533, %v700, -inf
        %713 = vmax.xlane.f32.xlu0 %v712
        %v714 = vpop.xlane.xlu0 %713
        %v715 = vsel %vm533, %v702, -inf
        %716 = vmax.xlane.f32.xlu0 %v715
        %v717 = vpop.xlane.xlu0 %716
        %v718 = vsel %vm533, %v705, -inf
        %719 = vmax.xlane.f32.xlu0 %v718
        %v720 = vpop.xlane.xlu0 %719
        %v721 = vmax.f32 %v709, %v714
        %v722 = vmax.f32 %v710, %v717
        %v723 = vmax.f32 %v711, %v720
        %v724 = vsub.f32 %v709, %v721
        %v725 = vsub.f32 %v710, %v722
        %v726 = vsub.f32 %v711, %v723
        %v727 = vmul.f32 %v724, 1.442695
        %v728 = vpow.pop %v727
        %v729 = vmul.f32 %v725, 1.442695
        %v730 = vpow.pop %v729
        %v731 = vmul.f32 %v726, 1.442695
        %v732 = vpow.pop %v731
        %734 = vset.pattern.permute.xlu0 0
        %735 = vperm.xlu0 %734, %v721
        %v736 = vpop.permute.xlu0 %735
        %739 = vset.pattern.permute.xlu0 0
        %740 = vperm.xlu0 %739, %v722
        %v741 = vpop.permute.xlu0 %740
        %744 = vset.pattern.permute.xlu0 0
        %745 = vperm.xlu0 %744, %v723
        %v746 = vpop.permute.xlu0 %745
        %v748 = vsub.f32 %v700, %v736
        %v749 = vsub.f32 %v702, %v741
        %v750 = vsub.f32 %v705, %v746
        %v751 = vmul.f32 %v748, 1.442695
        %v752 = vpow.pop %v751
        %v753 = vmul.f32 %v749, 1.442695
        %v754 = vpow.pop %v753
        %v755 = vmul.f32 %v750, 1.442695
        %v756 = vpow.pop %v755
        %s757 = scalar_lea.vmem [#allocation3], 24
        %v758 = vld [vmem:[%s757] sm:$0xff]
        %v759 = vld [vmem:[%s757 + $0x8] sm:$0xff]
        %v760 = vld [vmem:[%s757 + $0x10] sm:$0xff]
        %v761 = vmul.f32 %v728, %v758
        %v762 = vmul.f32 %v730, %v759
        %v763 = vmul.f32 %v732, %v760
        %v764 = vsel %vm533, %v752, 0.0
        %765 = vadd.xlane.f32.xlu0 %v764
        %v766 = vpop.xlane.xlu0 %765
        %v767 = vsel %vm533, %v754, 0.0
        %768 = vadd.xlane.f32.xlu0 %v767
        %v769 = vpop.xlane.xlu0 %768
        %v770 = vsel %vm533, %v756, 0.0
        %771 = vadd.xlane.f32.xlu0 %v770
        %v772 = vpop.xlane.xlu0 %771
        %v773 = vadd.f32 %v761, %v766
        %v774 = vadd.f32 %v762, %v769
        %v775 = vadd.f32 %v763, %v772
        %776 = vst.msk [vmem:[%s757] sm:$0xff] %vm597, %v773
        %777 = vst.msk [vmem:[%s757 + $0x8] sm:$0xff] %vm597, %v774
        %778 = vst.msk [vmem:[%s757 + $0x10] sm:$0xff] %vm597, %v775
        %s779 = scalar_lea.vmem [#allocation4], 24
        %v780 = vld [vmem:[%s779] sm:$0xff]
        %v781 = vld [vmem:[%s779 + $0x8] sm:$0xff]
        %v782 = vld [vmem:[%s779 + $0x10] sm:$0xff]
        %784 = vset.pattern.permute.xlu0 0
        %785 = vperm.xlu0 %784, %v728
        %v786 = vpop.permute.xlu0 %785
        %789 = vset.pattern.permute.xlu0 0
        %790 = vperm.xlu0 %789, %v730
        %v791 = vpop.permute.xlu0 %790
        %794 = vset.pattern.permute.xlu0 0
        %795 = vperm.xlu0 %794, %v732
        %v796 = vpop.permute.xlu0 %795
        %v798 = vmul.f32 %v786, %v780
        %v799 = vmul.f32 %v791, %v781
        %v800 = vmul.f32 %v796, %v782
        %v801 = vpack.c.bf16 %v754, %v752
        %v802 = vpack.c.bf16 %v756, %v756
        %803 = vrot.lane.b32.xlu0 %v630, 64
        %v804 = vpop.permute.xlu0 %803
        %805 = vrot.lane.b32.xlu0 %v631, 64
        %v806 = vpop.permute.xlu0 %805
        %v809 = vsel %vm533, %v801, 0
        %v812 = vsel %vm533, %v802, 0
        %v815 = vsel %vm639, %v806, 0
        %817 = vmatpush.bf16.msra.mxu0 0
        %818 = vmatpush.bf16.msra.mxu0 0
        %819 = vmatpush.bf16.msra.mxu0 0
        %820 = vmatpush.bf16.msra.mxu0 0
        %821 = vmatpush.bf16.msra.mxu0 0
        %822 = vmatpush.bf16.msra.mxu0 0
        %823 = vmatpush.bf16.msra.mxu0 %v815
        %824 = vmatpush.bf16.msra.mxu0 %v804
        %825 = vmatmul.bf16.gmra.mxu0 %v809
        %v826 = vpop.f32.mrf.mxu0
        %v827 = vadd.f32 0.0, %v826
        %v828 = vpop.f32.mrf.mxu0
        %v829 = vadd.f32 0.0, %v828
        %830 = vmatmul.bf16.gmra.mxu0 %v812
        %v831 = vpop.f32.mrf.mxu0
        %v832 = vadd.f32 0.0, %v831
        %v833 = vpop.f32.mrf.mxu0
        %834 = vdwg.mxu0
        %v835 = vadd.f32 %v798, %v827
        %v836 = vadd.f32 %v799, %v829
        %v837 = vadd.f32 %v800, %v832
        %838 = vst.msk [vmem:[%s779] sm:$0xff] %vm499, %v835
        %839 = vst.msk [vmem:[%s779 + $0x8] sm:$0xff] %vm499, %v836
        %840 = vst.msk [vmem:[%s779 + $0x10] sm:$0xff] %vm499, %v837
        %841 = vst.msk [vmem:[%s708] sm:$0xff] %vm597, %v721
        %842 = vst.msk [vmem:[%s708 + $0x8] sm:$0xff] %vm597, %v722
        %843 = vst.msk [vmem:[%s708 + $0x10] sm:$0xff] %vm597, %v723
        // Predicated region
        $region160: #{_lambda_.15} parent=142 // pred_check
          %p844 = pneg %p443
        $region161: #{_lambda_.15} parent=142 // pred_check_branch
          %846 = sbr.rel (%p844) target = $region163
        $region162: #{_lambda_.15} parent=142 // pred_region
          %v847 = vld [vmem:[#allocation4] sm:$0xff]
          %v848 = vld [vmem:[#allocation4 + $0x8] sm:$0xff]
          %v849 = vld [vmem:[#allocation4 + $0x10] sm:$0xff]
          %v850 = vld [vmem:[#allocation3] sm:$0xff]
          %v851 = vld [vmem:[#allocation3 + $0x8] sm:$0xff]
          %v852 = vld [vmem:[#allocation3 + $0x10] sm:$0xff]
          %v853 = vrcp.pop %v850
          %v854 = vrcp.pop %v851
          %v855 = vrcp.pop %v852
          %857 = vset.pattern.permute.xlu0 0
          %858 = vperm.xlu0 %857, %v853
          %v859 = vpop.permute.xlu0 %858
          %862 = vset.pattern.permute.xlu0 0
          %863 = vperm.xlu0 %862, %v854
          %v864 = vpop.permute.xlu0 %863
          %867 = vset.pattern.permute.xlu0 0
          %868 = vperm.xlu0 %867, %v855
          %v869 = vpop.permute.xlu0 %868
          %v871 = vmul.f32 %v847, %v859
          %v872 = vmul.f32 %v848, %v864
          %v873 = vmul.f32 %v849, %v869
          %v874 = vld [vmem:[%s779] sm:$0xff]
          %v875 = vld [vmem:[%s779 + $0x8] sm:$0xff]
          %v876 = vld [vmem:[%s779 + $0x10] sm:$0xff]
          %v877 = vld [vmem:[%s757] sm:$0xff]
          %v878 = vld [vmem:[%s757 + $0x8] sm:$0xff]
          %v879 = vld [vmem:[%s757 + $0x10] sm:$0xff]
          %v880 = vrcp.pop %v877
          %v881 = vrcp.pop %v878
          %v882 = vrcp.pop %v879
          %884 = vset.pattern.permute.xlu0 0
          %885 = vperm.xlu0 %884, %v880
          %v886 = vpop.permute.xlu0 %885
          %889 = vset.pattern.permute.xlu0 0
          %890 = vperm.xlu0 %889, %v881
          %v891 = vpop.permute.xlu0 %890
          %894 = vset.pattern.permute.xlu0 0
          %895 = vperm.xlu0 %894, %v882
          %v896 = vpop.permute.xlu0 %895
          %v898 = vmul.f32 %v874, %v886
          %v899 = vmul.f32 %v875, %v891
          %v900 = vmul.f32 %v876, %v896
          %904 = vrot.lane.b32.xlu0 %v898, 64
          %v905 = vpop.permute.xlu0 %904
          %906 = vrot.lane.b32.xlu0 %v899, 64
          %v907 = vpop.permute.xlu0 %906
          %908 = vrot.lane.b32.xlu0 %v900, 64
          %v909 = vpop.permute.xlu0 %908
          %v913 = vsel %vm499, %v871, %v905
          %v914 = vsel %vm499, %v872, %v907
          %v915 = vsel %vm499, %v873, %v909
          %v916 = vpack.c.bf16 %v913, %v913
          %v917 = vpack.c.bf16 %v914, %v914
          %v918 = vpack.c.bf16 %v915, %v915
          %919 = vst [vmem:[%s439] sm:$0xf] %v916
          %920 = vst [vmem:[%s439 + $0x4] sm:$0xf] %v917
          %921 = vst [vmem:[%s439 + $0x8] sm:$0xf] %v918
        $region163: #{_lambda_.15} parent=142 // pred_fallthru
          _
        %s922 = sadd.s32 %s20, %s22
        %s923 = smul.u32 3, %s922
        %p924 = scmp.lt.s32.totalorder %s923, 5
        %s925 = scalar_select %p924, %s923, 5
        %p926 = scmp.lt.s32.totalorder %s21, 0
        %s927 = scalar_select %p926, %s21, 0
        %s928 = sadd.s32 %s927, %s925
        %s929 = smul.addr %s928, 4
        %s930 = scalar_lea.vmem %s3, %s929
        // Predicated region
        $region164: #{_lambda_.15} parent=142 // pred_check
          %p931 = pneg %p156
        $region165: #{_lambda_.15} parent=142 // pred_check_branch
          %933 = sbr.rel (%p931) target = $region167
        $region166: #{_lambda_.15} parent=142 // pred_region
          %s934 = sadd.s32 %s20, %s22
          %s935 = smul.u32 3, %s934
        $region167: #{_lambda_.15} parent=142 // pred_fallthru
          _
      $region143: #{_lambda_.15} parent=5 // pred_fallthru
        _
      %p936 = scmp.le.s32.totalorder 2, %s9
      // Predicated region
      $region168: #{_lambda_.15} parent=5 // pred_check
        %p937 = pneg %p936
      $region169: #{_lambda_.15} parent=5 // pred_check_branch
        %939 = sbr.rel (%p937) target = $region171
      $region170: #{_lambda_.15} parent=5 // pred_region
        %s940 = ssub.s32 %s9, 2
        // Predicated region
        $region172: #{_lambda_.15} parent=170 // pred_check
          %p941 = pneg %p162
        $region173: #{_lambda_.15} parent=170 // pred_check_branch
          %943 = sbr.rel (%p941) target = $region175
        $region174: #{_lambda_.15} parent=170 // pred_region
          %s944 = sadd.s32 %s24, %s26
          %s945 = smul.u32 3, %s944
          %p946 = scmp.lt.s32.totalorder %s945, 5
          %s947 = scalar_select %p946, %s945, 5
          %p948 = scmp.lt.s32.totalorder %s25, 0
          %s949 = scalar_select %p948, %s25, 0
          %s950 = sadd.s32 %s949, %s947
          %s951 = smul.addr %s950, 4
          %s952 = scalar_lea.vmem %s3, %s951
        $region175: #{_lambda_.15} parent=170 // pred_fallthru
          _
      $region171: #{_lambda_.15} parent=5 // pred_fallthru
        _
    $region6: #{_lambda_.15} parent=1 // loop_footer
      %s13 = sadd.s32 1, %s9
    $region7: #{_lambda_.15} parent=1 // loop_footer_branch
      %8 = sbr.rel target = $region3
    $region8: #{_lambda_.15} parent=1 // loop_exit
      _

// kernel: _lambda_.16
$region0: #{_lambda_.16}
  #allocation0 [shape = 'u32[]', space=smem, size = 0x4, offset = 0x4, fixed_abs, tag = 'smem constant byte address 0x4 - core index']
  #allocation1 [shape = 'u32[72,128]{1,0:T(1,128)}', space=vmem, size = 0x9000, scoped, tag = 'internal scratch']
  #allocation2 [shape = 'f32[48,128]{1,0:T(8,128)}', space=vmem, size = 0x6000, scoped, tag = 'scratch operand']
  %s0 = inlined_call_operand.vmem [shape: bf16[48,128], index: 0, kind: input, shape index: {}]
  %s1 = inlined_call_operand.hbm [shape: bf16[128,128], index: 1, kind: input, shape index: {}]
  %s2 = inlined_call_operand.vmem [shape: f32[1,128], index: 2, kind: input, shape index: {}]
  %s3 = inlined_call_operand.vmem [shape: bf16[48,128], index: 3, kind: input, shape index: {}]
  %s4 = inlined_call_operand.vmem [shape: bf16[48,128], index: 4, kind: output, shape index: {}]
  %s5 = sld [smem:[#allocation0]]
  $region38: #{_lambda_.16} parent=0
    _
  %s7 = ssub.s32 1, %s5
  %s8 = scalar_select 0, %s7, %s5
  $region1: #{_lambda_.16} parent=0
    #allocation3 [shape = 'u8[32768]{0}', space=vmem, size = 0x8000, scoped, tag = 'input window, operand 1, single buffered']
    #allocation4 [shape = 's32[1]{0}', space=sflag, size = 0x4, scoped, tag = 'scoped memory for _lambda_.16']
    %9 = vsyncpa [#allocation4], 0
    // Predicated region
    $region2: #{_lambda_.16} parent=1 // pred_check
      _
    $region3: #{_lambda_.16} parent=1 // pred_check_branch
      %11 = sbr.rel (0) target = $region5
    $region4: #{_lambda_.16} parent=1 // pred_region
      _
    $region5: #{_lambda_.16} parent=1 // pred_fallthru
      _
    // Predicated region
    $region6: #{_lambda_.16} parent=1 // pred_check
      _
    $region7: #{_lambda_.16} parent=1 // pred_check_branch
      %13 = sbr.rel (0) target = $region9
    $region8: #{_lambda_.16} parent=1 // pred_region
      %15 = vsyncadd [#allocation4], 0
      %s16 = sshll.u32 %s1, 4
      %s17 = int_to_ptr.hbm [resolvable:$true] %s16
      %s18 = sshll.u32 [#allocation3], 4
      %s19 = int_to_ptr.vmem [resolvable:$true] %s18
      %24 = dma.hbm_to_vmem [thread:$0]  %s17, 1024, %s19, [#allocation4], 64, 64, 4
    $region9: #{_lambda_.16} parent=1 // pred_fallthru
      _
    // Predicated region
    $region10: #{_lambda_.16} parent=1 // pred_check
      _
    $region11: #{_lambda_.16} parent=1 // pred_check_branch
      %26 = sbr.rel (0) target = $region13
    $region12: #{_lambda_.16} parent=1 // pred_region
      _
    $region13: #{_lambda_.16} parent=1 // pred_fallthru
      _
    // Predicated region
    $region14: #{_lambda_.16} parent=1 // pred_check
      _
    $region15: #{_lambda_.16} parent=1 // pred_check_branch
      %28 = sbr.rel (0) target = $region17
    $region16: #{_lambda_.16} parent=1 // pred_region
      _
    $region17: #{_lambda_.16} parent=1 // pred_fallthru
      _
    // Predicated region
    $region18: #{_lambda_.16} parent=1 // pred_check
      _
    $region19: #{_lambda_.16} parent=1 // pred_check_branch
      %30 = sbr.rel (0) target = $region21
    $region20: #{_lambda_.16} parent=1 // pred_region
      %32 = dma.done [#allocation4], 1024
    $region21: #{_lambda_.16} parent=1 // pred_fallthru
      _
    %p33 = scmp.eq.s32.totalorder 0, 0
    // Predicated region
    $region22: #{_lambda_.16} parent=1 // pred_check
      %p34 = pneg %p33
    $region23: #{_lambda_.16} parent=1 // pred_check_branch
      %36 = sbr.rel (%p34) target = $region25
    $region24: #{_lambda_.16} parent=1 // pred_region
      %37 = vst [vmem:[#allocation2] sm:$0xff] 0.0
      %38 = vst [vmem:[#allocation2 + $0x8] sm:$0xff] 0.0
      %39 = vst [vmem:[#allocation2 + $0x10] sm:$0xff] 0.0
      %40 = vst [vmem:[#allocation2 + $0x18] sm:$0xff] 0.0
      %41 = vst [vmem:[#allocation2 + $0x20] sm:$0xff] 0.0
      %42 = vst [vmem:[#allocation2 + $0x28] sm:$0xff] 0.0
    $region25: #{_lambda_.16} parent=1 // pred_fallthru
      _
    %v43 = vld [vmem:[#allocation2] sm:$0xff]
    %v44 = vld [vmem:[#allocation2 + $0x8] sm:$0xff]
    %v45 = vld [vmem:[#allocation2 + $0x10] sm:$0xff]
    %v46 = vld [vmem:[#allocation2 + $0x18] sm:$0xff]
    %v47 = vld [vmem:[#allocation2 + $0x20] sm:$0xff]
    %v48 = vld [vmem:[#allocation2 + $0x28] sm:$0xff]
    %v49 = vld [vmem:[%s0] sm:$0xf]
    %v50 = vld [vmem:[%s0 + $0x4] sm:$0xf]
    %v51 = vld [vmem:[%s0 + $0x8] sm:$0xf]
    %v52 = vld [vmem:[%s0 + $0xc] sm:$0xf]
    %v53 = vld [vmem:[%s0 + $0x10] sm:$0xf]
    %v54 = vld [vmem:[%s0 + $0x14] sm:$0xf]
    %v55 = vld [vmem:[#allocation3] sm:$0xf]
    %v56 = vld [vmem:[#allocation3 + $0x4] sm:$0xf]
    %v57 = vld [vmem:[#allocation3 + $0x8] sm:$0xf]
    %v58 = vld [vmem:[#allocation3 + $0xc] sm:$0xf]
    %v59 = vld [vmem:[#allocation3 + $0x10] sm:$0xf]
    %v60 = vld [vmem:[#allocation3 + $0x14] sm:$0xf]
    %v61 = vld [vmem:[#allocation3 + $0x18] sm:$0xf]
    %v62 = vld [vmem:[#allocation3 + $0x1c] sm:$0xf]
    %v63 = vld [vmem:[#allocation3 + $0x20] sm:$0xf]
    %v64 = vld [vmem:[#allocation3 + $0x24] sm:$0xf]
    %v65 = vld [vmem:[#allocation3 + $0x28] sm:$0xf]
    %v66 = vld [vmem:[#allocation3 + $0x2c] sm:$0xf]
    %v67 = vld [vmem:[#allocation3 + $0x30] sm:$0xf]
    %v68 = vld [vmem:[#allocation3 + $0x34] sm:$0xf]
    %v69 = vld [vmem:[#allocation3 + $0x38] sm:$0xf]
    %v70 = vld [vmem:[#allocation3 + $0x3c] sm:$0xf]
    %v77 = vunpack.c.l.b16 %v49
    %v78 = vunpack.c.l.b16 %v50
    %v79 = vunpack.c.l.b16 %v51
    %v80 = vunpack.c.l.b16 %v52
    %v81 = vunpack.c.l.b16 %v53
    %v82 = vunpack.c.l.b16 %v54
    %v83 = vpack.c.b16 %v78, %v77
    %v84 = vpack.c.b16 %v80, %v79
    %v85 = vpack.c.b16 %v82, %v81
    %v105 = vunpack.c.l.b16 %v55
    %v106 = vunpack.c.l.b16 %v56
    %v107 = vunpack.c.l.b16 %v57
    %v108 = vunpack.c.l.b16 %v58
    %v109 = vunpack.c.l.b16 %v59
    %v110 = vunpack.c.l.b16 %v60
    %v111 = vunpack.c.l.b16 %v61
    %v112 = vunpack.c.l.b16 %v62
    %v113 = vunpack.c.l.b16 %v63
    %v114 = vunpack.c.l.b16 %v64
    %v115 = vunpack.c.l.b16 %v65
    %v116 = vunpack.c.l.b16 %v66
    %v117 = vunpack.c.l.b16 %v67
    %v118 = vunpack.c.l.b16 %v68
    %v119 = vunpack.c.l.b16 %v69
    %v120 = vunpack.c.l.b16 %v70
    %v121 = vpack.c.b16 %v106, %v105
    %v122 = vpack.c.b16 %v108, %v107
    %v123 = vpack.c.b16 %v110, %v109
    %v124 = vpack.c.b16 %v112, %v111
    %v125 = vpack.c.b16 %v114, %v113
    %v126 = vpack.c.b16 %v116, %v115
    %v127 = vpack.c.b16 %v118, %v117
    %v128 = vpack.c.b16 %v120, %v119
    %137 = vmatpush.bf16.msra.mxu0 %v128
    %138 = vmatpush.bf16.msra.mxu0 %v127
    %139 = vmatpush.bf16.msra.mxu0 %v126
    %140 = vmatpush.bf16.msra.mxu0 %v125
    %141 = vmatpush.bf16.msra.mxu0 %v124
    %142 = vmatpush.bf16.msra.mxu0 %v123
    %143 = vmatpush.bf16.msra.mxu0 %v122
    %144 = vmatpush.bf16.msra.mxu0 %v121
    %145 = vmatmul.bf16.gmra.mxu0 %v83
    %v146 = vpop.f32.mrf.mxu0
    %v147 = vadd.f32 0.0, %v146
    %v148 = vpop.f32.mrf.mxu0
    %v149 = vadd.f32 0.0, %v148
    %150 = vmatmul.bf16.gmra.mxu0 %v84
    %v151 = vpop.f32.mrf.mxu0
    %v152 = vadd.f32 0.0, %v151
    %v153 = vpop.f32.mrf.mxu0
    %v154 = vadd.f32 0.0, %v153
    %155 = vmatmul.bf16.gmra.mxu0 %v85
    %v156 = vpop.f32.mrf.mxu0
    %v157 = vadd.f32 0.0, %v156
    %v158 = vpop.f32.mrf.mxu0
    %v159 = vadd.f32 0.0, %v158
    %160 = vdwg.mxu0
    %v161 = vadd.f32 %v43, %v147
    %v162 = vadd.f32 %v44, %v149
    %v163 = vadd.f32 %v45, %v152
    %v164 = vadd.f32 %v46, %v154
    %v165 = vadd.f32 %v47, %v157
    %v166 = vadd.f32 %v48, %v159
    %167 = vst [vmem:[#allocation2] sm:$0xff] %v161
    %168 = vst [vmem:[#allocation2 + $0x8] sm:$0xff] %v162
    %169 = vst [vmem:[#allocation2 + $0x10] sm:$0xff] %v163
    %170 = vst [vmem:[#allocation2 + $0x18] sm:$0xff] %v164
    %171 = vst [vmem:[#allocation2 + $0x20] sm:$0xff] %v165
    %172 = vst [vmem:[#allocation2 + $0x28] sm:$0xff] %v166
    // Predicated region
    $region26: #{_lambda_.16} parent=1 // pred_check
      %p173 = pneg %p33
    $region27: #{_lambda_.16} parent=1 // pred_check_branch
      %175 = sbr.rel (%p173) target = $region29
    $region28: #{_lambda_.16} parent=1 // pred_region
      %v176 = vld [vmem:[#allocation2] sm:$0xff]
      %v177 = vld [vmem:[#allocation2 + $0x8] sm:$0xff]
      %v178 = vld [vmem:[#allocation2 + $0x10] sm:$0xff]
      %v179 = vld [vmem:[#allocation2 + $0x18] sm:$0xff]
      %v180 = vld [vmem:[#allocation2 + $0x20] sm:$0xff]
      %v181 = vld [vmem:[#allocation2 + $0x28] sm:$0xff]
      %v182 = vld [vmem:[%s2] sm:$0x1]
      %v184 = vperm.slane %v182, 0
      %v186 = vadd.f32 %v176, %v184
      %v187 = vadd.f32 %v177, %v184
      %v188 = vadd.f32 %v178, %v184
      %v189 = vadd.f32 %v179, %v184
      %v190 = vadd.f32 %v180, %v184
      %v191 = vadd.f32 %v181, %v184
      %v192 = vld [vmem:[%s3] sm:$0xf]
      %v193 = vld [vmem:[%s3 + $0x4] sm:$0xf]
      %v194 = vld [vmem:[%s3 + $0x8] sm:$0xf]
      %v195 = vld [vmem:[%s3 + $0xc] sm:$0xf]
      %v196 = vld [vmem:[%s3 + $0x10] sm:$0xf]
      %v197 = vld [vmem:[%s3 + $0x14] sm:$0xf]
      %v198 = vunpack.c.l.bf16 %v192
      %v199 = vunpack.c.l.bf16 %v193
      %v200 = vunpack.c.l.bf16 %v194
      %v201 = vunpack.c.l.bf16 %v195
      %v202 = vunpack.c.l.bf16 %v196
      %v203 = vunpack.c.l.bf16 %v197
      %v204 = vadd.f32 %v186, %v198
      %v205 = vadd.f32 %v187, %v199
      %v206 = vadd.f32 %v188, %v200
      %v207 = vadd.f32 %v189, %v201
      %v208 = vadd.f32 %v190, %v202
      %v209 = vadd.f32 %v191, %v203
      %v210 = vpack.c.bf16 %v204, %v204
      %v211 = vpack.c.bf16 %v205, %v205
      %v212 = vpack.c.bf16 %v206, %v206
      %v213 = vpack.c.bf16 %v207, %v207
      %v214 = vpack.c.bf16 %v208, %v208
      %v215 = vpack.c.bf16 %v209, %v209
      %216 = vst [vmem:[%s4] sm:$0xf] %v210
      %217 = vst [vmem:[%s4 + $0x4] sm:$0xf] %v211
      %218 = vst [vmem:[%s4 + $0x8] sm:$0xf] %v212
      %219 = vst [vmem:[%s4 + $0xc] sm:$0xf] %v213
      %220 = vst [vmem:[%s4 + $0x10] sm:$0xf] %v214
      %221 = vst [vmem:[%s4 + $0x14] sm:$0xf] %v215
    $region29: #{_lambda_.16} parent=1 // pred_fallthru
      _
    // Predicated region
    $region30: #{_lambda_.16} parent=1 // pred_check
      _
    $region31: #{_lambda_.16} parent=1 // pred_check_branch
      %223 = sbr.rel (0) target = $region33
    $region32: #{_lambda_.16} parent=1 // pred_region
      _
    $region33: #{_lambda_.16} parent=1 // pred_fallthru
      _
    // Predicated region
    $region34: #{_lambda_.16} parent=1 // pred_check
      _
    $region35: #{_lambda_.16} parent=1 // pred_check_branch
      %225 = sbr.rel (0) target = $region37
    $region36: #{_lambda_.16} parent=1 // pred_region
      _
    $region37: #{_lambda_.16} parent=1 // pred_fallthru
      _
    %226 = vsyncpa [#allocation4], 1

// kernel: _lambda_.18
$region0: #{_lambda_.18}
  #allocation0 [shape = 'u32[]', space=smem, size = 0x4, offset = 0x4, fixed_abs, tag = 'smem constant byte address 0x4 - core index']
  #allocation1 [shape = 'u32[72,128]{1,0:T(1,128)}', space=vmem, size = 0x9000, scoped, tag = 'internal scratch']
  #allocation2 [shape = 'bf16[48,128]{1,0:T(8,128)(2,1)}', space=vmem, size = 0x3000, scoped, tag = 'scratch operand']
  %s0 = inlined_call_operand.vmem [shape: bf16[48,128], index: 0, kind: input, shape index: {}]
  %s1 = inlined_call_operand.vmem [shape: f32[1,128], index: 1, kind: input, shape index: {}]
  %s2 = inlined_call_operand.vmem [shape: f32[1,128], index: 2, kind: input, shape index: {}]
  %s3 = inlined_call_operand.vmem [shape: bf16[128,384], index: 3, kind: input, shape index: {}]
  %s4 = inlined_call_operand.vmem [shape: f32[1,384], index: 4, kind: input, shape index: {}]
  %s5 = inlined_call_operand.vmem [shape: bf16[48,384], index: 5, kind: output, shape index: {}]
  %s6 = sld [smem:[#allocation0]]
  $region34: #{_lambda_.18} parent=0
    _
  %s8 = ssub.s32 1, %s6
  %s9 = scalar_select 0, %s8, %s6
  // Predicated region
  $region2: #{_lambda_.18} parent=0 // pred_check
    _
  $region3: #{_lambda_.18} parent=0 // pred_check_branch
    %11 = sbr.rel (0) target = $region5
  $region4: #{_lambda_.18} parent=0 // pred_region
    _
  $region5: #{_lambda_.18} parent=0 // pred_fallthru
    _
  // Predicated region
  $region6: #{_lambda_.18} parent=0 // pred_check
    _
  $region7: #{_lambda_.18} parent=0 // pred_check_branch
    %13 = sbr.rel (0) target = $region9
  $region8: #{_lambda_.18} parent=0 // pred_region
    _
  $region9: #{_lambda_.18} parent=0 // pred_fallthru
    _
  // Predicated region
  $region10: #{_lambda_.18} parent=0 // pred_check
    _
  $region11: #{_lambda_.18} parent=0 // pred_check_branch
    %15 = sbr.rel (0) target = $region13
  $region12: #{_lambda_.18} parent=0 // pred_region
    _
  $region13: #{_lambda_.18} parent=0 // pred_fallthru
    _
  // Predicated region
  $region14: #{_lambda_.18} parent=0 // pred_check
    _
  $region15: #{_lambda_.18} parent=0 // pred_check_branch
    %17 = sbr.rel (0) target = $region17
  $region16: #{_lambda_.18} parent=0 // pred_region
    _
  $region17: #{_lambda_.18} parent=0 // pred_fallthru
    _
  // Predicated region
  $region18: #{_lambda_.18} parent=0 // pred_check
    _
  $region19: #{_lambda_.18} parent=0 // pred_check_branch
    %19 = sbr.rel (0) target = $region21
  $region20: #{_lambda_.18} parent=0 // pred_region
    _
  $region21: #{_lambda_.18} parent=0 // pred_fallthru
    _
  %p20 = scmp.eq.s32.totalorder 0, 0
  // Predicated region
  $region22: #{_lambda_.18} parent=0 // pred_check
    %p21 = pneg %p20
  $region23: #{_lambda_.18} parent=0 // pred_check_branch
    %23 = sbr.rel (%p21) target = $region25
  $region24: #{_lambda_.18} parent=0 // pred_region
    %v24 = vld [vmem:[%s0] sm:$0xf]
    %v25 = vld [vmem:[%s0 + $0x4] sm:$0xf]
    %v26 = vld [vmem:[%s0 + $0x8] sm:$0xf]
    %v27 = vld [vmem:[%s0 + $0xc] sm:$0xf]
    %v28 = vld [vmem:[%s0 + $0x10] sm:$0xf]
    %v29 = vld [vmem:[%s0 + $0x14] sm:$0xf]
    %v30 = vunpack.c.l.bf16 %v24
    %v31 = vunpack.c.l.bf16 %v25
    %v32 = vunpack.c.l.bf16 %v26
    %v33 = vunpack.c.l.bf16 %v27
    %v34 = vunpack.c.l.bf16 %v28
    %v35 = vunpack.c.l.bf16 %v29
    %36 = vadd.xlane.f32.xlu0 %v30
    %v37 = vpop.xlane.xlu0 %36
    %38 = vadd.xlane.f32.xlu0 %v31
    %v39 = vpop.xlane.xlu0 %38
    %40 = vadd.xlane.f32.xlu0 %v32
    %v41 = vpop.xlane.xlu0 %40
    %42 = vadd.xlane.f32.xlu0 %v33
    %v43 = vpop.xlane.xlu0 %42
    %44 = vadd.xlane.f32.xlu0 %v34
    %v45 = vpop.xlane.xlu0 %44
    %46 = vadd.xlane.f32.xlu0 %v35
    %v47 = vpop.xlane.xlu0 %46
    %v48 = vrcp.pop 128.0
    %v49 = vmul.f32 128.0, %v48
    %v50 = vsub.f32 1.0, %v49
    %v51 = vmul.f32 %v48, %v50
    %v52 = vadd.f32 %v48, %v51
    %vm53 = vweird.f32 %v48
    %v54 = vsel %vm53, %v48, %v52
    %v55 = vmul.f32 %v37, %v54
    %v56 = vmul.f32 %v39, %v54
    %v57 = vmul.f32 %v41, %v54
    %v58 = vmul.f32 %v43, %v54
    %v59 = vmul.f32 %v45, %v54
    %v60 = vmul.f32 %v47, %v54
    %v61 = vsub.f32 %v30, %v55
    %v62 = vsub.f32 %v31, %v56
    %v63 = vsub.f32 %v32, %v57
    %v64 = vsub.f32 %v33, %v58
    %v65 = vsub.f32 %v34, %v59
    %v66 = vsub.f32 %v35, %v60
    %v67 = vmul.f32 %v61, %v61
    %v68 = vmul.f32 %v62, %v62
    %v69 = vmul.f32 %v63, %v63
    %v70 = vmul.f32 %v64, %v64
    %v71 = vmul.f32 %v65, %v65
    %v72 = vmul.f32 %v66, %v66
    %73 = vadd.xlane.f32.xlu0 %v67
    %v74 = vpop.xlane.xlu0 %73
    %75 = vadd.xlane.f32.xlu0 %v68
    %v76 = vpop.xlane.xlu0 %75
    %77 = vadd.xlane.f32.xlu0 %v69
    %v78 = vpop.xlane.xlu0 %77
    %79 = vadd.xlane.f32.xlu0 %v70
    %v80 = vpop.xlane.xlu0 %79
    %81 = vadd.xlane.f32.xlu0 %v71
    %v82 = vpop.xlane.xlu0 %81
    %83 = vadd.xlane.f32.xlu0 %v72
    %v84 = vpop.xlane.xlu0 %83
    %v85 = vmul.f32 %v74, %v54
    %v86 = vmul.f32 %v76, %v54
    %v87 = vmul.f32 %v78, %v54
    %v88 = vmul.f32 %v80, %v54
    %v89 = vmul.f32 %v82, %v54
    %v90 = vmul.f32 %v84, %v54
    %v91 = vadd.f32 %v85, 1e-05
    %v92 = vadd.f32 %v86, 1e-05
    %v93 = vadd.f32 %v87, 1e-05
    %v94 = vadd.f32 %v88, 1e-05
    %v95 = vadd.f32 %v89, 1e-05
    %v96 = vadd.f32 %v90, 1e-05
    %v97 = vrsqrt.pop %v91
    %v98 = vmul.f32 %v97, %v91
    %v99 = vmul.f32 %v98, %v97
    %v100 = vmul.f32 0.5, %v99
    %v101 = vsub.f32 1.5, %v100
    %v102 = vmul.f32 %v97, %v101
    %vm103 = vweird.f32 %v91
    %vm104 = vweird.f32 %v97
    %vm105 = vmor %vm103, %vm104
    %v106 = vsel %vm105, %v97, %v102
    %v107 = vrsqrt.pop %v92
    %v108 = vmul.f32 %v107, %v92
    %v109 = vmul.f32 %v108, %v107
    %v110 = vmul.f32 0.5, %v109
    %v111 = vsub.f32 1.5, %v110
    %v112 = vmul.f32 %v107, %v111
    %vm113 = vweird.f32 %v92
    %vm114 = vweird.f32 %v107
    %vm115 = vmor %vm113, %vm114
    %v116 = vsel %vm115, %v107, %v112
    %v117 = vrsqrt.pop %v93
    %v118 = vmul.f32 %v117, %v93
    %v119 = vmul.f32 %v118, %v117
    %v120 = vmul.f32 0.5, %v119
    %v121 = vsub.f32 1.5, %v120
    %v122 = vmul.f32 %v117, %v121
    %vm123 = vweird.f32 %v93
    %vm124 = vweird.f32 %v117
    %vm125 = vmor %vm123, %vm124
    %v126 = vsel %vm125, %v117, %v122
    %v127 = vrsqrt.pop %v94
    %v128 = vmul.f32 %v127, %v94
    %v129 = vmul.f32 %v128, %v127
    %v130 = vmul.f32 0.5, %v129
    %v131 = vsub.f32 1.5, %v130
    %v132 = vmul.f32 %v127, %v131
    %vm133 = vweird.f32 %v94
    %vm134 = vweird.f32 %v127
    %vm135 = vmor %vm133, %vm134
    %v136 = vsel %vm135, %v127, %v132
    %v137 = vrsqrt.pop %v95
    %v138 = vmul.f32 %v137, %v95
    %v139 = vmul.f32 %v138, %v137
    %v140 = vmul.f32 0.5, %v139
    %v141 = vsub.f32 1.5, %v140
    %v142 = vmul.f32 %v137, %v141
    %vm143 = vweird.f32 %v95
    %vm144 = vweird.f32 %v137
    %vm145 = vmor %vm143, %vm144
    %v146 = vsel %vm145, %v137, %v142
    %v147 = vrsqrt.pop %v96
    %v148 = vmul.f32 %v147, %v96
    %v149 = vmul.f32 %v148, %v147
    %v150 = vmul.f32 0.5, %v149
    %v151 = vsub.f32 1.5, %v150
    %v152 = vmul.f32 %v147, %v151
    %vm153 = vweird.f32 %v96
    %vm154 = vweird.f32 %v147
    %vm155 = vmor %vm153, %vm154
    %v156 = vsel %vm155, %v147, %v152
    %v157 = vmul.f32 %v61, %v106
    %v158 = vmul.f32 %v62, %v116
    %v159 = vmul.f32 %v63, %v126
    %v160 = vmul.f32 %v64, %v136
    %v161 = vmul.f32 %v65, %v146
    %v162 = vmul.f32 %v66, %v156
    %v163 = vld [vmem:[%s1] sm:$0x1]
    %v165 = vperm.slane %v163, 0
    %v167 = vmul.f32 %v157, %v165
    %v168 = vmul.f32 %v158, %v165
    %v169 = vmul.f32 %v159, %v165
    %v170 = vmul.f32 %v160, %v165
    %v171 = vmul.f32 %v161, %v165
    %v172 = vmul.f32 %v162, %v165
    %v173 = vld [vmem:[%s2] sm:$0x1]
    %v175 = vperm.slane %v173, 0
    %v177 = vadd.f32 %v167, %v175
    %v178 = vadd.f32 %v168, %v175
    %v179 = vadd.f32 %v169, %v175
    %v180 = vadd.f32 %v170, %v175
    %v181 = vadd.f32 %v171, %v175
    %v182 = vadd.f32 %v172, %v175
    %v183 = vpack.c.bf16 %v177, %v177
    %v184 = vpack.c.bf16 %v178, %v178
    %v185 = vpack.c.bf16 %v179, %v179
    %v186 = vpack.c.bf16 %v180, %v180
    %v187 = vpack.c.bf16 %v181, %v181
    %v188 = vpack.c.bf16 %v182, %v182
    %189 = vst [vmem:[#allocation2] sm:$0xf] %v183
    %190 = vst [vmem:[#allocation2 + $0x4] sm:$0xf] %v184
    %191 = vst [vmem:[#allocation2 + $0x8] sm:$0xf] %v185
    %192 = vst [vmem:[#allocation2 + $0xc] sm:$0xf] %v186
    %193 = vst [vmem:[#allocation2 + $0x10] sm:$0xf] %v187
    %194 = vst [vmem:[#allocation2 + $0x14] sm:$0xf] %v188
  $region25: #{_lambda_.18} parent=0 // pred_fallthru
    _
  %v195 = vld [vmem:[#allocation2] sm:$0xf]
  %v196 = vld [vmem:[#allocation2 + $0x4] sm:$0xf]
  %v197 = vld [vmem:[#allocation2 + $0x8] sm:$0xf]
  %v198 = vld [vmem:[#allocation2 + $0xc] sm:$0xf]
  %v199 = vld [vmem:[#allocation2 + $0x10] sm:$0xf]
  %v200 = vld [vmem:[#allocation2 + $0x14] sm:$0xf]
  %v201 = vld [vmem:[%s3] sm:$0xff]
  %v202 = vld [vmem:[%s3 + $0x8] sm:$0xf]
  %v203 = vld [vmem:[%s3 + $0xc] sm:$0xff]
  %v204 = vld [vmem:[%s3 + $0x14] sm:$0xf]
  %v205 = vld [vmem:[%s3 + $0x18] sm:$0xff]
  %v206 = vld [vmem:[%s3 + $0x20] sm:$0xf]
  %v207 = vld [vmem:[%s3 + $0x24] sm:$0xff]
  %v208 = vld [vmem:[%s3 + $0x2c] sm:$0xf]
  %v209 = vld [vmem:[%s3 + $0x30] sm:$0xff]
  %v210 = vld [vmem:[%s3 + $0x38] sm:$0xf]
  %v211 = vld [vmem:[%s3 + $0x3c] sm:$0xff]
  %v212 = vld [vmem:[%s3 + $0x44] sm:$0xf]
  %v213 = vld [vmem:[%s3 + $0x48] sm:$0xff]
  %v214 = vld [vmem:[%s3 + $0x50] sm:$0xf]
  %v215 = vld [vmem:[%s3 + $0x54] sm:$0xff]
  %v216 = vld [vmem:[%s3 + $0x5c] sm:$0xf]
  %v217 = vld [vmem:[%s3 + $0x60] sm:$0xff]
  %v218 = vld [vmem:[%s3 + $0x68] sm:$0xf]
  %v219 = vld [vmem:[%s3 + $0x6c] sm:$0xff]
  %v220 = vld [vmem:[%s3 + $0x74] sm:$0xf]
  %v221 = vld [vmem:[%s3 + $0x78] sm:$0xff]
  %v222 = vld [vmem:[%s3 + $0x80] sm:$0xf]
  %v223 = vld [vmem:[%s3 + $0x84] sm:$0xff]
  %v224 = vld [vmem:[%s3 + $0x8c] sm:$0xf]
  %v225 = vld [vmem:[%s3 + $0x90] sm:$0xff]
  %v226 = vld [vmem:[%s3 + $0x98] sm:$0xf]
  %v227 = vld [vmem:[%s3 + $0x9c] sm:$0xff]
  %v228 = vld [vmem:[%s3 + $0xa4] sm:$0xf]
  %v229 = vld [vmem:[%s3 + $0xa8] sm:$0xff]
  %v230 = vld [vmem:[%s3 + $0xb0] sm:$0xf]
  %v231 = vld [vmem:[%s3 + $0xb4] sm:$0xff]
  %v232 = vld [vmem:[%s3 + $0xbc] sm:$0xf]
  %v233 = vld [vmem:[%s4] sm:$0x7]
  %v235 = vperm.slane %v233, 0
  %v236 = vperm.slane %v233, 1
  %v237 = vperm.slane %v233, 2
  %v247 = vunpack.c.l.b16 %v195
  %v248 = vunpack.c.l.b16 %v196
  %v249 = vunpack.c.l.b16 %v197
  %v250 = vunpack.c.l.b16 %v198
  %v251 = vunpack.c.l.b16 %v199
  %v252 = vunpack.c.l.b16 %v200
  %v253 = vpack.c.b16 %v248, %v247
  %v254 = vpack.c.b16 %v250, %v249
  %v255 = vpack.c.b16 %v252, %v251
  %v291 = vunpack.c.l.b16 %v201
  %v292 = vunpack.c.h.b16 %v201
  %v293 = vunpack.c.l.b16 %v202
  %v294 = vunpack.c.l.b16 %v203
  %v295 = vunpack.c.h.b16 %v203
  %v296 = vunpack.c.l.b16 %v204
  %v297 = vunpack.c.l.b16 %v205
  %v298 = vunpack.c.h.b16 %v205
  %v299 = vunpack.c.l.b16 %v206
  %v300 = vunpack.c.l.b16 %v207
  %v301 = vunpack.c.h.b16 %v207
  %v302 = vunpack.c.l.b16 %v208
  %v303 = vunpack.c.l.b16 %v209
  %v304 = vunpack.c.h.b16 %v209
  %v305 = vunpack.c.l.b16 %v210
  %v306 = vunpack.c.l.b16 %v211
  %v307 = vunpack.c.h.b16 %v211
  %v308 = vunpack.c.l.b16 %v212
  %v309 = vunpack.c.l.b16 %v213
  %v310 = vunpack.c.h.b16 %v213
  %v311 = vunpack.c.l.b16 %v214
  %v312 = vunpack.c.l.b16 %v215
  %v313 = vunpack.c.h.b16 %v215
  %v314 = vunpack.c.l.b16 %v216
  %v315 = vunpack.c.l.b16 %v217
  %v316 = vunpack.c.h.b16 %v217
  %v317 = vunpack.c.l.b16 %v218
  %v318 = vunpack.c.l.b16 %v219
  %v319 = vunpack.c.h.b16 %v219
  %v320 = vunpack.c.l.b16 %v220
  %v321 = vunpack.c.l.b16 %v221
  %v322 = vunpack.c.h.b16 %v221
  %v323 = vunpack.c.l.b16 %v222
  %v324 = vunpack.c.l.b16 %v223
  %v325 = vunpack.c.h.b16 %v223
  %v326 = vunpack.c.l.b16 %v224
  %v327 = vunpack.c.l.b16 %v225
  %v328 = vunpack.c.h.b16 %v225
  %v329 = vunpack.c.l.b16 %v226
  %v330 = vunpack.c.l.b16 %v227
  %v331 = vunpack.c.h.b16 %v227
  %v332 = vunpack.c.l.b16 %v228
  %v333 = vunpack.c.l.b16 %v229
  %v334 = vunpack.c.h.b16 %v229
  %v335 = vunpack.c.l.b16 %v230
  %v336 = vunpack.c.l.b16 %v231
  %v337 = vunpack.c.h.b16 %v231
  %v338 = vunpack.c.l.b16 %v232
  %v339 = vpack.c.b16 %v294, %v291
  %v340 = vpack.c.b16 %v295, %v292
  %v341 = vpack.c.b16 %v296, %v293
  %v342 = vpack.c.b16 %v300, %v297
  %v343 = vpack.c.b16 %v301, %v298
  %v344 = vpack.c.b16 %v302, %v299
  %v345 = vpack.c.b16 %v306, %v303
  %v346 = vpack.c.b16 %v307, %v304
  %v347 = vpack.c.b16 %v308, %v305
  %v348 = vpack.c.b16 %v312, %v309
  %v349 = vpack.c.b16 %v313, %v310
  %v350 = vpack.c.b16 %v314, %v311
  %v351 = vpack.c.b16 %v318, %v315
  %v352 = vpack.c.b16 %v319, %v316
  %v353 = vpack.c.b16 %v320, %v317
  %v354 = vpack.c.b16 %v324, %v321
  %v355 = vpack.c.b16 %v325, %v322
  %v356 = vpack.c.b16 %v326, %v323
  %v357 = vpack.c.b16 %v330, %v327
  %v358 = vpack.c.b16 %v331, %v328
  %v359 = vpack.c.b16 %v332, %v329
  %v360 = vpack.c.b16 %v336, %v333
  %v361 = vpack.c.b16 %v337, %v334
  %v362 = vpack.c.b16 %v338, %v335
  %387 = vmatpush.bf16.msra.mxu0 %v360
  %388 = vmatpush.bf16.msra.mxu0 %v357
  %389 = vmatpush.bf16.msra.mxu0 %v354
  %390 = vmatpush.bf16.msra.mxu0 %v351
  %391 = vmatpush.bf16.msra.mxu0 %v348
  %392 = vmatpush.bf16.msra.mxu0 %v345
  %393 = vmatpush.bf16.msra.mxu0 %v342
  %394 = vmatpush.bf16.msra.mxu0 %v339
  %395 = vmatmul.bf16.gmra.mxu0 %v253
  %v396 = vpop.f32.mrf.mxu0
  %v397 = vadd.f32 %v235, %v396
  %v398 = vpop.f32.mrf.mxu0
  %v399 = vadd.f32 %v235, %v398
  %400 = vmatmul.bf16.gmra.mxu0 %v254
  %v401 = vpop.f32.mrf.mxu0
  %v402 = vadd.f32 %v235, %v401
  %v403 = vpop.f32.mrf.mxu0
  %v404 = vadd.f32 %v235, %v403
  %405 = vmatmul.bf16.gmra.mxu0 %v255
  %v406 = vpop.f32.mrf.mxu0
  %v407 = vadd.f32 %v235, %v406
  %v408 = vpop.f32.mrf.mxu0
  %v409 = vadd.f32 %v235, %v408
  %410 = vdwg.mxu0
  %411 = vmatpush.bf16.msra.mxu0 %v361
  %412 = vmatpush.bf16.msra.mxu0 %v358
  %413 = vmatpush.bf16.msra.mxu0 %v355
  %414 = vmatpush.bf16.msra.mxu0 %v352
  %415 = vmatpush.bf16.msra.mxu0 %v349
  %416 = vmatpush.bf16.msra.mxu0 %v346
  %417 = vmatpush.bf16.msra.mxu0 %v343
  %418 = vmatpush.bf16.msra.mxu0 %v340
  %419 = vmatmul.bf16.gmra.mxu0 %v253
  %v420 = vpop.f32.mrf.mxu0
  %v421 = vadd.f32 %v236, %v420
  %v422 = vpop.f32.mrf.mxu0
  %v423 = vadd.f32 %v236, %v422
  %424 = vmatmul.bf16.gmra.mxu0 %v254
  %v425 = vpop.f32.mrf.mxu0
  %v426 = vadd.f32 %v236, %v425
  %v427 = vpop.f32.mrf.mxu0
  %v428 = vadd.f32 %v236, %v427
  %429 = vmatmul.bf16.gmra.mxu0 %v255
  %v430 = vpop.f32.mrf.mxu0
  %v431 = vadd.f32 %v236, %v430
  %v432 = vpop.f32.mrf.mxu0
  %v433 = vadd.f32 %v236, %v432
  %434 = vdwg.mxu0
  %435 = vmatpush.bf16.msra.mxu0 %v362
  %436 = vmatpush.bf16.msra.mxu0 %v359
  %437 = vmatpush.bf16.msra.mxu0 %v356
  %438 = vmatpush.bf16.msra.mxu0 %v353
  %439 = vmatpush.bf16.msra.mxu0 %v350
  %440 = vmatpush.bf16.msra.mxu0 %v347
  %441 = vmatpush.bf16.msra.mxu0 %v344
  %442 = vmatpush.bf16.msra.mxu0 %v341
  %443 = vmatmul.bf16.gmra.mxu0 %v253
  %v444 = vpop.f32.mrf.mxu0
  %v445 = vadd.f32 %v237, %v444
  %v446 = vpop.f32.mrf.mxu0
  %v447 = vadd.f32 %v237, %v446
  %448 = vmatmul.bf16.gmra.mxu0 %v254
  %v449 = vpop.f32.mrf.mxu0
  %v450 = vadd.f32 %v237, %v449
  %v451 = vpop.f32.mrf.mxu0
  %v452 = vadd.f32 %v237, %v451
  %453 = vmatmul.bf16.gmra.mxu0 %v255
  %v454 = vpop.f32.mrf.mxu0
  %v455 = vadd.f32 %v237, %v454
  %v456 = vpop.f32.mrf.mxu0
  %v457 = vadd.f32 %v237, %v456
  %458 = vdwg.mxu0
  %v459 = vpack.c.bf16 %v421, %v397
  %v460 = vpack.c.bf16 %v445, %v445
  %v461 = vpack.c.bf16 %v423, %v399
  %v462 = vpack.c.bf16 %v447, %v447
  %v463 = vpack.c.bf16 %v426, %v402
  %v464 = vpack.c.bf16 %v450, %v450
  %v465 = vpack.c.bf16 %v428, %v404
  %v466 = vpack.c.bf16 %v452, %v452
  %v467 = vpack.c.bf16 %v431, %v407
  %v468 = vpack.c.bf16 %v455, %v455
  %v469 = vpack.c.bf16 %v433, %v409
  %v470 = vpack.c.bf16 %v457, %v457
  %471 = vst [vmem:[%s5] sm:$0xff] %v459
  %472 = vst [vmem:[%s5 + $0x8] sm:$0xf] %v460
  %473 = vst [vmem:[%s5 + $0xc] sm:$0xff] %v461
  %474 = vst [vmem:[%s5 + $0x14] sm:$0xf] %v462
  %475 = vst [vmem:[%s5 + $0x18] sm:$0xff] %v463
  %476 = vst [vmem:[%s5 + $0x20] sm:$0xf] %v464
  %477 = vst [vmem:[%s5 + $0x24] sm:$0xff] %v465
  %478 = vst [vmem:[%s5 + $0x2c] sm:$0xf] %v466
  %479 = vst [vmem:[%s5 + $0x30] sm:$0xff] %v467
  %480 = vst [vmem:[%s5 + $0x38] sm:$0xf] %v468
  %481 = vst [vmem:[%s5 + $0x3c] sm:$0xff] %v469
  %482 = vst [vmem:[%s5 + $0x44] sm:$0xf] %v470
  // Predicated region
  $region26: #{_lambda_.18} parent=0 // pred_check
    _
  $region27: #{_lambda_.18} parent=0 // pred_check_branch
    %484 = sbr.rel (0) target = $region29
  $region28: #{_lambda_.18} parent=0 // pred_region
    _
  $region29: #{_lambda_.18} parent=0 // pred_fallthru
    _
  // Predicated region
  $region30: #{_lambda_.18} parent=0 // pred_check
    _
  $region31: #{_lambda_.18} parent=0 // pred_check_branch
    %486 = sbr.rel (0) target = $region33
  $region32: #{_lambda_.18} parent=0 // pred_region
    _
  $region33: #{_lambda_.18} parent=0 // pred_fallthru
    _

// kernel: _lambda_.22
$region0: #{_lambda_.22}
  #allocation0 [shape = 'u32[]', space=smem, size = 0x4, offset = 0x4, fixed_abs, tag = 'smem constant byte address 0x4 - core index']
  #allocation1 [shape = 'u32[72,128]{1,0:T(1,128)}', space=vmem, size = 0x9000, scoped, tag = 'internal scratch']
  #allocation2 [shape = 'bf16[2,128]{1,0:T(2,128)(2,1)}', space=vmem, size = 0x200, scoped, tag = 'scratch operand']
  %s0 = inlined_call_operand.vmem [shape: bf16[2,128], index: 0, kind: input, shape index: {}]
  %s1 = inlined_call_operand.vmem [shape: f32[1,128], index: 1, kind: input, shape index: {}]
  %s2 = inlined_call_operand.vmem [shape: f32[1,128], index: 2, kind: input, shape index: {}]
  %s3 = inlined_call_operand.vmem [shape: bf16[128,64], index: 3, kind: input, shape index: {}]
  %s4 = inlined_call_operand.vmem [shape: f32[1,64], index: 4, kind: input, shape index: {}]
  %s5 = inlined_call_operand.vmem [shape: f32[2,64], index: 5, kind: output, shape index: {}]
  %s6 = sld [smem:[#allocation0]]
  $region34: #{_lambda_.22} parent=0
    _
  %s8 = ssub.s32 1, %s6
  %s9 = scalar_select 0, %s8, %s6
  // Predicated region
  $region2: #{_lambda_.22} parent=0 // pred_check
    _
  $region3: #{_lambda_.22} parent=0 // pred_check_branch
    %11 = sbr.rel (0) target = $region5
  $region4: #{_lambda_.22} parent=0 // pred_region
    _
  $region5: #{_lambda_.22} parent=0 // pred_fallthru
    _
  // Predicated region
  $region6: #{_lambda_.22} parent=0 // pred_check
    _
  $region7: #{_lambda_.22} parent=0 // pred_check_branch
    %13 = sbr.rel (0) target = $region9
  $region8: #{_lambda_.22} parent=0 // pred_region
    _
  $region9: #{_lambda_.22} parent=0 // pred_fallthru
    _
  // Predicated region
  $region10: #{_lambda_.22} parent=0 // pred_check
    _
  $region11: #{_lambda_.22} parent=0 // pred_check_branch
    %15 = sbr.rel (0) target = $region13
  $region12: #{_lambda_.22} parent=0 // pred_region
    _
  $region13: #{_lambda_.22} parent=0 // pred_fallthru
    _
  // Predicated region
  $region14: #{_lambda_.22} parent=0 // pred_check
    _
  $region15: #{_lambda_.22} parent=0 // pred_check_branch
    %17 = sbr.rel (0) target = $region17
  $region16: #{_lambda_.22} parent=0 // pred_region
    _
  $region17: #{_lambda_.22} parent=0 // pred_fallthru
    _
  // Predicated region
  $region18: #{_lambda_.22} parent=0 // pred_check
    _
  $region19: #{_lambda_.22} parent=0 // pred_check_branch
    %19 = sbr.rel (0) target = $region21
  $region20: #{_lambda_.22} parent=0 // pred_region
    _
  $region21: #{_lambda_.22} parent=0 // pred_fallthru
    _
  %p20 = scmp.eq.s32.totalorder 0, 0
  // Predicated region
  $region22: #{_lambda_.22} parent=0 // pred_check
    %p21 = pneg %p20
  $region23: #{_lambda_.22} parent=0 // pred_check_branch
    %23 = sbr.rel (%p21) target = $region25
  $region24: #{_lambda_.22} parent=0 // pred_region
    %v24 = vld [vmem:[%s0] sm:$0x1]
    %v25 = vunpack.c.l.bf16 %v24
    %vm26 = vcmask 1041408
    %v27 = vsel %vm26, %v25, 0.0
    %28 = vadd.xlane.f32.xlu0 %v27
    %v29 = vpop.xlane.xlu0 %28
    %v30 = vrcp.pop 128.0
    %v31 = vmul.f32 128.0, %v30
    %v32 = vsub.f32 1.0, %v31
    %v33 = vmul.f32 %v30, %v32
    %v34 = vadd.f32 %v30, %v33
    %vm35 = vweird.f32 %v30
    %v36 = vsel %vm35, %v30, %v34
    %v37 = vmul.f32 %v29, %v36
    %v38 = vsub.f32 %v25, %v37
    %v39 = vmul.f32 %v38, %v38
    %v40 = vsel %vm26, %v39, 0.0
    %41 = vadd.xlane.f32.xlu0 %v40
    %v42 = vpop.xlane.xlu0 %41
    %v43 = vmul.f32 %v42, %v36
    %v44 = vadd.f32 %v43, 1e-05
    %v45 = vrsqrt.pop %v44
    %v46 = vmul.f32 %v45, %v44
    %v47 = vmul.f32 %v46, %v45
    %v48 = vmul.f32 0.5, %v47
    %v49 = vsub.f32 1.5, %v48
    %v50 = vmul.f32 %v45, %v49
    %vm51 = vweird.f32 %v44
    %vm52 = vweird.f32 %v45
    %vm53 = vmor %vm51, %vm52
    %v54 = vsel %vm53, %v45, %v50
    %v55 = vmul.f32 %v38, %v54
    %v56 = vld [vmem:[%s1] sm:$0x1]
    %v58 = vperm.slane %v56, 0
    %v60 = vmul.f32 %v55, %v58
    %v61 = vld [vmem:[%s2] sm:$0x1]
    %v63 = vperm.slane %v61, 0
    %v65 = vadd.f32 %v60, %v63
    %v66 = vpack.c.bf16 %v65, %v65
    %67 = vst [vmem:[#allocation2] sm:$0x1] %v66
  $region25: #{_lambda_.22} parent=0 // pred_fallthru
    _
  %v68 = vld [vmem:[#allocation2] sm:$0x1]
  %v69 = vld [vmem:[%s3] sm:$0xf]
  %v70 = vld [vmem:[%s3 + $0x4] sm:$0xf]
  %v71 = vld [vmem:[%s3 + $0x8] sm:$0xf]
  %v72 = vld [vmem:[%s3 + $0xc] sm:$0xf]
  %v73 = vld [vmem:[%s3 + $0x10] sm:$0xf]
  %v74 = vld [vmem:[%s3 + $0x14] sm:$0xf]
  %v75 = vld [vmem:[%s3 + $0x18] sm:$0xf]
  %v76 = vld [vmem:[%s3 + $0x1c] sm:$0xf]
  %v77 = vld [vmem:[%s3 + $0x20] sm:$0xf]
  %v78 = vld [vmem:[%s3 + $0x24] sm:$0xf]
  %v79 = vld [vmem:[%s3 + $0x28] sm:$0xf]
  %v80 = vld [vmem:[%s3 + $0x2c] sm:$0xf]
  %v81 = vld [vmem:[%s3 + $0x30] sm:$0xf]
  %v82 = vld [vmem:[%s3 + $0x34] sm:$0xf]
  %v83 = vld [vmem:[%s3 + $0x38] sm:$0xf]
  %v84 = vld [vmem:[%s3 + $0x3c] sm:$0xf]
  %v85 = vld [vmem:[%s4] sm:$0x1]
  %v87 = vperm.slane %v85, 0
  %v105 = vunpack.c.l.b16 %v69
  %v106 = vunpack.c.l.b16 %v70
  %v107 = vunpack.c.l.b16 %v71
  %v108 = vunpack.c.l.b16 %v72
  %v109 = vunpack.c.l.b16 %v73
  %v110 = vunpack.c.l.b16 %v74
  %v111 = vunpack.c.l.b16 %v75
  %v112 = vunpack.c.l.b16 %v76
  %v113 = vunpack.c.l.b16 %v77
  %v114 = vunpack.c.l.b16 %v78
  %v115 = vunpack.c.l.b16 %v79
  %v116 = vunpack.c.l.b16 %v80
  %v117 = vunpack.c.l.b16 %v81
  %v118 = vunpack.c.l.b16 %v82
  %v119 = vunpack.c.l.b16 %v83
  %v120 = vunpack.c.l.b16 %v84
  %v121 = vpack.c.b16 %v106, %v105
  %v122 = vpack.c.b16 %v108, %v107
  %v123 = vpack.c.b16 %v110, %v109
  %v124 = vpack.c.b16 %v112, %v111
  %v125 = vpack.c.b16 %v114, %v113
  %v126 = vpack.c.b16 %v116, %v115
  %v127 = vpack.c.b16 %v118, %v117
  %v128 = vpack.c.b16 %v120, %v119
  %137 = vmatpush.bf16.msra.mxu0 %v128
  %138 = vmatpush.bf16.msra.mxu0 %v127
  %139 = vmatpush.bf16.msra.mxu0 %v126
  %140 = vmatpush.bf16.msra.mxu0 %v125
  %141 = vmatpush.bf16.msra.mxu0 %v124
  %142 = vmatpush.bf16.msra.mxu0 %v123
  %143 = vmatpush.bf16.msra.mxu0 %v122
  %144 = vmatpush.bf16.msra.mxu0 %v121
  %145 = vmatmul.bf16.gmra.mxu0 %v68
  %v146 = vpop.f32.mrf.mxu0
  %v147 = vadd.f32 %v87, %v146
  %v148 = vpop.f32.mrf.mxu0
  %149 = vdwg.mxu0
  %vm150 = vcmask 517120
  %151 = vst.msk [vmem:[%s5] sm:$0x3] %vm150, %v147
  // Predicated region
  $region26: #{_lambda_.22} parent=0 // pred_check
    _
  $region27: #{_lambda_.22} parent=0 // pred_check_branch
    %153 = sbr.rel (0) target = $region29
  $region28: #{_lambda_.22} parent=0 // pred_region
    _
  $region29: #{_lambda_.22} parent=0 // pred_fallthru
    _
  // Predicated region
  $region30: #{_lambda_.22} parent=0 // pred_check
    _
  $region31: #{_lambda_.22} parent=0 // pred_check_branch
    %155 = sbr.rel (0) target = $region33
  $region32: #{_lambda_.22} parent=0 // pred_region
    _
  $region33: #{_lambda_.22} parent=0 // pred_fallthru
    _

// kernel: _lambda_.17
$region0: #{_lambda_.17}
  #allocation0 [shape = 'u32[]', space=smem, size = 0x4, offset = 0x4, fixed_abs, tag = 'smem constant byte address 0x4 - core index']
  #allocation1 [shape = 'u32[72,128]{1,0:T(1,128)}', space=vmem, size = 0x9000, scoped, tag = 'internal scratch']
  #allocation2 [shape = 'bf16[48,128]{1,0:T(8,128)(2,1)}', space=vmem, size = 0x3000, scoped, tag = 'scratch operand']
  #allocation3 [shape = 'f32[48,128]{1,0:T(8,128)}', space=vmem, size = 0x6000, scoped, tag = 'scratch operand']
  %s0 = inlined_call_operand.vmem [shape: bf16[48,128], index: 0, kind: input, shape index: {}]
  %s1 = inlined_call_operand.vmem [shape: f32[1,128], index: 1, kind: input, shape index: {}]
  %s2 = inlined_call_operand.vmem [shape: f32[1,128], index: 2, kind: input, shape index: {}, may-alias: {2,6}]
  %s3 = inlined_call_operand.vmem [shape: bf16[128,512], index: 3, kind: input, shape index: {}]
  %s4 = inlined_call_operand.vmem [shape: f32[1,512], index: 4, kind: input, shape index: {}]
  %s5 = inlined_call_operand.hbm [shape: bf16[512,128], index: 5, kind: input, shape index: {}]
  %s6 = inlined_call_operand.vmem [shape: f32[1,128], index: 6, kind: input, shape index: {}, may-alias: {2,6}]
  %s7 = inlined_call_operand.vmem [shape: bf16[48,128], index: 7, kind: output, shape index: {}]
  %s8 = sld [smem:[#allocation0]]
  $region50: #{_lambda_.17} parent=0
    _
  %s10 = ssub.s32 1, %s8
  %s11 = scalar_select 0, %s10, %s8
  $region1: #{_lambda_.17} parent=0
    #allocation4 [shape = 'u8[131072]{0}', space=vmem, size = 0x20000, scoped, tag = 'input window, operand 5, single buffered']
    #allocation5 [shape = 's32[1]{0}', space=sflag, size = 0x4, scoped, tag = 'scoped memory for _lambda_.17']
    %12 = vsyncpa [#allocation5], 0
    // Predicated region
    $region2: #{_lambda_.17} parent=1 // pred_check
      _
    $region3: #{_lambda_.17} parent=1 // pred_check_branch
      %14 = sbr.rel (0) target = $region5
    $region4: #{_lambda_.17} parent=1 // pred_region
      _
    $region5: #{_lambda_.17} parent=1 // pred_fallthru
      _
    // Predicated region
    $region6: #{_lambda_.17} parent=1 // pred_check
      _
    $region7: #{_lambda_.17} parent=1 // pred_check_branch
      %16 = sbr.rel (0) target = $region9
    $region8: #{_lambda_.17} parent=1 // pred_region
      _
    $region9: #{_lambda_.17} parent=1 // pred_fallthru
      _
    // Predicated region
    $region10: #{_lambda_.17} parent=1 // pred_check
      _
    $region11: #{_lambda_.17} parent=1 // pred_check_branch
      %18 = sbr.rel (0) target = $region13
    $region12: #{_lambda_.17} parent=1 // pred_region
      _
    $region13: #{_lambda_.17} parent=1 // pred_fallthru
      _
    // Predicated region
    $region14: #{_lambda_.17} parent=1 // pred_check
      _
    $region15: #{_lambda_.17} parent=1 // pred_check_branch
      %20 = sbr.rel (0) target = $region17
    $region16: #{_lambda_.17} parent=1 // pred_region
      _
    $region17: #{_lambda_.17} parent=1 // pred_fallthru
      _
    // Predicated region
    $region18: #{_lambda_.17} parent=1 // pred_check
      _
    $region19: #{_lambda_.17} parent=1 // pred_check_branch
      %22 = sbr.rel (0) target = $region21
    $region20: #{_lambda_.17} parent=1 // pred_region
      _
    $region21: #{_lambda_.17} parent=1 // pred_fallthru
      _
    // Predicated region
    $region22: #{_lambda_.17} parent=1 // pred_check
      _
    $region23: #{_lambda_.17} parent=1 // pred_check_branch
      %24 = sbr.rel (0) target = $region25
    $region24: #{_lambda_.17} parent=1 // pred_region
      %26 = vsyncadd [#allocation5], 0
      %s27 = sshll.u32 %s5, 4
      %s28 = int_to_ptr.hbm [resolvable:$true] %s27
      %s29 = sshll.u32 [#allocation4], 4
      %s30 = int_to_ptr.vmem [resolvable:$true] %s29
      %35 = dma.hbm_to_vmem [thread:$0]  %s28, 4096, %s30, [#allocation5], 64, 64, 4
    $region25: #{_lambda_.17} parent=1 // pred_fallthru
      _
    // Predicated region
    $region26: #{_lambda_.17} parent=1 // pred_check
      _
    $region27: #{_lambda_.17} parent=1 // pred_check_branch
      %37 = sbr.rel (0) target = $region29
    $region28: #{_lambda_.17} parent=1 // pred_region
      _
    $region29: #{_lambda_.17} parent=1 // pred_fallthru
      _
    // Predicated region
    $region30: #{_lambda_.17} parent=1 // pred_check
      _
    $region31: #{_lambda_.17} parent=1 // pred_check_branch
      %39 = sbr.rel (0) target = $region33
    $region32: #{_lambda_.17} parent=1 // pred_region
      %41 = dma.done [#allocation5], 4096
    $region33: #{_lambda_.17} parent=1 // pred_fallthru
      _
    %p42 = scmp.eq.s32.totalorder 0, 0
    // Predicated region
    $region34: #{_lambda_.17} parent=1 // pred_check
      %p43 = pneg %p42
    $region35: #{_lambda_.17} parent=1 // pred_check_branch
      %45 = sbr.rel (%p43) target = $region37
    $region36: #{_lambda_.17} parent=1 // pred_region
      %v46 = vld [vmem:[%s0] sm:$0xf]
      %v47 = vld [vmem:[%s0 + $0x4] sm:$0xf]
      %v48 = vld [vmem:[%s0 + $0x8] sm:$0xf]
      %v49 = vld [vmem:[%s0 + $0xc] sm:$0xf]
      %v50 = vld [vmem:[%s0 + $0x10] sm:$0xf]
      %v51 = vld [vmem:[%s0 + $0x14] sm:$0xf]
      %v52 = vunpack.c.l.bf16 %v46
      %v53 = vunpack.c.l.bf16 %v47
      %v54 = vunpack.c.l.bf16 %v48
      %v55 = vunpack.c.l.bf16 %v49
      %v56 = vunpack.c.l.bf16 %v50
      %v57 = vunpack.c.l.bf16 %v51
      %58 = vadd.xlane.f32.xlu0 %v52
      %v59 = vpop.xlane.xlu0 %58
      %60 = vadd.xlane.f32.xlu0 %v53
      %v61 = vpop.xlane.xlu0 %60
      %62 = vadd.xlane.f32.xlu0 %v54
      %v63 = vpop.xlane.xlu0 %62
      %64 = vadd.xlane.f32.xlu0 %v55
      %v65 = vpop.xlane.xlu0 %64
      %66 = vadd.xlane.f32.xlu0 %v56
      %v67 = vpop.xlane.xlu0 %66
      %68 = vadd.xlane.f32.xlu0 %v57
      %v69 = vpop.xlane.xlu0 %68
      %v70 = vrcp.pop 128.0
      %v71 = vmul.f32 128.0, %v70
      %v72 = vsub.f32 1.0, %v71
      %v73 = vmul.f32 %v70, %v72
      %v74 = vadd.f32 %v70, %v73
      %vm75 = vweird.f32 %v70
      %v76 = vsel %vm75, %v70, %v74
      %v77 = vmul.f32 %v59, %v76
      %v78 = vmul.f32 %v61, %v76
      %v79 = vmul.f32 %v63, %v76
      %v80 = vmul.f32 %v65, %v76
      %v81 = vmul.f32 %v67, %v76
      %v82 = vmul.f32 %v69, %v76
      %v83 = vsub.f32 %v52, %v77
      %v84 = vsub.f32 %v53, %v78
      %v85 = vsub.f32 %v54, %v79
      %v86 = vsub.f32 %v55, %v80
      %v87 = vsub.f32 %v56, %v81
      %v88 = vsub.f32 %v57, %v82
      %v89 = vmul.f32 %v83, %v83
      %v90 = vmul.f32 %v84, %v84
      %v91 = vmul.f32 %v85, %v85
      %v92 = vmul.f32 %v86, %v86
      %v93 = vmul.f32 %v87, %v87
      %v94 = vmul.f32 %v88, %v88
      %95 = vadd.xlane.f32.xlu0 %v89
      %v96 = vpop.xlane.xlu0 %95
      %97 = vadd.xlane.f32.xlu0 %v90
      %v98 = vpop.xlane.xlu0 %97
      %99 = vadd.xlane.f32.xlu0 %v91
      %v100 = vpop.xlane.xlu0 %99
      %101 = vadd.xlane.f32.xlu0 %v92
      %v102 = vpop.xlane.xlu0 %101
      %103 = vadd.xlane.f32.xlu0 %v93
      %v104 = vpop.xlane.xlu0 %103
      %105 = vadd.xlane.f32.xlu0 %v94
      %v106 = vpop.xlane.xlu0 %105
      %v107 = vmul.f32 %v96, %v76
      %v108 = vmul.f32 %v98, %v76
      %v109 = vmul.f32 %v100, %v76
      %v110 = vmul.f32 %v102, %v76
      %v111 = vmul.f32 %v104, %v76
      %v112 = vmul.f32 %v106, %v76
      %v113 = vadd.f32 %v107, 1e-05
      %v114 = vadd.f32 %v108, 1e-05
      %v115 = vadd.f32 %v109, 1e-05
      %v116 = vadd.f32 %v110, 1e-05
      %v117 = vadd.f32 %v111, 1e-05
      %v118 = vadd.f32 %v112, 1e-05
      %v119 = vrsqrt.pop %v113
      %v120 = vmul.f32 %v119, %v113
      %v121 = vmul.f32 %v120, %v119
      %v122 = vmul.f32 0.5, %v121
      %v123 = vsub.f32 1.5, %v122
      %v124 = vmul.f32 %v119, %v123
      %vm125 = vweird.f32 %v113
      %vm126 = vweird.f32 %v119
      %vm127 = vmor %vm125, %vm126
      %v128 = vsel %vm127, %v119, %v124
      %v129 = vrsqrt.pop %v114
      %v130 = vmul.f32 %v129, %v114
      %v131 = vmul.f32 %v130, %v129
      %v132 = vmul.f32 0.5, %v131
      %v133 = vsub.f32 1.5, %v132
      %v134 = vmul.f32 %v129, %v133
      %vm135 = vweird.f32 %v114
      %vm136 = vweird.f32 %v129
      %vm137 = vmor %vm135, %vm136
      %v138 = vsel %vm137, %v129, %v134
      %v139 = vrsqrt.pop %v115
      %v140 = vmul.f32 %v139, %v115
      %v141 = vmul.f32 %v140, %v139
      %v142 = vmul.f32 0.5, %v141
      %v143 = vsub.f32 1.5, %v142
      %v144 = vmul.f32 %v139, %v143
      %vm145 = vweird.f32 %v115
      %vm146 = vweird.f32 %v139
      %vm147 = vmor %vm145, %vm146
      %v148 = vsel %vm147, %v139, %v144
      %v149 = vrsqrt.pop %v116
      %v150 = vmul.f32 %v149, %v116
      %v151 = vmul.f32 %v150, %v149
      %v152 = vmul.f32 0.5, %v151
      %v153 = vsub.f32 1.5, %v152
      %v154 = vmul.f32 %v149, %v153
      %vm155 = vweird.f32 %v116
      %vm156 = vweird.f32 %v149
      %vm157 = vmor %vm155, %vm156
      %v158 = vsel %vm157, %v149, %v154
      %v159 = vrsqrt.pop %v117
      %v160 = vmul.f32 %v159, %v117
      %v161 = vmul.f32 %v160, %v159
      %v162 = vmul.f32 0.5, %v161
      %v163 = vsub.f32 1.5, %v162
      %v164 = vmul.f32 %v159, %v163
      %vm165 = vweird.f32 %v117
      %vm166 = vweird.f32 %v159
      %vm167 = vmor %vm165, %vm166
      %v168 = vsel %vm167, %v159, %v164
      %v169 = vrsqrt.pop %v118
      %v170 = vmul.f32 %v169, %v118
      %v171 = vmul.f32 %v170, %v169
      %v172 = vmul.f32 0.5, %v171
      %v173 = vsub.f32 1.5, %v172
      %v174 = vmul.f32 %v169, %v173
      %vm175 = vweird.f32 %v118
      %vm176 = vweird.f32 %v169
      %vm177 = vmor %vm175, %vm176
      %v178 = vsel %vm177, %v169, %v174
      %v179 = vmul.f32 %v83, %v128
      %v180 = vmul.f32 %v84, %v138
      %v181 = vmul.f32 %v85, %v148
      %v182 = vmul.f32 %v86, %v158
      %v183 = vmul.f32 %v87, %v168
      %v184 = vmul.f32 %v88, %v178
      %v185 = vld [vmem:[%s1] sm:$0x1]
      %v187 = vperm.slane %v185, 0
      %v189 = vmul.f32 %v179, %v187
      %v190 = vmul.f32 %v180, %v187
      %v191 = vmul.f32 %v181, %v187
      %v192 = vmul.f32 %v182, %v187
      %v193 = vmul.f32 %v183, %v187
      %v194 = vmul.f32 %v184, %v187
      %v195 = vld [vmem:[%s2] sm:$0x1]
      %v197 = vperm.slane %v195, 0
      %v199 = vadd.f32 %v189, %v197
      %v200 = vadd.f32 %v190, %v197
      %v201 = vadd.f32 %v191, %v197
      %v202 = vadd.f32 %v192, %v197
      %v203 = vadd.f32 %v193, %v197
      %v204 = vadd.f32 %v194, %v197
      %v205 = vpack.c.bf16 %v199, %v199
      %v206 = vpack.c.bf16 %v200, %v200
      %v207 = vpack.c.bf16 %v201, %v201
      %v208 = vpack.c.bf16 %v202, %v202
      %v209 = vpack.c.bf16 %v203, %v203
      %v210 = vpack.c.bf16 %v204, %v204
      %211 = vst [vmem:[#allocation2] sm:$0xf] %v205
      %212 = vst [vmem:[#allocation2 + $0x4] sm:$0xf] %v206
      %213 = vst [vmem:[#allocation2 + $0x8] sm:$0xf] %v207
      %214 = vst [vmem:[#allocation2 + $0xc] sm:$0xf] %v208
      %215 = vst [vmem:[#allocation2 + $0x10] sm:$0xf] %v209
      %216 = vst [vmem:[#allocation2 + $0x14] sm:$0xf] %v210
      %217 = vst [vmem:[#allocation3] sm:$0xff] 0.0
      %218 = vst [vmem:[#allocation3 + $0x8] sm:$0xff] 0.0
      %219 = vst [vmem:[#allocation3 + $0x10] sm:$0xff] 0.0
      %220 = vst [vmem:[#allocation3 + $0x18] sm:$0xff] 0.0
      %221 = vst [vmem:[#allocation3 + $0x20] sm:$0xff] 0.0
      %222 = vst [vmem:[#allocation3 + $0x28] sm:$0xff] 0.0
    $region37: #{_lambda_.17} parent=1 // pred_fallthru
      _
    %v223 = vld [vmem:[#allocation2] sm:$0xf]
    %v224 = vld [vmem:[#allocation2 + $0x4] sm:$0xf]
    %v225 = vld [vmem:[#allocation2 + $0x8] sm:$0xf]
    %v226 = vld [vmem:[#allocation2 + $0xc] sm:$0xf]
    %v227 = vld [vmem:[#allocation2 + $0x10] sm:$0xf]
    %v228 = vld [vmem:[#allocation2 + $0x14] sm:$0xf]
    %v229 = vld [vmem:[%s3] sm:$0xff]
    %v230 = vld [vmem:[%s3 + $0x8] sm:$0xff]
    %v231 = vld [vmem:[%s3 + $0x10] sm:$0xff]
    %v232 = vld [vmem:[%s3 + $0x18] sm:$0xff]
    %v233 = vld [vmem:[%s3 + $0x20] sm:$0xff]
    %v234 = vld [vmem:[%s3 + $0x28] sm:$0xff]
    %v235 = vld [vmem:[%s3 + $0x30] sm:$0xff]
    %v236 = vld [vmem:[%s3 + $0x38] sm:$0xff]
    %v237 = vld [vmem:[%s3 + $0x40] sm:$0xff]
    %v238 = vld [vmem:[%s3 + $0x48] sm:$0xff]
    %v239 = vld [vmem:[%s3 + $0x50] sm:$0xff]
    %v240 = vld [vmem:[%s3 + $0x58] sm:$0xff]
    %v241 = vld [vmem:[%s3 + $0x60] sm:$0xff]
    %v242 = vld [vmem:[%s3 + $0x68] sm:$0xff]
    %v243 = vld [vmem:[%s3 + $0x70] sm:$0xff]
    %v244 = vld [vmem:[%s3 + $0x78] sm:$0xff]
    %v245 = vld [vmem:[%s3 + $0x80] sm:$0xff]
    %v246 = vld [vmem:[%s3 + $0x88] sm:$0xff]
    %v247 = vld [vmem:[%s3 + $0x90] sm:$0xff]
    %v248 = vld [vmem:[%s3 + $0x98] sm:$0xff]
    %v249 = vld [vmem:[%s3 + $0xa0] sm:$0xff]
    %v250 = vld [vmem:[%s3 + $0xa8] sm:$0xff]
    %v251 = vld [vmem:[%s3 + $0xb0] sm:$0xff]
    %v252 = vld [vmem:[%s3 + $0xb8] sm:$0xff]
    %v253 = vld [vmem:[%s3 + $0xc0] sm:$0xff]
    %v254 = vld [vmem:[%s3 + $0xc8] sm:$0xff]
    %v255 = vld [vmem:[%s3 + $0xd0] sm:$0xff]
    %v256 = vld [vmem:[%s3 + $0xd8] sm:$0xff]
    %v257 = vld [vmem:[%s3 + $0xe0] sm:$0xff]
    %v258 = vld [vmem:[%s3 + $0xe8] sm:$0xff]
    %v259 = vld [vmem:[%s3 + $0xf0] sm:$0xff]
    %v260 = vld [vmem:[%s3 + $0xf8] sm:$0xff]
    %v261 = vld [vmem:[%s4] sm:$0xf]
    %v263 = vperm.slane %v261, 0
    %v264 = vperm.slane %v261, 1
    %v265 = vperm.slane %v261, 2
    %v266 = vperm.slane %v261, 3
    %v277 = vunpack.c.l.b16 %v223
    %v278 = vunpack.c.l.b16 %v224
    %v279 = vunpack.c.l.b16 %v225
    %v280 = vunpack.c.l.b16 %v226
    %v281 = vunpack.c.l.b16 %v227
    %v282 = vunpack.c.l.b16 %v228
    %v283 = vpack.c.b16 %v278, %v277
    %v284 = vpack.c.b16 %v280, %v279
    %v285 = vpack.c.b16 %v282, %v281
    %v321 = vunpack.c.l.b16 %v229
    %v322 = vunpack.c.h.b16 %v229
    %v323 = vunpack.c.l.b16 %v230
    %v324 = vunpack.c.h.b16 %v230
    %v325 = vunpack.c.l.b16 %v231
    %v326 = vunpack.c.h.b16 %v231
    %v327 = vunpack.c.l.b16 %v232
    %v328 = vunpack.c.h.b16 %v232
    %v329 = vunpack.c.l.b16 %v233
    %v330 = vunpack.c.h.b16 %v233
    %v331 = vunpack.c.l.b16 %v234
    %v332 = vunpack.c.h.b16 %v234
    %v333 = vunpack.c.l.b16 %v235
    %v334 = vunpack.c.h.b16 %v235
    %v335 = vunpack.c.l.b16 %v236
    %v336 = vunpack.c.h.b16 %v236
    %v337 = vunpack.c.l.b16 %v237
    %v338 = vunpack.c.h.b16 %v237
    %v339 = vunpack.c.l.b16 %v238
    %v340 = vunpack.c.h.b16 %v238
    %v341 = vunpack.c.l.b16 %v239
    %v342 = vunpack.c.h.b16 %v239
    %v343 = vunpack.c.l.b16 %v240
    %v344 = vunpack.c.h.b16 %v240
    %v345 = vunpack.c.l.b16 %v241
    %v346 = vunpack.c.h.b16 %v241
    %v347 = vunpack.c.l.b16 %v242
    %v348 = vunpack.c.h.b16 %v242
    %v349 = vunpack.c.l.b16 %v243
    %v350 = vunpack.c.h.b16 %v243
    %v351 = vunpack.c.l.b16 %v244
    %v352 = vunpack.c.h.b16 %v244
    %v353 = vunpack.c.l.b16 %v245
    %v354 = vunpack.c.h.b16 %v245
    %v355 = vunpack.c.l.b16 %v246
    %v356 = vunpack.c.h.b16 %v246
    %v357 = vunpack.c.l.b16 %v247
    %v358 = vunpack.c.h.b16 %v247
    %v359 = vunpack.c.l.b16 %v248
    %v360 = vunpack.c.h.b16 %v248
    %v361 = vunpack.c.l.b16 %v249
    %v362 = vunpack.c.h.b16 %v249
    %v363 = vunpack.c.l.b16 %v250
    %v364 = vunpack.c.h.b16 %v250
    %v365 = vunpack.c.l.b16 %v251
    %v366 = vunpack.c.h.b16 %v251
    %v367 = vunpack.c.l.b16 %v252
    %v368 = vunpack.c.h.b16 %v252
    %v369 = vunpack.c.l.b16 %v253
    %v370 = vunpack.c.h.b16 %v253
    %v371 = vunpack.c.l.b16 %v254
    %v372 = vunpack.c.h.b16 %v254
    %v373 = vunpack.c.l.b16 %v255
    %v374 = vunpack.c.h.b16 %v255
    %v375 = vunpack.c.l.b16 %v256
    %v376 = vunpack.c.h.b16 %v256
    %v377 = vunpack.c.l.b16 %v257
    %v378 = vunpack.c.h.b16 %v257
    %v379 = vunpack.c.l.b16 %v258
    %v380 = vunpack.c.h.b16 %v258
    %v381 = vunpack.c.l.b16 %v259
    %v382 = vunpack.c.h.b16 %v259
    %v383 = vunpack.c.l.b16 %v260
    %v384 = vunpack.c.h.b16 %v260
    %v385 = vpack.c.b16 %v325, %v321
    %v386 = vpack.c.b16 %v326, %v322
    %v387 = vpack.c.b16 %v327, %v323
    %v388 = vpack.c.b16 %v328, %v324
    %v389 = vpack.c.b16 %v333, %v329
    %v390 = vpack.c.b16 %v334, %v330
    %v391 = vpack.c.b16 %v335, %v331
    %v392 = vpack.c.b16 %v336, %v332
    %v393 = vpack.c.b16 %v341, %v337
    %v394 = vpack.c.b16 %v342, %v338
    %v395 = vpack.c.b16 %v343, %v339
    %v396 = vpack.c.b16 %v344, %v340
    %v397 = vpack.c.b16 %v349, %v345
    %v398 = vpack.c.b16 %v350, %v346
    %v399 = vpack.c.b16 %v351, %v347
    %v400 = vpack.c.b16 %v352, %v348
    %v401 = vpack.c.b16 %v357, %v353
    %v402 = vpack.c.b16 %v358, %v354
    %v403 = vpack.c.b16 %v359, %v355
    %v404 = vpack.c.b16 %v360, %v356
    %v405 = vpack.c.b16 %v365, %v361
    %v406 = vpack.c.b16 %v366, %v362
    %v407 = vpack.c.b16 %v367, %v363
    %v408 = vpack.c.b16 %v368, %v364
    %v409 = vpack.c.b16 %v373, %v369
    %v410 = vpack.c.b16 %v374, %v370
    %v411 = vpack.c.b16 %v375, %v371
    %v412 = vpack.c.b16 %v376, %v372
    %v413 = vpack.c.b16 %v381, %v377
    %v414 = vpack.c.b16 %v382, %v378
    %v415 = vpack.c.b16 %v383, %v379
    %v416 = vpack.c.b16 %v384, %v380
    %449 = vmatpush.bf16.msra.mxu0 %v413
    %450 = vmatpush.bf16.msra.mxu0 %v409
    %451 = vmatpush.bf16.msra.mxu0 %v405
    %452 = vmatpush.bf16.msra.mxu0 %v401
    %453 = vmatpush.bf16.msra.mxu0 %v397
    %454 = vmatpush.bf16.msra.mxu0 %v393
    %455 = vmatpush.bf16.msra.mxu0 %v389
    %456 = vmatpush.bf16.msra.mxu0 %v385
    %457 = vmatmul.bf16.gmra.mxu0 %v283
    %v458 = vpop.f32.mrf.mxu0
    %v459 = vadd.f32 %v263, %v458
    %v460 = vpop.f32.mrf.mxu0
    %v461 = vadd.f32 %v263, %v460
    %462 = vmatmul.bf16.gmra.mxu0 %v284
    %v463 = vpop.f32.mrf.mxu0
    %v464 = vadd.f32 %v263, %v463
    %v465 = vpop.f32.mrf.mxu0
    %v466 = vadd.f32 %v263, %v465
    %467 = vmatmul.bf16.gmra.mxu0 %v285
    %v468 = vpop.f32.mrf.mxu0
    %v469 = vadd.f32 %v263, %v468
    %v470 = vpop.f32.mrf.mxu0
    %v471 = vadd.f32 %v263, %v470
    %472 = vdwg.mxu0
    %473 = vmatpush.bf16.msra.mxu0 %v414
    %474 = vmatpush.bf16.msra.mxu0 %v410
    %475 = vmatpush.bf16.msra.mxu0 %v406
    %476 = vmatpush.bf16.msra.mxu0 %v402
    %477 = vmatpush.bf16.msra.mxu0 %v398
    %478 = vmatpush.bf16.msra.mxu0 %v394
    %479 = vmatpush.bf16.msra.mxu0 %v390
    %480 = vmatpush.bf16.msra.mxu0 %v386
    %481 = vmatmul.bf16.gmra.mxu0 %v283
    %v482 = vpop.f32.mrf.mxu0
    %v483 = vadd.f32 %v264, %v482
    %v484 = vpop.f32.mrf.mxu0
    %v485 = vadd.f32 %v264, %v484
    %486 = vmatmul.bf16.gmra.mxu0 %v284
    %v487 = vpop.f32.mrf.mxu0
    %v488 = vadd.f32 %v264, %v487
    %v489 = vpop.f32.mrf.mxu0
    %v490 = vadd.f32 %v264, %v489
    %491 = vmatmul.bf16.gmra.mxu0 %v285
    %v492 = vpop.f32.mrf.mxu0
    %v493 = vadd.f32 %v264, %v492
    %v494 = vpop.f32.mrf.mxu0
    %v495 = vadd.f32 %v264, %v494
    %496 = vdwg.mxu0
    %497 = vmatpush.bf16.msra.mxu0 %v415
    %498 = vmatpush.bf16.msra.mxu0 %v411
    %499 = vmatpush.bf16.msra.mxu0 %v407
    %500 = vmatpush.bf16.msra.mxu0 %v403
    %501 = vmatpush.bf16.msra.mxu0 %v399
    %502 = vmatpush.bf16.msra.mxu0 %v395
    %503 = vmatpush.bf16.msra.mxu0 %v391
    %504 = vmatpush.bf16.msra.mxu0 %v387
    %505 = vmatmul.bf16.gmra.mxu0 %v283
    %v506 = vpop.f32.mrf.mxu0
    %v507 = vadd.f32 %v265, %v506
    %v508 = vpop.f32.mrf.mxu0
    %v509 = vadd.f32 %v265, %v508
    %510 = vmatmul.bf16.gmra.mxu0 %v284
    %v511 = vpop.f32.mrf.mxu0
    %v512 = vadd.f32 %v265, %v511
    %v513 = vpop.f32.mrf.mxu0
    %v514 = vadd.f32 %v265, %v513
    %515 = vmatmul.bf16.gmra.mxu0 %v285
    %v516 = vpop.f32.mrf.mxu0
    %v517 = vadd.f32 %v265, %v516
    %v518 = vpop.f32.mrf.mxu0
    %v519 = vadd.f32 %v265, %v518
    %520 = vdwg.mxu0
    %521 = vmatpush.bf16.msra.mxu0 %v416
    %522 = vmatpush.bf16.msra.mxu0 %v412
    %523 = vmatpush.bf16.msra.mxu0 %v408
    %524 = vmatpush.bf16.msra.mxu0 %v404
    %525 = vmatpush.bf16.msra.mxu0 %v400
    %526 = vmatpush.bf16.msra.mxu0 %v396
    %527 = vmatpush.bf16.msra.mxu0 %v392
    %528 = vmatpush.bf16.msra.mxu0 %v388
    %529 = vmatmul.bf16.gmra.mxu0 %v283
    %v530 = vpop.f32.mrf.mxu0
    %v531 = vadd.f32 %v266, %v530
    %v532 = vpop.f32.mrf.mxu0
    %v533 = vadd.f32 %v266, %v532
    %534 = vmatmul.bf16.gmra.mxu0 %v284
    %v535 = vpop.f32.mrf.mxu0
    %v536 = vadd.f32 %v266, %v535
    %v537 = vpop.f32.mrf.mxu0
    %v538 = vadd.f32 %v266, %v537
    %539 = vmatmul.bf16.gmra.mxu0 %v285
    %v540 = vpop.f32.mrf.mxu0
    %v541 = vadd.f32 %v266, %v540
    %v542 = vpop.f32.mrf.mxu0
    %v543 = vadd.f32 %v266, %v542
    %544 = vdwg.mxu0
    %v545 = vmul.f32 %v459, 1.702
    %v546 = vmul.f32 %v483, 1.702
    %v547 = vmul.f32 %v507, 1.702
    %v548 = vmul.f32 %v531, 1.702
    %v549 = vmul.f32 %v461, 1.702
    %v550 = vmul.f32 %v485, 1.702
    %v551 = vmul.f32 %v509, 1.702
    %v552 = vmul.f32 %v533, 1.702
    %v553 = vmul.f32 %v464, 1.702
    %v554 = vmul.f32 %v488, 1.702
    %v555 = vmul.f32 %v512, 1.702
    %v556 = vmul.f32 %v536, 1.702
    %v557 = vmul.f32 %v466, 1.702
    %v558 = vmul.f32 %v490, 1.702
    %v559 = vmul.f32 %v514, 1.702
    %v560 = vmul.f32 %v538, 1.702
    %v561 = vmul.f32 %v469, 1.702
    %v562 = vmul.f32 %v493, 1.702
    %v563 = vmul.f32 %v517, 1.702
    %v564 = vmul.f32 %v541, 1.702
    %v565 = vmul.f32 %v471, 1.702
    %v566 = vmul.f32 %v495, 1.702
    %v567 = vmul.f32 %v519, 1.702
    %v568 = vmul.f32 %v543, 1.702
    %v569 = vxor.u32 %v545, 2147483648
    %v570 = vxor.u32 %v546, 2147483648
    %v571 = vxor.u32 %v547, 2147483648
    %v572 = vxor.u32 %v548, 2147483648
    %v573 = vxor.u32 %v549, 2147483648
    %v574 = vxor.u32 %v550, 2147483648
    %v575 = vxor.u32 %v551, 2147483648
    %v576 = vxor.u32 %v552, 2147483648
    %v577 = vxor.u32 %v553, 2147483648
    %v578 = vxor.u32 %v554, 2147483648
    %v579 = vxor.u32 %v555, 2147483648
    %v580 = vxor.u32 %v556, 2147483648
    %v581 = vxor.u32 %v557, 2147483648
    %v582 = vxor.u32 %v558, 2147483648
    %v583 = vxor.u32 %v559, 2147483648
    %v584 = vxor.u32 %v560, 2147483648
    %v585 = vxor.u32 %v561, 2147483648
    %v586 = vxor.u32 %v562, 2147483648
    %v587 = vxor.u32 %v563, 2147483648
    %v588 = vxor.u32 %v564, 2147483648
    %v589 = vxor.u32 %v565, 2147483648
    %v590 = vxor.u32 %v566, 2147483648
    %v591 = vxor.u32 %v567, 2147483648
    %v592 = vxor.u32 %v568, 2147483648
    %v593 = vmul.f32 %v569, 1.442695
    %v594 = vpow.pop %v593
    %v595 = vmul.f32 %v570, 1.442695
    %v596 = vpow.pop %v595
    %v597 = vmul.f32 %v571, 1.442695
    %v598 = vpow.pop %v597
    %v599 = vmul.f32 %v572, 1.442695
    %v600 = vpow.pop %v599
    %v601 = vmul.f32 %v573, 1.442695
    %v602 = vpow.pop %v601
    %v603 = vmul.f32 %v574, 1.442695
    %v604 = vpow.pop %v603
    %v605 = vmul.f32 %v575, 1.442695
    %v606 = vpow.pop %v605
    %v607 = vmul.f32 %v576, 1.442695
    %v608 = vpow.pop %v607
    %v609 = vmul.f32 %v577, 1.442695
    %v610 = vpow.pop %v609
    %v611 = vmul.f32 %v578, 1.442695
    %v612 = vpow.pop %v611
    %v613 = vmul.f32 %v579, 1.442695
    %v614 = vpow.pop %v613
    %v615 = vmul.f32 %v580, 1.442695
    %v616 = vpow.pop %v615
    %v617 = vmul.f32 %v581, 1.442695
    %v618 = vpow.pop %v617
    %v619 = vmul.f32 %v582, 1.442695
    %v620 = vpow.pop %v619
    %v621 = vmul.f32 %v583, 1.442695
    %v622 = vpow.pop %v621
    %v623 = vmul.f32 %v584, 1.442695
    %v624 = vpow.pop %v623
    %v625 = vmul.f32 %v585, 1.442695
    %v626 = vpow.pop %v625
    %v627 = vmul.f32 %v586, 1.442695
    %v628 = vpow.pop %v627
    %v629 = vmul.f32 %v587, 1.442695
    %v630 = vpow.pop %v629
    %v631 = vmul.f32 %v588, 1.442695
    %v632 = vpow.pop %v631
    %v633 = vmul.f32 %v589, 1.442695
    %v634 = vpow.pop %v633
    %v635 = vmul.f32 %v590, 1.442695
    %v636 = vpow.pop %v635
    %v637 = vmul.f32 %v591, 1.442695
    %v638 = vpow.pop %v637
    %v639 = vmul.f32 %v592, 1.442695
    %v640 = vpow.pop %v639
    %v641 = vadd.f32 %v594, 1.0
    %v642 = vadd.f32 %v596, 1.0
    %v643 = vadd.f32 %v598, 1.0
    %v644 = vadd.f32 %v600, 1.0
    %v645 = vadd.f32 %v602, 1.0
    %v646 = vadd.f32 %v604, 1.0
    %v647 = vadd.f32 %v606, 1.0
    %v648 = vadd.f32 %v608, 1.0
    %v649 = vadd.f32 %v610, 1.0
    %v650 = vadd.f32 %v612, 1.0
    %v651 = vadd.f32 %v614, 1.0
    %v652 = vadd.f32 %v616, 1.0
    %v653 = vadd.f32 %v618, 1.0
    %v654 = vadd.f32 %v620, 1.0
    %v655 = vadd.f32 %v622, 1.0
    %v656 = vadd.f32 %v624, 1.0
    %v657 = vadd.f32 %v626, 1.0
    %v658 = vadd.f32 %v628, 1.0
    %v659 = vadd.f32 %v630, 1.0
    %v660 = vadd.f32 %v632, 1.0
    %v661 = vadd.f32 %v634, 1.0
    %v662 = vadd.f32 %v636, 1.0
    %v663 = vadd.f32 %v638, 1.0
    %v664 = vadd.f32 %v640, 1.0
    %v665 = vrcp.pop %v641
    %v666 = vmul.f32 %v641, %v665
    %v667 = vsub.f32 1.0, %v666
    %v668 = vmul.f32 %v665, %v667
    %v669 = vadd.f32 %v665, %v668
    %vm670 = vweird.f32 %v641
    %vm671 = vweird.f32 %v665
    %vm672 = vmor %vm670, %vm671
    %v673 = vsel %vm672, %v665, %v669
    %v674 = vand.u32 2147483647, %v641
    %vm675 = vcmp.eq.f32.partialorder %v674, 8.507059e+37
    %v676 = vand.u32 %v641, 2147483648
    %v677 = vor.u32 1.1754944e-38, %v676
    %v678 = vsel %vm675, %v677, %v673
    %v679 = vmul.f32 1.0, %v678
    %v680 = vrcp.pop %v642
    %v681 = vmul.f32 %v642, %v680
    %v682 = vsub.f32 1.0, %v681
    %v683 = vmul.f32 %v680, %v682
    %v684 = vadd.f32 %v680, %v683
    %vm685 = vweird.f32 %v642
    %vm686 = vweird.f32 %v680
    %vm687 = vmor %vm685, %vm686
    %v688 = vsel %vm687, %v680, %v684
    %v689 = vand.u32 2147483647, %v642
    %vm690 = vcmp.eq.f32.partialorder %v689, 8.507059e+37
    %v691 = vand.u32 %v642, 2147483648
    %v692 = vor.u32 1.1754944e-38, %v691
    %v693 = vsel %vm690, %v692, %v688
    %v694 = vmul.f32 1.0, %v693
    %v695 = vrcp.pop %v643
    %v696 = vmul.f32 %v643, %v695
    %v697 = vsub.f32 1.0, %v696
    %v698 = vmul.f32 %v695, %v697
    %v699 = vadd.f32 %v695, %v698
    %vm700 = vweird.f32 %v643
    %vm701 = vweird.f32 %v695
    %vm702 = vmor %vm700, %vm701
    %v703 = vsel %vm702, %v695, %v699
    %v704 = vand.u32 2147483647, %v643
    %vm705 = vcmp.eq.f32.partialorder %v704, 8.507059e+37
    %v706 = vand.u32 %v643, 2147483648
    %v707 = vor.u32 1.1754944e-38, %v706
    %v708 = vsel %vm705, %v707, %v703
    %v709 = vmul.f32 1.0, %v708
    %v710 = vrcp.pop %v644
    %v711 = vmul.f32 %v644, %v710
    %v712 = vsub.f32 1.0, %v711
    %v713 = vmul.f32 %v710, %v712
    %v714 = vadd.f32 %v710, %v713
    %vm715 = vweird.f32 %v644
    %vm716 = vweird.f32 %v710
    %vm717 = vmor %vm715, %vm716
    %v718 = vsel %vm717, %v710, %v714
    %v719 = vand.u32 2147483647, %v644
    %vm720 = vcmp.eq.f32.partialorder %v719, 8.507059e+37
    %v721 = vand.u32 %v644, 2147483648
    %v722 = vor.u32 1.1754944e-38, %v721
    %v723 = vsel %vm720, %v722, %v718
    %v724 = vmul.f32 1.0, %v723
    %v725 = vrcp.pop %v645
    %v726 = vmul.f32 %v645, %v725
    %v727 = vsub.f32 1.0, %v726
    %v728 = vmul.f32 %v725, %v727
    %v729 = vadd.f32 %v725, %v728
    %vm730 = vweird.f32 %v645
    %vm731 = vweird.f32 %v725
    %vm732 = vmor %vm730, %vm731
    %v733 = vsel %vm732, %v725, %v729
    %v734 = vand.u32 2147483647, %v645
    %vm735 = vcmp.eq.f32.partialorder %v734, 8.507059e+37
    %v736 = vand.u32 %v645, 2147483648
    %v737 = vor.u32 1.1754944e-38, %v736
    %v738 = vsel %vm735, %v737, %v733
    %v739 = vmul.f32 1.0, %v738
    %v740 = vrcp.pop %v646
    %v741 = vmul.f32 %v646, %v740
    %v742 = vsub.f32 1.0, %v741
    %v743 = vmul.f32 %v740, %v742
    %v744 = vadd.f32 %v740, %v743
    %vm745 = vweird.f32 %v646
    %vm746 = vweird.f32 %v740
    %vm747 = vmor %vm745, %vm746
    %v748 = vsel %vm747, %v740, %v744
    %v749 = vand.u32 2147483647, %v646
    %vm750 = vcmp.eq.f32.partialorder %v749, 8.507059e+37
    %v751 = vand.u32 %v646, 2147483648
    %v752 = vor.u32 1.1754944e-38, %v751
    %v753 = vsel %vm750, %v752, %v748
    %v754 = vmul.f32 1.0, %v753
    %v755 = vrcp.pop %v647
    %v756 = vmul.f32 %v647, %v755
    %v757 = vsub.f32 1.0, %v756
    %v758 = vmul.f32 %v755, %v757
    %v759 = vadd.f32 %v755, %v758
    %vm760 = vweird.f32 %v647
    %vm761 = vweird.f32 %v755
    %vm762 = vmor %vm760, %vm761
    %v763 = vsel %vm762, %v755, %v759
    %v764 = vand.u32 2147483647, %v647
    %vm765 = vcmp.eq.f32.partialorder %v764, 8.507059e+37
    %v766 = vand.u32 %v647, 2147483648
    %v767 = vor.u32 1.1754944e-38, %v766
    %v768 = vsel %vm765, %v767, %v763
    %v769 = vmul.f32 1.0, %v768
    %v770 = vrcp.pop %v648
    %v771 = vmul.f32 %v648, %v770
    %v772 = vsub.f32 1.0, %v771
    %v773 = vmul.f32 %v770, %v772
    %v774 = vadd.f32 %v770, %v773
    %vm775 = vweird.f32 %v648
    %vm776 = vweird.f32 %v770
    %vm777 = vmor %vm775, %vm776
    %v778 = vsel %vm777, %v770, %v774
    %v779 = vand.u32 2147483647, %v648
    %vm780 = vcmp.eq.f32.partialorder %v779, 8.507059e+37
    %v781 = vand.u32 %v648, 2147483648
    %v782 = vor.u32 1.1754944e-38, %v781
    %v783 = vsel %vm780, %v782, %v778
    %v784 = vmul.f32 1.0, %v783
    %v785 = vrcp.pop %v649
    %v786 = vmul.f32 %v649, %v785
    %v787 = vsub.f32 1.0, %v786
    %v788 = vmul.f32 %v785, %v787
    %v789 = vadd.f32 %v785, %v788
    %vm790 = vweird.f32 %v649
    %vm791 = vweird.f32 %v785
    %vm792 = vmor %vm790, %vm791
    %v793 = vsel %vm792, %v785, %v789
    %v794 = vand.u32 2147483647, %v649
    %vm795 = vcmp.eq.f32.partialorder %v794, 8.507059e+37
    %v796 = vand.u32 %v649, 2147483648
    %v797 = vor.u32 1.1754944e-38, %v796
    %v798 = vsel %vm795, %v797, %v793
    %v799 = vmul.f32 1.0, %v798
    %v800 = vrcp.pop %v650
    %v801 = vmul.f32 %v650, %v800
    %v802 = vsub.f32 1.0, %v801
    %v803 = vmul.f32 %v800, %v802
    %v804 = vadd.f32 %v800, %v803
    %vm805 = vweird.f32 %v650
    %vm806 = vweird.f32 %v800
    %vm807 = vmor %vm805, %vm806
    %v808 = vsel %vm807, %v800, %v804
    %v809 = vand.u32 2147483647, %v650
    %vm810 = vcmp.eq.f32.partialorder %v809, 8.507059e+37
    %v811 = vand.u32 %v650, 2147483648
    %v812 = vor.u32 1.1754944e-38, %v811
    %v813 = vsel %vm810, %v812, %v808
    %v814 = vmul.f32 1.0, %v813
    %v815 = vrcp.pop %v651
    %v816 = vmul.f32 %v651, %v815
    %v817 = vsub.f32 1.0, %v816
    %v818 = vmul.f32 %v815, %v817
    %v819 = vadd.f32 %v815, %v818
    %vm820 = vweird.f32 %v651
    %vm821 = vweird.f32 %v815
    %vm822 = vmor %vm820, %vm821
    %v823 = vsel %vm822, %v815, %v819
    %v824 = vand.u32 2147483647, %v651
    %vm825 = vcmp.eq.f32.partialorder %v824, 8.507059e+37
    %v826 = vand.u32 %v651, 2147483648
    %v827 = vor.u32 1.1754944e-38, %v826
    %v828 = vsel %vm825, %v827, %v823
    %v829 = vmul.f32 1.0, %v828
    %v830 = vrcp.pop %v652
    %v831 = vmul.f32 %v652, %v830
    %v832 = vsub.f32 1.0, %v831
    %v833 = vmul.f32 %v830, %v832
    %v834 = vadd.f32 %v830, %v833
    %vm835 = vweird.f32 %v652
    %vm836 = vweird.f32 %v830
    %vm837 = vmor %vm835, %vm836
    %v838 = vsel %vm837, %v830, %v834
    %v839 = vand.u32 2147483647, %v652
    %vm840 = vcmp.eq.f32.partialorder %v839, 8.507059e+37
    %v841 = vand.u32 %v652, 2147483648
    %v842 = vor.u32 1.1754944e-38, %v841
    %v843 = vsel %vm840, %v842, %v838
    %v844 = vmul.f32 1.0, %v843
    %v845 = vrcp.pop %v653
    %v846 = vmul.f32 %v653, %v845
    %v847 = vsub.f32 1.0, %v846
    %v848 = vmul.f32 %v845, %v847
    %v849 = vadd.f32 %v845, %v848
    %vm850 = vweird.f32 %v653
    %vm851 = vweird.f32 %v845
    %vm852 = vmor %vm850, %vm851
    %v853 = vsel %vm852, %v845, %v849
    %v854 = vand.u32 2147483647, %v653
    %vm855 = vcmp.eq.f32.partialorder %v854, 8.507059e+37
    %v856 = vand.u32 %v653, 2147483648
    %v857 = vor.u32 1.1754944e-38, %v856
    %v858 = vsel %vm855, %v857, %v853
    %v859 = vmul.f32 1.0, %v858
    %v860 = vrcp.pop %v654
    %v861 = vmul.f32 %v654, %v860
    %v862 = vsub.f32 1.0, %v861
    %v863 = vmul.f32 %v860, %v862
    %v864 = vadd.f32 %v860, %v863
    %vm865 = vweird.f32 %v654
    %vm866 = vweird.f32 %v860
    %vm867 = vmor %vm865, %vm866
    %v868 = vsel %vm867, %v860, %v864
    %v869 = vand.u32 2147483647, %v654
    %vm870 = vcmp.eq.f32.partialorder %v869, 8.507059e+37
    %v871 = vand.u32 %v654, 2147483648
    %v872 = vor.u32 1.1754944e-38, %v871
    %v873 = vsel %vm870, %v872, %v868
    %v874 = vmul.f32 1.0, %v873
    %v875 = vrcp.pop %v655
    %v876 = vmul.f32 %v655, %v875
    %v877 = vsub.f32 1.0, %v876
    %v878 = vmul.f32 %v875, %v877
    %v879 = vadd.f32 %v875, %v878
    %vm880 = vweird.f32 %v655
    %vm881 = vweird.f32 %v875
    %vm882 = vmor %vm880, %vm881
    %v883 = vsel %vm882, %v875, %v879
    %v884 = vand.u32 2147483647, %v655
    %vm885 = vcmp.eq.f32.partialorder %v884, 8.507059e+37
    %v886 = vand.u32 %v655, 2147483648
    %v887 = vor.u32 1.1754944e-38, %v886
    %v888 = vsel %vm885, %v887, %v883
    %v889 = vmul.f32 1.0, %v888
    %v890 = vrcp.pop %v656
    %v891 = vmul.f32 %v656, %v890
    %v892 = vsub.f32 1.0, %v891
    %v893 = vmul.f32 %v890, %v892
    %v894 = vadd.f32 %v890, %v893
    %vm895 = vweird.f32 %v656
    %vm896 = vweird.f32 %v890
    %vm897 = vmor %vm895, %vm896
    %v898 = vsel %vm897, %v890, %v894
    %v899 = vand.u32 2147483647, %v656
    %vm900 = vcmp.eq.f32.partialorder %v899, 8.507059e+37
    %v901 = vand.u32 %v656, 2147483648
    %v902 = vor.u32 1.1754944e-38, %v901
    %v903 = vsel %vm900, %v902, %v898
    %v904 = vmul.f32 1.0, %v903
    %v905 = vrcp.pop %v657
    %v906 = vmul.f32 %v657, %v905
    %v907 = vsub.f32 1.0, %v906
    %v908 = vmul.f32 %v905, %v907
    %v909 = vadd.f32 %v905, %v908
    %vm910 = vweird.f32 %v657
    %vm911 = vweird.f32 %v905
    %vm912 = vmor %vm910, %vm911
    %v913 = vsel %vm912, %v905, %v909
    %v914 = vand.u32 2147483647, %v657
    %vm915 = vcmp.eq.f32.partialorder %v914, 8.507059e+37
    %v916 = vand.u32 %v657, 2147483648
    %v917 = vor.u32 1.1754944e-38, %v916
    %v918 = vsel %vm915, %v917, %v913
    %v919 = vmul.f32 1.0, %v918
    %v920 = vrcp.pop %v658
    %v921 = vmul.f32 %v658, %v920
    %v922 = vsub.f32 1.0, %v921
    %v923 = vmul.f32 %v920, %v922
    %v924 = vadd.f32 %v920, %v923
    %vm925 = vweird.f32 %v658
    %vm926 = vweird.f32 %v920
    %vm927 = vmor %vm925, %vm926
    %v928 = vsel %vm927, %v920, %v924
    %v929 = vand.u32 2147483647, %v658
    %vm930 = vcmp.eq.f32.partialorder %v929, 8.507059e+37
    %v931 = vand.u32 %v658, 2147483648
    %v932 = vor.u32 1.1754944e-38, %v931
    %v933 = vsel %vm930, %v932, %v928
    %v934 = vmul.f32 1.0, %v933
    %v935 = vrcp.pop %v659
    %v936 = vmul.f32 %v659, %v935
    %v937 = vsub.f32 1.0, %v936
    %v938 = vmul.f32 %v935, %v937
    %v939 = vadd.f32 %v935, %v938
    %vm940 = vweird.f32 %v659
    %vm941 = vweird.f32 %v935
    %vm942 = vmor %vm940, %vm941
    %v943 = vsel %vm942, %v935, %v939
    %v944 = vand.u32 2147483647, %v659
    %vm945 = vcmp.eq.f32.partialorder %v944, 8.507059e+37
    %v946 = vand.u32 %v659, 2147483648
    %v947 = vor.u32 1.1754944e-38, %v946
    %v948 = vsel %vm945, %v947, %v943
    %v949 = vmul.f32 1.0, %v948
    %v950 = vrcp.pop %v660
    %v951 = vmul.f32 %v660, %v950
    %v952 = vsub.f32 1.0, %v951
    %v953 = vmul.f32 %v950, %v952
    %v954 = vadd.f32 %v950, %v953
    %vm955 = vweird.f32 %v660
    %vm956 = vweird.f32 %v950
    %vm957 = vmor %vm955, %vm956
    %v958 = vsel %vm957, %v950, %v954
    %v959 = vand.u32 2147483647, %v660
    %vm960 = vcmp.eq.f32.partialorder %v959, 8.507059e+37
    %v961 = vand.u32 %v660, 2147483648
    %v962 = vor.u32 1.1754944e-38, %v961
    %v963 = vsel %vm960, %v962, %v958
    %v964 = vmul.f32 1.0, %v963
    %v965 = vrcp.pop %v661
    %v966 = vmul.f32 %v661, %v965
    %v967 = vsub.f32 1.0, %v966
    %v968 = vmul.f32 %v965, %v967
    %v969 = vadd.f32 %v965, %v968
    %vm970 = vweird.f32 %v661
    %vm971 = vweird.f32 %v965
    %vm972 = vmor %vm970, %vm971
    %v973 = vsel %vm972, %v965, %v969
    %v974 = vand.u32 2147483647, %v661
    %vm975 = vcmp.eq.f32.partialorder %v974, 8.507059e+37
    %v976 = vand.u32 %v661, 2147483648
    %v977 = vor.u32 1.1754944e-38, %v976
    %v978 = vsel %vm975, %v977, %v973
    %v979 = vmul.f32 1.0, %v978
    %v980 = vrcp.pop %v662
    %v981 = vmul.f32 %v662, %v980
    %v982 = vsub.f32 1.0, %v981
    %v983 = vmul.f32 %v980, %v982
    %v984 = vadd.f32 %v980, %v983
    %vm985 = vweird.f32 %v662
    %vm986 = vweird.f32 %v980
    %vm987 = vmor %vm985, %vm986
    %v988 = vsel %vm987, %v980, %v984
    %v989 = vand.u32 2147483647, %v662
    %vm990 = vcmp.eq.f32.partialorder %v989, 8.507059e+37
    %v991 = vand.u32 %v662, 2147483648
    %v992 = vor.u32 1.1754944e-38, %v991
    %v993 = vsel %vm990, %v992, %v988
    %v994 = vmul.f32 1.0, %v993
    %v995 = vrcp.pop %v663
    %v996 = vmul.f32 %v663, %v995
    %v997 = vsub.f32 1.0, %v996
    %v998 = vmul.f32 %v995, %v997
    %v999 = vadd.f32 %v995, %v998
    %vm1000 = vweird.f32 %v663
    %vm1001 = vweird.f32 %v995
    %vm1002 = vmor %vm1000, %vm1001
    %v1003 = vsel %vm1002, %v995, %v999
    %v1004 = vand.u32 2147483647, %v663
    %vm1005 = vcmp.eq.f32.partialorder %v1004, 8.507059e+37
    %v1006 = vand.u32 %v663, 2147483648
    %v1007 = vor.u32 1.1754944e-38, %v1006
    %v1008 = vsel %vm1005, %v1007, %v1003
    %v1009 = vmul.f32 1.0, %v1008
    %v1010 = vrcp.pop %v664
    %v1011 = vmul.f32 %v664, %v1010
    %v1012 = vsub.f32 1.0, %v1011
    %v1013 = vmul.f32 %v1010, %v1012
    %v1014 = vadd.f32 %v1010, %v1013
    %vm1015 = vweird.f32 %v664
    %vm1016 = vweird.f32 %v1010
    %vm1017 = vmor %vm1015, %vm1016
    %v1018 = vsel %vm1017, %v1010, %v1014
    %v1019 = vand.u32 2147483647, %v664
    %vm1020 = vcmp.eq.f32.partialorder %v1019, 8.507059e+37
    %v1021 = vand.u32 %v664, 2147483648
    %v1022 = vor.u32 1.1754944e-38, %v1021
    %v1023 = vsel %vm1020, %v1022, %v1018
    %v1024 = vmul.f32 1.0, %v1023
    %v1025 = vmul.f32 %v459, %v679
    %v1026 = vmul.f32 %v483, %v694
    %v1027 = vmul.f32 %v507, %v709
    %v1028 = vmul.f32 %v531, %v724
    %v1029 = vmul.f32 %v461, %v739
    %v1030 = vmul.f32 %v485, %v754
    %v1031 = vmul.f32 %v509, %v769
    %v1032 = vmul.f32 %v533, %v784
    %v1033 = vmul.f32 %v464, %v799
    %v1034 = vmul.f32 %v488, %v814
    %v1035 = vmul.f32 %v512, %v829
    %v1036 = vmul.f32 %v536, %v844
    %v1037 = vmul.f32 %v466, %v859
    %v1038 = vmul.f32 %v490, %v874
    %v1039 = vmul.f32 %v514, %v889
    %v1040 = vmul.f32 %v538, %v904
    %v1041 = vmul.f32 %v469, %v919
    %v1042 = vmul.f32 %v493, %v934
    %v1043 = vmul.f32 %v517, %v949
    %v1044 = vmul.f32 %v541, %v964
    %v1045 = vmul.f32 %v471, %v979
    %v1046 = vmul.f32 %v495, %v994
    %v1047 = vmul.f32 %v519, %v1009
    %v1048 = vmul.f32 %v543, %v1024
    %v1049 = vld [vmem:[#allocation3] sm:$0xff]
    %v1050 = vld [vmem:[#allocation3 + $0x8] sm:$0xff]
    %v1051 = vld [vmem:[#allocation3 + $0x10] sm:$0xff]
    %v1052 = vld [vmem:[#allocation3 + $0x18] sm:$0xff]
    %v1053 = vld [vmem:[#allocation3 + $0x20] sm:$0xff]
    %v1054 = vld [vmem:[#allocation3 + $0x28] sm:$0xff]
    %v1055 = vpack.c.bf16 %v1029, %v1025
    %v1056 = vpack.c.bf16 %v1030, %v1026
    %v1057 = vpack.c.bf16 %v1031, %v1027
    %v1058 = vpack.c.bf16 %v1032, %v1028
    %v1059 = vpack.c.bf16 %v1037, %v1033
    %v1060 = vpack.c.bf16 %v1038, %v1034
    %v1061 = vpack.c.bf16 %v1039, %v1035
    %v1062 = vpack.c.bf16 %v1040, %v1036
    %v1063 = vpack.c.bf16 %v1045, %v1041
    %v1064 = vpack.c.bf16 %v1046, %v1042
    %v1065 = vpack.c.bf16 %v1047, %v1043
    %v1066 = vpack.c.bf16 %v1048, %v1044
    %v1067 = vld [vmem:[#allocation4] sm:$0xf]
    %v1068 = vld [vmem:[#allocation4 + $0x4] sm:$0xf]
    %v1069 = vld [vmem:[#allocation4 + $0x8] sm:$0xf]
    %v1070 = vld [vmem:[#allocation4 + $0xc] sm:$0xf]
    %v1071 = vld [vmem:[#allocation4 + $0x10] sm:$0xf]
    %v1072 = vld [vmem:[#allocation4 + $0x14] sm:$0xf]
    %v1073 = vld [vmem:[#allocation4 + $0x18] sm:$0xf]
    %v1074 = vld [vmem:[#allocation4 + $0x1c] sm:$0xf]
    %v1075 = vld [vmem:[#allocation4 + $0x20] sm:$0xf]
    %v1076 = vld [vmem:[#allocation4 + $0x24] sm:$0xf]
    %v1077 = vld [vmem:[#allocation4 + $0x28] sm:$0xf]
    %v1078 = vld [vmem:[#allocation4 + $0x2c] sm:$0xf]
    %v1079 = vld [vmem:[#allocation4 + $0x30] sm:$0xf]
    %v1080 = vld [vmem:[#allocation4 + $0x34] sm:$0xf]
    %v1081 = vld [vmem:[#allocation4 + $0x38] sm:$0xf]
    %v1082 = vld [vmem:[#allocation4 + $0x3c] sm:$0xf]
    %v1083 = vld [vmem:[#allocation4 + $0x40] sm:$0xf]
    %v1084 = vld [vmem:[#allocation4 + $0x44] sm:$0xf]
    %v1085 = vld [vmem:[#allocation4 + $0x48] sm:$0xf]
    %v1086 = vld [vmem:[#allocation4 + $0x4c] sm:$0xf]
    %v1087 = vld [vmem:[#allocation4 + $0x50] sm:$0xf]
    %v1088 = vld [vmem:[#allocation4 + $0x54] sm:$0xf]
    %v1089 = vld [vmem:[#allocation4 + $0x58] sm:$0xf]
    %v1090 = vld [vmem:[#allocation4 + $0x5c] sm:$0xf]
    %v1091 = vld [vmem:[#allocation4 + $0x60] sm:$0xf]
    %v1092 = vld [vmem:[#allocation4 + $0x64] sm:$0xf]
    %v1093 = vld [vmem:[#allocation4 + $0x68] sm:$0xf]
    %v1094 = vld [vmem:[#allocation4 + $0x6c] sm:$0xf]
    %v1095 = vld [vmem:[#allocation4 + $0x70] sm:$0xf]
    %v1096 = vld [vmem:[#allocation4 + $0x74] sm:$0xf]
    %v1097 = vld [vmem:[#allocation4 + $0x78] sm:$0xf]
    %v1098 = vld [vmem:[#allocation4 + $0x7c] sm:$0xf]
    %v1099 = vld [vmem:[#allocation4 + $0x80] sm:$0xf]
    %v1100 = vld [vmem:[#allocation4 + $0x84] sm:$0xf]
    %v1101 = vld [vmem:[#allocation4 + $0x88] sm:$0xf]
    %v1102 = vld [vmem:[#allocation4 + $0x8c] sm:$0xf]
    %v1103 = vld [vmem:[#allocation4 + $0x90] sm:$0xf]
    %v1104 = vld [vmem:[#allocation4 + $0x94] sm:$0xf]
    %v1105 = vld [vmem:[#allocation4 + $0x98] sm:$0xf]
    %v1106 = vld [vmem:[#allocation4 + $0x9c] sm:$0xf]
    %v1107 = vld [vmem:[#allocation4 + $0xa0] sm:$0xf]
    %v1108 = vld [vmem:[#allocation4 + $0xa4] sm:$0xf]
    %v1109 = vld [vmem:[#allocation4 + $0xa8] sm:$0xf]
    %v1110 = vld [vmem:[#allocation4 + $0xac] sm:$0xf]
    %v1111 = vld [vmem:[#allocation4 + $0xb0] sm:$0xf]
    %v1112 = vld [vmem:[#allocation4 + $0xb4] sm:$0xf]
    %v1113 = vld [vmem:[#allocation4 + $0xb8] sm:$0xf]
    %v1114 = vld [vmem:[#allocation4 + $0xbc] sm:$0xf]
    %v1115 = vld [vmem:[#allocation4 + $0xc0] sm:$0xf]
    %v1116 = vld [vmem:[#allocation4 + $0xc4] sm:$0xf]
    %v1117 = vld [vmem:[#allocation4 + $0xc8] sm:$0xf]
    %v1118 = vld [vmem:[#allocation4 + $0xcc] sm:$0xf]
    %v1119 = vld [vmem:[#allocation4 + $0xd0] sm:$0xf]
    %v1120 = vld [vmem:[#allocation4 + $0xd4] sm:$0xf]
    %v1121 = vld [vmem:[#allocation4 + $0xd8] sm:$0xf]
    %v1122 = vld [vmem:[#allocation4 + $0xdc] sm:$0xf]
    %v1123 = vld [vmem:[#allocation4 + $0xe0] sm:$0xf]
    %v1124 = vld [vmem:[#allocation4 + $0xe4] sm:$0xf]
    %v1125 = vld [vmem:[#allocation4 + $0xe8] sm:$0xf]
    %v1126 = vld [vmem:[#allocation4 + $0xec] sm:$0xf]
    %v1127 = vld [vmem:[#allocation4 + $0xf0] sm:$0xf]
    %v1128 = vld [vmem:[#allocation4 + $0xf4] sm:$0xf]
    %v1129 = vld [vmem:[#allocation4 + $0xf8] sm:$0xf]
    %v1130 = vld [vmem:[#allocation4 + $0xfc] sm:$0xf]
    %v1195 = vunpack.c.l.b16 %v1067
    %v1196 = vunpack.c.l.b16 %v1068
    %v1197 = vunpack.c.l.b16 %v1069
    %v1198 = vunpack.c.l.b16 %v1070
    %v1199 = vunpack.c.l.b16 %v1071
    %v1200 = vunpack.c.l.b16 %v1072
    %v1201 = vunpack.c.l.b16 %v1073
    %v1202 = vunpack.c.l.b16 %v1074
    %v1203 = vunpack.c.l.b16 %v1075
    %v1204 = vunpack.c.l.b16 %v1076
    %v1205 = vunpack.c.l.b16 %v1077
    %v1206 = vunpack.c.l.b16 %v1078
    %v1207 = vunpack.c.l.b16 %v1079
    %v1208 = vunpack.c.l.b16 %v1080
    %v1209 = vunpack.c.l.b16 %v1081
    %v1210 = vunpack.c.l.b16 %v1082
    %v1211 = vunpack.c.l.b16 %v1083
    %v1212 = vunpack.c.l.b16 %v1084
    %v1213 = vunpack.c.l.b16 %v1085
    %v1214 = vunpack.c.l.b16 %v1086
    %v1215 = vunpack.c.l.b16 %v1087
    %v1216 = vunpack.c.l.b16 %v1088
    %v1217 = vunpack.c.l.b16 %v1089
    %v1218 = vunpack.c.l.b16 %v1090
    %v1219 = vunpack.c.l.b16 %v1091
    %v1220 = vunpack.c.l.b16 %v1092
    %v1221 = vunpack.c.l.b16 %v1093
    %v1222 = vunpack.c.l.b16 %v1094
    %v1223 = vunpack.c.l.b16 %v1095
    %v1224 = vunpack.c.l.b16 %v1096
    %v1225 = vunpack.c.l.b16 %v1097
    %v1226 = vunpack.c.l.b16 %v1098
    %v1227 = vunpack.c.l.b16 %v1099
    %v1228 = vunpack.c.l.b16 %v1100
    %v1229 = vunpack.c.l.b16 %v1101
    %v1230 = vunpack.c.l.b16 %v1102
    %v1231 = vunpack.c.l.b16 %v1103
    %v1232 = vunpack.c.l.b16 %v1104
    %v1233 = vunpack.c.l.b16 %v1105
    %v1234 = vunpack.c.l.b16 %v1106
    %v1235 = vunpack.c.l.b16 %v1107
    %v1236 = vunpack.c.l.b16 %v1108
    %v1237 = vunpack.c.l.b16 %v1109
    %v1238 = vunpack.c.l.b16 %v1110
    %v1239 = vunpack.c.l.b16 %v1111
    %v1240 = vunpack.c.l.b16 %v1112
    %v1241 = vunpack.c.l.b16 %v1113
    %v1242 = vunpack.c.l.b16 %v1114
    %v1243 = vunpack.c.l.b16 %v1115
    %v1244 = vunpack.c.l.b16 %v1116
    %v1245 = vunpack.c.l.b16 %v1117
    %v1246 = vunpack.c.l.b16 %v1118
    %v1247 = vunpack.c.l.b16 %v1119
    %v1248 = vunpack.c.l.b16 %v1120
    %v1249 = vunpack.c.l.b16 %v1121
    %v1250 = vunpack.c.l.b16 %v1122
    %v1251 = vunpack.c.l.b16 %v1123
    %v1252 = vunpack.c.l.b16 %v1124
    %v1253 = vunpack.c.l.b16 %v1125
    %v1254 = vunpack.c.l.b16 %v1126
    %v1255 = vunpack.c.l.b16 %v1127
    %v1256 = vunpack.c.l.b16 %v1128
    %v1257 = vunpack.c.l.b16 %v1129
    %v1258 = vunpack.c.l.b16 %v1130
    %v1259 = vpack.c.b16 %v1196, %v1195
    %v1260 = vpack.c.b16 %v1198, %v1197
    %v1261 = vpack.c.b16 %v1200, %v1199
    %v1262 = vpack.c.b16 %v1202, %v1201
    %v1263 = vpack.c.b16 %v1204, %v1203
    %v1264 = vpack.c.b16 %v1206, %v1205
    %v1265 = vpack.c.b16 %v1208, %v1207
    %v1266 = vpack.c.b16 %v1210, %v1209
    %v1267 = vpack.c.b16 %v1212, %v1211
    %v1268 = vpack.c.b16 %v1214, %v1213
    %v1269 = vpack.c.b16 %v1216, %v1215
    %v1270 = vpack.c.b16 %v1218, %v1217
    %v1271 = vpack.c.b16 %v1220, %v1219
    %v1272 = vpack.c.b16 %v1222, %v1221
    %v1273 = vpack.c.b16 %v1224, %v1223
    %v1274 = vpack.c.b16 %v1226, %v1225
    %v1275 = vpack.c.b16 %v1228, %v1227
    %v1276 = vpack.c.b16 %v1230, %v1229
    %v1277 = vpack.c.b16 %v1232, %v1231
    %v1278 = vpack.c.b16 %v1234, %v1233
    %v1279 = vpack.c.b16 %v1236, %v1235
    %v1280 = vpack.c.b16 %v1238, %v1237
    %v1281 = vpack.c.b16 %v1240, %v1239
    %v1282 = vpack.c.b16 %v1242, %v1241
    %v1283 = vpack.c.b16 %v1244, %v1243
    %v1284 = vpack.c.b16 %v1246, %v1245
    %v1285 = vpack.c.b16 %v1248, %v1247
    %v1286 = vpack.c.b16 %v1250, %v1249
    %v1287 = vpack.c.b16 %v1252, %v1251
    %v1288 = vpack.c.b16 %v1254, %v1253
    %v1289 = vpack.c.b16 %v1256, %v1255
    %v1290 = vpack.c.b16 %v1258, %v1257
    %1323 = vmatpush.bf16.msra.mxu0 %v1266
    %1324 = vmatpush.bf16.msra.mxu0 %v1265
    %1325 = vmatpush.bf16.msra.mxu0 %v1264
    %1326 = vmatpush.bf16.msra.mxu0 %v1263
    %1327 = vmatpush.bf16.msra.mxu0 %v1262
    %1328 = vmatpush.bf16.msra.mxu0 %v1261
    %1329 = vmatpush.bf16.msra.mxu0 %v1260
    %1330 = vmatpush.bf16.msra.mxu0 %v1259
    %1331 = vmatmul.bf16.gmra.mxu0 %v1055
    %v1332 = vpop.f32.mrf.mxu0
    %v1333 = vadd.f32 0.0, %v1332
    %v1334 = vpop.f32.mrf.mxu0
    %v1335 = vadd.f32 0.0, %v1334
    %1336 = vmatmul.bf16.gmra.mxu0 %v1059
    %v1337 = vpop.f32.mrf.mxu0
    %v1338 = vadd.f32 0.0, %v1337
    %v1339 = vpop.f32.mrf.mxu0
    %v1340 = vadd.f32 0.0, %v1339
    %1341 = vmatmul.bf16.gmra.mxu0 %v1063
    %v1342 = vpop.f32.mrf.mxu0
    %v1343 = vadd.f32 0.0, %v1342
    %v1344 = vpop.f32.mrf.mxu0
    %v1345 = vadd.f32 0.0, %v1344
    %1346 = vdwg.mxu0
    %1347 = vmatpush.bf16.msra.mxu0 %v1274
    %1348 = vmatpush.bf16.msra.mxu0 %v1273
    %1349 = vmatpush.bf16.msra.mxu0 %v1272
    %1350 = vmatpush.bf16.msra.mxu0 %v1271
    %1351 = vmatpush.bf16.msra.mxu0 %v1270
    %1352 = vmatpush.bf16.msra.mxu0 %v1269
    %1353 = vmatpush.bf16.msra.mxu0 %v1268
    %1354 = vmatpush.bf16.msra.mxu0 %v1267
    %1355 = vmatmul.bf16.gmra.mxu0 %v1056
    %v1356 = vpop.f32.mrf.mxu0
    %v1357 = vadd.f32 %v1333, %v1356
    %v1358 = vpop.f32.mrf.mxu0
    %v1359 = vadd.f32 %v1335, %v1358
    %1360 = vmatmul.bf16.gmra.mxu0 %v1060
    %v1361 = vpop.f32.mrf.mxu0
    %v1362 = vadd.f32 %v1338, %v1361
    %v1363 = vpop.f32.mrf.mxu0
    %v1364 = vadd.f32 %v1340, %v1363
    %1365 = vmatmul.bf16.gmra.mxu0 %v1064
    %v1366 = vpop.f32.mrf.mxu0
    %v1367 = vadd.f32 %v1343, %v1366
    %v1368 = vpop.f32.mrf.mxu0
    %v1369 = vadd.f32 %v1345, %v1368
    %1370 = vdwg.mxu0
    %1371 = vmatpush.bf16.msra.mxu0 %v1282
    %1372 = vmatpush.bf16.msra.mxu0 %v1281
    %1373 = vmatpush.bf16.msra.mxu0 %v1280
    %1374 = vmatpush.bf16.msra.mxu0 %v1279
    %1375 = vmatpush.bf16.msra.mxu0 %v1278
    %1376 = vmatpush.bf16.msra.mxu0 %v1277
    %1377 = vmatpush.bf16.msra.mxu0 %v1276
    %1378 = vmatpush.bf16.msra.mxu0 %v1275
    %1379 = vmatmul.bf16.gmra.mxu0 %v1057
    %v1380 = vpop.f32.mrf.mxu0
    %v1381 = vadd.f32 %v1357, %v1380
    %v1382 = vpop.f32.mrf.mxu0
    %v1383 = vadd.f32 %v1359, %v1382
    %1384 = vmatmul.bf16.gmra.mxu0 %v1061
    %v1385 = vpop.f32.mrf.mxu0
    %v1386 = vadd.f32 %v1362, %v1385
    %v1387 = vpop.f32.mrf.mxu0
    %v1388 = vadd.f32 %v1364, %v1387
    %1389 = vmatmul.bf16.gmra.mxu0 %v1065
    %v1390 = vpop.f32.mrf.mxu0
    %v1391 = vadd.f32 %v1367, %v1390
    %v1392 = vpop.f32.mrf.mxu0
    %v1393 = vadd.f32 %v1369, %v1392
    %1394 = vdwg.mxu0
    %1395 = vmatpush.bf16.msra.mxu0 %v1290
    %1396 = vmatpush.bf16.msra.mxu0 %v1289
    %1397 = vmatpush.bf16.msra.mxu0 %v1288
    %1398 = vmatpush.bf16.msra.mxu0 %v1287
    %1399 = vmatpush.bf16.msra.mxu0 %v1286
    %1400 = vmatpush.bf16.msra.mxu0 %v1285
    %1401 = vmatpush.bf16.msra.mxu0 %v1284
    %1402 = vmatpush.bf16.msra.mxu0 %v1283
    %1403 = vmatmul.bf16.gmra.mxu0 %v1058
    %v1404 = vpop.f32.mrf.mxu0
    %v1405 = vadd.f32 %v1381, %v1404
    %v1406 = vpop.f32.mrf.mxu0
    %v1407 = vadd.f32 %v1383, %v1406
    %1408 = vmatmul.bf16.gmra.mxu0 %v1062
    %v1409 = vpop.f32.mrf.mxu0
    %v1410 = vadd.f32 %v1386, %v1409
    %v1411 = vpop.f32.mrf.mxu0
    %v1412 = vadd.f32 %v1388, %v1411
    %1413 = vmatmul.bf16.gmra.mxu0 %v1066
    %v1414 = vpop.f32.mrf.mxu0
    %v1415 = vadd.f32 %v1391, %v1414
    %v1416 = vpop.f32.mrf.mxu0
    %v1417 = vadd.f32 %v1393, %v1416
    %1418 = vdwg.mxu0
    %v1419 = vadd.f32 %v1049, %v1405
    %v1420 = vadd.f32 %v1050, %v1407
    %v1421 = vadd.f32 %v1051, %v1410
    %v1422 = vadd.f32 %v1052, %v1412
    %v1423 = vadd.f32 %v1053, %v1415
    %v1424 = vadd.f32 %v1054, %v1417
    %1425 = vst [vmem:[#allocation3] sm:$0xff] %v1419
    %1426 = vst [vmem:[#allocation3 + $0x8] sm:$0xff] %v1420
    %1427 = vst [vmem:[#allocation3 + $0x10] sm:$0xff] %v1421
    %1428 = vst [vmem:[#allocation3 + $0x18] sm:$0xff] %v1422
    %1429 = vst [vmem:[#allocation3 + $0x20] sm:$0xff] %v1423
    %1430 = vst [vmem:[#allocation3 + $0x28] sm:$0xff] %v1424
    // Predicated region
    $region38: #{_lambda_.17} parent=1 // pred_check
      %p1431 = pneg %p42
    $region39: #{_lambda_.17} parent=1 // pred_check_branch
      %1433 = sbr.rel (%p1431) target = $region41
    $region40: #{_lambda_.17} parent=1 // pred_region
      %v1434 = vld [vmem:[#allocation3] sm:$0xff]
      %v1435 = vld [vmem:[#allocation3 + $0x8] sm:$0xff]
      %v1436 = vld [vmem:[#allocation3 + $0x10] sm:$0xff]
      %v1437 = vld [vmem:[#allocation3 + $0x18] sm:$0xff]
      %v1438 = vld [vmem:[#allocation3 + $0x20] sm:$0xff]
      %v1439 = vld [vmem:[#allocation3 + $0x28] sm:$0xff]
      %v1440 = vld [vmem:[%s6] sm:$0x1]
      %v1442 = vperm.slane %v1440, 0
      %v1444 = vadd.f32 %v1434, %v1442
      %v1445 = vadd.f32 %v1435, %v1442
      %v1446 = vadd.f32 %v1436, %v1442
      %v1447 = vadd.f32 %v1437, %v1442
      %v1448 = vadd.f32 %v1438, %v1442
      %v1449 = vadd.f32 %v1439, %v1442
      %v1450 = vld [vmem:[%s0] sm:$0xf]
      %v1451 = vld [vmem:[%s0 + $0x4] sm:$0xf]
      %v1452 = vld [vmem:[%s0 + $0x8] sm:$0xf]
      %v1453 = vld [vmem:[%s0 + $0xc] sm:$0xf]
      %v1454 = vld [vmem:[%s0 + $0x10] sm:$0xf]
      %v1455 = vld [vmem:[%s0 + $0x14] sm:$0xf]
      %v1456 = vunpack.c.l.bf16 %v1450
      %v1457 = vunpack.c.l.bf16 %v1451
      %v1458 = vunpack.c.l.bf16 %v1452
      %v1459 = vunpack.c.l.bf16 %v1453
      %v1460 = vunpack.c.l.bf16 %v1454
      %v1461 = vunpack.c.l.bf16 %v1455
      %v1462 = vadd.f32 %v1444, %v1456
      %v1463 = vadd.f32 %v1445, %v1457
      %v1464 = vadd.f32 %v1446, %v1458
      %v1465 = vadd.f32 %v1447, %v1459
      %v1466 = vadd.f32 %v1448, %v1460
      %v1467 = vadd.f32 %v1449, %v1461
      %v1468 = vpack.c.bf16 %v1462, %v1462
      %v1469 = vpack.c.bf16 %v1463, %v1463
      %v1470 = vpack.c.bf16 %v1464, %v1464
      %v1471 = vpack.c.bf16 %v1465, %v1465
      %v1472 = vpack.c.bf16 %v1466, %v1466
      %v1473 = vpack.c.bf16 %v1467, %v1467
      %1474 = vst [vmem:[%s7] sm:$0xf] %v1468
      %1475 = vst [vmem:[%s7 + $0x4] sm:$0xf] %v1469
      %1476 = vst [vmem:[%s7 + $0x8] sm:$0xf] %v1470
      %1477 = vst [vmem:[%s7 + $0xc] sm:$0xf] %v1471
      %1478 = vst [vmem:[%s7 + $0x10] sm:$0xf] %v1472
      %1479 = vst [vmem:[%s7 + $0x14] sm:$0xf] %v1473
    $region41: #{_lambda_.17} parent=1 // pred_fallthru
      _
    // Predicated region
    $region42: #{_lambda_.17} parent=1 // pred_check
      _
    $region43: #{_lambda_.17} parent=1 // pred_check_branch
      %1481 = sbr.rel (0) target = $region45
    $region44: #{_lambda_.17} parent=1 // pred_region
      _
    $region45: #{_lambda_.17} parent=1 // pred_fallthru
      _
    // Predicated region
    $region46: #{_lambda_.17} parent=1 // pred_check
      _
    $region47: #{_lambda_.17} parent=1 // pred_check_branch
      %1483 = sbr.rel (0) target = $region49
    $region48: #{_lambda_.17} parent=1 // pred_region
      _
    $region49: #{_lambda_.17} parent=1 // pred_fallthru
      _
    %1484 = vsyncpa [#allocation5], 1

// kernel: _lambda_.23
$region0: #{_lambda_.23}
  #allocation0 [shape = 'u32[]', space=smem, size = 0x4, offset = 0x4, fixed_abs, tag = 'smem constant byte address 0x4 - core index']
  #allocation1 [shape = 'u32[72,128]{1,0:T(1,128)}', space=vmem, size = 0x9000, scoped, tag = 'internal scratch']
  %s0 = inlined_call_operand.vmem [shape: f32[2,64], index: 0, kind: input, shape index: {}]
  %s1 = inlined_call_operand.hbm [shape: bf16[64,8], index: 1, kind: input, shape index: {}]
  %s2 = inlined_call_operand.hbm [shape: f32[2,8], index: 2, kind: output, shape index: {}]
  %s3 = sld [smem:[#allocation0]]
  $region22: #{_lambda_.23} parent=0
    _
  %s5 = ssub.s32 1, %s3
  %s6 = scalar_select 0, %s5, %s3
  $region1: #{_lambda_.23} parent=0
    #allocation2 [shape = 'u8[16384]{0}', space=vmem, size = 0x4000, scoped, tag = 'input window, operand 1, single buffered']
    #allocation3 [shape = 's32[1]{0}', space=sflag, size = 0x4, scoped, tag = 'scoped memory for _lambda_.23']
    #allocation4 [shape = 's32[1]{0}', space=sflag, size = 0x4, scoped, tag = 'scoped memory for _lambda_.23']
    #allocation5 [shape = 'u8[1024]{0}', space=vmem, size = 0x400, scoped, tag = 'output window, operand 0, single buffered']
    %7 = vsyncpa [#allocation3], 0
    %8 = vsyncpa [#allocation4], 0
    // Predicated region
    $region2: #{_lambda_.23} parent=1 // pred_check
      _
    $region3: #{_lambda_.23} parent=1 // pred_check_branch
      %10 = sbr.rel (0) target = $region5
    $region4: #{_lambda_.23} parent=1 // pred_region
      _
    $region5: #{_lambda_.23} parent=1 // pred_fallthru
      _
    // Predicated region
    $region6: #{_lambda_.23} parent=1 // pred_check
      _
    $region7: #{_lambda_.23} parent=1 // pred_check_branch
      %12 = sbr.rel (0) target = $region9
    $region8: #{_lambda_.23} parent=1 // pred_region
      %14 = vsyncadd [#allocation3], 0
      %s15 = sshll.u32 %s1, 4
      %s16 = int_to_ptr.hbm [resolvable:$true] %s15
      %s17 = sshll.u32 [#allocation2], 4
      %s18 = int_to_ptr.vmem [resolvable:$true] %s17
      %23 = dma.hbm_to_vmem [thread:$0]  %s16, 512, %s18, [#allocation3], 64, 64, 4
    $region9: #{_lambda_.23} parent=1 // pred_fallthru
      _
    // Predicated region
    $region10: #{_lambda_.23} parent=1 // pred_check
      _
    $region11: #{_lambda_.23} parent=1 // pred_check_branch
      %25 = sbr.rel (0) target = $region13
    $region12: #{_lambda_.23} parent=1 // pred_region
      %27 = dma.done [#allocation3], 512
    $region13: #{_lambda_.23} parent=1 // pred_fallthru
      _
    %v29 = vld [vmem:[%s0] sm:$0x3]
    %v30 = vmul.f32 %v29, %v29
    %vm31 = vcmask 517120
    %v32 = vsel %vm31, %v30, 0.0
    %33 = vadd.xlane.f32.xlu0 %v32
    %v34 = vpop.xlane.xlu0 %33
    %v35 = vmax.f32 %v34, 1e-24
    %v36 = vrsqrt.pop %v35
    %v37 = vmul.f32 %v36, %v35
    %v38 = vmul.f32 %v37, %v36
    %v39 = vmul.f32 0.5, %v38
    %v40 = vsub.f32 1.5, %v39
    %v41 = vmul.f32 %v36, %v40
    %vm42 = vweird.f32 %v35
    %vm43 = vweird.f32 %v36
    %vm44 = vmor %vm42, %vm43
    %v45 = vsel %vm44, %v36, %v41
    %v46 = vmul.f32 %v29, %v45
    %v47 = vpack.c.bf16 %v46, %v46
    %v48 = vld [vmem:[#allocation2] sm:$0xf]
    %v49 = vld [vmem:[#allocation2 + $0x4] sm:$0xf]
    %v50 = vld [vmem:[#allocation2 + $0x8] sm:$0xf]
    %v51 = vld [vmem:[#allocation2 + $0xc] sm:$0xf]
    %v52 = vld [vmem:[#allocation2 + $0x10] sm:$0xf]
    %v53 = vld [vmem:[#allocation2 + $0x14] sm:$0xf]
    %v54 = vld [vmem:[#allocation2 + $0x18] sm:$0xf]
    %v55 = vld [vmem:[#allocation2 + $0x1c] sm:$0xf]
    %v64 = vunpack.c.l.b16 %v48
    %v65 = vunpack.c.l.b16 %v49
    %v66 = vunpack.c.l.b16 %v50
    %v67 = vunpack.c.l.b16 %v51
    %v68 = vunpack.c.l.b16 %v52
    %v69 = vunpack.c.l.b16 %v53
    %v70 = vunpack.c.l.b16 %v54
    %v71 = vunpack.c.l.b16 %v55
    %v72 = vpack.c.b16 %v65, %v64
    %v73 = vpack.c.b16 %v67, %v66
    %v74 = vpack.c.b16 %v69, %v68
    %v75 = vpack.c.b16 %v71, %v70
    %vm80 = vcmask 523264
    %v82 = vsel %vm80, %v47, 0
    %84 = vmatpush.bf16.msra.mxu0 0
    %85 = vmatpush.bf16.msra.mxu0 0
    %86 = vmatpush.bf16.msra.mxu0 0
    %87 = vmatpush.bf16.msra.mxu0 0
    %88 = vmatpush.bf16.msra.mxu0 %v75
    %89 = vmatpush.bf16.msra.mxu0 %v74
    %90 = vmatpush.bf16.msra.mxu0 %v73
    %91 = vmatpush.bf16.msra.mxu0 %v72
    %92 = vmatmul.bf16.gmra.mxu0 %v82
    %v93 = vpop.f32.mrf.mxu0
    %v94 = vadd.f32 0.0, %v93
    %v95 = vpop.f32.mrf.mxu0
    %96 = vdwg.mxu0
    %v97 = vmul.f32 %v94, 14.285714
    %vm98 = vcmask 58368
    %99 = vst.msk [vmem:[#allocation5] sm:$0x3] %vm98, %v97
    // Predicated region
    $region14: #{_lambda_.23} parent=1 // pred_check
      _
    $region15: #{_lambda_.23} parent=1 // pred_check_branch
      %101 = sbr.rel (0) target = $region17
    $region16: #{_lambda_.23} parent=1 // pred_region
      %103 = vsyncadd [#allocation4], 0
      %s105 = sshll.u32 [#allocation5], 4
      %s106 = int_to_ptr.vmem [resolvable:$true] %s105
      %s107 = sshll.u32 %s2, 4
      %s108 = int_to_ptr.hbm [resolvable:$true] %s107
      %110 = dma.vmem_to_hbm [thread:$0]  %s106, 32, %s108, [#allocation4]
    $region17: #{_lambda_.23} parent=1 // pred_fallthru
      _
    // Predicated region
    $region18: #{_lambda_.23} parent=1 // pred_check
      _
    $region19: #{_lambda_.23} parent=1 // pred_check_branch
      %112 = sbr.rel (0) target = $region21
    $region20: #{_lambda_.23} parent=1 // pred_region
      %114 = dma.done [#allocation4], 32
    $region21: #{_lambda_.23} parent=1 // pred_fallthru
      _
    %115 = vsyncpa [#allocation3], 1
    %116 = vsyncpa [#allocation4], 1

// kernel: _lambda_.21
$region0: #{_lambda_.21}
  #allocation0 [shape = 'u32[]', space=smem, size = 0x4, offset = 0x4, fixed_abs, tag = 'smem constant byte address 0x4 - core index']
  #allocation1 [shape = 'u32[72,128]{1,0:T(1,128)}', space=vmem, size = 0x9000, scoped, tag = 'internal scratch']
  #allocation2 [shape = 'bf16[48,128]{1,0:T(8,128)(2,1)}', space=vmem, size = 0x3000, scoped, tag = 'scratch operand']
  #allocation3 [shape = 'f32[48,128]{1,0:T(8,128)}', space=vmem, size = 0x6000, scoped, tag = 'scratch operand']
  %s0 = inlined_call_operand.vmem [shape: bf16[48,128], index: 0, kind: input, shape index: {}]
  %s1 = inlined_call_operand.vmem [shape: f32[1,128], index: 1, kind: input, shape index: {}]
  %s2 = inlined_call_operand.vmem [shape: f32[1,128], index: 2, kind: input, shape index: {}, may-alias: {2,6}]
  %s3 = inlined_call_operand.vmem [shape: bf16[128,512], index: 3, kind: input, shape index: {}]
  %s4 = inlined_call_operand.vmem [shape: f32[1,512], index: 4, kind: input, shape index: {}]
  %s5 = inlined_call_operand.vmem [shape: bf16[512,128], index: 5, kind: input, shape index: {}]
  %s6 = inlined_call_operand.vmem [shape: f32[1,128], index: 6, kind: input, shape index: {}, may-alias: {2,6}]
  %s7 = inlined_call_operand.vmem [shape: bf16[48,128], index: 7, kind: output, shape index: {}]
  %s8 = sld [smem:[#allocation0]]
  $region46: #{_lambda_.21} parent=0
    _
  %s10 = ssub.s32 1, %s8
  %s11 = scalar_select 0, %s10, %s8
  // Predicated region
  $region2: #{_lambda_.21} parent=0 // pred_check
    _
  $region3: #{_lambda_.21} parent=0 // pred_check_branch
    %13 = sbr.rel (0) target = $region5
  $region4: #{_lambda_.21} parent=0 // pred_region
    _
  $region5: #{_lambda_.21} parent=0 // pred_fallthru
    _
  // Predicated region
  $region6: #{_lambda_.21} parent=0 // pred_check
    _
  $region7: #{_lambda_.21} parent=0 // pred_check_branch
    %15 = sbr.rel (0) target = $region9
  $region8: #{_lambda_.21} parent=0 // pred_region
    _
  $region9: #{_lambda_.21} parent=0 // pred_fallthru
    _
  // Predicated region
  $region10: #{_lambda_.21} parent=0 // pred_check
    _
  $region11: #{_lambda_.21} parent=0 // pred_check_branch
    %17 = sbr.rel (0) target = $region13
  $region12: #{_lambda_.21} parent=0 // pred_region
    _
  $region13: #{_lambda_.21} parent=0 // pred_fallthru
    _
  // Predicated region
  $region14: #{_lambda_.21} parent=0 // pred_check
    _
  $region15: #{_lambda_.21} parent=0 // pred_check_branch
    %19 = sbr.rel (0) target = $region17
  $region16: #{_lambda_.21} parent=0 // pred_region
    _
  $region17: #{_lambda_.21} parent=0 // pred_fallthru
    _
  // Predicated region
  $region18: #{_lambda_.21} parent=0 // pred_check
    _
  $region19: #{_lambda_.21} parent=0 // pred_check_branch
    %21 = sbr.rel (0) target = $region21
  $region20: #{_lambda_.21} parent=0 // pred_region
    _
  $region21: #{_lambda_.21} parent=0 // pred_fallthru
    _
  // Predicated region
  $region22: #{_lambda_.21} parent=0 // pred_check
    _
  $region23: #{_lambda_.21} parent=0 // pred_check_branch
    %23 = sbr.rel (0) target = $region25
  $region24: #{_lambda_.21} parent=0 // pred_region
    _
  $region25: #{_lambda_.21} parent=0 // pred_fallthru
    _
  // Predicated region
  $region26: #{_lambda_.21} parent=0 // pred_check
    _
  $region27: #{_lambda_.21} parent=0 // pred_check_branch
    %25 = sbr.rel (0) target = $region29
  $region28: #{_lambda_.21} parent=0 // pred_region
    _
  $region29: #{_lambda_.21} parent=0 // pred_fallthru
    _
  %p26 = scmp.eq.s32.totalorder 0, 0
  // Predicated region
  $region30: #{_lambda_.21} parent=0 // pred_check
    %p27 = pneg %p26
  $region31: #{_lambda_.21} parent=0 // pred_check_branch
    %29 = sbr.rel (%p27) target = $region33
  $region32: #{_lambda_.21} parent=0 // pred_region
    %v30 = vld [vmem:[%s0] sm:$0xf]
    %v31 = vld [vmem:[%s0 + $0x4] sm:$0xf]
    %v32 = vld [vmem:[%s0 + $0x8] sm:$0xf]
    %v33 = vld [vmem:[%s0 + $0xc] sm:$0xf]
    %v34 = vld [vmem:[%s0 + $0x10] sm:$0xf]
    %v35 = vld [vmem:[%s0 + $0x14] sm:$0xf]
    %v36 = vunpack.c.l.bf16 %v30
    %v37 = vunpack.c.l.bf16 %v31
    %v38 = vunpack.c.l.bf16 %v32
    %v39 = vunpack.c.l.bf16 %v33
    %v40 = vunpack.c.l.bf16 %v34
    %v41 = vunpack.c.l.bf16 %v35
    %42 = vadd.xlane.f32.xlu0 %v36
    %v43 = vpop.xlane.xlu0 %42
    %44 = vadd.xlane.f32.xlu0 %v37
    %v45 = vpop.xlane.xlu0 %44
    %46 = vadd.xlane.f32.xlu0 %v38
    %v47 = vpop.xlane.xlu0 %46
    %48 = vadd.xlane.f32.xlu0 %v39
    %v49 = vpop.xlane.xlu0 %48
    %50 = vadd.xlane.f32.xlu0 %v40
    %v51 = vpop.xlane.xlu0 %50
    %52 = vadd.xlane.f32.xlu0 %v41
    %v53 = vpop.xlane.xlu0 %52
    %v54 = vrcp.pop 128.0
    %v55 = vmul.f32 128.0, %v54
    %v56 = vsub.f32 1.0, %v55
    %v57 = vmul.f32 %v54, %v56
    %v58 = vadd.f32 %v54, %v57
    %vm59 = vweird.f32 %v54
    %v60 = vsel %vm59, %v54, %v58
    %v61 = vmul.f32 %v43, %v60
    %v62 = vmul.f32 %v45, %v60
    %v63 = vmul.f32 %v47, %v60
    %v64 = vmul.f32 %v49, %v60
    %v65 = vmul.f32 %v51, %v60
    %v66 = vmul.f32 %v53, %v60
    %v67 = vsub.f32 %v36, %v61
    %v68 = vsub.f32 %v37, %v62
    %v69 = vsub.f32 %v38, %v63
    %v70 = vsub.f32 %v39, %v64
    %v71 = vsub.f32 %v40, %v65
    %v72 = vsub.f32 %v41, %v66
    %v73 = vmul.f32 %v67, %v67
    %v74 = vmul.f32 %v68, %v68
    %v75 = vmul.f32 %v69, %v69
    %v76 = vmul.f32 %v70, %v70
    %v77 = vmul.f32 %v71, %v71
    %v78 = vmul.f32 %v72, %v72
    %79 = vadd.xlane.f32.xlu0 %v73
    %v80 = vpop.xlane.xlu0 %79
    %81 = vadd.xlane.f32.xlu0 %v74
    %v82 = vpop.xlane.xlu0 %81
    %83 = vadd.xlane.f32.xlu0 %v75
    %v84 = vpop.xlane.xlu0 %83
    %85 = vadd.xlane.f32.xlu0 %v76
    %v86 = vpop.xlane.xlu0 %85
    %87 = vadd.xlane.f32.xlu0 %v77
    %v88 = vpop.xlane.xlu0 %87
    %89 = vadd.xlane.f32.xlu0 %v78
    %v90 = vpop.xlane.xlu0 %89
    %v91 = vmul.f32 %v80, %v60
    %v92 = vmul.f32 %v82, %v60
    %v93 = vmul.f32 %v84, %v60
    %v94 = vmul.f32 %v86, %v60
    %v95 = vmul.f32 %v88, %v60
    %v96 = vmul.f32 %v90, %v60
    %v97 = vadd.f32 %v91, 1e-05
    %v98 = vadd.f32 %v92, 1e-05
    %v99 = vadd.f32 %v93, 1e-05
    %v100 = vadd.f32 %v94, 1e-05
    %v101 = vadd.f32 %v95, 1e-05
    %v102 = vadd.f32 %v96, 1e-05
    %v103 = vrsqrt.pop %v97
    %v104 = vmul.f32 %v103, %v97
    %v105 = vmul.f32 %v104, %v103
    %v106 = vmul.f32 0.5, %v105
    %v107 = vsub.f32 1.5, %v106
    %v108 = vmul.f32 %v103, %v107
    %vm109 = vweird.f32 %v97
    %vm110 = vweird.f32 %v103
    %vm111 = vmor %vm109, %vm110
    %v112 = vsel %vm111, %v103, %v108
    %v113 = vrsqrt.pop %v98
    %v114 = vmul.f32 %v113, %v98
    %v115 = vmul.f32 %v114, %v113
    %v116 = vmul.f32 0.5, %v115
    %v117 = vsub.f32 1.5, %v116
    %v118 = vmul.f32 %v113, %v117
    %vm119 = vweird.f32 %v98
    %vm120 = vweird.f32 %v113
    %vm121 = vmor %vm119, %vm120
    %v122 = vsel %vm121, %v113, %v118
    %v123 = vrsqrt.pop %v99
    %v124 = vmul.f32 %v123, %v99
    %v125 = vmul.f32 %v124, %v123
    %v126 = vmul.f32 0.5, %v125
    %v127 = vsub.f32 1.5, %v126
    %v128 = vmul.f32 %v123, %v127
    %vm129 = vweird.f32 %v99
    %vm130 = vweird.f32 %v123
    %vm131 = vmor %vm129, %vm130
    %v132 = vsel %vm131, %v123, %v128
    %v133 = vrsqrt.pop %v100
    %v134 = vmul.f32 %v133, %v100
    %v135 = vmul.f32 %v134, %v133
    %v136 = vmul.f32 0.5, %v135
    %v137 = vsub.f32 1.5, %v136
    %v138 = vmul.f32 %v133, %v137
    %vm139 = vweird.f32 %v100
    %vm140 = vweird.f32 %v133
    %vm141 = vmor %vm139, %vm140
    %v142 = vsel %vm141, %v133, %v138
    %v143 = vrsqrt.pop %v101
    %v144 = vmul.f32 %v143, %v101
    %v145 = vmul.f32 %v144, %v143
    %v146 = vmul.f32 0.5, %v145
    %v147 = vsub.f32 1.5, %v146
    %v148 = vmul.f32 %v143, %v147
    %vm149 = vweird.f32 %v101
    %vm150 = vweird.f32 %v143
    %vm151 = vmor %vm149, %vm150
    %v152 = vsel %vm151, %v143, %v148
    %v153 = vrsqrt.pop %v102
    %v154 = vmul.f32 %v153, %v102
    %v155 = vmul.f32 %v154, %v153
    %v156 = vmul.f32 0.5, %v155
    %v157 = vsub.f32 1.5, %v156
    %v158 = vmul.f32 %v153, %v157
    %vm159 = vweird.f32 %v102
    %vm160 = vweird.f32 %v153
    %vm161 = vmor %vm159, %vm160
    %v162 = vsel %vm161, %v153, %v158
    %v163 = vmul.f32 %v67, %v112
    %v164 = vmul.f32 %v68, %v122
    %v165 = vmul.f32 %v69, %v132
    %v166 = vmul.f32 %v70, %v142
    %v167 = vmul.f32 %v71, %v152
    %v168 = vmul.f32 %v72, %v162
    %v169 = vld [vmem:[%s1] sm:$0x1]
    %v171 = vperm.slane %v169, 0
    %v173 = vmul.f32 %v163, %v171
    %v174 = vmul.f32 %v164, %v171
    %v175 = vmul.f32 %v165, %v171
    %v176 = vmul.f32 %v166, %v171
    %v177 = vmul.f32 %v167, %v171
    %v178 = vmul.f32 %v168, %v171
    %v179 = vld [vmem:[%s2] sm:$0x1]
    %v181 = vperm.slane %v179, 0
    %v183 = vadd.f32 %v173, %v181
    %v184 = vadd.f32 %v174, %v181
    %v185 = vadd.f32 %v175, %v181
    %v186 = vadd.f32 %v176, %v181
    %v187 = vadd.f32 %v177, %v181
    %v188 = vadd.f32 %v178, %v181
    %v189 = vpack.c.bf16 %v183, %v183
    %v190 = vpack.c.bf16 %v184, %v184
    %v191 = vpack.c.bf16 %v185, %v185
    %v192 = vpack.c.bf16 %v186, %v186
    %v193 = vpack.c.bf16 %v187, %v187
    %v194 = vpack.c.bf16 %v188, %v188
    %195 = vst [vmem:[#allocation2] sm:$0xf] %v189
    %196 = vst [vmem:[#allocation2 + $0x4] sm:$0xf] %v190
    %197 = vst [vmem:[#allocation2 + $0x8] sm:$0xf] %v191
    %198 = vst [vmem:[#allocation2 + $0xc] sm:$0xf] %v192
    %199 = vst [vmem:[#allocation2 + $0x10] sm:$0xf] %v193
    %200 = vst [vmem:[#allocation2 + $0x14] sm:$0xf] %v194
    %201 = vst [vmem:[#allocation3] sm:$0xff] 0.0
    %202 = vst [vmem:[#allocation3 + $0x8] sm:$0xff] 0.0
    %203 = vst [vmem:[#allocation3 + $0x10] sm:$0xff] 0.0
    %204 = vst [vmem:[#allocation3 + $0x18] sm:$0xff] 0.0
    %205 = vst [vmem:[#allocation3 + $0x20] sm:$0xff] 0.0
    %206 = vst [vmem:[#allocation3 + $0x28] sm:$0xff] 0.0
  $region33: #{_lambda_.21} parent=0 // pred_fallthru
    _
  %v207 = vld [vmem:[#allocation2] sm:$0xf]
  %v208 = vld [vmem:[#allocation2 + $0x4] sm:$0xf]
  %v209 = vld [vmem:[#allocation2 + $0x8] sm:$0xf]
  %v210 = vld [vmem:[#allocation2 + $0xc] sm:$0xf]
  %v211 = vld [vmem:[#allocation2 + $0x10] sm:$0xf]
  %v212 = vld [vmem:[#allocation2 + $0x14] sm:$0xf]
  %v213 = vld [vmem:[%s3] sm:$0xff]
  %v214 = vld [vmem:[%s3 + $0x8] sm:$0xff]
  %v215 = vld [vmem:[%s3 + $0x10] sm:$0xff]
  %v216 = vld [vmem:[%s3 + $0x18] sm:$0xff]
  %v217 = vld [vmem:[%s3 + $0x20] sm:$0xff]
  %v218 = vld [vmem:[%s3 + $0x28] sm:$0xff]
  %v219 = vld [vmem:[%s3 + $0x30] sm:$0xff]
  %v220 = vld [vmem:[%s3 + $0x38] sm:$0xff]
  %v221 = vld [vmem:[%s3 + $0x40] sm:$0xff]
  %v222 = vld [vmem:[%s3 + $0x48] sm:$0xff]
  %v223 = vld [vmem:[%s3 + $0x50] sm:$0xff]
  %v224 = vld [vmem:[%s3 + $0x58] sm:$0xff]
  %v225 = vld [vmem:[%s3 + $0x60] sm:$0xff]
  %v226 = vld [vmem:[%s3 + $0x68] sm:$0xff]
  %v227 = vld [vmem:[%s3 + $0x70] sm:$0xff]
  %v228 = vld [vmem:[%s3 + $0x78] sm:$0xff]
  %v229 = vld [vmem:[%s3 + $0x80] sm:$0xff]
  %v230 = vld [vmem:[%s3 + $0x88] sm:$0xff]
  %v231 = vld [vmem:[%s3 + $0x90] sm:$0xff]
  %v232 = vld [vmem:[%s3 + $0x98] sm:$0xff]
  %v233 = vld [vmem:[%s3 + $0xa0] sm:$0xff]
  %v234 = vld [vmem:[%s3 + $0xa8] sm:$0xff]
  %v235 = vld [vmem:[%s3 + $0xb0] sm:$0xff]
  %v236 = vld [vmem:[%s3 + $0xb8] sm:$0xff]
  %v237 = vld [vmem:[%s3 + $0xc0] sm:$0xff]
  %v238 = vld [vmem:[%s3 + $0xc8] sm:$0xff]
  %v239 = vld [vmem:[%s3 + $0xd0] sm:$0xff]
  %v240 = vld [vmem:[%s3 + $0xd8] sm:$0xff]
  %v241 = vld [vmem:[%s3 + $0xe0] sm:$0xff]
  %v242 = vld [vmem:[%s3 + $0xe8] sm:$0xff]
  %v243 = vld [vmem:[%s3 + $0xf0] sm:$0xff]
  %v244 = vld [vmem:[%s3 + $0xf8] sm:$0xff]
  %v245 = vld [vmem:[%s4] sm:$0xf]
  %v247 = vperm.slane %v245, 0
  %v248 = vperm.slane %v245, 1
  %v249 = vperm.slane %v245, 2
  %v250 = vperm.slane %v245, 3
  %v261 = vunpack.c.l.b16 %v207
  %v262 = vunpack.c.l.b16 %v208
  %v263 = vunpack.c.l.b16 %v209
  %v264 = vunpack.c.l.b16 %v210
  %v265 = vunpack.c.l.b16 %v211
  %v266 = vunpack.c.l.b16 %v212
  %v267 = vpack.c.b16 %v262, %v261
  %v268 = vpack.c.b16 %v264, %v263
  %v269 = vpack.c.b16 %v266, %v265
  %v305 = vunpack.c.l.b16 %v213
  %v306 = vunpack.c.h.b16 %v213
  %v307 = vunpack.c.l.b16 %v214
  %v308 = vunpack.c.h.b16 %v214
  %v309 = vunpack.c.l.b16 %v215
  %v310 = vunpack.c.h.b16 %v215
  %v311 = vunpack.c.l.b16 %v216
  %v312 = vunpack.c.h.b16 %v216
  %v313 = vunpack.c.l.b16 %v217
  %v314 = vunpack.c.h.b16 %v217
  %v315 = vunpack.c.l.b16 %v218
  %v316 = vunpack.c.h.b16 %v218
  %v317 = vunpack.c.l.b16 %v219
  %v318 = vunpack.c.h.b16 %v219
  %v319 = vunpack.c.l.b16 %v220
  %v320 = vunpack.c.h.b16 %v220
  %v321 = vunpack.c.l.b16 %v221
  %v322 = vunpack.c.h.b16 %v221
  %v323 = vunpack.c.l.b16 %v222
  %v324 = vunpack.c.h.b16 %v222
  %v325 = vunpack.c.l.b16 %v223
  %v326 = vunpack.c.h.b16 %v223
  %v327 = vunpack.c.l.b16 %v224
  %v328 = vunpack.c.h.b16 %v224
  %v329 = vunpack.c.l.b16 %v225
  %v330 = vunpack.c.h.b16 %v225
  %v331 = vunpack.c.l.b16 %v226
  %v332 = vunpack.c.h.b16 %v226
  %v333 = vunpack.c.l.b16 %v227
  %v334 = vunpack.c.h.b16 %v227
  %v335 = vunpack.c.l.b16 %v228
  %v336 = vunpack.c.h.b16 %v228
  %v337 = vunpack.c.l.b16 %v229
  %v338 = vunpack.c.h.b16 %v229
  %v339 = vunpack.c.l.b16 %v230
  %v340 = vunpack.c.h.b16 %v230
  %v341 = vunpack.c.l.b16 %v231
  %v342 = vunpack.c.h.b16 %v231
  %v343 = vunpack.c.l.b16 %v232
  %v344 = vunpack.c.h.b16 %v232
  %v345 = vunpack.c.l.b16 %v233
  %v346 = vunpack.c.h.b16 %v233
  %v347 = vunpack.c.l.b16 %v234
  %v348 = vunpack.c.h.b16 %v234
  %v349 = vunpack.c.l.b16 %v235
  %v350 = vunpack.c.h.b16 %v235
  %v351 = vunpack.c.l.b16 %v236
  %v352 = vunpack.c.h.b16 %v236
  %v353 = vunpack.c.l.b16 %v237
  %v354 = vunpack.c.h.b16 %v237
  %v355 = vunpack.c.l.b16 %v238
  %v356 = vunpack.c.h.b16 %v238
  %v357 = vunpack.c.l.b16 %v239
  %v358 = vunpack.c.h.b16 %v239
  %v359 = vunpack.c.l.b16 %v240
  %v360 = vunpack.c.h.b16 %v240
  %v361 = vunpack.c.l.b16 %v241
  %v362 = vunpack.c.h.b16 %v241
  %v363 = vunpack.c.l.b16 %v242
  %v364 = vunpack.c.h.b16 %v242
  %v365 = vunpack.c.l.b16 %v243
  %v366 = vunpack.c.h.b16 %v243
  %v367 = vunpack.c.l.b16 %v244
  %v368 = vunpack.c.h.b16 %v244
  %v369 = vpack.c.b16 %v309, %v305
  %v370 = vpack.c.b16 %v310, %v306
  %v371 = vpack.c.b16 %v311, %v307
  %v372 = vpack.c.b16 %v312, %v308
  %v373 = vpack.c.b16 %v317, %v313
  %v374 = vpack.c.b16 %v318, %v314
  %v375 = vpack.c.b16 %v319, %v315
  %v376 = vpack.c.b16 %v320, %v316
  %v377 = vpack.c.b16 %v325, %v321
  %v378 = vpack.c.b16 %v326, %v322
  %v379 = vpack.c.b16 %v327, %v323
  %v380 = vpack.c.b16 %v328, %v324
  %v381 = vpack.c.b16 %v333, %v329
  %v382 = vpack.c.b16 %v334, %v330
  %v383 = vpack.c.b16 %v335, %v331
  %v384 = vpack.c.b16 %v336, %v332
  %v385 = vpack.c.b16 %v341, %v337
  %v386 = vpack.c.b16 %v342, %v338
  %v387 = vpack.c.b16 %v343, %v339
  %v388 = vpack.c.b16 %v344, %v340
  %v389 = vpack.c.b16 %v349, %v345
  %v390 = vpack.c.b16 %v350, %v346
  %v391 = vpack.c.b16 %v351, %v347
  %v392 = vpack.c.b16 %v352, %v348
  %v393 = vpack.c.b16 %v357, %v353
  %v394 = vpack.c.b16 %v358, %v354
  %v395 = vpack.c.b16 %v359, %v355
  %v396 = vpack.c.b16 %v360, %v356
  %v397 = vpack.c.b16 %v365, %v361
  %v398 = vpack.c.b16 %v366, %v362
  %v399 = vpack.c.b16 %v367, %v363
  %v400 = vpack.c.b16 %v368, %v364
  %433 = vmatpush.bf16.msra.mxu0 %v397
  %434 = vmatpush.bf16.msra.mxu0 %v393
  %435 = vmatpush.bf16.msra.mxu0 %v389
  %436 = vmatpush.bf16.msra.mxu0 %v385
  %437 = vmatpush.bf16.msra.mxu0 %v381
  %438 = vmatpush.bf16.msra.mxu0 %v377
  %439 = vmatpush.bf16.msra.mxu0 %v373
  %440 = vmatpush.bf16.msra.mxu0 %v369
  %441 = vmatmul.bf16.gmra.mxu0 %v267
  %v442 = vpop.f32.mrf.mxu0
  %v443 = vadd.f32 %v247, %v442
  %v444 = vpop.f32.mrf.mxu0
  %v445 = vadd.f32 %v247, %v444
  %446 = vmatmul.bf16.gmra.mxu0 %v268
  %v447 = vpop.f32.mrf.mxu0
  %v448 = vadd.f32 %v247, %v447
  %v449 = vpop.f32.mrf.mxu0
  %v450 = vadd.f32 %v247, %v449
  %451 = vmatmul.bf16.gmra.mxu0 %v269
  %v452 = vpop.f32.mrf.mxu0
  %v453 = vadd.f32 %v247, %v452
  %v454 = vpop.f32.mrf.mxu0
  %v455 = vadd.f32 %v247, %v454
  %456 = vdwg.mxu0
  %457 = vmatpush.bf16.msra.mxu0 %v398
  %458 = vmatpush.bf16.msra.mxu0 %v394
  %459 = vmatpush.bf16.msra.mxu0 %v390
  %460 = vmatpush.bf16.msra.mxu0 %v386
  %461 = vmatpush.bf16.msra.mxu0 %v382
  %462 = vmatpush.bf16.msra.mxu0 %v378
  %463 = vmatpush.bf16.msra.mxu0 %v374
  %464 = vmatpush.bf16.msra.mxu0 %v370
  %465 = vmatmul.bf16.gmra.mxu0 %v267
  %v466 = vpop.f32.mrf.mxu0
  %v467 = vadd.f32 %v248, %v466
  %v468 = vpop.f32.mrf.mxu0
  %v469 = vadd.f32 %v248, %v468
  %470 = vmatmul.bf16.gmra.mxu0 %v268
  %v471 = vpop.f32.mrf.mxu0
  %v472 = vadd.f32 %v248, %v471
  %v473 = vpop.f32.mrf.mxu0
  %v474 = vadd.f32 %v248, %v473
  %475 = vmatmul.bf16.gmra.mxu0 %v269
  %v476 = vpop.f32.mrf.mxu0
  %v477 = vadd.f32 %v248, %v476
  %v478 = vpop.f32.mrf.mxu0
  %v479 = vadd.f32 %v248, %v478
  %480 = vdwg.mxu0
  %481 = vmatpush.bf16.msra.mxu0 %v399
  %482 = vmatpush.bf16.msra.mxu0 %v395
  %483 = vmatpush.bf16.msra.mxu0 %v391
  %484 = vmatpush.bf16.msra.mxu0 %v387
  %485 = vmatpush.bf16.msra.mxu0 %v383
  %486 = vmatpush.bf16.msra.mxu0 %v379
  %487 = vmatpush.bf16.msra.mxu0 %v375
  %488 = vmatpush.bf16.msra.mxu0 %v371
  %489 = vmatmul.bf16.gmra.mxu0 %v267
  %v490 = vpop.f32.mrf.mxu0
  %v491 = vadd.f32 %v249, %v490
  %v492 = vpop.f32.mrf.mxu0
  %v493 = vadd.f32 %v249, %v492
  %494 = vmatmul.bf16.gmra.mxu0 %v268
  %v495 = vpop.f32.mrf.mxu0
  %v496 = vadd.f32 %v249, %v495
  %v497 = vpop.f32.mrf.mxu0
  %v498 = vadd.f32 %v249, %v497
  %499 = vmatmul.bf16.gmra.mxu0 %v269
  %v500 = vpop.f32.mrf.mxu0
  %v501 = vadd.f32 %v249, %v500
  %v502 = vpop.f32.mrf.mxu0
  %v503 = vadd.f32 %v249, %v502
  %504 = vdwg.mxu0
  %505 = vmatpush.bf16.msra.mxu0 %v400
  %506 = vmatpush.bf16.msra.mxu0 %v396
  %507 = vmatpush.bf16.msra.mxu0 %v392
  %508 = vmatpush.bf16.msra.mxu0 %v388
  %509 = vmatpush.bf16.msra.mxu0 %v384
  %510 = vmatpush.bf16.msra.mxu0 %v380
  %511 = vmatpush.bf16.msra.mxu0 %v376
  %512 = vmatpush.bf16.msra.mxu0 %v372
  %513 = vmatmul.bf16.gmra.mxu0 %v267
  %v514 = vpop.f32.mrf.mxu0
  %v515 = vadd.f32 %v250, %v514
  %v516 = vpop.f32.mrf.mxu0
  %v517 = vadd.f32 %v250, %v516
  %518 = vmatmul.bf16.gmra.mxu0 %v268
  %v519 = vpop.f32.mrf.mxu0
  %v520 = vadd.f32 %v250, %v519
  %v521 = vpop.f32.mrf.mxu0
  %v522 = vadd.f32 %v250, %v521
  %523 = vmatmul.bf16.gmra.mxu0 %v269
  %v524 = vpop.f32.mrf.mxu0
  %v525 = vadd.f32 %v250, %v524
  %v526 = vpop.f32.mrf.mxu0
  %v527 = vadd.f32 %v250, %v526
  %528 = vdwg.mxu0
  %v529 = vmul.f32 %v443, 1.702
  %v530 = vmul.f32 %v467, 1.702
  %v531 = vmul.f32 %v491, 1.702
  %v532 = vmul.f32 %v515, 1.702
  %v533 = vmul.f32 %v445, 1.702
  %v534 = vmul.f32 %v469, 1.702
  %v535 = vmul.f32 %v493, 1.702
  %v536 = vmul.f32 %v517, 1.702
  %v537 = vmul.f32 %v448, 1.702
  %v538 = vmul.f32 %v472, 1.702
  %v539 = vmul.f32 %v496, 1.702
  %v540 = vmul.f32 %v520, 1.702
  %v541 = vmul.f32 %v450, 1.702
  %v542 = vmul.f32 %v474, 1.702
  %v543 = vmul.f32 %v498, 1.702
  %v544 = vmul.f32 %v522, 1.702
  %v545 = vmul.f32 %v453, 1.702
  %v546 = vmul.f32 %v477, 1.702
  %v547 = vmul.f32 %v501, 1.702
  %v548 = vmul.f32 %v525, 1.702
  %v549 = vmul.f32 %v455, 1.702
  %v550 = vmul.f32 %v479, 1.702
  %v551 = vmul.f32 %v503, 1.702
  %v552 = vmul.f32 %v527, 1.702
  %v553 = vxor.u32 %v529, 2147483648
  %v554 = vxor.u32 %v530, 2147483648
  %v555 = vxor.u32 %v531, 2147483648
  %v556 = vxor.u32 %v532, 2147483648
  %v557 = vxor.u32 %v533, 2147483648
  %v558 = vxor.u32 %v534, 2147483648
  %v559 = vxor.u32 %v535, 2147483648
  %v560 = vxor.u32 %v536, 2147483648
  %v561 = vxor.u32 %v537, 2147483648
  %v562 = vxor.u32 %v538, 2147483648
  %v563 = vxor.u32 %v539, 2147483648
  %v564 = vxor.u32 %v540, 2147483648
  %v565 = vxor.u32 %v541, 2147483648
  %v566 = vxor.u32 %v542, 2147483648
  %v567 = vxor.u32 %v543, 2147483648
  %v568 = vxor.u32 %v544, 2147483648
  %v569 = vxor.u32 %v545, 2147483648
  %v570 = vxor.u32 %v546, 2147483648
  %v571 = vxor.u32 %v547, 2147483648
  %v572 = vxor.u32 %v548, 2147483648
  %v573 = vxor.u32 %v549, 2147483648
  %v574 = vxor.u32 %v550, 2147483648
  %v575 = vxor.u32 %v551, 2147483648
  %v576 = vxor.u32 %v552, 2147483648
  %v577 = vmul.f32 %v553, 1.442695
  %v578 = vpow.pop %v577
  %v579 = vmul.f32 %v554, 1.442695
  %v580 = vpow.pop %v579
  %v581 = vmul.f32 %v555, 1.442695
  %v582 = vpow.pop %v581
  %v583 = vmul.f32 %v556, 1.442695
  %v584 = vpow.pop %v583
  %v585 = vmul.f32 %v557, 1.442695
  %v586 = vpow.pop %v585
  %v587 = vmul.f32 %v558, 1.442695
  %v588 = vpow.pop %v587
  %v589 = vmul.f32 %v559, 1.442695
  %v590 = vpow.pop %v589
  %v591 = vmul.f32 %v560, 1.442695
  %v592 = vpow.pop %v591
  %v593 = vmul.f32 %v561, 1.442695
  %v594 = vpow.pop %v593
  %v595 = vmul.f32 %v562, 1.442695
  %v596 = vpow.pop %v595
  %v597 = vmul.f32 %v563, 1.442695
  %v598 = vpow.pop %v597
  %v599 = vmul.f32 %v564, 1.442695
  %v600 = vpow.pop %v599
  %v601 = vmul.f32 %v565, 1.442695
  %v602 = vpow.pop %v601
  %v603 = vmul.f32 %v566, 1.442695
  %v604 = vpow.pop %v603
  %v605 = vmul.f32 %v567, 1.442695
  %v606 = vpow.pop %v605
  %v607 = vmul.f32 %v568, 1.442695
  %v608 = vpow.pop %v607
  %v609 = vmul.f32 %v569, 1.442695
  %v610 = vpow.pop %v609
  %v611 = vmul.f32 %v570, 1.442695
  %v612 = vpow.pop %v611
  %v613 = vmul.f32 %v571, 1.442695
  %v614 = vpow.pop %v613
  %v615 = vmul.f32 %v572, 1.442695
  %v616 = vpow.pop %v615
  %v617 = vmul.f32 %v573, 1.442695
  %v618 = vpow.pop %v617
  %v619 = vmul.f32 %v574, 1.442695
  %v620 = vpow.pop %v619
  %v621 = vmul.f32 %v575, 1.442695
  %v622 = vpow.pop %v621
  %v623 = vmul.f32 %v576, 1.442695
  %v624 = vpow.pop %v623
  %v625 = vadd.f32 %v578, 1.0
  %v626 = vadd.f32 %v580, 1.0
  %v627 = vadd.f32 %v582, 1.0
  %v628 = vadd.f32 %v584, 1.0
  %v629 = vadd.f32 %v586, 1.0
  %v630 = vadd.f32 %v588, 1.0
  %v631 = vadd.f32 %v590, 1.0
  %v632 = vadd.f32 %v592, 1.0
  %v633 = vadd.f32 %v594, 1.0
  %v634 = vadd.f32 %v596, 1.0
  %v635 = vadd.f32 %v598, 1.0
  %v636 = vadd.f32 %v600, 1.0
  %v637 = vadd.f32 %v602, 1.0
  %v638 = vadd.f32 %v604, 1.0
  %v639 = vadd.f32 %v606, 1.0
  %v640 = vadd.f32 %v608, 1.0
  %v641 = vadd.f32 %v610, 1.0
  %v642 = vadd.f32 %v612, 1.0
  %v643 = vadd.f32 %v614, 1.0
  %v644 = vadd.f32 %v616, 1.0
  %v645 = vadd.f32 %v618, 1.0
  %v646 = vadd.f32 %v620, 1.0
  %v647 = vadd.f32 %v622, 1.0
  %v648 = vadd.f32 %v624, 1.0
  %v649 = vrcp.pop %v625
  %v650 = vmul.f32 %v625, %v649
  %v651 = vsub.f32 1.0, %v650
  %v652 = vmul.f32 %v649, %v651
  %v653 = vadd.f32 %v649, %v652
  %vm654 = vweird.f32 %v625
  %vm655 = vweird.f32 %v649
  %vm656 = vmor %vm654, %vm655
  %v657 = vsel %vm656, %v649, %v653
  %v658 = vand.u32 2147483647, %v625
  %vm659 = vcmp.eq.f32.partialorder %v658, 8.507059e+37
  %v660 = vand.u32 %v625, 2147483648
  %v661 = vor.u32 1.1754944e-38, %v660
  %v662 = vsel %vm659, %v661, %v657
  %v663 = vmul.f32 1.0, %v662
  %v664 = vrcp.pop %v626
  %v665 = vmul.f32 %v626, %v664
  %v666 = vsub.f32 1.0, %v665
  %v667 = vmul.f32 %v664, %v666
  %v668 = vadd.f32 %v664, %v667
  %vm669 = vweird.f32 %v626
  %vm670 = vweird.f32 %v664
  %vm671 = vmor %vm669, %vm670
  %v672 = vsel %vm671, %v664, %v668
  %v673 = vand.u32 2147483647, %v626
  %vm674 = vcmp.eq.f32.partialorder %v673, 8.507059e+37
  %v675 = vand.u32 %v626, 2147483648
  %v676 = vor.u32 1.1754944e-38, %v675
  %v677 = vsel %vm674, %v676, %v672
  %v678 = vmul.f32 1.0, %v677
  %v679 = vrcp.pop %v627
  %v680 = vmul.f32 %v627, %v679
  %v681 = vsub.f32 1.0, %v680
  %v682 = vmul.f32 %v679, %v681
  %v683 = vadd.f32 %v679, %v682
  %vm684 = vweird.f32 %v627
  %vm685 = vweird.f32 %v679
  %vm686 = vmor %vm684, %vm685
  %v687 = vsel %vm686, %v679, %v683
  %v688 = vand.u32 2147483647, %v627
  %vm689 = vcmp.eq.f32.partialorder %v688, 8.507059e+37
  %v690 = vand.u32 %v627, 2147483648
  %v691 = vor.u32 1.1754944e-38, %v690
  %v692 = vsel %vm689, %v691, %v687
  %v693 = vmul.f32 1.0, %v692
  %v694 = vrcp.pop %v628
  %v695 = vmul.f32 %v628, %v694
  %v696 = vsub.f32 1.0, %v695
  %v697 = vmul.f32 %v694, %v696
  %v698 = vadd.f32 %v694, %v697
  %vm699 = vweird.f32 %v628
  %vm700 = vweird.f32 %v694
  %vm701 = vmor %vm699, %vm700
  %v702 = vsel %vm701, %v694, %v698
  %v703 = vand.u32 2147483647, %v628
  %vm704 = vcmp.eq.f32.partialorder %v703, 8.507059e+37
  %v705 = vand.u32 %v628, 2147483648
  %v706 = vor.u32 1.1754944e-38, %v705
  %v707 = vsel %vm704, %v706, %v702
  %v708 = vmul.f32 1.0, %v707
  %v709 = vrcp.pop %v629
  %v710 = vmul.f32 %v629, %v709
  %v711 = vsub.f32 1.0, %v710
  %v712 = vmul.f32 %v709, %v711
  %v713 = vadd.f32 %v709, %v712
  %vm714 = vweird.f32 %v629
  %vm715 = vweird.f32 %v709
  %vm716 = vmor %vm714, %vm715
  %v717 = vsel %vm716, %v709, %v713
  %v718 = vand.u32 2147483647, %v629
  %vm719 = vcmp.eq.f32.partialorder %v718, 8.507059e+37
  %v720 = vand.u32 %v629, 2147483648
  %v721 = vor.u32 1.1754944e-38, %v720
  %v722 = vsel %vm719, %v721, %v717
  %v723 = vmul.f32 1.0, %v722
  %v724 = vrcp.pop %v630
  %v725 = vmul.f32 %v630, %v724
  %v726 = vsub.f32 1.0, %v725
  %v727 = vmul.f32 %v724, %v726
  %v728 = vadd.f32 %v724, %v727
  %vm729 = vweird.f32 %v630
  %vm730 = vweird.f32 %v724
  %vm731 = vmor %vm729, %vm730
  %v732 = vsel %vm731, %v724, %v728
  %v733 = vand.u32 2147483647, %v630
  %vm734 = vcmp.eq.f32.partialorder %v733, 8.507059e+37
  %v735 = vand.u32 %v630, 2147483648
  %v736 = vor.u32 1.1754944e-38, %v735
  %v737 = vsel %vm734, %v736, %v732
  %v738 = vmul.f32 1.0, %v737
  %v739 = vrcp.pop %v631
  %v740 = vmul.f32 %v631, %v739
  %v741 = vsub.f32 1.0, %v740
  %v742 = vmul.f32 %v739, %v741
  %v743 = vadd.f32 %v739, %v742
  %vm744 = vweird.f32 %v631
  %vm745 = vweird.f32 %v739
  %vm746 = vmor %vm744, %vm745
  %v747 = vsel %vm746, %v739, %v743
  %v748 = vand.u32 2147483647, %v631
  %vm749 = vcmp.eq.f32.partialorder %v748, 8.507059e+37
  %v750 = vand.u32 %v631, 2147483648
  %v751 = vor.u32 1.1754944e-38, %v750
  %v752 = vsel %vm749, %v751, %v747
  %v753 = vmul.f32 1.0, %v752
  %v754 = vrcp.pop %v632
  %v755 = vmul.f32 %v632, %v754
  %v756 = vsub.f32 1.0, %v755
  %v757 = vmul.f32 %v754, %v756
  %v758 = vadd.f32 %v754, %v757
  %vm759 = vweird.f32 %v632
  %vm760 = vweird.f32 %v754
  %vm761 = vmor %vm759, %vm760
  %v762 = vsel %vm761, %v754, %v758
  %v763 = vand.u32 2147483647, %v632
  %vm764 = vcmp.eq.f32.partialorder %v763, 8.507059e+37
  %v765 = vand.u32 %v632, 2147483648
  %v766 = vor.u32 1.1754944e-38, %v765
  %v767 = vsel %vm764, %v766, %v762
  %v768 = vmul.f32 1.0, %v767
  %v769 = vrcp.pop %v633
  %v770 = vmul.f32 %v633, %v769
  %v771 = vsub.f32 1.0, %v770
  %v772 = vmul.f32 %v769, %v771
  %v773 = vadd.f32 %v769, %v772
  %vm774 = vweird.f32 %v633
  %vm775 = vweird.f32 %v769
  %vm776 = vmor %vm774, %vm775
  %v777 = vsel %vm776, %v769, %v773
  %v778 = vand.u32 2147483647, %v633
  %vm779 = vcmp.eq.f32.partialorder %v778, 8.507059e+37
  %v780 = vand.u32 %v633, 2147483648
  %v781 = vor.u32 1.1754944e-38, %v780
  %v782 = vsel %vm779, %v781, %v777
  %v783 = vmul.f32 1.0, %v782
  %v784 = vrcp.pop %v634
  %v785 = vmul.f32 %v634, %v784
  %v786 = vsub.f32 1.0, %v785
  %v787 = vmul.f32 %v784, %v786
  %v788 = vadd.f32 %v784, %v787
  %vm789 = vweird.f32 %v634
  %vm790 = vweird.f32 %v784
  %vm791 = vmor %vm789, %vm790
  %v792 = vsel %vm791, %v784, %v788
  %v793 = vand.u32 2147483647, %v634
  %vm794 = vcmp.eq.f32.partialorder %v793, 8.507059e+37
  %v795 = vand.u32 %v634, 2147483648
  %v796 = vor.u32 1.1754944e-38, %v795
  %v797 = vsel %vm794, %v796, %v792
  %v798 = vmul.f32 1.0, %v797
  %v799 = vrcp.pop %v635
  %v800 = vmul.f32 %v635, %v799
  %v801 = vsub.f32 1.0, %v800
  %v802 = vmul.f32 %v799, %v801
  %v803 = vadd.f32 %v799, %v802
  %vm804 = vweird.f32 %v635
  %vm805 = vweird.f32 %v799
  %vm806 = vmor %vm804, %vm805
  %v807 = vsel %vm806, %v799, %v803
  %v808 = vand.u32 2147483647, %v635
  %vm809 = vcmp.eq.f32.partialorder %v808, 8.507059e+37
  %v810 = vand.u32 %v635, 2147483648
  %v811 = vor.u32 1.1754944e-38, %v810
  %v812 = vsel %vm809, %v811, %v807
  %v813 = vmul.f32 1.0, %v812
  %v814 = vrcp.pop %v636
  %v815 = vmul.f32 %v636, %v814
  %v816 = vsub.f32 1.0, %v815
  %v817 = vmul.f32 %v814, %v816
  %v818 = vadd.f32 %v814, %v817
  %vm819 = vweird.f32 %v636
  %vm820 = vweird.f32 %v814
  %vm821 = vmor %vm819, %vm820
  %v822 = vsel %vm821, %v814, %v818
  %v823 = vand.u32 2147483647, %v636
  %vm824 = vcmp.eq.f32.partialorder %v823, 8.507059e+37
  %v825 = vand.u32 %v636, 2147483648
  %v826 = vor.u32 1.1754944e-38, %v825
  %v827 = vsel %vm824, %v826, %v822
  %v828 = vmul.f32 1.0, %v827
  %v829 = vrcp.pop %v637
  %v830 = vmul.f32 %v637, %v829
  %v831 = vsub.f32 1.0, %v830
  %v832 = vmul.f32 %v829, %v831
  %v833 = vadd.f32 %v829, %v832
  %vm834 = vweird.f32 %v637
  %vm835 = vweird.f32 %v829
  %vm836 = vmor %vm834, %vm835
  %v837 = vsel %vm836, %v829, %v833
  %v838 = vand.u32 2147483647, %v637
  %vm839 = vcmp.eq.f32.partialorder %v838, 8.507059e+37
  %v840 = vand.u32 %v637, 2147483648
  %v841 = vor.u32 1.1754944e-38, %v840
  %v842 = vsel %vm839, %v841, %v837
  %v843 = vmul.f32 1.0, %v842
  %v844 = vrcp.pop %v638
  %v845 = vmul.f32 %v638, %v844
  %v846 = vsub.f32 1.0, %v845
  %v847 = vmul.f32 %v844, %v846
  %v848 = vadd.f32 %v844, %v847
  %vm849 = vweird.f32 %v638
  %vm850 = vweird.f32 %v844
  %vm851 = vmor %vm849, %vm850
  %v852 = vsel %vm851, %v844, %v848
  %v853 = vand.u32 2147483647, %v638
  %vm854 = vcmp.eq.f32.partialorder %v853, 8.507059e+37
  %v855 = vand.u32 %v638, 2147483648
  %v856 = vor.u32 1.1754944e-38, %v855
  %v857 = vsel %vm854, %v856, %v852
  %v858 = vmul.f32 1.0, %v857
  %v859 = vrcp.pop %v639
  %v860 = vmul.f32 %v639, %v859
  %v861 = vsub.f32 1.0, %v860
  %v862 = vmul.f32 %v859, %v861
  %v863 = vadd.f32 %v859, %v862
  %vm864 = vweird.f32 %v639
  %vm865 = vweird.f32 %v859
  %vm866 = vmor %vm864, %vm865
  %v867 = vsel %vm866, %v859, %v863
  %v868 = vand.u32 2147483647, %v639
  %vm869 = vcmp.eq.f32.partialorder %v868, 8.507059e+37
  %v870 = vand.u32 %v639, 2147483648
  %v871 = vor.u32 1.1754944e-38, %v870
  %v872 = vsel %vm869, %v871, %v867
  %v873 = vmul.f32 1.0, %v872
  %v874 = vrcp.pop %v640
  %v875 = vmul.f32 %v640, %v874
  %v876 = vsub.f32 1.0, %v875
  %v877 = vmul.f32 %v874, %v876
  %v878 = vadd.f32 %v874, %v877
  %vm879 = vweird.f32 %v640
  %vm880 = vweird.f32 %v874
  %vm881 = vmor %vm879, %vm880
  %v882 = vsel %vm881, %v874, %v878
  %v883 = vand.u32 2147483647, %v640
  %vm884 = vcmp.eq.f32.partialorder %v883, 8.507059e+37
  %v885 = vand.u32 %v640, 2147483648
  %v886 = vor.u32 1.1754944e-38, %v885
  %v887 = vsel %vm884, %v886, %v882
  %v888 = vmul.f32 1.0, %v887
  %v889 = vrcp.pop %v641
  %v890 = vmul.f32 %v641, %v889
  %v891 = vsub.f32 1.0, %v890
  %v892 = vmul.f32 %v889, %v891
  %v893 = vadd.f32 %v889, %v892
  %vm894 = vweird.f32 %v641
  %vm895 = vweird.f32 %v889
  %vm896 = vmor %vm894, %vm895
  %v897 = vsel %vm896, %v889, %v893
  %v898 = vand.u32 2147483647, %v641
  %vm899 = vcmp.eq.f32.partialorder %v898, 8.507059e+37
  %v900 = vand.u32 %v641, 2147483648
  %v901 = vor.u32 1.1754944e-38, %v900
  %v902 = vsel %vm899, %v901, %v897
  %v903 = vmul.f32 1.0, %v902
  %v904 = vrcp.pop %v642
  %v905 = vmul.f32 %v642, %v904
  %v906 = vsub.f32 1.0, %v905
  %v907 = vmul.f32 %v904, %v906
  %v908 = vadd.f32 %v904, %v907
  %vm909 = vweird.f32 %v642
  %vm910 = vweird.f32 %v904
  %vm911 = vmor %vm909, %vm910
  %v912 = vsel %vm911, %v904, %v908
  %v913 = vand.u32 2147483647, %v642
  %vm914 = vcmp.eq.f32.partialorder %v913, 8.507059e+37
  %v915 = vand.u32 %v642, 2147483648
  %v916 = vor.u32 1.1754944e-38, %v915
  %v917 = vsel %vm914, %v916, %v912
  %v918 = vmul.f32 1.0, %v917
  %v919 = vrcp.pop %v643
  %v920 = vmul.f32 %v643, %v919
  %v921 = vsub.f32 1.0, %v920
  %v922 = vmul.f32 %v919, %v921
  %v923 = vadd.f32 %v919, %v922
  %vm924 = vweird.f32 %v643
  %vm925 = vweird.f32 %v919
  %vm926 = vmor %vm924, %vm925
  %v927 = vsel %vm926, %v919, %v923
  %v928 = vand.u32 2147483647, %v643
  %vm929 = vcmp.eq.f32.partialorder %v928, 8.507059e+37
  %v930 = vand.u32 %v643, 2147483648
  %v931 = vor.u32 1.1754944e-38, %v930
  %v932 = vsel %vm929, %v931, %v927
  %v933 = vmul.f32 1.0, %v932
  %v934 = vrcp.pop %v644
  %v935 = vmul.f32 %v644, %v934
  %v936 = vsub.f32 1.0, %v935
  %v937 = vmul.f32 %v934, %v936
  %v938 = vadd.f32 %v934, %v937
  %vm939 = vweird.f32 %v644
  %vm940 = vweird.f32 %v934
  %vm941 = vmor %vm939, %vm940
  %v942 = vsel %vm941, %v934, %v938
  %v943 = vand.u32 2147483647, %v644
  %vm944 = vcmp.eq.f32.partialorder %v943, 8.507059e+37
  %v945 = vand.u32 %v644, 2147483648
  %v946 = vor.u32 1.1754944e-38, %v945
  %v947 = vsel %vm944, %v946, %v942
  %v948 = vmul.f32 1.0, %v947
  %v949 = vrcp.pop %v645
  %v950 = vmul.f32 %v645, %v949
  %v951 = vsub.f32 1.0, %v950
  %v952 = vmul.f32 %v949, %v951
  %v953 = vadd.f32 %v949, %v952
  %vm954 = vweird.f32 %v645
  %vm955 = vweird.f32 %v949
  %vm956 = vmor %vm954, %vm955
  %v957 = vsel %vm956, %v949, %v953
  %v958 = vand.u32 2147483647, %v645
  %vm959 = vcmp.eq.f32.partialorder %v958, 8.507059e+37
  %v960 = vand.u32 %v645, 2147483648
  %v961 = vor.u32 1.1754944e-38, %v960
  %v962 = vsel %vm959, %v961, %v957
  %v963 = vmul.f32 1.0, %v962
  %v964 = vrcp.pop %v646
  %v965 = vmul.f32 %v646, %v964
  %v966 = vsub.f32 1.0, %v965
  %v967 = vmul.f32 %v964, %v966
  %v968 = vadd.f32 %v964, %v967
  %vm969 = vweird.f32 %v646
  %vm970 = vweird.f32 %v964
  %vm971 = vmor %vm969, %vm970
  %v972 = vsel %vm971, %v964, %v968
  %v973 = vand.u32 2147483647, %v646
  %vm974 = vcmp.eq.f32.partialorder %v973, 8.507059e+37
  %v975 = vand.u32 %v646, 2147483648
  %v976 = vor.u32 1.1754944e-38, %v975
  %v977 = vsel %vm974, %v976, %v972
  %v978 = vmul.f32 1.0, %v977
  %v979 = vrcp.pop %v647
  %v980 = vmul.f32 %v647, %v979
  %v981 = vsub.f32 1.0, %v980
  %v982 = vmul.f32 %v979, %v981
  %v983 = vadd.f32 %v979, %v982
  %vm984 = vweird.f32 %v647
  %vm985 = vweird.f32 %v979
  %vm986 = vmor %vm984, %vm985
  %v987 = vsel %vm986, %v979, %v983
  %v988 = vand.u32 2147483647, %v647
  %vm989 = vcmp.eq.f32.partialorder %v988, 8.507059e+37
  %v990 = vand.u32 %v647, 2147483648
  %v991 = vor.u32 1.1754944e-38, %v990
  %v992 = vsel %vm989, %v991, %v987
  %v993 = vmul.f32 1.0, %v992
  %v994 = vrcp.pop %v648
  %v995 = vmul.f32 %v648, %v994
  %v996 = vsub.f32 1.0, %v995
  %v997 = vmul.f32 %v994, %v996
  %v998 = vadd.f32 %v994, %v997
  %vm999 = vweird.f32 %v648
  %vm1000 = vweird.f32 %v994
  %vm1001 = vmor %vm999, %vm1000
  %v1002 = vsel %vm1001, %v994, %v998
  %v1003 = vand.u32 2147483647, %v648
  %vm1004 = vcmp.eq.f32.partialorder %v1003, 8.507059e+37
  %v1005 = vand.u32 %v648, 2147483648
  %v1006 = vor.u32 1.1754944e-38, %v1005
  %v1007 = vsel %vm1004, %v1006, %v1002
  %v1008 = vmul.f32 1.0, %v1007
  %v1009 = vmul.f32 %v443, %v663
  %v1010 = vmul.f32 %v467, %v678
  %v1011 = vmul.f32 %v491, %v693
  %v1012 = vmul.f32 %v515, %v708
  %v1013 = vmul.f32 %v445, %v723
  %v1014 = vmul.f32 %v469, %v738
  %v1015 = vmul.f32 %v493, %v753
  %v1016 = vmul.f32 %v517, %v768
  %v1017 = vmul.f32 %v448, %v783
  %v1018 = vmul.f32 %v472, %v798
  %v1019 = vmul.f32 %v496, %v813
  %v1020 = vmul.f32 %v520, %v828
  %v1021 = vmul.f32 %v450, %v843
  %v1022 = vmul.f32 %v474, %v858
  %v1023 = vmul.f32 %v498, %v873
  %v1024 = vmul.f32 %v522, %v888
  %v1025 = vmul.f32 %v453, %v903
  %v1026 = vmul.f32 %v477, %v918
  %v1027 = vmul.f32 %v501, %v933
  %v1028 = vmul.f32 %v525, %v948
  %v1029 = vmul.f32 %v455, %v963
  %v1030 = vmul.f32 %v479, %v978
  %v1031 = vmul.f32 %v503, %v993
  %v1032 = vmul.f32 %v527, %v1008
  %v1033 = vld [vmem:[#allocation3] sm:$0xff]
  %v1034 = vld [vmem:[#allocation3 + $0x8] sm:$0xff]
  %v1035 = vld [vmem:[#allocation3 + $0x10] sm:$0xff]
  %v1036 = vld [vmem:[#allocation3 + $0x18] sm:$0xff]
  %v1037 = vld [vmem:[#allocation3 + $0x20] sm:$0xff]
  %v1038 = vld [vmem:[#allocation3 + $0x28] sm:$0xff]
  %v1039 = vpack.c.bf16 %v1013, %v1009
  %v1040 = vpack.c.bf16 %v1014, %v1010
  %v1041 = vpack.c.bf16 %v1015, %v1011
  %v1042 = vpack.c.bf16 %v1016, %v1012
  %v1043 = vpack.c.bf16 %v1021, %v1017
  %v1044 = vpack.c.bf16 %v1022, %v1018
  %v1045 = vpack.c.bf16 %v1023, %v1019
  %v1046 = vpack.c.bf16 %v1024, %v1020
  %v1047 = vpack.c.bf16 %v1029, %v1025
  %v1048 = vpack.c.bf16 %v1030, %v1026
  %v1049 = vpack.c.bf16 %v1031, %v1027
  %v1050 = vpack.c.bf16 %v1032, %v1028
  %v1051 = vld [vmem:[%s5] sm:$0xf]
  %v1052 = vld [vmem:[%s5 + $0x4] sm:$0xf]
  %v1053 = vld [vmem:[%s5 + $0x8] sm:$0xf]
  %v1054 = vld [vmem:[%s5 + $0xc] sm:$0xf]
  %v1055 = vld [vmem:[%s5 + $0x10] sm:$0xf]
  %v1056 = vld [vmem:[%s5 + $0x14] sm:$0xf]
  %v1057 = vld [vmem:[%s5 + $0x18] sm:$0xf]
  %v1058 = vld [vmem:[%s5 + $0x1c] sm:$0xf]
  %v1059 = vld [vmem:[%s5 + $0x20] sm:$0xf]
  %v1060 = vld [vmem:[%s5 + $0x24] sm:$0xf]
  %v1061 = vld [vmem:[%s5 + $0x28] sm:$0xf]
  %v1062 = vld [vmem:[%s5 + $0x2c] sm:$0xf]
  %v1063 = vld [vmem:[%s5 + $0x30] sm:$0xf]
  %v1064 = vld [vmem:[%s5 + $0x34] sm:$0xf]
  %v1065 = vld [vmem:[%s5 + $0x38] sm:$0xf]
  %v1066 = vld [vmem:[%s5 + $0x3c] sm:$0xf]
  %v1067 = vld [vmem:[%s5 + $0x40] sm:$0xf]
  %v1068 = vld [vmem:[%s5 + $0x44] sm:$0xf]
  %v1069 = vld [vmem:[%s5 + $0x48] sm:$0xf]
  %v1070 = vld [vmem:[%s5 + $0x4c] sm:$0xf]
  %v1071 = vld [vmem:[%s5 + $0x50] sm:$0xf]
  %v1072 = vld [vmem:[%s5 + $0x54] sm:$0xf]
  %v1073 = vld [vmem:[%s5 + $0x58] sm:$0xf]
  %v1074 = vld [vmem:[%s5 + $0x5c] sm:$0xf]
  %v1075 = vld [vmem:[%s5 + $0x60] sm:$0xf]
  %v1076 = vld [vmem:[%s5 + $0x64] sm:$0xf]
  %v1077 = vld [vmem:[%s5 + $0x68] sm:$0xf]
  %v1078 = vld [vmem:[%s5 + $0x6c] sm:$0xf]
  %v1079 = vld [vmem:[%s5 + $0x70] sm:$0xf]
  %v1080 = vld [vmem:[%s5 + $0x74] sm:$0xf]
  %v1081 = vld [vmem:[%s5 + $0x78] sm:$0xf]
  %v1082 = vld [vmem:[%s5 + $0x7c] sm:$0xf]
  %v1083 = vld [vmem:[%s5 + $0x80] sm:$0xf]
  %v1084 = vld [vmem:[%s5 + $0x84] sm:$0xf]
  %v1085 = vld [vmem:[%s5 + $0x88] sm:$0xf]
  %v1086 = vld [vmem:[%s5 + $0x8c] sm:$0xf]
  %v1087 = vld [vmem:[%s5 + $0x90] sm:$0xf]
  %v1088 = vld [vmem:[%s5 + $0x94] sm:$0xf]
  %v1089 = vld [vmem:[%s5 + $0x98] sm:$0xf]
  %v1090 = vld [vmem:[%s5 + $0x9c] sm:$0xf]
  %v1091 = vld [vmem:[%s5 + $0xa0] sm:$0xf]
  %v1092 = vld [vmem:[%s5 + $0xa4] sm:$0xf]
  %v1093 = vld [vmem:[%s5 + $0xa8] sm:$0xf]
  %v1094 = vld [vmem:[%s5 + $0xac] sm:$0xf]
  %v1095 = vld [vmem:[%s5 + $0xb0] sm:$0xf]
  %v1096 = vld [vmem:[%s5 + $0xb4] sm:$0xf]
  %v1097 = vld [vmem:[%s5 + $0xb8] sm:$0xf]
  %v1098 = vld [vmem:[%s5 + $0xbc] sm:$0xf]
  %v1099 = vld [vmem:[%s5 + $0xc0] sm:$0xf]
  %v1100 = vld [vmem:[%s5 + $0xc4] sm:$0xf]
  %v1101 = vld [vmem:[%s5 + $0xc8] sm:$0xf]
  %v1102 = vld [vmem:[%s5 + $0xcc] sm:$0xf]
  %v1103 = vld [vmem:[%s5 + $0xd0] sm:$0xf]
  %v1104 = vld [vmem:[%s5 + $0xd4] sm:$0xf]
  %v1105 = vld [vmem:[%s5 + $0xd8] sm:$0xf]
  %v1106 = vld [vmem:[%s5 + $0xdc] sm:$0xf]
  %v1107 = vld [vmem:[%s5 + $0xe0] sm:$0xf]
  %v1108 = vld [vmem:[%s5 + $0xe4] sm:$0xf]
  %v1109 = vld [vmem:[%s5 + $0xe8] sm:$0xf]
  %v1110 = vld [vmem:[%s5 + $0xec] sm:$0xf]
  %v1111 = vld [vmem:[%s5 + $0xf0] sm:$0xf]
  %v1112 = vld [vmem:[%s5 + $0xf4] sm:$0xf]
  %v1113 = vld [vmem:[%s5 + $0xf8] sm:$0xf]
  %v1114 = vld [vmem:[%s5 + $0xfc] sm:$0xf]
  %v1179 = vunpack.c.l.b16 %v1051
  %v1180 = vunpack.c.l.b16 %v1052
  %v1181 = vunpack.c.l.b16 %v1053
  %v1182 = vunpack.c.l.b16 %v1054
  %v1183 = vunpack.c.l.b16 %v1055
  %v1184 = vunpack.c.l.b16 %v1056
  %v1185 = vunpack.c.l.b16 %v1057
  %v1186 = vunpack.c.l.b16 %v1058
  %v1187 = vunpack.c.l.b16 %v1059
  %v1188 = vunpack.c.l.b16 %v1060
  %v1189 = vunpack.c.l.b16 %v1061
  %v1190 = vunpack.c.l.b16 %v1062
  %v1191 = vunpack.c.l.b16 %v1063
  %v1192 = vunpack.c.l.b16 %v1064
  %v1193 = vunpack.c.l.b16 %v1065
  %v1194 = vunpack.c.l.b16 %v1066
  %v1195 = vunpack.c.l.b16 %v1067
  %v1196 = vunpack.c.l.b16 %v1068
  %v1197 = vunpack.c.l.b16 %v1069
  %v1198 = vunpack.c.l.b16 %v1070
  %v1199 = vunpack.c.l.b16 %v1071
  %v1200 = vunpack.c.l.b16 %v1072
  %v1201 = vunpack.c.l.b16 %v1073
  %v1202 = vunpack.c.l.b16 %v1074
  %v1203 = vunpack.c.l.b16 %v1075
  %v1204 = vunpack.c.l.b16 %v1076
  %v1205 = vunpack.c.l.b16 %v1077
  %v1206 = vunpack.c.l.b16 %v1078
  %v1207 = vunpack.c.l.b16 %v1079
  %v1208 = vunpack.c.l.b16 %v1080
  %v1209 = vunpack.c.l.b16 %v1081
  %v1210 = vunpack.c.l.b16 %v1082
  %v1211 = vunpack.c.l.b16 %v1083
  %v1212 = vunpack.c.l.b16 %v1084
  %v1213 = vunpack.c.l.b16 %v1085
  %v1214 = vunpack.c.l.b16 %v1086
  %v1215 = vunpack.c.l.b16 %v1087
  %v1216 = vunpack.c.l.b16 %v1088
  %v1217 = vunpack.c.l.b16 %v1089
  %v1218 = vunpack.c.l.b16 %v1090
  %v1219 = vunpack.c.l.b16 %v1091
  %v1220 = vunpack.c.l.b16 %v1092
  %v1221 = vunpack.c.l.b16 %v1093
  %v1222 = vunpack.c.l.b16 %v1094
  %v1223 = vunpack.c.l.b16 %v1095
  %v1224 = vunpack.c.l.b16 %v1096
  %v1225 = vunpack.c.l.b16 %v1097
  %v1226 = vunpack.c.l.b16 %v1098
  %v1227 = vunpack.c.l.b16 %v1099
  %v1228 = vunpack.c.l.b16 %v1100
  %v1229 = vunpack.c.l.b16 %v1101
  %v1230 = vunpack.c.l.b16 %v1102
  %v1231 = vunpack.c.l.b16 %v1103
  %v1232 = vunpack.c.l.b16 %v1104
  %v1233 = vunpack.c.l.b16 %v1105
  %v1234 = vunpack.c.l.b16 %v1106
  %v1235 = vunpack.c.l.b16 %v1107
  %v1236 = vunpack.c.l.b16 %v1108
  %v1237 = vunpack.c.l.b16 %v1109
  %v1238 = vunpack.c.l.b16 %v1110
  %v1239 = vunpack.c.l.b16 %v1111
  %v1240 = vunpack.c.l.b16 %v1112
  %v1241 = vunpack.c.l.b16 %v1113
  %v1242 = vunpack.c.l.b16 %v1114
  %v1243 = vpack.c.b16 %v1180, %v1179
  %v1244 = vpack.c.b16 %v1182, %v1181
  %v1245 = vpack.c.b16 %v1184, %v1183
  %v1246 = vpack.c.b16 %v1186, %v1185
  %v1247 = vpack.c.b16 %v1188, %v1187
  %v1248 = vpack.c.b16 %v1190, %v1189
  %v1249 = vpack.c.b16 %v1192, %v1191
  %v1250 = vpack.c.b16 %v1194, %v1193
  %v1251 = vpack.c.b16 %v1196, %v1195
  %v1252 = vpack.c.b16 %v1198, %v1197
  %v1253 = vpack.c.b16 %v1200, %v1199
  %v1254 = vpack.c.b16 %v1202, %v1201
  %v1255 = vpack.c.b16 %v1204, %v1203
  %v1256 = vpack.c.b16 %v1206, %v1205
  %v1257 = vpack.c.b16 %v1208, %v1207
  %v1258 = vpack.c.b16 %v1210, %v1209
  %v1259 = vpack.c.b16 %v1212, %v1211
  %v1260 = vpack.c.b16 %v1214, %v1213
  %v1261 = vpack.c.b16 %v1216, %v1215
  %v1262 = vpack.c.b16 %v1218, %v1217
  %v1263 = vpack.c.b16 %v1220, %v1219
  %v1264 = vpack.c.b16 %v1222, %v1221
  %v1265 = vpack.c.b16 %v1224, %v1223
  %v1266 = vpack.c.b16 %v1226, %v1225
  %v1267 = vpack.c.b16 %v1228, %v1227
  %v1268 = vpack.c.b16 %v1230, %v1229
  %v1269 = vpack.c.b16 %v1232, %v1231
  %v1270 = vpack.c.b16 %v1234, %v1233
  %v1271 = vpack.c.b16 %v1236, %v1235
  %v1272 = vpack.c.b16 %v1238, %v1237
  %v1273 = vpack.c.b16 %v1240, %v1239
  %v1274 = vpack.c.b16 %v1242, %v1241
  %1307 = vmatpush.bf16.msra.mxu0 %v1250
  %1308 = vmatpush.bf16.msra.mxu0 %v1249
  %1309 = vmatpush.bf16.msra.mxu0 %v1248
  %1310 = vmatpush.bf16.msra.mxu0 %v1247
  %1311 = vmatpush.bf16.msra.mxu0 %v1246
  %1312 = vmatpush.bf16.msra.mxu0 %v1245
  %1313 = vmatpush.bf16.msra.mxu0 %v1244
  %1314 = vmatpush.bf16.msra.mxu0 %v1243
  %1315 = vmatmul.bf16.gmra.mxu0 %v1039
  %v1316 = vpop.f32.mrf.mxu0
  %v1317 = vadd.f32 0.0, %v1316
  %v1318 = vpop.f32.mrf.mxu0
  %v1319 = vadd.f32 0.0, %v1318
  %1320 = vmatmul.bf16.gmra.mxu0 %v1043
  %v1321 = vpop.f32.mrf.mxu0
  %v1322 = vadd.f32 0.0, %v1321
  %v1323 = vpop.f32.mrf.mxu0
  %v1324 = vadd.f32 0.0, %v1323
  %1325 = vmatmul.bf16.gmra.mxu0 %v1047
  %v1326 = vpop.f32.mrf.mxu0
  %v1327 = vadd.f32 0.0, %v1326
  %v1328 = vpop.f32.mrf.mxu0
  %v1329 = vadd.f32 0.0, %v1328
  %1330 = vdwg.mxu0
  %1331 = vmatpush.bf16.msra.mxu0 %v1258
  %1332 = vmatpush.bf16.msra.mxu0 %v1257
  %1333 = vmatpush.bf16.msra.mxu0 %v1256
  %1334 = vmatpush.bf16.msra.mxu0 %v1255
  %1335 = vmatpush.bf16.msra.mxu0 %v1254
  %1336 = vmatpush.bf16.msra.mxu0 %v1253
  %1337 = vmatpush.bf16.msra.mxu0 %v1252
  %1338 = vmatpush.bf16.msra.mxu0 %v1251
  %1339 = vmatmul.bf16.gmra.mxu0 %v1040
  %v1340 = vpop.f32.mrf.mxu0
  %v1341 = vadd.f32 %v1317, %v1340
  %v1342 = vpop.f32.mrf.mxu0
  %v1343 = vadd.f32 %v1319, %v1342
  %1344 = vmatmul.bf16.gmra.mxu0 %v1044
  %v1345 = vpop.f32.mrf.mxu0
  %v1346 = vadd.f32 %v1322, %v1345
  %v1347 = vpop.f32.mrf.mxu0
  %v1348 = vadd.f32 %v1324, %v1347
  %1349 = vmatmul.bf16.gmra.mxu0 %v1048
  %v1350 = vpop.f32.mrf.mxu0
  %v1351 = vadd.f32 %v1327, %v1350
  %v1352 = vpop.f32.mrf.mxu0
  %v1353 = vadd.f32 %v1329, %v1352
  %1354 = vdwg.mxu0
  %1355 = vmatpush.bf16.msra.mxu0 %v1266
  %1356 = vmatpush.bf16.msra.mxu0 %v1265
  %1357 = vmatpush.bf16.msra.mxu0 %v1264
  %1358 = vmatpush.bf16.msra.mxu0 %v1263
  %1359 = vmatpush.bf16.msra.mxu0 %v1262
  %1360 = vmatpush.bf16.msra.mxu0 %v1261
  %1361 = vmatpush.bf16.msra.mxu0 %v1260
  %1362 = vmatpush.bf16.msra.mxu0 %v1259
  %1363 = vmatmul.bf16.gmra.mxu0 %v1041
  %v1364 = vpop.f32.mrf.mxu0
  %v1365 = vadd.f32 %v1341, %v1364
  %v1366 = vpop.f32.mrf.mxu0
  %v1367 = vadd.f32 %v1343, %v1366
  %1368 = vmatmul.bf16.gmra.mxu0 %v1045
  %v1369 = vpop.f32.mrf.mxu0
  %v1370 = vadd.f32 %v1346, %v1369
  %v1371 = vpop.f32.mrf.mxu0
  %v1372 = vadd.f32 %v1348, %v1371
  %1373 = vmatmul.bf16.gmra.mxu0 %v1049
  %v1374 = vpop.f32.mrf.mxu0
  %v1375 = vadd.f32 %v1351, %v1374
  %v1376 = vpop.f32.mrf.mxu0
  %v1377 = vadd.f32 %v1353, %v1376
  %1378 = vdwg.mxu0
  %1379 = vmatpush.bf16.msra.mxu0 %v1274
  %1380 = vmatpush.bf16.msra.mxu0 %v1273
  %1381 = vmatpush.bf16.msra.mxu0 %v1272
  %1382 = vmatpush.bf16.msra.mxu0 %v1271
  %1383 = vmatpush.bf16.msra.mxu0 %v1270
  %1384 = vmatpush.bf16.msra.mxu0 %v1269
  %1385 = vmatpush.bf16.msra.mxu0 %v1268
  %1386 = vmatpush.bf16.msra.mxu0 %v1267
  %1387 = vmatmul.bf16.gmra.mxu0 %v1042
  %v1388 = vpop.f32.mrf.mxu0
  %v1389 = vadd.f32 %v1365, %v1388
  %v1390 = vpop.f32.mrf.mxu0
  %v1391 = vadd.f32 %v1367, %v1390
  %1392 = vmatmul.bf16.gmra.mxu0 %v1046
  %v1393 = vpop.f32.mrf.mxu0
  %v1394 = vadd.f32 %v1370, %v1393
  %v1395 = vpop.f32.mrf.mxu0
  %v1396 = vadd.f32 %v1372, %v1395
  %1397 = vmatmul.bf16.gmra.mxu0 %v1050
  %v1398 = vpop.f32.mrf.mxu0
  %v1399 = vadd.f32 %v1375, %v1398
  %v1400 = vpop.f32.mrf.mxu0
  %v1401 = vadd.f32 %v1377, %v1400
  %1402 = vdwg.mxu0
  %v1403 = vadd.f32 %v1033, %v1389
  %v1404 = vadd.f32 %v1034, %v1391
  %v1405 = vadd.f32 %v1035, %v1394
  %v1406 = vadd.f32 %v1036, %v1396
  %v1407 = vadd.f32 %v1037, %v1399
  %v1408 = vadd.f32 %v1038, %v1401
  %1409 = vst [vmem:[#allocation3] sm:$0xff] %v1403
  %1410 = vst [vmem:[#allocation3 + $0x8] sm:$0xff] %v1404
  %1411 = vst [vmem:[#allocation3 + $0x10] sm:$0xff] %v1405
  %1412 = vst [vmem:[#allocation3 + $0x18] sm:$0xff] %v1406
  %1413 = vst [vmem:[#allocation3 + $0x20] sm:$0xff] %v1407
  %1414 = vst [vmem:[#allocation3 + $0x28] sm:$0xff] %v1408
  // Predicated region
  $region34: #{_lambda_.21} parent=0 // pred_check
    %p1415 = pneg %p26
  $region35: #{_lambda_.21} parent=0 // pred_check_branch
    %1417 = sbr.rel (%p1415) target = $region37
  $region36: #{_lambda_.21} parent=0 // pred_region
    %v1418 = vld [vmem:[#allocation3] sm:$0xff]
    %v1419 = vld [vmem:[#allocation3 + $0x8] sm:$0xff]
    %v1420 = vld [vmem:[#allocation3 + $0x10] sm:$0xff]
    %v1421 = vld [vmem:[#allocation3 + $0x18] sm:$0xff]
    %v1422 = vld [vmem:[#allocation3 + $0x20] sm:$0xff]
    %v1423 = vld [vmem:[#allocation3 + $0x28] sm:$0xff]
    %v1424 = vld [vmem:[%s6] sm:$0x1]
    %v1426 = vperm.slane %v1424, 0
    %v1428 = vadd.f32 %v1418, %v1426
    %v1429 = vadd.f32 %v1419, %v1426
    %v1430 = vadd.f32 %v1420, %v1426
    %v1431 = vadd.f32 %v1421, %v1426
    %v1432 = vadd.f32 %v1422, %v1426
    %v1433 = vadd.f32 %v1423, %v1426
    %v1434 = vld [vmem:[%s0] sm:$0xf]
    %v1435 = vld [vmem:[%s0 + $0x4] sm:$0xf]
    %v1436 = vld [vmem:[%s0 + $0x8] sm:$0xf]
    %v1437 = vld [vmem:[%s0 + $0xc] sm:$0xf]
    %v1438 = vld [vmem:[%s0 + $0x10] sm:$0xf]
    %v1439 = vld [vmem:[%s0 + $0x14] sm:$0xf]
    %v1440 = vunpack.c.l.bf16 %v1434
    %v1441 = vunpack.c.l.bf16 %v1435
    %v1442 = vunpack.c.l.bf16 %v1436
    %v1443 = vunpack.c.l.bf16 %v1437
    %v1444 = vunpack.c.l.bf16 %v1438
    %v1445 = vunpack.c.l.bf16 %v1439
    %v1446 = vadd.f32 %v1428, %v1440
    %v1447 = vadd.f32 %v1429, %v1441
    %v1448 = vadd.f32 %v1430, %v1442
    %v1449 = vadd.f32 %v1431, %v1443
    %v1450 = vadd.f32 %v1432, %v1444
    %v1451 = vadd.f32 %v1433, %v1445
    %v1452 = vpack.c.bf16 %v1446, %v1446
    %v1453 = vpack.c.bf16 %v1447, %v1447
    %v1454 = vpack.c.bf16 %v1448, %v1448
    %v1455 = vpack.c.bf16 %v1449, %v1449
    %v1456 = vpack.c.bf16 %v1450, %v1450
    %v1457 = vpack.c.bf16 %v1451, %v1451
    %1458 = vst [vmem:[%s7] sm:$0xf] %v1452
    %1459 = vst [vmem:[%s7 + $0x4] sm:$0xf] %v1453
    %1460 = vst [vmem:[%s7 + $0x8] sm:$0xf] %v1454
    %1461 = vst [vmem:[%s7 + $0xc] sm:$0xf] %v1455
    %1462 = vst [vmem:[%s7 + $0x10] sm:$0xf] %v1456
    %1463 = vst [vmem:[%s7 + $0x14] sm:$0xf] %v1457
  $region37: #{_lambda_.21} parent=0 // pred_fallthru
    _
  // Predicated region
  $region38: #{_lambda_.21} parent=0 // pred_check
    _
  $region39: #{_lambda_.21} parent=0 // pred_check_branch
    %1465 = sbr.rel (0) target = $region41
  $region40: #{_lambda_.21} parent=0 // pred_region
    _
  $region41: #{_lambda_.21} parent=0 // pred_fallthru
    _
  // Predicated region
  $region42: #{_lambda_.21} parent=0 // pred_check
    _
  $region43: #{_lambda_.21} parent=0 // pred_check_branch
    %1467 = sbr.rel (0) target = $region45
  $region44: #{_lambda_.21} parent=0 // pred_region
    _
  $region45: #{_lambda_.21} parent=0 // pred_fallthru
    _

</llo_original>
